<compile_context>
chip_gen: v7x
topology: tpu7x:2x2x1
jax: 0.10.0
libtpu: 0.0.40
codegen_flags: <defaults>
</compile_context>

<pallas_src>
import functools
import math

import numpy as np

import jax
import jax.numpy as jnp
from jax import lax
from jax.experimental import pallas as pl
from jax.experimental.pallas import tpu as pltpu


# --------------------------- in-kernel building blocks ---------------------------

def _act(y, act):
    if act == "relu":
        return jnp.maximum(y, 0.0)
    if act == "sigmoid":
        return jax.nn.sigmoid(y)
    return y  # "none"


def _make_tap_masks(H, W):
    """Hoisted boolean border masks for all 9 (dy, dx) taps of a flattened (H, W) map."""
    P = H * W
    idx = lax.broadcasted_iota(jnp.int32, (1, P), 1)
    col = jnp.bitwise_and(idx, W - 1) if (W & (W - 1)) == 0 else lax.rem(idx, W)
    row_ok = {-1: idx >= W, 0: None, 1: idx < (H - 1) * W}
    col_ok = {-1: col >= 1, 0: None, 1: col <= W - 2}
    masks = {}
    for dy in (-1, 0, 1):
        for dx in (-1, 0, 1):
            m, mc = row_ok[dy], col_ok[dx]
            if m is None:
                m = mc
            elif mc is not None:
                m = jnp.logical_and(m, mc)
            masks[(dy, dx)] = m
    return masks


def _tap(x, dy, dx, W, masks):
    """out[:, p] = zero_padded_x[row(p)+dy, col(p)+dx] for flattened x of shape (C, H*W)."""
    P = x.shape[1]
    d = dy * W + dx
    sh = x if d == 0 else pltpu.roll(x, (-d) % P, axis=1)
    m = masks[(dy, dx)]
    return sh if m is None else jnp.where(m, sh, 0.0)


def _avgpool3x3(x, W, masks):
    """AvgPool2d(3, stride=1, padding=1, count_include_pad=True), separable (4 rolls)."""
    h = x + _tap(x, 0, -1, W, masks) + _tap(x, 0, 1, W, masks)
    v = h + _tap(h, -1, 0, W, masks) + _tap(h, 1, 0, W, masks)
    return v * (1.0 / 9.0)


def _conv3x3(x, w_ref, b, W, masks, act):
    """3x3 'same' conv (+folded BN bias) + act, accumulated tap-by-tap on the MXU.
    No im2col buffer is materialized.  x: (Cin, P) f32; w_ref: Ref (9, Cout, Cin);
    b: (Cout, 1)."""
    y = None
    t = 0
    for dy in (-1, 0, 1):
        for dx in (-1, 0, 1):
            tap = _tap(x, dy, dx, W, masks).astype(jnp.bfloat16)
            yt = jnp.dot(w_ref[t].astype(jnp.bfloat16), tap,
                         preferred_element_type=jnp.float32)
            y = yt if y is None else y + yt
            t += 1
    return _act(y + b, act)


def _conv3x3_small(x, wcat, b, s_ref, act):
    """3x3 'same' conv on a small (<128-lane) flattened map, roll-free.
    x: (Cin, P); wcat: (9*Cout, Cin) tap-major stack of the 9 per-tap weights;
    s_ref: Ref (9*P, P) bf16 0/1 tap-selection matrices (zero-padding baked in).
    y = sum_t (W_t @ x) @ S_t  -> 1 + 9 tiny MXU dots, all on the idle MXU."""
    P = x.shape[1]
    cout = b.shape[0]
    z = jnp.dot(wcat.astype(jnp.bfloat16), x.astype(jnp.bfloat16),
                preferred_element_type=jnp.float32)            # (9*Cout, P): W_t @ x, all taps
    y = None
    for t in range(9):
        zt = z[t * cout:(t + 1) * cout, :].astype(jnp.bfloat16)
        yt = jnp.dot(zt, s_ref[pl.ds(t * P, P), :],
                     preferred_element_type=jnp.float32)       # shift + zero-pad via 0/1 matrix
        y = yt if y is None else y + yt
    return _act(y + b, act)


def _conv1x1_acc(x, w, y=None):
    """Accumulate w @ x on the VPU (Cin <= 16 everywhere here -> skip the MXU)."""
    for c in range(x.shape[0]):
        t = w[:, c:c + 1] * x[c:c + 1, :]
        y = t if y is None else y + t
    return y


def _conv1x1(x, w, b, act):
    """1x1 conv (+folded BN bias) + act.  x: (Cin, P); w: (Cout, Cin); b: (Cout, 1)."""
    return _act(_conv1x1_acc(x, w) + b, act)


# -------------------------------- the fused kernel --------------------------------

def _detail_kernel(img_ref, f_ref, bf_ref,
                   s4_ref, s8_ref, u48_ref, u816_ref,
                   fw0_ref, fb0_ref, fw1_ref, fb1_ref, fw2_ref, fb2_ref,
                   iw_ref, ib_ref,
                   inw_ref, inb_ref, midw_ref, midb_ref, eew_ref, eeb_ref,
                   mow_ref, mob_ref,
                   gw0_ref, gb0_ref, gw1_ref, gb1_ref, outw_ref, outb_ref,
                   o_ref, *, H, W, width):
    masks = _make_tap_masks(H, W)                                         # hoisted once/step

    # ---- feature_upsample branch: conv@H/4 -> up2x -> conv@H/2 -> up2x -> conv@H ----
    x0 = jnp.concatenate([f_ref[0], bf_ref[0]], axis=0)                   # channel concat
    y4 = _conv3x3_small(x0, fw0_ref[...], fb0_ref[...], s4_ref, "relu")
    x8 = jnp.dot(y4.astype(jnp.bfloat16), u48_ref[...],
                 preferred_element_type=jnp.float32)                      # bilinear up 2x
    y8 = _conv3x3_small(x8, fw1_ref[...], fb1_ref[...], s8_ref, "relu")
    x16 = jnp.dot(y8.astype(jnp.bfloat16), u816_ref[...],
                  preferred_element_type=jnp.float32)                     # bilinear up 2x
    f16 = _conv3x3(x16, fw2_ref, fb2_ref[...], W, masks, "relu")          # 3rd feature conv

    # ---- img branch: img_in conv3x3 + MEEM (width branches) + residual ----
    imgc = _conv3x3(img_ref[0], iw_ref, ib_ref[...], W, masks, "relu")
    mid = _conv1x1(imgc, inw_ref[...], inb_ref[...], "sigmoid")           # MEEM in_conv
    outs = [mid]
    for i in range(width - 1):
        mid = _avgpool3x3(mid, W, masks)
        mid = _conv1x1(mid, midw_ref[i], midb_ref[i], "sigmoid")          # mid_conv[i]
        edge = mid - _avgpool3x3(mid, W, masks)                           # EdgeEnhancer
        edge = _conv1x1(edge, eew_ref[i], eeb_ref[i], "sigmoid")
        outs.append(mid + edge)
    y = None
    for i in range(width):                                                # MEEM out_conv on the
        y = _conv1x1_acc(outs[i], mow_ref[i], y)                          # branch concat (VPU)
    imgf = _act(y + mob_ref[...], "relu") + imgc                          # MEEM residual

    # ---- fusion head ----
    cat = jnp.concatenate([f16, imgf], axis=0)
    z = _conv3x3(cat, gw0_ref, gb0_ref[...], W, masks, "relu")
    z = _conv3x3(z, gw1_ref, gb1_ref[...], W, masks, "relu")
    o_ref[0] = _conv1x1(z, outw_ref[...], outb_ref[...], "none")          # 1x1 (+bias), lane-dense


# ------------------------ static (constant) spatial operators ------------------------

def _upsample1d_op(n):
    """1D 2x bilinear (align_corners=False) operator, shape (2n, n)."""
    a = np.zeros((2 * n, n), np.float32)
    for j in range(n):
        a[2 * j, j] += 0.75
        a[2 * j, max(j - 1, 0)] += 0.25
        a[2 * j + 1, j] += 0.75
        a[2 * j + 1, min(j + 1, n - 1)] += 0.25
    return a


@functools.lru_cache(maxsize=None)
def _static_operators(hf, wf):
    """Constants for the low-res feature branch (numpy, cached per shape):
    tap-selection stacks (9*P, P) with zero 'same'-padding baked in, and the
    flattened 2x bilinear upsample operators (P, 4*P)."""
    def sel_stack(h, w):
        p = h * w
        mats = []
        for dy in (-1, 0, 1):
            for dx in (-1, 0, 1):
                s = np.zeros((p, p), np.float32)
                for r in range(h):
                    for c in range(w):
                        rr, cc = r + dy, c + dx
                        if 0 <= rr < h and 0 <= cc < w:
                            s[rr * w + cc, r * w + c] = 1.0
                mats.append(s)
        return np.concatenate(mats, axis=0)                               # (9p, p)

    def up_op(h, w):
        return np.kron(_upsample1d_op(h), _upsample1d_op(w)).T.copy()     # (hw, 4hw)

    return (sel_stack(hf, wf), sel_stack(2 * hf, 2 * wf),
            up_op(hf, wf), up_op(2 * hf, 2 * wf))


# --------------------------------- kernel wrapper ---------------------------------

def _full_spec(a):
    nd = a.ndim
    return pl.BlockSpec(a.shape, lambda n, _nd=nd: (0,) * _nd)


def detail_enhancement_forward(p, img, feature, b_feature):
    """img: (N, 3, H, W); feature/b_feature: (N, F, H/4, W/4) -> (N, 1, H, W)."""
    N, Ci, H, W = img.shape
    _, F, Hf, Wf = feature.shape
    assert (H, W) == (4 * Hf, 4 * Wf) and b_feature.shape == feature.shape
    P = H * W
    cin_pad = p["img_in_w"].shape[2]           # img channels zero-padded for sublane alignment
    if cin_pad != Ci:
        img = jnp.pad(img, ((0, 0), (0, cin_pad - Ci), (0, 0), (0, 0)))
    img = img.reshape(N, cin_pad, P)
    f = feature.reshape(N, F, Hf * Wf)
    bf = b_feature.reshape(N, F, Hf * Wf)

    s4, s8, u48, u816 = (jnp.asarray(a, jnp.bfloat16)
                         for a in _static_operators(Hf, Wf))
    width = p["meem_mid_w"].shape[0] + 1
    weights = (s4, s8, u48, u816,
               p["feat_w0"], p["feat_b0"], p["feat_w1"], p["feat_b1"],
               p["feat_w2"], p["feat_b2"], p["img_in_w"], p["img_in_b"],
               p["meem_in_w"], p["meem_in_b"],
               p["meem_mid_w"], p["meem_mid_b"], p["meem_ee_w"], p["meem_ee_b"],
               p["meem_out_w"], p["meem_out_b"],
               p["fus_w0"], p["fus_b0"], p["fus_w1"], p["fus_b1"],
               p["out_w"], p["out_b"])

    out = pl.pallas_call(
        functools.partial(_detail_kernel, H=H, W=W, width=width),
        out_shape=jax.ShapeDtypeStruct((N, 1, P), jnp.float32),
        grid=(N,),
        in_specs=[pl.BlockSpec((1, cin_pad, P), lambda n: (n, 0, 0)),
                  pl.BlockSpec((1, F, Hf * Wf), lambda n: (n, 0, 0)),
                  pl.BlockSpec((1, F, Hf * Wf), lambda n: (n, 0, 0))]
                 + [_full_spec(a) for a in weights],
        out_specs=pl.BlockSpec((1, 1, P), lambda n: (n, 0, 0)),
        compiler_params=pltpu.CompilerParams(dimension_semantics=("parallel",)),
    )(img, f, bf, *weights)
    return out.reshape(N, 1, H, W)


# ------------------------------- parameter setup -------------------------------

class _KeyGen:
    def __init__(self, key):
        self._key = key

    def __call__(self):
        self._key, sub = jax.random.split(self._key)
        return sub


def init_params(key, img_dim, feature_dim):
    """Random weights; eval-mode BatchNorm folded into conv weight/bias."""
    kg = _KeyGen(key)

    def bn_fold(c):
        g = jax.random.uniform(kg(), (c,), minval=0.5, maxval=1.5)
        beta = jax.random.normal(kg(), (c,)) * 0.1
        mean = jax.random.normal(kg(), (c,)) * 0.1
        var = jax.random.uniform(kg(), (c,), minval=0.5, maxval=1.5)
        s = g / jnp.sqrt(var + 1e-5)
        return s, beta - mean * s

    def conv3_w(cin, cout):
        w = jax.random.normal(kg(), (cout, 3, 3, cin)) / math.sqrt(9 * cin)
        s, b = bn_fold(cout)
        return w * s[:, None, None, None], b.reshape(cout, 1).astype(jnp.float32)

    def conv3_bn_taps(cin, cout, cin_pad=None):
        """(9, Cout, Cin) tap-major layout for the per-tap MXU accumulation path."""
        w, b = conv3_w(cin, cout)
        if cin_pad is not None and cin_pad != cin:
            w = jnp.pad(w, ((0, 0), (0, 0), (0, 0), (0, cin_pad - cin)))
            cin = cin_pad
        w = w.reshape(cout, 9, cin).transpose(1, 0, 2)
        return w.astype(jnp.float32), b

    def conv3_bn_zcat(cin, cout):
        """(9*Cout, Cin) stacked layout: one dot yields W_t @ x for all 9 taps."""
        w, b = conv3_w(cin, cout)
        w = w.reshape(cout, 9, cin).transpose(1, 0, 2).reshape(9 * cout, cin)
        return w.astype(jnp.float32), b

    def conv1_bn(cin, cout):
        w = jax.random.normal(kg(), (cout, cin)) / math.sqrt(cin)
        s, b = bn_fold(cout)
        return ((w * s[:, None]).astype(jnp.float32),
                b.reshape(cout, 1).astype(jnp.float32))

    hid, width = img_dim // 2, 4
    p = {}
    # feature_upsample branch (2 low-res convs use the zcat layout, the 16x16 one taps)
    p["feat_w0"], p["feat_b0"] = conv3_bn_zcat(2 * feature_dim, feature_dim)
    p["feat_w1"], p["feat_b1"] = conv3_bn_zcat(feature_dim, feature_dim)
    p["feat_w2"], p["feat_b2"] = conv3_bn_taps(feature_dim, feature_dim)
    # img_in_conv (3 input channels zero-padded to 8 for sublane alignment)
    p["img_in_w"], p["img_in_b"] = conv3_bn_taps(3, img_dim, cin_pad=8)
    # MEEM
    p["meem_in_w"], p["meem_in_b"] = conv1_bn(img_dim, hid)
    mw, mb, ew, eb = [], [], [], []
    for _ in range(width - 1):
        w, b = conv1_bn(hid, hid); mw.append(w); mb.append(b)
        w, b = conv1_bn(hid, hid); ew.append(w); eb.append(b)
    p["meem_mid_w"], p["meem_mid_b"] = jnp.stack(mw), jnp.stack(mb)
    p["meem_ee_w"], p["meem_ee_b"] = jnp.stack(ew), jnp.stack(eb)
    ow, ob = conv1_bn(hid * width, img_dim)
    p["meem_out_w"] = ow.reshape(img_dim, width, hid).transpose(1, 0, 2)   # (width, img_dim, hid)
    p["meem_out_b"] = ob
    # fusion head
    p["fus_w0"], p["fus_b0"] = conv3_bn_taps(feature_dim + img_dim, 32)
    p["fus_w1"], p["fus_b1"] = conv3_bn_taps(32, 16)
    # final out conv: Conv2d(16, 1, 1) with bias, no norm / no act
    p["out_w"] = (jax.random.normal(kg(), (1, 16)) / math.sqrt(16)).astype(jnp.float32)
    p["out_b"] = (jax.random.normal(kg(), (1, 1)) * 0.1).astype(jnp.float32)
    return p


# ------------------------------------ main ------------------------------------

if __name__ == "__main__":
    img_dim, feature_dim = 8, 8
    key = jax.random.PRNGKey(0)
    kp, ki, kf, kb = jax.random.split(key, 4)

    params = init_params(kp, img_dim, feature_dim)
    img = jax.random.normal(ki, (2, 3, 16, 16), jnp.float32)
    feature = jax.random.normal(kf, (2, feature_dim, 4, 4), jnp.float32)
    b_feature = jax.random.normal(kb, (2, feature_dim, 4, 4), jnp.float32)

    fwd = jax.jit(functools.partial(detail_enhancement_forward, params))
    out = fwd(img, feature, b_feature)
    jax.block_until_ready(out)
    assert out.shape == (2, 1, 16, 16), out.shape
    assert bool(jnp.all(jnp.isfinite(out)))
    print("KERNEL_OK")
</pallas_src>

<mosaic_0001>
module attributes {stable_mosaic.version = 11 : i64} {
  func.func @_detail_kernel(%arg0: i32, %arg1: memref<1x8x256xf32, #tpu.memory_space<vmem>>, %arg2: memref<1x8x16xf32, #tpu.memory_space<vmem>>, %arg3: memref<1x8x16xf32, #tpu.memory_space<vmem>>, %arg4: memref<144x16xbf16, #tpu.memory_space<vmem>>, %arg5: memref<576x64xbf16, #tpu.memory_space<vmem>>, %arg6: memref<16x64xbf16, #tpu.memory_space<vmem>>, %arg7: memref<64x256xbf16, #tpu.memory_space<vmem>>, %arg8: memref<72x16xf32, #tpu.memory_space<vmem>>, %arg9: memref<8x1xf32, #tpu.memory_space<vmem>>, %arg10: memref<72x8xf32, #tpu.memory_space<vmem>>, %arg11: memref<8x1xf32, #tpu.memory_space<vmem>>, %arg12: memref<9x8x8xf32, #tpu.memory_space<vmem>>, %arg13: memref<8x1xf32, #tpu.memory_space<vmem>>, %arg14: memref<9x8x8xf32, #tpu.memory_space<vmem>>, %arg15: memref<8x1xf32, #tpu.memory_space<vmem>>, %arg16: memref<4x8xf32, #tpu.memory_space<vmem>>, %arg17: memref<4x1xf32, #tpu.memory_space<vmem>>, %arg18: memref<3x4x4xf32, #tpu.memory_space<vmem>>, %arg19: memref<3x4x1xf32, #tpu.memory_space<vmem>>, %arg20: memref<3x4x4xf32, #tpu.memory_space<vmem>>, %arg21: memref<3x4x1xf32, #tpu.memory_space<vmem>>, %arg22: memref<4x8x4xf32, #tpu.memory_space<vmem>>, %arg23: memref<8x1xf32, #tpu.memory_space<vmem>>, %arg24: memref<9x32x16xf32, #tpu.memory_space<vmem>>, %arg25: memref<32x1xf32, #tpu.memory_space<vmem>>, %arg26: memref<9x16x32xf32, #tpu.memory_space<vmem>>, %arg27: memref<16x1xf32, #tpu.memory_space<vmem>>, %arg28: memref<1x16xf32, #tpu.memory_space<vmem>>, %arg29: memref<1x1xf32, #tpu.memory_space<vmem>>, %arg30: memref<1x1x256xf32, #tpu.memory_space<vmem>>) attributes {dimension_semantics = [#tpu.dimension_semantics<parallel>], iteration_bounds = array<i64: 2>, scalar_prefetch = 0 : i64, scratch_operands = 0 : i64, tpu.core_type = #tpu.core_type<tc>, window_params = [{transform_indices = @transform_0, window_bounds = array<i64: 1, 8, 256>}, {transform_indices = @transform_1, window_bounds = array<i64: 1, 8, 16>}, {transform_indices = @transform_2, window_bounds = array<i64: 1, 8, 16>}, {pipeline_mode = #tpu.pipeline_mode<synchronous>, transform_indices = @transform_3, window_bounds = array<i64: 144, 16>}, {pipeline_mode = #tpu.pipeline_mode<synchronous>, transform_indices = @transform_4, window_bounds = array<i64: 576, 64>}, {pipeline_mode = #tpu.pipeline_mode<synchronous>, transform_indices = @transform_5, window_bounds = array<i64: 16, 64>}, {pipeline_mode = #tpu.pipeline_mode<synchronous>, transform_indices = @transform_6, window_bounds = array<i64: 64, 256>}, {pipeline_mode = #tpu.pipeline_mode<synchronous>, transform_indices = @transform_7, window_bounds = array<i64: 72, 16>}, {pipeline_mode = #tpu.pipeline_mode<synchronous>, transform_indices = @transform_8, window_bounds = array<i64: 8, 1>}, {pipeline_mode = #tpu.pipeline_mode<synchronous>, transform_indices = @transform_9, window_bounds = array<i64: 72, 8>}, {pipeline_mode = #tpu.pipeline_mode<synchronous>, transform_indices = @transform_10, window_bounds = array<i64: 8, 1>}, {pipeline_mode = #tpu.pipeline_mode<synchronous>, transform_indices = @transform_11, window_bounds = array<i64: 9, 8, 8>}, {pipeline_mode = #tpu.pipeline_mode<synchronous>, transform_indices = @transform_12, window_bounds = array<i64: 8, 1>}, {pipeline_mode = #tpu.pipeline_mode<synchronous>, transform_indices = @transform_13, window_bounds = array<i64: 9, 8, 8>}, {pipeline_mode = #tpu.pipeline_mode<synchronous>, transform_indices = @transform_14, window_bounds = array<i64: 8, 1>}, {pipeline_mode = #tpu.pipeline_mode<synchronous>, transform_indices = @transform_15, window_bounds = array<i64: 4, 8>}, {pipeline_mode = #tpu.pipeline_mode<synchronous>, transform_indices = @transform_16, window_bounds = array<i64: 4, 1>}, {pipeline_mode = #tpu.pipeline_mode<synchronous>, transform_indices = @transform_17, window_bounds = array<i64: 3, 4, 4>}, {pipeline_mode = #tpu.pipeline_mode<synchronous>, transform_indices = @transform_18, window_bounds = array<i64: 3, 4, 1>}, {pipeline_mode = #tpu.pipeline_mode<synchronous>, transform_indices = @transform_19, window_bounds = array<i64: 3, 4, 4>}, {pipeline_mode = #tpu.pipeline_mode<synchronous>, transform_indices = @transform_20, window_bounds = array<i64: 3, 4, 1>}, {pipeline_mode = #tpu.pipeline_mode<synchronous>, transform_indices = @transform_21, window_bounds = array<i64: 4, 8, 4>}, {pipeline_mode = #tpu.pipeline_mode<synchronous>, transform_indices = @transform_22, window_bounds = array<i64: 8, 1>}, {pipeline_mode = #tpu.pipeline_mode<synchronous>, transform_indices = @transform_23, window_bounds = array<i64: 9, 32, 16>}, {pipeline_mode = #tpu.pipeline_mode<synchronous>, transform_indices = @transform_24, window_bounds = array<i64: 32, 1>}, {pipeline_mode = #tpu.pipeline_mode<synchronous>, transform_indices = @transform_25, window_bounds = array<i64: 9, 16, 32>}, {pipeline_mode = #tpu.pipeline_mode<synchronous>, transform_indices = @transform_26, window_bounds = array<i64: 16, 1>}, {pipeline_mode = #tpu.pipeline_mode<synchronous>, transform_indices = @transform_27, window_bounds = array<i64: 1, 16>}, {pipeline_mode = #tpu.pipeline_mode<synchronous>, transform_indices = @transform_28, window_bounds = array<i64: 1, 1>}, {transform_indices = @transform_29, window_bounds = array<i64: 1, 1, 256>}]} {
    %0 = tpu.iota {dimensions = array<i32: 1>} : vector<1x256xi32>
    %c15_i32 = arith.constant 15 : i32
    %1 = vector.broadcast %c15_i32 : i32 to vector<1x256xi32>
    %2 = arith.andi %0, %1 : vector<1x256xi32>
    %c16_i32 = arith.constant 16 : i32
    %3 = vector.broadcast %c16_i32 : i32 to vector<1x256xi32>
    %4 = arith.cmpi sge, %0, %3 : vector<1x256xi32>
    %c240_i32 = arith.constant 240 : i32
    %5 = vector.broadcast %c240_i32 : i32 to vector<1x256xi32>
    %6 = arith.cmpi slt, %0, %5 : vector<1x256xi32>
    %c1_i32 = arith.constant 1 : i32
    %7 = vector.broadcast %c1_i32 : i32 to vector<1x256xi32>
    %8 = arith.cmpi sge, %2, %7 : vector<1x256xi32>
    %c14_i32 = arith.constant 14 : i32
    %9 = vector.broadcast %c14_i32 : i32 to vector<1x256xi32>
    %10 = arith.cmpi sle, %2, %9 : vector<1x256xi32>
    %11 = arith.andi %4, %8 : vector<1x256xi1>
    %12 = arith.andi %4, %10 : vector<1x256xi1>
    %13 = arith.andi %6, %8 : vector<1x256xi1>
    %14 = arith.andi %6, %10 : vector<1x256xi1>
    %c0 = arith.constant 0 : index
    %c0_0 = arith.constant 0 : index
    %c0_1 = arith.constant 0 : index
    %15 = vector.load %arg2[%c0, %c0_0, %c0_1] : memref<1x8x16xf32, #tpu.memory_space<vmem>>, vector<1x8x16xf32>
    %16 = vector.shape_cast %15 : vector<1x8x16xf32> to vector<8x16xf32>
    %c0_2 = arith.constant 0 : index
    %c0_3 = arith.constant 0 : index
    %c0_4 = arith.constant 0 : index
    %17 = vector.load %arg3[%c0_2, %c0_3, %c0_4] : memref<1x8x16xf32, #tpu.memory_space<vmem>>, vector<1x8x16xf32>
    %18 = vector.shape_cast %17 : vector<1x8x16xf32> to vector<8x16xf32>
    %19 = tpu.concatenate %16, %18 in 0 : vector<8x16xf32>, vector<8x16xf32> -> vector<16x16xf32>
    %c0_5 = arith.constant 0 : index
    %c0_6 = arith.constant 0 : index
    %20 = vector.load %arg8[%c0_5, %c0_6] : memref<72x16xf32, #tpu.memory_space<vmem>>, vector<72x16xf32>
    %c0_7 = arith.constant 0 : index
    %c0_8 = arith.constant 0 : index
    %21 = vector.load %arg9[%c0_7, %c0_8] : memref<8x1xf32, #tpu.memory_space<vmem>>, vector<8x1xf32>
    %22 = arith.truncf %20 : vector<72x16xf32> to vector<72x16xbf16>
    %23 = arith.truncf %19 : vector<16x16xf32> to vector<16x16xbf16>
    %cst = arith.constant dense<0.000000e+00> : vector<72x16xf32>
    %24 = tpu.matmul %22, %23, %cst {dimension_numbers = #tpu.dot_dimension_numbers<[1], [0], [0], [1], [0, 0, 1, 1], [], []>} : vector<72x16xbf16>, vector<16x16xbf16>, vector<72x16xf32> -> vector<72x16xf32>
    %25 = vector.extract_strided_slice %24 {offsets = [0, 0], sizes = [8, 16], strides = [1, 1]} : vector<72x16xf32> to vector<8x16xf32>
    %26 = arith.truncf %25 : vector<8x16xf32> to vector<8x16xbf16>
    %c0_9 = arith.constant 0 : index
    %c0_10 = arith.constant 0 : index
    %27 = vector.load %arg4[%c0_9, %c0_10] : memref<144x16xbf16, #tpu.memory_space<vmem>>, vector<16x16xbf16>
    %cst_11 = arith.constant dense<0.000000e+00> : vector<8x16xf32>
    %28 = tpu.matmul %26, %27, %cst_11 {dimension_numbers = #tpu.dot_dimension_numbers<[1], [0], [0], [1], [0, 0, 1, 1], [], []>} : vector<8x16xbf16>, vector<16x16xbf16>, vector<8x16xf32> -> vector<8x16xf32>
    %29 = vector.extract_strided_slice %24 {offsets = [8, 0], sizes = [8, 16], strides = [1, 1]} : vector<72x16xf32> to vector<8x16xf32>
    %30 = arith.truncf %29 : vector<8x16xf32> to vector<8x16xbf16>
    %c16 = arith.constant 16 : index
    %c0_12 = arith.constant 0 : index
    %31 = vector.load %arg4[%c16, %c0_12] : memref<144x16xbf16, #tpu.memory_space<vmem>>, vector<16x16xbf16>
    %cst_13 = arith.constant dense<0.000000e+00> : vector<8x16xf32>
    %32 = tpu.matmul %30, %31, %cst_13 {dimension_numbers = #tpu.dot_dimension_numbers<[1], [0], [0], [1], [0, 0, 1, 1], [], []>} : vector<8x16xbf16>, vector<16x16xbf16>, vector<8x16xf32> -> vector<8x16xf32>
    %33 = arith.addf %28, %32 : vector<8x16xf32>
    %34 = vector.extract_strided_slice %24 {offsets = [16, 0], sizes = [8, 16], strides = [1, 1]} : vector<72x16xf32> to vector<8x16xf32>
    %35 = arith.truncf %34 : vector<8x16xf32> to vector<8x16xbf16>
    %c32 = arith.constant 32 : index
    %c0_14 = arith.constant 0 : index
    %36 = vector.load %arg4[%c32, %c0_14] : memref<144x16xbf16, #tpu.memory_space<vmem>>, vector<16x16xbf16>
    %cst_15 = arith.constant dense<0.000000e+00> : vector<8x16xf32>
    %37 = tpu.matmul %35, %36, %cst_15 {dimension_numbers = #tpu.dot_dimension_numbers<[1], [0], [0], [1], [0, 0, 1, 1], [], []>} : vector<8x16xbf16>, vector<16x16xbf16>, vector<8x16xf32> -> vector<8x16xf32>
    %38 = arith.addf %33, %37 : vector<8x16xf32>
    %39 = vector.extract_strided_slice %24 {offsets = [24, 0], sizes = [8, 16], strides = [1, 1]} : vector<72x16xf32> to vector<8x16xf32>
    %40 = arith.truncf %39 : vector<8x16xf32> to vector<8x16xbf16>
    %c48 = arith.constant 48 : index
    %c0_16 = arith.constant 0 : index
    %41 = vector.load %arg4[%c48, %c0_16] : memref<144x16xbf16, #tpu.memory_space<vmem>>, vector<16x16xbf16>
    %cst_17 = arith.constant dense<0.000000e+00> : vector<8x16xf32>
    %42 = tpu.matmul %40, %41, %cst_17 {dimension_numbers = #tpu.dot_dimension_numbers<[1], [0], [0], [1], [0, 0, 1, 1], [], []>} : vector<8x16xbf16>, vector<16x16xbf16>, vector<8x16xf32> -> vector<8x16xf32>
    %43 = arith.addf %38, %42 : vector<8x16xf32>
    %44 = vector.extract_strided_slice %24 {offsets = [32, 0], sizes = [8, 16], strides = [1, 1]} : vector<72x16xf32> to vector<8x16xf32>
    %45 = arith.truncf %44 : vector<8x16xf32> to vector<8x16xbf16>
    %c64 = arith.constant 64 : index
    %c0_18 = arith.constant 0 : index
    %46 = vector.load %arg4[%c64, %c0_18] : memref<144x16xbf16, #tpu.memory_space<vmem>>, vector<16x16xbf16>
    %cst_19 = arith.constant dense<0.000000e+00> : vector<8x16xf32>
    %47 = tpu.matmul %45, %46, %cst_19 {dimension_numbers = #tpu.dot_dimension_numbers<[1], [0], [0], [1], [0, 0, 1, 1], [], []>} : vector<8x16xbf16>, vector<16x16xbf16>, vector<8x16xf32> -> vector<8x16xf32>
    %48 = arith.addf %43, %47 : vector<8x16xf32>
    %49 = vector.extract_strided_slice %24 {offsets = [40, 0], sizes = [8, 16], strides = [1, 1]} : vector<72x16xf32> to vector<8x16xf32>
    %50 = arith.truncf %49 : vector<8x16xf32> to vector<8x16xbf16>
    %c80 = arith.constant 80 : index
    %c0_20 = arith.constant 0 : index
    %51 = vector.load %arg4[%c80, %c0_20] : memref<144x16xbf16, #tpu.memory_space<vmem>>, vector<16x16xbf16>
    %cst_21 = arith.constant dense<0.000000e+00> : vector<8x16xf32>
    %52 = tpu.matmul %50, %51, %cst_21 {dimension_numbers = #tpu.dot_dimension_numbers<[1], [0], [0], [1], [0, 0, 1, 1], [], []>} : vector<8x16xbf16>, vector<16x16xbf16>, vector<8x16xf32> -> vector<8x16xf32>
    %53 = arith.addf %48, %52 : vector<8x16xf32>
    %54 = vector.extract_strided_slice %24 {offsets = [48, 0], sizes = [8, 16], strides = [1, 1]} : vector<72x16xf32> to vector<8x16xf32>
    %55 = arith.truncf %54 : vector<8x16xf32> to vector<8x16xbf16>
    %c96 = arith.constant 96 : index
    %c0_22 = arith.constant 0 : index
    %56 = vector.load %arg4[%c96, %c0_22] : memref<144x16xbf16, #tpu.memory_space<vmem>>, vector<16x16xbf16>
    %cst_23 = arith.constant dense<0.000000e+00> : vector<8x16xf32>
    %57 = tpu.matmul %55, %56, %cst_23 {dimension_numbers = #tpu.dot_dimension_numbers<[1], [0], [0], [1], [0, 0, 1, 1], [], []>} : vector<8x16xbf16>, vector<16x16xbf16>, vector<8x16xf32> -> vector<8x16xf32>
    %58 = arith.addf %53, %57 : vector<8x16xf32>
    %59 = vector.extract_strided_slice %24 {offsets = [56, 0], sizes = [8, 16], strides = [1, 1]} : vector<72x16xf32> to vector<8x16xf32>
    %60 = arith.truncf %59 : vector<8x16xf32> to vector<8x16xbf16>
    %c112 = arith.constant 112 : index
    %c0_24 = arith.constant 0 : index
    %61 = vector.load %arg4[%c112, %c0_24] : memref<144x16xbf16, #tpu.memory_space<vmem>>, vector<16x16xbf16>
    %cst_25 = arith.constant dense<0.000000e+00> : vector<8x16xf32>
    %62 = tpu.matmul %60, %61, %cst_25 {dimension_numbers = #tpu.dot_dimension_numbers<[1], [0], [0], [1], [0, 0, 1, 1], [], []>} : vector<8x16xbf16>, vector<16x16xbf16>, vector<8x16xf32> -> vector<8x16xf32>
    %63 = arith.addf %58, %62 : vector<8x16xf32>
    %64 = vector.extract_strided_slice %24 {offsets = [64, 0], sizes = [8, 16], strides = [1, 1]} : vector<72x16xf32> to vector<8x16xf32>
    %65 = arith.truncf %64 : vector<8x16xf32> to vector<8x16xbf16>
    %c128 = arith.constant 128 : index
    %c0_26 = arith.constant 0 : index
    %66 = vector.load %arg4[%c128, %c0_26] : memref<144x16xbf16, #tpu.memory_space<vmem>>, vector<16x16xbf16>
    %cst_27 = arith.constant dense<0.000000e+00> : vector<8x16xf32>
    %67 = tpu.matmul %65, %66, %cst_27 {dimension_numbers = #tpu.dot_dimension_numbers<[1], [0], [0], [1], [0, 0, 1, 1], [], []>} : vector<8x16xbf16>, vector<16x16xbf16>, vector<8x16xf32> -> vector<8x16xf32>
    %68 = arith.addf %63, %67 : vector<8x16xf32>
    %69 = vector.broadcast %21 : vector<8x1xf32> to vector<8x16xf32>
    %70 = arith.addf %68, %69 : vector<8x16xf32>
    %cst_28 = arith.constant 0.000000e+00 : f32
    %71 = vector.broadcast %cst_28 : f32 to vector<8x16xf32>
    %72 = arith.maximumf %70, %71 : vector<8x16xf32>
    %73 = arith.truncf %72 : vector<8x16xf32> to vector<8x16xbf16>
    %c0_29 = arith.constant 0 : index
    %c0_30 = arith.constant 0 : index
    %74 = vector.load %arg6[%c0_29, %c0_30] : memref<16x64xbf16, #tpu.memory_space<vmem>>, vector<16x64xbf16>
    %cst_31 = arith.constant dense<0.000000e+00> : vector<8x64xf32>
    %75 = tpu.matmul %73, %74, %cst_31 {dimension_numbers = #tpu.dot_dimension_numbers<[1], [0], [0], [1], [0, 0, 1, 1], [], []>} : vector<8x16xbf16>, vector<16x64xbf16>, vector<8x64xf32> -> vector<8x64xf32>
    %c0_32 = arith.constant 0 : index
    %c0_33 = arith.constant 0 : index
    %76 = vector.load %arg10[%c0_32, %c0_33] : memref<72x8xf32, #tpu.memory_space<vmem>>, vector<72x8xf32>
    %c0_34 = arith.constant 0 : index
    %c0_35 = arith.constant 0 : index
    %77 = vector.load %arg11[%c0_34, %c0_35] : memref<8x1xf32, #tpu.memory_space<vmem>>, vector<8x1xf32>
    %78 = arith.truncf %76 : vector<72x8xf32> to vector<72x8xbf16>
    %79 = arith.truncf %75 : vector<8x64xf32> to vector<8x64xbf16>
    %cst_36 = arith.constant dense<0.000000e+00> : vector<72x64xf32>
    %80 = tpu.matmul %78, %79, %cst_36 {dimension_numbers = #tpu.dot_dimension_numbers<[1], [0], [0], [1], [0, 0, 1, 1], [], []>} : vector<72x8xbf16>, vector<8x64xbf16>, vector<72x64xf32> -> vector<72x64xf32>
    %81 = vector.extract_strided_slice %80 {offsets = [0, 0], sizes = [8, 64], strides = [1, 1]} : vector<72x64xf32> to vector<8x64xf32>
    %82 = arith.truncf %81 : vector<8x64xf32> to vector<8x64xbf16>
    %c0_37 = arith.constant 0 : index
    %c0_38 = arith.constant 0 : index
    %83 = vector.load %arg5[%c0_37, %c0_38] : memref<576x64xbf16, #tpu.memory_space<vmem>>, vector<64x64xbf16>
    %cst_39 = arith.constant dense<0.000000e+00> : vector<8x64xf32>
    %84 = tpu.matmul %82, %83, %cst_39 {dimension_numbers = #tpu.dot_dimension_numbers<[1], [0], [0], [1], [0, 0, 1, 1], [], []>} : vector<8x64xbf16>, vector<64x64xbf16>, vector<8x64xf32> -> vector<8x64xf32>
    %85 = vector.extract_strided_slice %80 {offsets = [8, 0], sizes = [8, 64], strides = [1, 1]} : vector<72x64xf32> to vector<8x64xf32>
    %86 = arith.truncf %85 : vector<8x64xf32> to vector<8x64xbf16>
    %c64_40 = arith.constant 64 : index
    %c0_41 = arith.constant 0 : index
    %87 = vector.load %arg5[%c64_40, %c0_41] : memref<576x64xbf16, #tpu.memory_space<vmem>>, vector<64x64xbf16>
    %cst_42 = arith.constant dense<0.000000e+00> : vector<8x64xf32>
    %88 = tpu.matmul %86, %87, %cst_42 {dimension_numbers = #tpu.dot_dimension_numbers<[1], [0], [0], [1], [0, 0, 1, 1], [], []>} : vector<8x64xbf16>, vector<64x64xbf16>, vector<8x64xf32> -> vector<8x64xf32>
    %89 = arith.addf %84, %88 : vector<8x64xf32>
    %90 = vector.extract_strided_slice %80 {offsets = [16, 0], sizes = [8, 64], strides = [1, 1]} : vector<72x64xf32> to vector<8x64xf32>
    %91 = arith.truncf %90 : vector<8x64xf32> to vector<8x64xbf16>
    %c128_43 = arith.constant 128 : index
    %c0_44 = arith.constant 0 : index
    %92 = vector.load %arg5[%c128_43, %c0_44] : memref<576x64xbf16, #tpu.memory_space<vmem>>, vector<64x64xbf16>
    %cst_45 = arith.constant dense<0.000000e+00> : vector<8x64xf32>
    %93 = tpu.matmul %91, %92, %cst_45 {dimension_numbers = #tpu.dot_dimension_numbers<[1], [0], [0], [1], [0, 0, 1, 1], [], []>} : vector<8x64xbf16>, vector<64x64xbf16>, vector<8x64xf32> -> vector<8x64xf32>
    %94 = arith.addf %89, %93 : vector<8x64xf32>
    %95 = vector.extract_strided_slice %80 {offsets = [24, 0], sizes = [8, 64], strides = [1, 1]} : vector<72x64xf32> to vector<8x64xf32>
    %96 = arith.truncf %95 : vector<8x64xf32> to vector<8x64xbf16>
    %c192 = arith.constant 192 : index
    %c0_46 = arith.constant 0 : index
    %97 = vector.load %arg5[%c192, %c0_46] : memref<576x64xbf16, #tpu.memory_space<vmem>>, vector<64x64xbf16>
    %cst_47 = arith.constant dense<0.000000e+00> : vector<8x64xf32>
    %98 = tpu.matmul %96, %97, %cst_47 {dimension_numbers = #tpu.dot_dimension_numbers<[1], [0], [0], [1], [0, 0, 1, 1], [], []>} : vector<8x64xbf16>, vector<64x64xbf16>, vector<8x64xf32> -> vector<8x64xf32>
    %99 = arith.addf %94, %98 : vector<8x64xf32>
    %100 = vector.extract_strided_slice %80 {offsets = [32, 0], sizes = [8, 64], strides = [1, 1]} : vector<72x64xf32> to vector<8x64xf32>
    %101 = arith.truncf %100 : vector<8x64xf32> to vector<8x64xbf16>
    %c256 = arith.constant 256 : index
    %c0_48 = arith.constant 0 : index
    %102 = vector.load %arg5[%c256, %c0_48] : memref<576x64xbf16, #tpu.memory_space<vmem>>, vector<64x64xbf16>
    %cst_49 = arith.constant dense<0.000000e+00> : vector<8x64xf32>
    %103 = tpu.matmul %101, %102, %cst_49 {dimension_numbers = #tpu.dot_dimension_numbers<[1], [0], [0], [1], [0, 0, 1, 1], [], []>} : vector<8x64xbf16>, vector<64x64xbf16>, vector<8x64xf32> -> vector<8x64xf32>
    %104 = arith.addf %99, %103 : vector<8x64xf32>
    %105 = vector.extract_strided_slice %80 {offsets = [40, 0], sizes = [8, 64], strides = [1, 1]} : vector<72x64xf32> to vector<8x64xf32>
    %106 = arith.truncf %105 : vector<8x64xf32> to vector<8x64xbf16>
    %c320 = arith.constant 320 : index
    %c0_50 = arith.constant 0 : index
    %107 = vector.load %arg5[%c320, %c0_50] : memref<576x64xbf16, #tpu.memory_space<vmem>>, vector<64x64xbf16>
    %cst_51 = arith.constant dense<0.000000e+00> : vector<8x64xf32>
    %108 = tpu.matmul %106, %107, %cst_51 {dimension_numbers = #tpu.dot_dimension_numbers<[1], [0], [0], [1], [0, 0, 1, 1], [], []>} : vector<8x64xbf16>, vector<64x64xbf16>, vector<8x64xf32> -> vector<8x64xf32>
    %109 = arith.addf %104, %108 : vector<8x64xf32>
    %110 = vector.extract_strided_slice %80 {offsets = [48, 0], sizes = [8, 64], strides = [1, 1]} : vector<72x64xf32> to vector<8x64xf32>
    %111 = arith.truncf %110 : vector<8x64xf32> to vector<8x64xbf16>
    %c384 = arith.constant 384 : index
    %c0_52 = arith.constant 0 : index
    %112 = vector.load %arg5[%c384, %c0_52] : memref<576x64xbf16, #tpu.memory_space<vmem>>, vector<64x64xbf16>
    %cst_53 = arith.constant dense<0.000000e+00> : vector<8x64xf32>
    %113 = tpu.matmul %111, %112, %cst_53 {dimension_numbers = #tpu.dot_dimension_numbers<[1], [0], [0], [1], [0, 0, 1, 1], [], []>} : vector<8x64xbf16>, vector<64x64xbf16>, vector<8x64xf32> -> vector<8x64xf32>
    %114 = arith.addf %109, %113 : vector<8x64xf32>
    %115 = vector.extract_strided_slice %80 {offsets = [56, 0], sizes = [8, 64], strides = [1, 1]} : vector<72x64xf32> to vector<8x64xf32>
    %116 = arith.truncf %115 : vector<8x64xf32> to vector<8x64xbf16>
    %c448 = arith.constant 448 : index
    %c0_54 = arith.constant 0 : index
    %117 = vector.load %arg5[%c448, %c0_54] : memref<576x64xbf16, #tpu.memory_space<vmem>>, vector<64x64xbf16>
    %cst_55 = arith.constant dense<0.000000e+00> : vector<8x64xf32>
    %118 = tpu.matmul %116, %117, %cst_55 {dimension_numbers = #tpu.dot_dimension_numbers<[1], [0], [0], [1], [0, 0, 1, 1], [], []>} : vector<8x64xbf16>, vector<64x64xbf16>, vector<8x64xf32> -> vector<8x64xf32>
    %119 = arith.addf %114, %118 : vector<8x64xf32>
    %120 = vector.extract_strided_slice %80 {offsets = [64, 0], sizes = [8, 64], strides = [1, 1]} : vector<72x64xf32> to vector<8x64xf32>
    %121 = arith.truncf %120 : vector<8x64xf32> to vector<8x64xbf16>
    %c512 = arith.constant 512 : index
    %c0_56 = arith.constant 0 : index
    %122 = vector.load %arg5[%c512, %c0_56] : memref<576x64xbf16, #tpu.memory_space<vmem>>, vector<64x64xbf16>
    %cst_57 = arith.constant dense<0.000000e+00> : vector<8x64xf32>
    %123 = tpu.matmul %121, %122, %cst_57 {dimension_numbers = #tpu.dot_dimension_numbers<[1], [0], [0], [1], [0, 0, 1, 1], [], []>} : vector<8x64xbf16>, vector<64x64xbf16>, vector<8x64xf32> -> vector<8x64xf32>
    %124 = arith.addf %119, %123 : vector<8x64xf32>
    %125 = vector.broadcast %77 : vector<8x1xf32> to vector<8x64xf32>
    %126 = arith.addf %124, %125 : vector<8x64xf32>
    %cst_58 = arith.constant 0.000000e+00 : f32
    %127 = vector.broadcast %cst_58 : f32 to vector<8x64xf32>
    %128 = arith.maximumf %126, %127 : vector<8x64xf32>
    %129 = arith.truncf %128 : vector<8x64xf32> to vector<8x64xbf16>
    %c0_59 = arith.constant 0 : index
    %c0_60 = arith.constant 0 : index
    %130 = vector.load %arg7[%c0_59, %c0_60] : memref<64x256xbf16, #tpu.memory_space<vmem>>, vector<64x256xbf16>
    %cst_61 = arith.constant dense<0.000000e+00> : vector<8x256xf32>
    %131 = tpu.matmul %129, %130, %cst_61 {dimension_numbers = #tpu.dot_dimension_numbers<[1], [0], [0], [1], [0, 0, 1, 1], [], []>} : vector<8x64xbf16>, vector<64x256xbf16>, vector<8x256xf32> -> vector<8x256xf32>
    %c0_62 = arith.constant 0 : index
    %c0_63 = arith.constant 0 : index
    %132 = vector.load %arg13[%c0_62, %c0_63] : memref<8x1xf32, #tpu.memory_space<vmem>>, vector<8x1xf32>
    %c17_i32 = arith.constant 17 : i32
    %133 = tpu.dynamic_rotate %131 by %c17_i32 dim 1 : vector<8x256xf32>, i32 -> vector<8x256xf32>
    %cst_64 = arith.constant 0.000000e+00 : f32
    %134 = vector.shape_cast %11 : vector<1x256xi1> to vector<1x256xi1>
    %135 = vector.broadcast %134 : vector<1x256xi1> to vector<8x256xi1>
    %136 = vector.broadcast %cst_64 : f32 to vector<8x256xf32>
    %137 = arith.select %135, %133, %136 : vector<8x256xi1>, vector<8x256xf32>
    %138 = arith.truncf %137 : vector<8x256xf32> to vector<8x256xbf16>
    %c0_65 = arith.constant 0 : index
    %c0_66 = arith.constant 0 : index
    %c0_67 = arith.constant 0 : index
    %139 = vector.load %arg12[%c0_65, %c0_66, %c0_67] : memref<9x8x8xf32, #tpu.memory_space<vmem>>, vector<1x8x8xf32>
    %140 = vector.shape_cast %139 : vector<1x8x8xf32> to vector<8x8xf32>
    %141 = arith.truncf %140 : vector<8x8xf32> to vector<8x8xbf16>
    %cst_68 = arith.constant dense<0.000000e+00> : vector<8x256xf32>
    %142 = tpu.matmul %141, %138, %cst_68 {dimension_numbers = #tpu.dot_dimension_numbers<[1], [0], [0], [1], [0, 0, 1, 1], [], []>} : vector<8x8xbf16>, vector<8x256xbf16>, vector<8x256xf32> -> vector<8x256xf32>
    %c16_i32_69 = arith.constant 16 : i32
    %143 = tpu.dynamic_rotate %131 by %c16_i32_69 dim 1 : vector<8x256xf32>, i32 -> vector<8x256xf32>
    %cst_70 = arith.constant 0.000000e+00 : f32
    %144 = vector.shape_cast %4 : vector<1x256xi1> to vector<1x256xi1>
    %145 = vector.broadcast %144 : vector<1x256xi1> to vector<8x256xi1>
    %146 = vector.broadcast %cst_70 : f32 to vector<8x256xf32>
    %147 = arith.select %145, %143, %146 : vector<8x256xi1>, vector<8x256xf32>
    %148 = arith.truncf %147 : vector<8x256xf32> to vector<8x256xbf16>
    %c1 = arith.constant 1 : index
    %c0_71 = arith.constant 0 : index
    %c0_72 = arith.constant 0 : index
    %149 = vector.load %arg12[%c1, %c0_71, %c0_72] : memref<9x8x8xf32, #tpu.memory_space<vmem>>, vector<1x8x8xf32>
    %150 = vector.shape_cast %149 : vector<1x8x8xf32> to vector<8x8xf32>
    %151 = arith.truncf %150 : vector<8x8xf32> to vector<8x8xbf16>
    %cst_73 = arith.constant dense<0.000000e+00> : vector<8x256xf32>
    %152 = tpu.matmul %151, %148, %cst_73 {dimension_numbers = #tpu.dot_dimension_numbers<[1], [0], [0], [1], [0, 0, 1, 1], [], []>} : vector<8x8xbf16>, vector<8x256xbf16>, vector<8x256xf32> -> vector<8x256xf32>
    %153 = arith.addf %142, %152 : vector<8x256xf32>
    %c15_i32_74 = arith.constant 15 : i32
    %154 = tpu.dynamic_rotate %131 by %c15_i32_74 dim 1 : vector<8x256xf32>, i32 -> vector<8x256xf32>
    %cst_75 = arith.constant 0.000000e+00 : f32
    %155 = vector.shape_cast %12 : vector<1x256xi1> to vector<1x256xi1>
    %156 = vector.broadcast %155 : vector<1x256xi1> to vector<8x256xi1>
    %157 = vector.broadcast %cst_75 : f32 to vector<8x256xf32>
    %158 = arith.select %156, %154, %157 : vector<8x256xi1>, vector<8x256xf32>
    %159 = arith.truncf %158 : vector<8x256xf32> to vector<8x256xbf16>
    %c2 = arith.constant 2 : index
    %c0_76 = arith.constant 0 : index
    %c0_77 = arith.constant 0 : index
    %160 = vector.load %arg12[%c2, %c0_76, %c0_77] : memref<9x8x8xf32, #tpu.memory_space<vmem>>, vector<1x8x8xf32>
    %161 = vector.shape_cast %160 : vector<1x8x8xf32> to vector<8x8xf32>
    %162 = arith.truncf %161 : vector<8x8xf32> to vector<8x8xbf16>
    %cst_78 = arith.constant dense<0.000000e+00> : vector<8x256xf32>
    %163 = tpu.matmul %162, %159, %cst_78 {dimension_numbers = #tpu.dot_dimension_numbers<[1], [0], [0], [1], [0, 0, 1, 1], [], []>} : vector<8x8xbf16>, vector<8x256xbf16>, vector<8x256xf32> -> vector<8x256xf32>
    %164 = arith.addf %153, %163 : vector<8x256xf32>
    %c1_i32_79 = arith.constant 1 : i32
    %165 = tpu.dynamic_rotate %131 by %c1_i32_79 dim 1 : vector<8x256xf32>, i32 -> vector<8x256xf32>
    %cst_80 = arith.constant 0.000000e+00 : f32
    %166 = vector.shape_cast %8 : vector<1x256xi1> to vector<1x256xi1>
    %167 = vector.broadcast %166 : vector<1x256xi1> to vector<8x256xi1>
    %168 = vector.broadcast %cst_80 : f32 to vector<8x256xf32>
    %169 = arith.select %167, %165, %168 : vector<8x256xi1>, vector<8x256xf32>
    %170 = arith.truncf %169 : vector<8x256xf32> to vector<8x256xbf16>
    %c3 = arith.constant 3 : index
    %c0_81 = arith.constant 0 : index
    %c0_82 = arith.constant 0 : index
    %171 = vector.load %arg12[%c3, %c0_81, %c0_82] : memref<9x8x8xf32, #tpu.memory_space<vmem>>, vector<1x8x8xf32>
    %172 = vector.shape_cast %171 : vector<1x8x8xf32> to vector<8x8xf32>
    %173 = arith.truncf %172 : vector<8x8xf32> to vector<8x8xbf16>
    %cst_83 = arith.constant dense<0.000000e+00> : vector<8x256xf32>
    %174 = tpu.matmul %173, %170, %cst_83 {dimension_numbers = #tpu.dot_dimension_numbers<[1], [0], [0], [1], [0, 0, 1, 1], [], []>} : vector<8x8xbf16>, vector<8x256xbf16>, vector<8x256xf32> -> vector<8x256xf32>
    %175 = arith.addf %164, %174 : vector<8x256xf32>
    %176 = arith.truncf %131 : vector<8x256xf32> to vector<8x256xbf16>
    %c4 = arith.constant 4 : index
    %c0_84 = arith.constant 0 : index
    %c0_85 = arith.constant 0 : index
    %177 = vector.load %arg12[%c4, %c0_84, %c0_85] : memref<9x8x8xf32, #tpu.memory_space<vmem>>, vector<1x8x8xf32>
    %178 = vector.shape_cast %177 : vector<1x8x8xf32> to vector<8x8xf32>
    %179 = arith.truncf %178 : vector<8x8xf32> to vector<8x8xbf16>
    %cst_86 = arith.constant dense<0.000000e+00> : vector<8x256xf32>
    %180 = tpu.matmul %179, %176, %cst_86 {dimension_numbers = #tpu.dot_dimension_numbers<[1], [0], [0], [1], [0, 0, 1, 1], [], []>} : vector<8x8xbf16>, vector<8x256xbf16>, vector<8x256xf32> -> vector<8x256xf32>
    %181 = arith.addf %175, %180 : vector<8x256xf32>
    %c255_i32 = arith.constant 255 : i32
    %182 = tpu.dynamic_rotate %131 by %c255_i32 dim 1 : vector<8x256xf32>, i32 -> vector<8x256xf32>
    %cst_87 = arith.constant 0.000000e+00 : f32
    %183 = vector.shape_cast %10 : vector<1x256xi1> to vector<1x256xi1>
    %184 = vector.broadcast %183 : vector<1x256xi1> to vector<8x256xi1>
    %185 = vector.broadcast %cst_87 : f32 to vector<8x256xf32>
    %186 = arith.select %184, %182, %185 : vector<8x256xi1>, vector<8x256xf32>
    %187 = arith.truncf %186 : vector<8x256xf32> to vector<8x256xbf16>
    %c5 = arith.constant 5 : index
    %c0_88 = arith.constant 0 : index
    %c0_89 = arith.constant 0 : index
    %188 = vector.load %arg12[%c5, %c0_88, %c0_89] : memref<9x8x8xf32, #tpu.memory_space<vmem>>, vector<1x8x8xf32>
    %189 = vector.shape_cast %188 : vector<1x8x8xf32> to vector<8x8xf32>
    %190 = arith.truncf %189 : vector<8x8xf32> to vector<8x8xbf16>
    %cst_90 = arith.constant dense<0.000000e+00> : vector<8x256xf32>
    %191 = tpu.matmul %190, %187, %cst_90 {dimension_numbers = #tpu.dot_dimension_numbers<[1], [0], [0], [1], [0, 0, 1, 1], [], []>} : vector<8x8xbf16>, vector<8x256xbf16>, vector<8x256xf32> -> vector<8x256xf32>
    %192 = arith.addf %181, %191 : vector<8x256xf32>
    %c241_i32 = arith.constant 241 : i32
    %193 = tpu.dynamic_rotate %131 by %c241_i32 dim 1 : vector<8x256xf32>, i32 -> vector<8x256xf32>
    %cst_91 = arith.constant 0.000000e+00 : f32
    %194 = vector.shape_cast %13 : vector<1x256xi1> to vector<1x256xi1>
    %195 = vector.broadcast %194 : vector<1x256xi1> to vector<8x256xi1>
    %196 = vector.broadcast %cst_91 : f32 to vector<8x256xf32>
    %197 = arith.select %195, %193, %196 : vector<8x256xi1>, vector<8x256xf32>
    %198 = arith.truncf %197 : vector<8x256xf32> to vector<8x256xbf16>
    %c6 = arith.constant 6 : index
    %c0_92 = arith.constant 0 : index
    %c0_93 = arith.constant 0 : index
    %199 = vector.load %arg12[%c6, %c0_92, %c0_93] : memref<9x8x8xf32, #tpu.memory_space<vmem>>, vector<1x8x8xf32>
    %200 = vector.shape_cast %199 : vector<1x8x8xf32> to vector<8x8xf32>
    %201 = arith.truncf %200 : vector<8x8xf32> to vector<8x8xbf16>
    %cst_94 = arith.constant dense<0.000000e+00> : vector<8x256xf32>
    %202 = tpu.matmul %201, %198, %cst_94 {dimension_numbers = #tpu.dot_dimension_numbers<[1], [0], [0], [1], [0, 0, 1, 1], [], []>} : vector<8x8xbf16>, vector<8x256xbf16>, vector<8x256xf32> -> vector<8x256xf32>
    %203 = arith.addf %192, %202 : vector<8x256xf32>
    %c240_i32_95 = arith.constant 240 : i32
    %204 = tpu.dynamic_rotate %131 by %c240_i32_95 dim 1 : vector<8x256xf32>, i32 -> vector<8x256xf32>
    %cst_96 = arith.constant 0.000000e+00 : f32
    %205 = vector.shape_cast %6 : vector<1x256xi1> to vector<1x256xi1>
    %206 = vector.broadcast %205 : vector<1x256xi1> to vector<8x256xi1>
    %207 = vector.broadcast %cst_96 : f32 to vector<8x256xf32>
    %208 = arith.select %206, %204, %207 : vector<8x256xi1>, vector<8x256xf32>
    %209 = arith.truncf %208 : vector<8x256xf32> to vector<8x256xbf16>
    %c7 = arith.constant 7 : index
    %c0_97 = arith.constant 0 : index
    %c0_98 = arith.constant 0 : index
    %210 = vector.load %arg12[%c7, %c0_97, %c0_98] : memref<9x8x8xf32, #tpu.memory_space<vmem>>, vector<1x8x8xf32>
    %211 = vector.shape_cast %210 : vector<1x8x8xf32> to vector<8x8xf32>
    %212 = arith.truncf %211 : vector<8x8xf32> to vector<8x8xbf16>
    %cst_99 = arith.constant dense<0.000000e+00> : vector<8x256xf32>
    %213 = tpu.matmul %212, %209, %cst_99 {dimension_numbers = #tpu.dot_dimension_numbers<[1], [0], [0], [1], [0, 0, 1, 1], [], []>} : vector<8x8xbf16>, vector<8x256xbf16>, vector<8x256xf32> -> vector<8x256xf32>
    %214 = arith.addf %203, %213 : vector<8x256xf32>
    %c239_i32 = arith.constant 239 : i32
    %215 = tpu.dynamic_rotate %131 by %c239_i32 dim 1 : vector<8x256xf32>, i32 -> vector<8x256xf32>
    %cst_100 = arith.constant 0.000000e+00 : f32
    %216 = vector.shape_cast %14 : vector<1x256xi1> to vector<1x256xi1>
    %217 = vector.broadcast %216 : vector<1x256xi1> to vector<8x256xi1>
    %218 = vector.broadcast %cst_100 : f32 to vector<8x256xf32>
    %219 = arith.select %217, %215, %218 : vector<8x256xi1>, vector<8x256xf32>
    %220 = arith.truncf %219 : vector<8x256xf32> to vector<8x256xbf16>
    %c8 = arith.constant 8 : index
    %c0_101 = arith.constant 0 : index
    %c0_102 = arith.constant 0 : index
    %221 = vector.load %arg12[%c8, %c0_101, %c0_102] : memref<9x8x8xf32, #tpu.memory_space<vmem>>, vector<1x8x8xf32>
    %222 = vector.shape_cast %221 : vector<1x8x8xf32> to vector<8x8xf32>
    %223 = arith.truncf %222 : vector<8x8xf32> to vector<8x8xbf16>
    %cst_103 = arith.constant dense<0.000000e+00> : vector<8x256xf32>
    %224 = tpu.matmul %223, %220, %cst_103 {dimension_numbers = #tpu.dot_dimension_numbers<[1], [0], [0], [1], [0, 0, 1, 1], [], []>} : vector<8x8xbf16>, vector<8x256xbf16>, vector<8x256xf32> -> vector<8x256xf32>
    %225 = arith.addf %214, %224 : vector<8x256xf32>
    %226 = vector.broadcast %132 : vector<8x1xf32> to vector<8x256xf32>
    %227 = arith.addf %225, %226 : vector<8x256xf32>
    %cst_104 = arith.constant 0.000000e+00 : f32
    %228 = vector.broadcast %cst_104 : f32 to vector<8x256xf32>
    %229 = arith.maximumf %227, %228 : vector<8x256xf32>
    %c0_105 = arith.constant 0 : index
    %c0_106 = arith.constant 0 : index
    %c0_107 = arith.constant 0 : index
    %230 = vector.load %arg1[%c0_105, %c0_106, %c0_107] : memref<1x8x256xf32, #tpu.memory_space<vmem>>, vector<1x8x256xf32>
    %231 = vector.shape_cast %230 : vector<1x8x256xf32> to vector<8x256xf32>
    %c0_108 = arith.constant 0 : index
    %c0_109 = arith.constant 0 : index
    %232 = vector.load %arg15[%c0_108, %c0_109] : memref<8x1xf32, #tpu.memory_space<vmem>>, vector<8x1xf32>
    %c17_i32_110 = arith.constant 17 : i32
    %233 = tpu.dynamic_rotate %231 by %c17_i32_110 dim 1 : vector<8x256xf32>, i32 -> vector<8x256xf32>
    %cst_111 = arith.constant 0.000000e+00 : f32
    %234 = vector.shape_cast %11 : vector<1x256xi1> to vector<1x256xi1>
    %235 = vector.broadcast %234 : vector<1x256xi1> to vector<8x256xi1>
    %236 = vector.broadcast %cst_111 : f32 to vector<8x256xf32>
    %237 = arith.select %235, %233, %236 : vector<8x256xi1>, vector<8x256xf32>
    %238 = arith.truncf %237 : vector<8x256xf32> to vector<8x256xbf16>
    %c0_112 = arith.constant 0 : index
    %c0_113 = arith.constant 0 : index
    %c0_114 = arith.constant 0 : index
    %239 = vector.load %arg14[%c0_112, %c0_113, %c0_114] : memref<9x8x8xf32, #tpu.memory_space<vmem>>, vector<1x8x8xf32>
    %240 = vector.shape_cast %239 : vector<1x8x8xf32> to vector<8x8xf32>
    %241 = arith.truncf %240 : vector<8x8xf32> to vector<8x8xbf16>
    %cst_115 = arith.constant dense<0.000000e+00> : vector<8x256xf32>
    %242 = tpu.matmul %241, %238, %cst_115 {dimension_numbers = #tpu.dot_dimension_numbers<[1], [0], [0], [1], [0, 0, 1, 1], [], []>} : vector<8x8xbf16>, vector<8x256xbf16>, vector<8x256xf32> -> vector<8x256xf32>
    %c16_i32_116 = arith.constant 16 : i32
    %243 = tpu.dynamic_rotate %231 by %c16_i32_116 dim 1 : vector<8x256xf32>, i32 -> vector<8x256xf32>
    %cst_117 = arith.constant 0.000000e+00 : f32
    %244 = vector.shape_cast %4 : vector<1x256xi1> to vector<1x256xi1>
    %245 = vector.broadcast %244 : vector<1x256xi1> to vector<8x256xi1>
    %246 = vector.broadcast %cst_117 : f32 to vector<8x256xf32>
    %247 = arith.select %245, %243, %246 : vector<8x256xi1>, vector<8x256xf32>
    %248 = arith.truncf %247 : vector<8x256xf32> to vector<8x256xbf16>
    %c1_118 = arith.constant 1 : index
    %c0_119 = arith.constant 0 : index
    %c0_120 = arith.constant 0 : index
    %249 = vector.load %arg14[%c1_118, %c0_119, %c0_120] : memref<9x8x8xf32, #tpu.memory_space<vmem>>, vector<1x8x8xf32>
    %250 = vector.shape_cast %249 : vector<1x8x8xf32> to vector<8x8xf32>
    %251 = arith.truncf %250 : vector<8x8xf32> to vector<8x8xbf16>
    %cst_121 = arith.constant dense<0.000000e+00> : vector<8x256xf32>
    %252 = tpu.matmul %251, %248, %cst_121 {dimension_numbers = #tpu.dot_dimension_numbers<[1], [0], [0], [1], [0, 0, 1, 1], [], []>} : vector<8x8xbf16>, vector<8x256xbf16>, vector<8x256xf32> -> vector<8x256xf32>
    %253 = arith.addf %242, %252 : vector<8x256xf32>
    %c15_i32_122 = arith.constant 15 : i32
    %254 = tpu.dynamic_rotate %231 by %c15_i32_122 dim 1 : vector<8x256xf32>, i32 -> vector<8x256xf32>
    %cst_123 = arith.constant 0.000000e+00 : f32
    %255 = vector.shape_cast %12 : vector<1x256xi1> to vector<1x256xi1>
    %256 = vector.broadcast %255 : vector<1x256xi1> to vector<8x256xi1>
    %257 = vector.broadcast %cst_123 : f32 to vector<8x256xf32>
    %258 = arith.select %256, %254, %257 : vector<8x256xi1>, vector<8x256xf32>
    %259 = arith.truncf %258 : vector<8x256xf32> to vector<8x256xbf16>
    %c2_124 = arith.constant 2 : index
    %c0_125 = arith.constant 0 : index
    %c0_126 = arith.constant 0 : index
    %260 = vector.load %arg14[%c2_124, %c0_125, %c0_126] : memref<9x8x8xf32, #tpu.memory_space<vmem>>, vector<1x8x8xf32>
    %261 = vector.shape_cast %260 : vector<1x8x8xf32> to vector<8x8xf32>
    %262 = arith.truncf %261 : vector<8x8xf32> to vector<8x8xbf16>
    %cst_127 = arith.constant dense<0.000000e+00> : vector<8x256xf32>
    %263 = tpu.matmul %262, %259, %cst_127 {dimension_numbers = #tpu.dot_dimension_numbers<[1], [0], [0], [1], [0, 0, 1, 1], [], []>} : vector<8x8xbf16>, vector<8x256xbf16>, vector<8x256xf32> -> vector<8x256xf32>
    %264 = arith.addf %253, %263 : vector<8x256xf32>
    %c1_i32_128 = arith.constant 1 : i32
    %265 = tpu.dynamic_rotate %231 by %c1_i32_128 dim 1 : vector<8x256xf32>, i32 -> vector<8x256xf32>
    %cst_129 = arith.constant 0.000000e+00 : f32
    %266 = vector.shape_cast %8 : vector<1x256xi1> to vector<1x256xi1>
    %267 = vector.broadcast %266 : vector<1x256xi1> to vector<8x256xi1>
    %268 = vector.broadcast %cst_129 : f32 to vector<8x256xf32>
    %269 = arith.select %267, %265, %268 : vector<8x256xi1>, vector<8x256xf32>
    %270 = arith.truncf %269 : vector<8x256xf32> to vector<8x256xbf16>
    %c3_130 = arith.constant 3 : index
    %c0_131 = arith.constant 0 : index
    %c0_132 = arith.constant 0 : index
    %271 = vector.load %arg14[%c3_130, %c0_131, %c0_132] : memref<9x8x8xf32, #tpu.memory_space<vmem>>, vector<1x8x8xf32>
    %272 = vector.shape_cast %271 : vector<1x8x8xf32> to vector<8x8xf32>
    %273 = arith.truncf %272 : vector<8x8xf32> to vector<8x8xbf16>
    %cst_133 = arith.constant dense<0.000000e+00> : vector<8x256xf32>
    %274 = tpu.matmul %273, %270, %cst_133 {dimension_numbers = #tpu.dot_dimension_numbers<[1], [0], [0], [1], [0, 0, 1, 1], [], []>} : vector<8x8xbf16>, vector<8x256xbf16>, vector<8x256xf32> -> vector<8x256xf32>
    %275 = arith.addf %264, %274 : vector<8x256xf32>
    %276 = arith.truncf %231 : vector<8x256xf32> to vector<8x256xbf16>
    %c4_134 = arith.constant 4 : index
    %c0_135 = arith.constant 0 : index
    %c0_136 = arith.constant 0 : index
    %277 = vector.load %arg14[%c4_134, %c0_135, %c0_136] : memref<9x8x8xf32, #tpu.memory_space<vmem>>, vector<1x8x8xf32>
    %278 = vector.shape_cast %277 : vector<1x8x8xf32> to vector<8x8xf32>
    %279 = arith.truncf %278 : vector<8x8xf32> to vector<8x8xbf16>
    %cst_137 = arith.constant dense<0.000000e+00> : vector<8x256xf32>
    %280 = tpu.matmul %279, %276, %cst_137 {dimension_numbers = #tpu.dot_dimension_numbers<[1], [0], [0], [1], [0, 0, 1, 1], [], []>} : vector<8x8xbf16>, vector<8x256xbf16>, vector<8x256xf32> -> vector<8x256xf32>
    %281 = arith.addf %275, %280 : vector<8x256xf32>
    %c255_i32_138 = arith.constant 255 : i32
    %282 = tpu.dynamic_rotate %231 by %c255_i32_138 dim 1 : vector<8x256xf32>, i32 -> vector<8x256xf32>
    %cst_139 = arith.constant 0.000000e+00 : f32
    %283 = vector.shape_cast %10 : vector<1x256xi1> to vector<1x256xi1>
    %284 = vector.broadcast %283 : vector<1x256xi1> to vector<8x256xi1>
    %285 = vector.broadcast %cst_139 : f32 to vector<8x256xf32>
    %286 = arith.select %284, %282, %285 : vector<8x256xi1>, vector<8x256xf32>
    %287 = arith.truncf %286 : vector<8x256xf32> to vector<8x256xbf16>
    %c5_140 = arith.constant 5 : index
    %c0_141 = arith.constant 0 : index
    %c0_142 = arith.constant 0 : index
    %288 = vector.load %arg14[%c5_140, %c0_141, %c0_142] : memref<9x8x8xf32, #tpu.memory_space<vmem>>, vector<1x8x8xf32>
    %289 = vector.shape_cast %288 : vector<1x8x8xf32> to vector<8x8xf32>
    %290 = arith.truncf %289 : vector<8x8xf32> to vector<8x8xbf16>
    %cst_143 = arith.constant dense<0.000000e+00> : vector<8x256xf32>
    %291 = tpu.matmul %290, %287, %cst_143 {dimension_numbers = #tpu.dot_dimension_numbers<[1], [0], [0], [1], [0, 0, 1, 1], [], []>} : vector<8x8xbf16>, vector<8x256xbf16>, vector<8x256xf32> -> vector<8x256xf32>
    %292 = arith.addf %281, %291 : vector<8x256xf32>
    %c241_i32_144 = arith.constant 241 : i32
    %293 = tpu.dynamic_rotate %231 by %c241_i32_144 dim 1 : vector<8x256xf32>, i32 -> vector<8x256xf32>
    %cst_145 = arith.constant 0.000000e+00 : f32
    %294 = vector.shape_cast %13 : vector<1x256xi1> to vector<1x256xi1>
    %295 = vector.broadcast %294 : vector<1x256xi1> to vector<8x256xi1>
    %296 = vector.broadcast %cst_145 : f32 to vector<8x256xf32>
    %297 = arith.select %295, %293, %296 : vector<8x256xi1>, vector<8x256xf32>
    %298 = arith.truncf %297 : vector<8x256xf32> to vector<8x256xbf16>
    %c6_146 = arith.constant 6 : index
    %c0_147 = arith.constant 0 : index
    %c0_148 = arith.constant 0 : index
    %299 = vector.load %arg14[%c6_146, %c0_147, %c0_148] : memref<9x8x8xf32, #tpu.memory_space<vmem>>, vector<1x8x8xf32>
    %300 = vector.shape_cast %299 : vector<1x8x8xf32> to vector<8x8xf32>
    %301 = arith.truncf %300 : vector<8x8xf32> to vector<8x8xbf16>
    %cst_149 = arith.constant dense<0.000000e+00> : vector<8x256xf32>
    %302 = tpu.matmul %301, %298, %cst_149 {dimension_numbers = #tpu.dot_dimension_numbers<[1], [0], [0], [1], [0, 0, 1, 1], [], []>} : vector<8x8xbf16>, vector<8x256xbf16>, vector<8x256xf32> -> vector<8x256xf32>
    %303 = arith.addf %292, %302 : vector<8x256xf32>
    %c240_i32_150 = arith.constant 240 : i32
    %304 = tpu.dynamic_rotate %231 by %c240_i32_150 dim 1 : vector<8x256xf32>, i32 -> vector<8x256xf32>
    %cst_151 = arith.constant 0.000000e+00 : f32
    %305 = vector.shape_cast %6 : vector<1x256xi1> to vector<1x256xi1>
    %306 = vector.broadcast %305 : vector<1x256xi1> to vector<8x256xi1>
    %307 = vector.broadcast %cst_151 : f32 to vector<8x256xf32>
    %308 = arith.select %306, %304, %307 : vector<8x256xi1>, vector<8x256xf32>
    %309 = arith.truncf %308 : vector<8x256xf32> to vector<8x256xbf16>
    %c7_152 = arith.constant 7 : index
    %c0_153 = arith.constant 0 : index
    %c0_154 = arith.constant 0 : index
    %310 = vector.load %arg14[%c7_152, %c0_153, %c0_154] : memref<9x8x8xf32, #tpu.memory_space<vmem>>, vector<1x8x8xf32>
    %311 = vector.shape_cast %310 : vector<1x8x8xf32> to vector<8x8xf32>
    %312 = arith.truncf %311 : vector<8x8xf32> to vector<8x8xbf16>
    %cst_155 = arith.constant dense<0.000000e+00> : vector<8x256xf32>
    %313 = tpu.matmul %312, %309, %cst_155 {dimension_numbers = #tpu.dot_dimension_numbers<[1], [0], [0], [1], [0, 0, 1, 1], [], []>} : vector<8x8xbf16>, vector<8x256xbf16>, vector<8x256xf32> -> vector<8x256xf32>
    %314 = arith.addf %303, %313 : vector<8x256xf32>
    %c239_i32_156 = arith.constant 239 : i32
    %315 = tpu.dynamic_rotate %231 by %c239_i32_156 dim 1 : vector<8x256xf32>, i32 -> vector<8x256xf32>
    %cst_157 = arith.constant 0.000000e+00 : f32
    %316 = vector.shape_cast %14 : vector<1x256xi1> to vector<1x256xi1>
    %317 = vector.broadcast %316 : vector<1x256xi1> to vector<8x256xi1>
    %318 = vector.broadcast %cst_157 : f32 to vector<8x256xf32>
    %319 = arith.select %317, %315, %318 : vector<8x256xi1>, vector<8x256xf32>
    %320 = arith.truncf %319 : vector<8x256xf32> to vector<8x256xbf16>
    %c8_158 = arith.constant 8 : index
    %c0_159 = arith.constant 0 : index
    %c0_160 = arith.constant 0 : index
    %321 = vector.load %arg14[%c8_158, %c0_159, %c0_160] : memref<9x8x8xf32, #tpu.memory_space<vmem>>, vector<1x8x8xf32>
    %322 = vector.shape_cast %321 : vector<1x8x8xf32> to vector<8x8xf32>
    %323 = arith.truncf %322 : vector<8x8xf32> to vector<8x8xbf16>
    %cst_161 = arith.constant dense<0.000000e+00> : vector<8x256xf32>
    %324 = tpu.matmul %323, %320, %cst_161 {dimension_numbers = #tpu.dot_dimension_numbers<[1], [0], [0], [1], [0, 0, 1, 1], [], []>} : vector<8x8xbf16>, vector<8x256xbf16>, vector<8x256xf32> -> vector<8x256xf32>
    %325 = arith.addf %314, %324 : vector<8x256xf32>
    %326 = vector.broadcast %232 : vector<8x1xf32> to vector<8x256xf32>
    %327 = arith.addf %325, %326 : vector<8x256xf32>
    %cst_162 = arith.constant 0.000000e+00 : f32
    %328 = vector.broadcast %cst_162 : f32 to vector<8x256xf32>
    %329 = arith.maximumf %327, %328 : vector<8x256xf32>
    %c0_163 = arith.constant 0 : index
    %c0_164 = arith.constant 0 : index
    %330 = vector.load %arg16[%c0_163, %c0_164] : memref<4x8xf32, #tpu.memory_space<vmem>>, vector<4x8xf32>
    %c0_165 = arith.constant 0 : index
    %c0_166 = arith.constant 0 : index
    %331 = vector.load %arg17[%c0_165, %c0_166] : memref<4x1xf32, #tpu.memory_space<vmem>>, vector<4x1xf32>
    %332 = vector.extract_strided_slice %330 {offsets = [0, 0], sizes = [4, 1], strides = [1, 1]} : vector<4x8xf32> to vector<4x1xf32>
    %333 = vector.extract_strided_slice %329 {offsets = [0, 0], sizes = [1, 256], strides = [1, 1]} : vector<8x256xf32> to vector<1x256xf32>
    %334 = vector.broadcast %332 : vector<4x1xf32> to vector<4x256xf32>
    %335 = vector.broadcast %333 : vector<1x256xf32> to vector<4x256xf32>
    %336 = arith.mulf %334, %335 : vector<4x256xf32>
    %337 = vector.extract_strided_slice %330 {offsets = [0, 1], sizes = [4, 1], strides = [1, 1]} : vector<4x8xf32> to vector<4x1xf32>
    %338 = vector.extract_strided_slice %329 {offsets = [1, 0], sizes = [1, 256], strides = [1, 1]} : vector<8x256xf32> to vector<1x256xf32>
    %339 = vector.broadcast %337 : vector<4x1xf32> to vector<4x256xf32>
    %340 = vector.broadcast %338 : vector<1x256xf32> to vector<4x256xf32>
    %341 = arith.mulf %339, %340 : vector<4x256xf32>
    %342 = arith.addf %336, %341 : vector<4x256xf32>
    %343 = vector.extract_strided_slice %330 {offsets = [0, 2], sizes = [4, 1], strides = [1, 1]} : vector<4x8xf32> to vector<4x1xf32>
    %344 = vector.extract_strided_slice %329 {offsets = [2, 0], sizes = [1, 256], strides = [1, 1]} : vector<8x256xf32> to vector<1x256xf32>
    %345 = vector.broadcast %343 : vector<4x1xf32> to vector<4x256xf32>
    %346 = vector.broadcast %344 : vector<1x256xf32> to vector<4x256xf32>
    %347 = arith.mulf %345, %346 : vector<4x256xf32>
    %348 = arith.addf %342, %347 : vector<4x256xf32>
    %349 = vector.extract_strided_slice %330 {offsets = [0, 3], sizes = [4, 1], strides = [1, 1]} : vector<4x8xf32> to vector<4x1xf32>
    %350 = vector.extract_strided_slice %329 {offsets = [3, 0], sizes = [1, 256], strides = [1, 1]} : vector<8x256xf32> to vector<1x256xf32>
    %351 = vector.broadcast %349 : vector<4x1xf32> to vector<4x256xf32>
    %352 = vector.broadcast %350 : vector<1x256xf32> to vector<4x256xf32>
    %353 = arith.mulf %351, %352 : vector<4x256xf32>
    %354 = arith.addf %348, %353 : vector<4x256xf32>
    %355 = vector.extract_strided_slice %330 {offsets = [0, 4], sizes = [4, 1], strides = [1, 1]} : vector<4x8xf32> to vector<4x1xf32>
    %356 = vector.extract_strided_slice %329 {offsets = [4, 0], sizes = [1, 256], strides = [1, 1]} : vector<8x256xf32> to vector<1x256xf32>
    %357 = vector.broadcast %355 : vector<4x1xf32> to vector<4x256xf32>
    %358 = vector.broadcast %356 : vector<1x256xf32> to vector<4x256xf32>
    %359 = arith.mulf %357, %358 : vector<4x256xf32>
    %360 = arith.addf %354, %359 : vector<4x256xf32>
    %361 = vector.extract_strided_slice %330 {offsets = [0, 5], sizes = [4, 1], strides = [1, 1]} : vector<4x8xf32> to vector<4x1xf32>
    %362 = vector.extract_strided_slice %329 {offsets = [5, 0], sizes = [1, 256], strides = [1, 1]} : vector<8x256xf32> to vector<1x256xf32>
    %363 = vector.broadcast %361 : vector<4x1xf32> to vector<4x256xf32>
    %364 = vector.broadcast %362 : vector<1x256xf32> to vector<4x256xf32>
    %365 = arith.mulf %363, %364 : vector<4x256xf32>
    %366 = arith.addf %360, %365 : vector<4x256xf32>
    %367 = vector.extract_strided_slice %330 {offsets = [0, 6], sizes = [4, 1], strides = [1, 1]} : vector<4x8xf32> to vector<4x1xf32>
    %368 = vector.extract_strided_slice %329 {offsets = [6, 0], sizes = [1, 256], strides = [1, 1]} : vector<8x256xf32> to vector<1x256xf32>
    %369 = vector.broadcast %367 : vector<4x1xf32> to vector<4x256xf32>
    %370 = vector.broadcast %368 : vector<1x256xf32> to vector<4x256xf32>
    %371 = arith.mulf %369, %370 : vector<4x256xf32>
    %372 = arith.addf %366, %371 : vector<4x256xf32>
    %373 = vector.extract_strided_slice %330 {offsets = [0, 7], sizes = [4, 1], strides = [1, 1]} : vector<4x8xf32> to vector<4x1xf32>
    %374 = vector.extract_strided_slice %329 {offsets = [7, 0], sizes = [1, 256], strides = [1, 1]} : vector<8x256xf32> to vector<1x256xf32>
    %375 = vector.broadcast %373 : vector<4x1xf32> to vector<4x256xf32>
    %376 = vector.broadcast %374 : vector<1x256xf32> to vector<4x256xf32>
    %377 = arith.mulf %375, %376 : vector<4x256xf32>
    %378 = arith.addf %372, %377 : vector<4x256xf32>
    %379 = vector.broadcast %331 : vector<4x1xf32> to vector<4x256xf32>
    %380 = arith.addf %378, %379 : vector<4x256xf32>
    %381 = arith.negf %380 : vector<4x256xf32>
    %382 = math.exp %381 : vector<4x256xf32>
    %cst_167 = arith.constant 1.000000e+00 : f32
    %383 = vector.broadcast %cst_167 : f32 to vector<4x256xf32>
    %384 = arith.addf %383, %382 : vector<4x256xf32>
    %385 = arith.divf %383, %384 : vector<4x256xf32>
    %c1_i32_168 = arith.constant 1 : i32
    %386 = tpu.dynamic_rotate %385 by %c1_i32_168 dim 1 : vector<4x256xf32>, i32 -> vector<4x256xf32>
    %cst_169 = arith.constant 0.000000e+00 : f32
    %387 = vector.shape_cast %8 : vector<1x256xi1> to vector<1x256xi1>
    %388 = vector.broadcast %387 : vector<1x256xi1> to vector<4x256xi1>
    %389 = vector.broadcast %cst_169 : f32 to vector<4x256xf32>
    %390 = arith.select %388, %386, %389 : vector<4x256xi1>, vector<4x256xf32>
    %391 = arith.addf %385, %390 : vector<4x256xf32>
    %c255_i32_170 = arith.constant 255 : i32
    %392 = tpu.dynamic_rotate %385 by %c255_i32_170 dim 1 : vector<4x256xf32>, i32 -> vector<4x256xf32>
    %cst_171 = arith.constant 0.000000e+00 : f32
    %393 = vector.shape_cast %10 : vector<1x256xi1> to vector<1x256xi1>
    %394 = vector.broadcast %393 : vector<1x256xi1> to vector<4x256xi1>
    %395 = vector.broadcast %cst_171 : f32 to vector<4x256xf32>
    %396 = arith.select %394, %392, %395 : vector<4x256xi1>, vector<4x256xf32>
    %397 = arith.addf %391, %396 : vector<4x256xf32>
    %c16_i32_172 = arith.constant 16 : i32
    %398 = tpu.dynamic_rotate %397 by %c16_i32_172 dim 1 : vector<4x256xf32>, i32 -> vector<4x256xf32>
    %cst_173 = arith.constant 0.000000e+00 : f32
    %399 = vector.shape_cast %4 : vector<1x256xi1> to vector<1x256xi1>
    %400 = vector.broadcast %399 : vector<1x256xi1> to vector<4x256xi1>
    %401 = vector.broadcast %cst_173 : f32 to vector<4x256xf32>
    %402 = arith.select %400, %398, %401 : vector<4x256xi1>, vector<4x256xf32>
    %403 = arith.addf %397, %402 : vector<4x256xf32>
    %c240_i32_174 = arith.constant 240 : i32
    %404 = tpu.dynamic_rotate %397 by %c240_i32_174 dim 1 : vector<4x256xf32>, i32 -> vector<4x256xf32>
    %cst_175 = arith.constant 0.000000e+00 : f32
    %405 = vector.shape_cast %6 : vector<1x256xi1> to vector<1x256xi1>
    %406 = vector.broadcast %405 : vector<1x256xi1> to vector<4x256xi1>
    %407 = vector.broadcast %cst_175 : f32 to vector<4x256xf32>
    %408 = arith.select %406, %404, %407 : vector<4x256xi1>, vector<4x256xf32>
    %409 = arith.addf %403, %408 : vector<4x256xf32>
    %cst_176 = arith.constant 0.111111112 : f32
    %410 = vector.broadcast %cst_176 : f32 to vector<4x256xf32>
    %411 = arith.mulf %409, %410 : vector<4x256xf32>
    %c0_177 = arith.constant 0 : index
    %c0_178 = arith.constant 0 : index
    %c0_179 = arith.constant 0 : index
    %412 = vector.load %arg18[%c0_177, %c0_178, %c0_179] : memref<3x4x4xf32, #tpu.memory_space<vmem>>, vector<1x4x4xf32>
    %413 = vector.shape_cast %412 : vector<1x4x4xf32> to vector<4x4xf32>
    %c0_180 = arith.constant 0 : index
    %c0_181 = arith.constant 0 : index
    %c0_182 = arith.constant 0 : index
    %414 = vector.load %arg19[%c0_180, %c0_181, %c0_182] : memref<3x4x1xf32, #tpu.memory_space<vmem>>, vector<1x4x1xf32>
    %415 = vector.shape_cast %414 : vector<1x4x1xf32> to vector<4x1xf32>
    %416 = vector.extract_strided_slice %413 {offsets = [0, 0], sizes = [4, 1], strides = [1, 1]} : vector<4x4xf32> to vector<4x1xf32>
    %417 = vector.extract_strided_slice %411 {offsets = [0, 0], sizes = [1, 256], strides = [1, 1]} : vector<4x256xf32> to vector<1x256xf32>
    %418 = vector.broadcast %416 : vector<4x1xf32> to vector<4x256xf32>
    %419 = vector.broadcast %417 : vector<1x256xf32> to vector<4x256xf32>
    %420 = arith.mulf %418, %419 : vector<4x256xf32>
    %421 = vector.extract_strided_slice %413 {offsets = [0, 1], sizes = [4, 1], strides = [1, 1]} : vector<4x4xf32> to vector<4x1xf32>
    %422 = vector.extract_strided_slice %411 {offsets = [1, 0], sizes = [1, 256], strides = [1, 1]} : vector<4x256xf32> to vector<1x256xf32>
    %423 = vector.broadcast %421 : vector<4x1xf32> to vector<4x256xf32>
    %424 = vector.broadcast %422 : vector<1x256xf32> to vector<4x256xf32>
    %425 = arith.mulf %423, %424 : vector<4x256xf32>
    %426 = arith.addf %420, %425 : vector<4x256xf32>
    %427 = vector.extract_strided_slice %413 {offsets = [0, 2], sizes = [4, 1], strides = [1, 1]} : vector<4x4xf32> to vector<4x1xf32>
    %428 = vector.extract_strided_slice %411 {offsets = [2, 0], sizes = [1, 256], strides = [1, 1]} : vector<4x256xf32> to vector<1x256xf32>
    %429 = vector.broadcast %427 : vector<4x1xf32> to vector<4x256xf32>
    %430 = vector.broadcast %428 : vector<1x256xf32> to vector<4x256xf32>
    %431 = arith.mulf %429, %430 : vector<4x256xf32>
    %432 = arith.addf %426, %431 : vector<4x256xf32>
    %433 = vector.extract_strided_slice %413 {offsets = [0, 3], sizes = [4, 1], strides = [1, 1]} : vector<4x4xf32> to vector<4x1xf32>
    %434 = vector.extract_strided_slice %411 {offsets = [3, 0], sizes = [1, 256], strides = [1, 1]} : vector<4x256xf32> to vector<1x256xf32>
    %435 = vector.broadcast %433 : vector<4x1xf32> to vector<4x256xf32>
    %436 = vector.broadcast %434 : vector<1x256xf32> to vector<4x256xf32>
    %437 = arith.mulf %435, %436 : vector<4x256xf32>
    %438 = arith.addf %432, %437 : vector<4x256xf32>
    %439 = vector.broadcast %415 : vector<4x1xf32> to vector<4x256xf32>
    %440 = arith.addf %438, %439 : vector<4x256xf32>
    %441 = arith.negf %440 : vector<4x256xf32>
    %442 = math.exp %441 : vector<4x256xf32>
    %cst_183 = arith.constant 1.000000e+00 : f32
    %443 = vector.broadcast %cst_183 : f32 to vector<4x256xf32>
    %444 = arith.addf %443, %442 : vector<4x256xf32>
    %445 = arith.divf %443, %444 : vector<4x256xf32>
    %c1_i32_184 = arith.constant 1 : i32
    %446 = tpu.dynamic_rotate %445 by %c1_i32_184 dim 1 : vector<4x256xf32>, i32 -> vector<4x256xf32>
    %cst_185 = arith.constant 0.000000e+00 : f32
    %447 = vector.shape_cast %8 : vector<1x256xi1> to vector<1x256xi1>
    %448 = vector.broadcast %447 : vector<1x256xi1> to vector<4x256xi1>
    %449 = vector.broadcast %cst_185 : f32 to vector<4x256xf32>
    %450 = arith.select %448, %446, %449 : vector<4x256xi1>, vector<4x256xf32>
    %451 = arith.addf %445, %450 : vector<4x256xf32>
    %c255_i32_186 = arith.constant 255 : i32
    %452 = tpu.dynamic_rotate %445 by %c255_i32_186 dim 1 : vector<4x256xf32>, i32 -> vector<4x256xf32>
    %cst_187 = arith.constant 0.000000e+00 : f32
    %453 = vector.shape_cast %10 : vector<1x256xi1> to vector<1x256xi1>
    %454 = vector.broadcast %453 : vector<1x256xi1> to vector<4x256xi1>
    %455 = vector.broadcast %cst_187 : f32 to vector<4x256xf32>
    %456 = arith.select %454, %452, %455 : vector<4x256xi1>, vector<4x256xf32>
    %457 = arith.addf %451, %456 : vector<4x256xf32>
    %c16_i32_188 = arith.constant 16 : i32
    %458 = tpu.dynamic_rotate %457 by %c16_i32_188 dim 1 : vector<4x256xf32>, i32 -> vector<4x256xf32>
    %cst_189 = arith.constant 0.000000e+00 : f32
    %459 = vector.shape_cast %4 : vector<1x256xi1> to vector<1x256xi1>
    %460 = vector.broadcast %459 : vector<1x256xi1> to vector<4x256xi1>
    %461 = vector.broadcast %cst_189 : f32 to vector<4x256xf32>
    %462 = arith.select %460, %458, %461 : vector<4x256xi1>, vector<4x256xf32>
    %463 = arith.addf %457, %462 : vector<4x256xf32>
    %c240_i32_190 = arith.constant 240 : i32
    %464 = tpu.dynamic_rotate %457 by %c240_i32_190 dim 1 : vector<4x256xf32>, i32 -> vector<4x256xf32>
    %cst_191 = arith.constant 0.000000e+00 : f32
    %465 = vector.shape_cast %6 : vector<1x256xi1> to vector<1x256xi1>
    %466 = vector.broadcast %465 : vector<1x256xi1> to vector<4x256xi1>
    %467 = vector.broadcast %cst_191 : f32 to vector<4x256xf32>
    %468 = arith.select %466, %464, %467 : vector<4x256xi1>, vector<4x256xf32>
    %469 = arith.addf %463, %468 : vector<4x256xf32>
    %cst_192 = arith.constant 0.111111112 : f32
    %470 = vector.broadcast %cst_192 : f32 to vector<4x256xf32>
    %471 = arith.mulf %469, %470 : vector<4x256xf32>
    %472 = arith.subf %445, %471 : vector<4x256xf32>
    %c0_193 = arith.constant 0 : index
    %c0_194 = arith.constant 0 : index
    %c0_195 = arith.constant 0 : index
    %473 = vector.load %arg20[%c0_193, %c0_194, %c0_195] : memref<3x4x4xf32, #tpu.memory_space<vmem>>, vector<1x4x4xf32>
    %474 = vector.shape_cast %473 : vector<1x4x4xf32> to vector<4x4xf32>
    %c0_196 = arith.constant 0 : index
    %c0_197 = arith.constant 0 : index
    %c0_198 = arith.constant 0 : index
    %475 = vector.load %arg21[%c0_196, %c0_197, %c0_198] : memref<3x4x1xf32, #tpu.memory_space<vmem>>, vector<1x4x1xf32>
    %476 = vector.shape_cast %475 : vector<1x4x1xf32> to vector<4x1xf32>
    %477 = vector.extract_strided_slice %474 {offsets = [0, 0], sizes = [4, 1], strides = [1, 1]} : vector<4x4xf32> to vector<4x1xf32>
    %478 = vector.extract_strided_slice %472 {offsets = [0, 0], sizes = [1, 256], strides = [1, 1]} : vector<4x256xf32> to vector<1x256xf32>
    %479 = vector.broadcast %477 : vector<4x1xf32> to vector<4x256xf32>
    %480 = vector.broadcast %478 : vector<1x256xf32> to vector<4x256xf32>
    %481 = arith.mulf %479, %480 : vector<4x256xf32>
    %482 = vector.extract_strided_slice %474 {offsets = [0, 1], sizes = [4, 1], strides = [1, 1]} : vector<4x4xf32> to vector<4x1xf32>
    %483 = vector.extract_strided_slice %472 {offsets = [1, 0], sizes = [1, 256], strides = [1, 1]} : vector<4x256xf32> to vector<1x256xf32>
    %484 = vector.broadcast %482 : vector<4x1xf32> to vector<4x256xf32>
    %485 = vector.broadcast %483 : vector<1x256xf32> to vector<4x256xf32>
    %486 = arith.mulf %484, %485 : vector<4x256xf32>
    %487 = arith.addf %481, %486 : vector<4x256xf32>
    %488 = vector.extract_strided_slice %474 {offsets = [0, 2], sizes = [4, 1], strides = [1, 1]} : vector<4x4xf32> to vector<4x1xf32>
    %489 = vector.extract_strided_slice %472 {offsets = [2, 0], sizes = [1, 256], strides = [1, 1]} : vector<4x256xf32> to vector<1x256xf32>
    %490 = vector.broadcast %488 : vector<4x1xf32> to vector<4x256xf32>
    %491 = vector.broadcast %489 : vector<1x256xf32> to vector<4x256xf32>
    %492 = arith.mulf %490, %491 : vector<4x256xf32>
    %493 = arith.addf %487, %492 : vector<4x256xf32>
    %494 = vector.extract_strided_slice %474 {offsets = [0, 3], sizes = [4, 1], strides = [1, 1]} : vector<4x4xf32> to vector<4x1xf32>
    %495 = vector.extract_strided_slice %472 {offsets = [3, 0], sizes = [1, 256], strides = [1, 1]} : vector<4x256xf32> to vector<1x256xf32>
    %496 = vector.broadcast %494 : vector<4x1xf32> to vector<4x256xf32>
    %497 = vector.broadcast %495 : vector<1x256xf32> to vector<4x256xf32>
    %498 = arith.mulf %496, %497 : vector<4x256xf32>
    %499 = arith.addf %493, %498 : vector<4x256xf32>
    %500 = vector.broadcast %476 : vector<4x1xf32> to vector<4x256xf32>
    %501 = arith.addf %499, %500 : vector<4x256xf32>
    %502 = arith.negf %501 : vector<4x256xf32>
    %503 = math.exp %502 : vector<4x256xf32>
    %cst_199 = arith.constant 1.000000e+00 : f32
    %504 = vector.broadcast %cst_199 : f32 to vector<4x256xf32>
    %505 = arith.addf %504, %503 : vector<4x256xf32>
    %506 = arith.divf %504, %505 : vector<4x256xf32>
    %507 = arith.addf %445, %506 : vector<4x256xf32>
    %c1_i32_200 = arith.constant 1 : i32
    %508 = tpu.dynamic_rotate %445 by %c1_i32_200 dim 1 : vector<4x256xf32>, i32 -> vector<4x256xf32>
    %cst_201 = arith.constant 0.000000e+00 : f32
    %509 = vector.shape_cast %8 : vector<1x256xi1> to vector<1x256xi1>
    %510 = vector.broadcast %509 : vector<1x256xi1> to vector<4x256xi1>
    %511 = vector.broadcast %cst_201 : f32 to vector<4x256xf32>
    %512 = arith.select %510, %508, %511 : vector<4x256xi1>, vector<4x256xf32>
    %513 = arith.addf %445, %512 : vector<4x256xf32>
    %c255_i32_202 = arith.constant 255 : i32
    %514 = tpu.dynamic_rotate %445 by %c255_i32_202 dim 1 : vector<4x256xf32>, i32 -> vector<4x256xf32>
    %cst_203 = arith.constant 0.000000e+00 : f32
    %515 = vector.shape_cast %10 : vector<1x256xi1> to vector<1x256xi1>
    %516 = vector.broadcast %515 : vector<1x256xi1> to vector<4x256xi1>
    %517 = vector.broadcast %cst_203 : f32 to vector<4x256xf32>
    %518 = arith.select %516, %514, %517 : vector<4x256xi1>, vector<4x256xf32>
    %519 = arith.addf %513, %518 : vector<4x256xf32>
    %c16_i32_204 = arith.constant 16 : i32
    %520 = tpu.dynamic_rotate %519 by %c16_i32_204 dim 1 : vector<4x256xf32>, i32 -> vector<4x256xf32>
    %cst_205 = arith.constant 0.000000e+00 : f32
    %521 = vector.shape_cast %4 : vector<1x256xi1> to vector<1x256xi1>
    %522 = vector.broadcast %521 : vector<1x256xi1> to vector<4x256xi1>
    %523 = vector.broadcast %cst_205 : f32 to vector<4x256xf32>
    %524 = arith.select %522, %520, %523 : vector<4x256xi1>, vector<4x256xf32>
    %525 = arith.addf %519, %524 : vector<4x256xf32>
    %c240_i32_206 = arith.constant 240 : i32
    %526 = tpu.dynamic_rotate %519 by %c240_i32_206 dim 1 : vector<4x256xf32>, i32 -> vector<4x256xf32>
    %cst_207 = arith.constant 0.000000e+00 : f32
    %527 = vector.shape_cast %6 : vector<1x256xi1> to vector<1x256xi1>
    %528 = vector.broadcast %527 : vector<1x256xi1> to vector<4x256xi1>
    %529 = vector.broadcast %cst_207 : f32 to vector<4x256xf32>
    %530 = arith.select %528, %526, %529 : vector<4x256xi1>, vector<4x256xf32>
    %531 = arith.addf %525, %530 : vector<4x256xf32>
    %cst_208 = arith.constant 0.111111112 : f32
    %532 = vector.broadcast %cst_208 : f32 to vector<4x256xf32>
    %533 = arith.mulf %531, %532 : vector<4x256xf32>
    %c1_209 = arith.constant 1 : index
    %c0_210 = arith.constant 0 : index
    %c0_211 = arith.constant 0 : index
    %534 = vector.load %arg18[%c1_209, %c0_210, %c0_211] : memref<3x4x4xf32, #tpu.memory_space<vmem>>, vector<1x4x4xf32>
    %535 = vector.shape_cast %534 : vector<1x4x4xf32> to vector<4x4xf32>
    %c1_212 = arith.constant 1 : index
    %c0_213 = arith.constant 0 : index
    %c0_214 = arith.constant 0 : index
    %536 = vector.load %arg19[%c1_212, %c0_213, %c0_214] : memref<3x4x1xf32, #tpu.memory_space<vmem>>, vector<1x4x1xf32>
    %537 = vector.shape_cast %536 : vector<1x4x1xf32> to vector<4x1xf32>
    %538 = vector.extract_strided_slice %535 {offsets = [0, 0], sizes = [4, 1], strides = [1, 1]} : vector<4x4xf32> to vector<4x1xf32>
    %539 = vector.extract_strided_slice %533 {offsets = [0, 0], sizes = [1, 256], strides = [1, 1]} : vector<4x256xf32> to vector<1x256xf32>
    %540 = vector.broadcast %538 : vector<4x1xf32> to vector<4x256xf32>
    %541 = vector.broadcast %539 : vector<1x256xf32> to vector<4x256xf32>
    %542 = arith.mulf %540, %541 : vector<4x256xf32>
    %543 = vector.extract_strided_slice %535 {offsets = [0, 1], sizes = [4, 1], strides = [1, 1]} : vector<4x4xf32> to vector<4x1xf32>
    %544 = vector.extract_strided_slice %533 {offsets = [1, 0], sizes = [1, 256], strides = [1, 1]} : vector<4x256xf32> to vector<1x256xf32>
    %545 = vector.broadcast %543 : vector<4x1xf32> to vector<4x256xf32>
    %546 = vector.broadcast %544 : vector<1x256xf32> to vector<4x256xf32>
    %547 = arith.mulf %545, %546 : vector<4x256xf32>
    %548 = arith.addf %542, %547 : vector<4x256xf32>
    %549 = vector.extract_strided_slice %535 {offsets = [0, 2], sizes = [4, 1], strides = [1, 1]} : vector<4x4xf32> to vector<4x1xf32>
    %550 = vector.extract_strided_slice %533 {offsets = [2, 0], sizes = [1, 256], strides = [1, 1]} : vector<4x256xf32> to vector<1x256xf32>
    %551 = vector.broadcast %549 : vector<4x1xf32> to vector<4x256xf32>
    %552 = vector.broadcast %550 : vector<1x256xf32> to vector<4x256xf32>
    %553 = arith.mulf %551, %552 : vector<4x256xf32>
    %554 = arith.addf %548, %553 : vector<4x256xf32>
    %555 = vector.extract_strided_slice %535 {offsets = [0, 3], sizes = [4, 1], strides = [1, 1]} : vector<4x4xf32> to vector<4x1xf32>
    %556 = vector.extract_strided_slice %533 {offsets = [3, 0], sizes = [1, 256], strides = [1, 1]} : vector<4x256xf32> to vector<1x256xf32>
    %557 = vector.broadcast %555 : vector<4x1xf32> to vector<4x256xf32>
    %558 = vector.broadcast %556 : vector<1x256xf32> to vector<4x256xf32>
    %559 = arith.mulf %557, %558 : vector<4x256xf32>
    %560 = arith.addf %554, %559 : vector<4x256xf32>
    %561 = vector.broadcast %537 : vector<4x1xf32> to vector<4x256xf32>
    %562 = arith.addf %560, %561 : vector<4x256xf32>
    %563 = arith.negf %562 : vector<4x256xf32>
    %564 = math.exp %563 : vector<4x256xf32>
    %cst_215 = arith.constant 1.000000e+00 : f32
    %565 = vector.broadcast %cst_215 : f32 to vector<4x256xf32>
    %566 = arith.addf %565, %564 : vector<4x256xf32>
    %567 = arith.divf %565, %566 : vector<4x256xf32>
    %c1_i32_216 = arith.constant 1 : i32
    %568 = tpu.dynamic_rotate %567 by %c1_i32_216 dim 1 : vector<4x256xf32>, i32 -> vector<4x256xf32>
    %cst_217 = arith.constant 0.000000e+00 : f32
    %569 = vector.shape_cast %8 : vector<1x256xi1> to vector<1x256xi1>
    %570 = vector.broadcast %569 : vector<1x256xi1> to vector<4x256xi1>
    %571 = vector.broadcast %cst_217 : f32 to vector<4x256xf32>
    %572 = arith.select %570, %568, %571 : vector<4x256xi1>, vector<4x256xf32>
    %573 = arith.addf %567, %572 : vector<4x256xf32>
    %c255_i32_218 = arith.constant 255 : i32
    %574 = tpu.dynamic_rotate %567 by %c255_i32_218 dim 1 : vector<4x256xf32>, i32 -> vector<4x256xf32>
    %cst_219 = arith.constant 0.000000e+00 : f32
    %575 = vector.shape_cast %10 : vector<1x256xi1> to vector<1x256xi1>
    %576 = vector.broadcast %575 : vector<1x256xi1> to vector<4x256xi1>
    %577 = vector.broadcast %cst_219 : f32 to vector<4x256xf32>
    %578 = arith.select %576, %574, %577 : vector<4x256xi1>, vector<4x256xf32>
    %579 = arith.addf %573, %578 : vector<4x256xf32>
    %c16_i32_220 = arith.constant 16 : i32
    %580 = tpu.dynamic_rotate %579 by %c16_i32_220 dim 1 : vector<4x256xf32>, i32 -> vector<4x256xf32>
    %cst_221 = arith.constant 0.000000e+00 : f32
    %581 = vector.shape_cast %4 : vector<1x256xi1> to vector<1x256xi1>
    %582 = vector.broadcast %581 : vector<1x256xi1> to vector<4x256xi1>
    %583 = vector.broadcast %cst_221 : f32 to vector<4x256xf32>
    %584 = arith.select %582, %580, %583 : vector<4x256xi1>, vector<4x256xf32>
    %585 = arith.addf %579, %584 : vector<4x256xf32>
    %c240_i32_222 = arith.constant 240 : i32
    %586 = tpu.dynamic_rotate %579 by %c240_i32_222 dim 1 : vector<4x256xf32>, i32 -> vector<4x256xf32>
    %cst_223 = arith.constant 0.000000e+00 : f32
    %587 = vector.shape_cast %6 : vector<1x256xi1> to vector<1x256xi1>
    %588 = vector.broadcast %587 : vector<1x256xi1> to vector<4x256xi1>
    %589 = vector.broadcast %cst_223 : f32 to vector<4x256xf32>
    %590 = arith.select %588, %586, %589 : vector<4x256xi1>, vector<4x256xf32>
    %591 = arith.addf %585, %590 : vector<4x256xf32>
    %cst_224 = arith.constant 0.111111112 : f32
    %592 = vector.broadcast %cst_224 : f32 to vector<4x256xf32>
    %593 = arith.mulf %591, %592 : vector<4x256xf32>
    %594 = arith.subf %567, %593 : vector<4x256xf32>
    %c1_225 = arith.constant 1 : index
    %c0_226 = arith.constant 0 : index
    %c0_227 = arith.constant 0 : index
    %595 = vector.load %arg20[%c1_225, %c0_226, %c0_227] : memref<3x4x4xf32, #tpu.memory_space<vmem>>, vector<1x4x4xf32>
    %596 = vector.shape_cast %595 : vector<1x4x4xf32> to vector<4x4xf32>
    %c1_228 = arith.constant 1 : index
    %c0_229 = arith.constant 0 : index
    %c0_230 = arith.constant 0 : index
    %597 = vector.load %arg21[%c1_228, %c0_229, %c0_230] : memref<3x4x1xf32, #tpu.memory_space<vmem>>, vector<1x4x1xf32>
    %598 = vector.shape_cast %597 : vector<1x4x1xf32> to vector<4x1xf32>
    %599 = vector.extract_strided_slice %596 {offsets = [0, 0], sizes = [4, 1], strides = [1, 1]} : vector<4x4xf32> to vector<4x1xf32>
    %600 = vector.extract_strided_slice %594 {offsets = [0, 0], sizes = [1, 256], strides = [1, 1]} : vector<4x256xf32> to vector<1x256xf32>
    %601 = vector.broadcast %599 : vector<4x1xf32> to vector<4x256xf32>
    %602 = vector.broadcast %600 : vector<1x256xf32> to vector<4x256xf32>
    %603 = arith.mulf %601, %602 : vector<4x256xf32>
    %604 = vector.extract_strided_slice %596 {offsets = [0, 1], sizes = [4, 1], strides = [1, 1]} : vector<4x4xf32> to vector<4x1xf32>
    %605 = vector.extract_strided_slice %594 {offsets = [1, 0], sizes = [1, 256], strides = [1, 1]} : vector<4x256xf32> to vector<1x256xf32>
    %606 = vector.broadcast %604 : vector<4x1xf32> to vector<4x256xf32>
    %607 = vector.broadcast %605 : vector<1x256xf32> to vector<4x256xf32>
    %608 = arith.mulf %606, %607 : vector<4x256xf32>
    %609 = arith.addf %603, %608 : vector<4x256xf32>
    %610 = vector.extract_strided_slice %596 {offsets = [0, 2], sizes = [4, 1], strides = [1, 1]} : vector<4x4xf32> to vector<4x1xf32>
    %611 = vector.extract_strided_slice %594 {offsets = [2, 0], sizes = [1, 256], strides = [1, 1]} : vector<4x256xf32> to vector<1x256xf32>
    %612 = vector.broadcast %610 : vector<4x1xf32> to vector<4x256xf32>
    %613 = vector.broadcast %611 : vector<1x256xf32> to vector<4x256xf32>
    %614 = arith.mulf %612, %613 : vector<4x256xf32>
    %615 = arith.addf %609, %614 : vector<4x256xf32>
    %616 = vector.extract_strided_slice %596 {offsets = [0, 3], sizes = [4, 1], strides = [1, 1]} : vector<4x4xf32> to vector<4x1xf32>
    %617 = vector.extract_strided_slice %594 {offsets = [3, 0], sizes = [1, 256], strides = [1, 1]} : vector<4x256xf32> to vector<1x256xf32>
    %618 = vector.broadcast %616 : vector<4x1xf32> to vector<4x256xf32>
    %619 = vector.broadcast %617 : vector<1x256xf32> to vector<4x256xf32>
    %620 = arith.mulf %618, %619 : vector<4x256xf32>
    %621 = arith.addf %615, %620 : vector<4x256xf32>
    %622 = vector.broadcast %598 : vector<4x1xf32> to vector<4x256xf32>
    %623 = arith.addf %621, %622 : vector<4x256xf32>
    %624 = arith.negf %623 : vector<4x256xf32>
    %625 = math.exp %624 : vector<4x256xf32>
    %cst_231 = arith.constant 1.000000e+00 : f32
    %626 = vector.broadcast %cst_231 : f32 to vector<4x256xf32>
    %627 = arith.addf %626, %625 : vector<4x256xf32>
    %628 = arith.divf %626, %627 : vector<4x256xf32>
    %629 = arith.addf %567, %628 : vector<4x256xf32>
    %c1_i32_232 = arith.constant 1 : i32
    %630 = tpu.dynamic_rotate %567 by %c1_i32_232 dim 1 : vector<4x256xf32>, i32 -> vector<4x256xf32>
    %cst_233 = arith.constant 0.000000e+00 : f32
    %631 = vector.shape_cast %8 : vector<1x256xi1> to vector<1x256xi1>
    %632 = vector.broadcast %631 : vector<1x256xi1> to vector<4x256xi1>
    %633 = vector.broadcast %cst_233 : f32 to vector<4x256xf32>
    %634 = arith.select %632, %630, %633 : vector<4x256xi1>, vector<4x256xf32>
    %635 = arith.addf %567, %634 : vector<4x256xf32>
    %c255_i32_234 = arith.constant 255 : i32
    %636 = tpu.dynamic_rotate %567 by %c255_i32_234 dim 1 : vector<4x256xf32>, i32 -> vector<4x256xf32>
    %cst_235 = arith.constant 0.000000e+00 : f32
    %637 = vector.shape_cast %10 : vector<1x256xi1> to vector<1x256xi1>
    %638 = vector.broadcast %637 : vector<1x256xi1> to vector<4x256xi1>
    %639 = vector.broadcast %cst_235 : f32 to vector<4x256xf32>
    %640 = arith.select %638, %636, %639 : vector<4x256xi1>, vector<4x256xf32>
    %641 = arith.addf %635, %640 : vector<4x256xf32>
    %c16_i32_236 = arith.constant 16 : i32
    %642 = tpu.dynamic_rotate %641 by %c16_i32_236 dim 1 : vector<4x256xf32>, i32 -> vector<4x256xf32>
    %cst_237 = arith.constant 0.000000e+00 : f32
    %643 = vector.shape_cast %4 : vector<1x256xi1> to vector<1x256xi1>
    %644 = vector.broadcast %643 : vector<1x256xi1> to vector<4x256xi1>
    %645 = vector.broadcast %cst_237 : f32 to vector<4x256xf32>
    %646 = arith.select %644, %642, %645 : vector<4x256xi1>, vector<4x256xf32>
    %647 = arith.addf %641, %646 : vector<4x256xf32>
    %c240_i32_238 = arith.constant 240 : i32
    %648 = tpu.dynamic_rotate %641 by %c240_i32_238 dim 1 : vector<4x256xf32>, i32 -> vector<4x256xf32>
    %cst_239 = arith.constant 0.000000e+00 : f32
    %649 = vector.shape_cast %6 : vector<1x256xi1> to vector<1x256xi1>
    %650 = vector.broadcast %649 : vector<1x256xi1> to vector<4x256xi1>
    %651 = vector.broadcast %cst_239 : f32 to vector<4x256xf32>
    %652 = arith.select %650, %648, %651 : vector<4x256xi1>, vector<4x256xf32>
    %653 = arith.addf %647, %652 : vector<4x256xf32>
    %cst_240 = arith.constant 0.111111112 : f32
    %654 = vector.broadcast %cst_240 : f32 to vector<4x256xf32>
    %655 = arith.mulf %653, %654 : vector<4x256xf32>
    %c2_241 = arith.constant 2 : index
    %c0_242 = arith.constant 0 : index
    %c0_243 = arith.constant 0 : index
    %656 = vector.load %arg18[%c2_241, %c0_242, %c0_243] : memref<3x4x4xf32, #tpu.memory_space<vmem>>, vector<1x4x4xf32>
    %657 = vector.shape_cast %656 : vector<1x4x4xf32> to vector<4x4xf32>
    %c2_244 = arith.constant 2 : index
    %c0_245 = arith.constant 0 : index
    %c0_246 = arith.constant 0 : index
    %658 = vector.load %arg19[%c2_244, %c0_245, %c0_246] : memref<3x4x1xf32, #tpu.memory_space<vmem>>, vector<1x4x1xf32>
    %659 = vector.shape_cast %658 : vector<1x4x1xf32> to vector<4x1xf32>
    %660 = vector.extract_strided_slice %657 {offsets = [0, 0], sizes = [4, 1], strides = [1, 1]} : vector<4x4xf32> to vector<4x1xf32>
    %661 = vector.extract_strided_slice %655 {offsets = [0, 0], sizes = [1, 256], strides = [1, 1]} : vector<4x256xf32> to vector<1x256xf32>
    %662 = vector.broadcast %660 : vector<4x1xf32> to vector<4x256xf32>
    %663 = vector.broadcast %661 : vector<1x256xf32> to vector<4x256xf32>
    %664 = arith.mulf %662, %663 : vector<4x256xf32>
    %665 = vector.extract_strided_slice %657 {offsets = [0, 1], sizes = [4, 1], strides = [1, 1]} : vector<4x4xf32> to vector<4x1xf32>
    %666 = vector.extract_strided_slice %655 {offsets = [1, 0], sizes = [1, 256], strides = [1, 1]} : vector<4x256xf32> to vector<1x256xf32>
    %667 = vector.broadcast %665 : vector<4x1xf32> to vector<4x256xf32>
    %668 = vector.broadcast %666 : vector<1x256xf32> to vector<4x256xf32>
    %669 = arith.mulf %667, %668 : vector<4x256xf32>
    %670 = arith.addf %664, %669 : vector<4x256xf32>
    %671 = vector.extract_strided_slice %657 {offsets = [0, 2], sizes = [4, 1], strides = [1, 1]} : vector<4x4xf32> to vector<4x1xf32>
    %672 = vector.extract_strided_slice %655 {offsets = [2, 0], sizes = [1, 256], strides = [1, 1]} : vector<4x256xf32> to vector<1x256xf32>
    %673 = vector.broadcast %671 : vector<4x1xf32> to vector<4x256xf32>
    %674 = vector.broadcast %672 : vector<1x256xf32> to vector<4x256xf32>
    %675 = arith.mulf %673, %674 : vector<4x256xf32>
    %676 = arith.addf %670, %675 : vector<4x256xf32>
    %677 = vector.extract_strided_slice %657 {offsets = [0, 3], sizes = [4, 1], strides = [1, 1]} : vector<4x4xf32> to vector<4x1xf32>
    %678 = vector.extract_strided_slice %655 {offsets = [3, 0], sizes = [1, 256], strides = [1, 1]} : vector<4x256xf32> to vector<1x256xf32>
    %679 = vector.broadcast %677 : vector<4x1xf32> to vector<4x256xf32>
    %680 = vector.broadcast %678 : vector<1x256xf32> to vector<4x256xf32>
    %681 = arith.mulf %679, %680 : vector<4x256xf32>
    %682 = arith.addf %676, %681 : vector<4x256xf32>
    %683 = vector.broadcast %659 : vector<4x1xf32> to vector<4x256xf32>
    %684 = arith.addf %682, %683 : vector<4x256xf32>
    %685 = arith.negf %684 : vector<4x256xf32>
    %686 = math.exp %685 : vector<4x256xf32>
    %cst_247 = arith.constant 1.000000e+00 : f32
    %687 = vector.broadcast %cst_247 : f32 to vector<4x256xf32>
    %688 = arith.addf %687, %686 : vector<4x256xf32>
    %689 = arith.divf %687, %688 : vector<4x256xf32>
    %c1_i32_248 = arith.constant 1 : i32
    %690 = tpu.dynamic_rotate %689 by %c1_i32_248 dim 1 : vector<4x256xf32>, i32 -> vector<4x256xf32>
    %cst_249 = arith.constant 0.000000e+00 : f32
    %691 = vector.shape_cast %8 : vector<1x256xi1> to vector<1x256xi1>
    %692 = vector.broadcast %691 : vector<1x256xi1> to vector<4x256xi1>
    %693 = vector.broadcast %cst_249 : f32 to vector<4x256xf32>
    %694 = arith.select %692, %690, %693 : vector<4x256xi1>, vector<4x256xf32>
    %695 = arith.addf %689, %694 : vector<4x256xf32>
    %c255_i32_250 = arith.constant 255 : i32
    %696 = tpu.dynamic_rotate %689 by %c255_i32_250 dim 1 : vector<4x256xf32>, i32 -> vector<4x256xf32>
    %cst_251 = arith.constant 0.000000e+00 : f32
    %697 = vector.shape_cast %10 : vector<1x256xi1> to vector<1x256xi1>
    %698 = vector.broadcast %697 : vector<1x256xi1> to vector<4x256xi1>
    %699 = vector.broadcast %cst_251 : f32 to vector<4x256xf32>
    %700 = arith.select %698, %696, %699 : vector<4x256xi1>, vector<4x256xf32>
    %701 = arith.addf %695, %700 : vector<4x256xf32>
    %c16_i32_252 = arith.constant 16 : i32
    %702 = tpu.dynamic_rotate %701 by %c16_i32_252 dim 1 : vector<4x256xf32>, i32 -> vector<4x256xf32>
    %cst_253 = arith.constant 0.000000e+00 : f32
    %703 = vector.shape_cast %4 : vector<1x256xi1> to vector<1x256xi1>
    %704 = vector.broadcast %703 : vector<1x256xi1> to vector<4x256xi1>
    %705 = vector.broadcast %cst_253 : f32 to vector<4x256xf32>
    %706 = arith.select %704, %702, %705 : vector<4x256xi1>, vector<4x256xf32>
    %707 = arith.addf %701, %706 : vector<4x256xf32>
    %c240_i32_254 = arith.constant 240 : i32
    %708 = tpu.dynamic_rotate %701 by %c240_i32_254 dim 1 : vector<4x256xf32>, i32 -> vector<4x256xf32>
    %cst_255 = arith.constant 0.000000e+00 : f32
    %709 = vector.shape_cast %6 : vector<1x256xi1> to vector<1x256xi1>
    %710 = vector.broadcast %709 : vector<1x256xi1> to vector<4x256xi1>
    %711 = vector.broadcast %cst_255 : f32 to vector<4x256xf32>
    %712 = arith.select %710, %708, %711 : vector<4x256xi1>, vector<4x256xf32>
    %713 = arith.addf %707, %712 : vector<4x256xf32>
    %cst_256 = arith.constant 0.111111112 : f32
    %714 = vector.broadcast %cst_256 : f32 to vector<4x256xf32>
    %715 = arith.mulf %713, %714 : vector<4x256xf32>
    %716 = arith.subf %689, %715 : vector<4x256xf32>
    %c2_257 = arith.constant 2 : index
    %c0_258 = arith.constant 0 : index
    %c0_259 = arith.constant 0 : index
    %717 = vector.load %arg20[%c2_257, %c0_258, %c0_259] : memref<3x4x4xf32, #tpu.memory_space<vmem>>, vector<1x4x4xf32>
    %718 = vector.shape_cast %717 : vector<1x4x4xf32> to vector<4x4xf32>
    %c2_260 = arith.constant 2 : index
    %c0_261 = arith.constant 0 : index
    %c0_262 = arith.constant 0 : index
    %719 = vector.load %arg21[%c2_260, %c0_261, %c0_262] : memref<3x4x1xf32, #tpu.memory_space<vmem>>, vector<1x4x1xf32>
    %720 = vector.shape_cast %719 : vector<1x4x1xf32> to vector<4x1xf32>
    %721 = vector.extract_strided_slice %718 {offsets = [0, 0], sizes = [4, 1], strides = [1, 1]} : vector<4x4xf32> to vector<4x1xf32>
    %722 = vector.extract_strided_slice %716 {offsets = [0, 0], sizes = [1, 256], strides = [1, 1]} : vector<4x256xf32> to vector<1x256xf32>
    %723 = vector.broadcast %721 : vector<4x1xf32> to vector<4x256xf32>
    %724 = vector.broadcast %722 : vector<1x256xf32> to vector<4x256xf32>
    %725 = arith.mulf %723, %724 : vector<4x256xf32>
    %726 = vector.extract_strided_slice %718 {offsets = [0, 1], sizes = [4, 1], strides = [1, 1]} : vector<4x4xf32> to vector<4x1xf32>
    %727 = vector.extract_strided_slice %716 {offsets = [1, 0], sizes = [1, 256], strides = [1, 1]} : vector<4x256xf32> to vector<1x256xf32>
    %728 = vector.broadcast %726 : vector<4x1xf32> to vector<4x256xf32>
    %729 = vector.broadcast %727 : vector<1x256xf32> to vector<4x256xf32>
    %730 = arith.mulf %728, %729 : vector<4x256xf32>
    %731 = arith.addf %725, %730 : vector<4x256xf32>
    %732 = vector.extract_strided_slice %718 {offsets = [0, 2], sizes = [4, 1], strides = [1, 1]} : vector<4x4xf32> to vector<4x1xf32>
    %733 = vector.extract_strided_slice %716 {offsets = [2, 0], sizes = [1, 256], strides = [1, 1]} : vector<4x256xf32> to vector<1x256xf32>
    %734 = vector.broadcast %732 : vector<4x1xf32> to vector<4x256xf32>
    %735 = vector.broadcast %733 : vector<1x256xf32> to vector<4x256xf32>
    %736 = arith.mulf %734, %735 : vector<4x256xf32>
    %737 = arith.addf %731, %736 : vector<4x256xf32>
    %738 = vector.extract_strided_slice %718 {offsets = [0, 3], sizes = [4, 1], strides = [1, 1]} : vector<4x4xf32> to vector<4x1xf32>
    %739 = vector.extract_strided_slice %716 {offsets = [3, 0], sizes = [1, 256], strides = [1, 1]} : vector<4x256xf32> to vector<1x256xf32>
    %740 = vector.broadcast %738 : vector<4x1xf32> to vector<4x256xf32>
    %741 = vector.broadcast %739 : vector<1x256xf32> to vector<4x256xf32>
    %742 = arith.mulf %740, %741 : vector<4x256xf32>
    %743 = arith.addf %737, %742 : vector<4x256xf32>
    %744 = vector.broadcast %720 : vector<4x1xf32> to vector<4x256xf32>
    %745 = arith.addf %743, %744 : vector<4x256xf32>
    %746 = arith.negf %745 : vector<4x256xf32>
    %747 = math.exp %746 : vector<4x256xf32>
    %cst_263 = arith.constant 1.000000e+00 : f32
    %748 = vector.broadcast %cst_263 : f32 to vector<4x256xf32>
    %749 = arith.addf %748, %747 : vector<4x256xf32>
    %750 = arith.divf %748, %749 : vector<4x256xf32>
    %751 = arith.addf %689, %750 : vector<4x256xf32>
    %c0_264 = arith.constant 0 : index
    %c0_265 = arith.constant 0 : index
    %c0_266 = arith.constant 0 : index
    %752 = vector.load %arg22[%c0_264, %c0_265, %c0_266] : memref<4x8x4xf32, #tpu.memory_space<vmem>>, vector<1x8x4xf32>
    %753 = vector.shape_cast %752 : vector<1x8x4xf32> to vector<8x4xf32>
    %754 = vector.extract_strided_slice %753 {offsets = [0, 0], sizes = [8, 1], strides = [1, 1]} : vector<8x4xf32> to vector<8x1xf32>
    %755 = vector.extract_strided_slice %385 {offsets = [0, 0], sizes = [1, 256], strides = [1, 1]} : vector<4x256xf32> to vector<1x256xf32>
    %756 = vector.broadcast %754 : vector<8x1xf32> to vector<8x256xf32>
    %757 = vector.broadcast %755 : vector<1x256xf32> to vector<8x256xf32>
    %758 = arith.mulf %756, %757 : vector<8x256xf32>
    %759 = vector.extract_strided_slice %753 {offsets = [0, 1], sizes = [8, 1], strides = [1, 1]} : vector<8x4xf32> to vector<8x1xf32>
    %760 = vector.extract_strided_slice %385 {offsets = [1, 0], sizes = [1, 256], strides = [1, 1]} : vector<4x256xf32> to vector<1x256xf32>
    %761 = vector.broadcast %759 : vector<8x1xf32> to vector<8x256xf32>
    %762 = vector.broadcast %760 : vector<1x256xf32> to vector<8x256xf32>
    %763 = arith.mulf %761, %762 : vector<8x256xf32>
    %764 = arith.addf %758, %763 : vector<8x256xf32>
    %765 = vector.extract_strided_slice %753 {offsets = [0, 2], sizes = [8, 1], strides = [1, 1]} : vector<8x4xf32> to vector<8x1xf32>
    %766 = vector.extract_strided_slice %385 {offsets = [2, 0], sizes = [1, 256], strides = [1, 1]} : vector<4x256xf32> to vector<1x256xf32>
    %767 = vector.broadcast %765 : vector<8x1xf32> to vector<8x256xf32>
    %768 = vector.broadcast %766 : vector<1x256xf32> to vector<8x256xf32>
    %769 = arith.mulf %767, %768 : vector<8x256xf32>
    %770 = arith.addf %764, %769 : vector<8x256xf32>
    %771 = vector.extract_strided_slice %753 {offsets = [0, 3], sizes = [8, 1], strides = [1, 1]} : vector<8x4xf32> to vector<8x1xf32>
    %772 = vector.extract_strided_slice %385 {offsets = [3, 0], sizes = [1, 256], strides = [1, 1]} : vector<4x256xf32> to vector<1x256xf32>
    %773 = vector.broadcast %771 : vector<8x1xf32> to vector<8x256xf32>
    %774 = vector.broadcast %772 : vector<1x256xf32> to vector<8x256xf32>
    %775 = arith.mulf %773, %774 : vector<8x256xf32>
    %776 = arith.addf %770, %775 : vector<8x256xf32>
    %c1_267 = arith.constant 1 : index
    %c0_268 = arith.constant 0 : index
    %c0_269 = arith.constant 0 : index
    %777 = vector.load %arg22[%c1_267, %c0_268, %c0_269] : memref<4x8x4xf32, #tpu.memory_space<vmem>>, vector<1x8x4xf32>
    %778 = vector.shape_cast %777 : vector<1x8x4xf32> to vector<8x4xf32>
    %779 = vector.extract_strided_slice %778 {offsets = [0, 0], sizes = [8, 1], strides = [1, 1]} : vector<8x4xf32> to vector<8x1xf32>
    %780 = vector.extract_strided_slice %507 {offsets = [0, 0], sizes = [1, 256], strides = [1, 1]} : vector<4x256xf32> to vector<1x256xf32>
    %781 = vector.broadcast %779 : vector<8x1xf32> to vector<8x256xf32>
    %782 = vector.broadcast %780 : vector<1x256xf32> to vector<8x256xf32>
    %783 = arith.mulf %781, %782 : vector<8x256xf32>
    %784 = arith.addf %776, %783 : vector<8x256xf32>
    %785 = vector.extract_strided_slice %778 {offsets = [0, 1], sizes = [8, 1], strides = [1, 1]} : vector<8x4xf32> to vector<8x1xf32>
    %786 = vector.extract_strided_slice %507 {offsets = [1, 0], sizes = [1, 256], strides = [1, 1]} : vector<4x256xf32> to vector<1x256xf32>
    %787 = vector.broadcast %785 : vector<8x1xf32> to vector<8x256xf32>
    %788 = vector.broadcast %786 : vector<1x256xf32> to vector<8x256xf32>
    %789 = arith.mulf %787, %788 : vector<8x256xf32>
    %790 = arith.addf %784, %789 : vector<8x256xf32>
    %791 = vector.extract_strided_slice %778 {offsets = [0, 2], sizes = [8, 1], strides = [1, 1]} : vector<8x4xf32> to vector<8x1xf32>
    %792 = vector.extract_strided_slice %507 {offsets = [2, 0], sizes = [1, 256], strides = [1, 1]} : vector<4x256xf32> to vector<1x256xf32>
    %793 = vector.broadcast %791 : vector<8x1xf32> to vector<8x256xf32>
    %794 = vector.broadcast %792 : vector<1x256xf32> to vector<8x256xf32>
    %795 = arith.mulf %793, %794 : vector<8x256xf32>
    %796 = arith.addf %790, %795 : vector<8x256xf32>
    %797 = vector.extract_strided_slice %778 {offsets = [0, 3], sizes = [8, 1], strides = [1, 1]} : vector<8x4xf32> to vector<8x1xf32>
    %798 = vector.extract_strided_slice %507 {offsets = [3, 0], sizes = [1, 256], strides = [1, 1]} : vector<4x256xf32> to vector<1x256xf32>
    %799 = vector.broadcast %797 : vector<8x1xf32> to vector<8x256xf32>
    %800 = vector.broadcast %798 : vector<1x256xf32> to vector<8x256xf32>
    %801 = arith.mulf %799, %800 : vector<8x256xf32>
    %802 = arith.addf %796, %801 : vector<8x256xf32>
    %c2_270 = arith.constant 2 : index
    %c0_271 = arith.constant 0 : index
    %c0_272 = arith.constant 0 : index
    %803 = vector.load %arg22[%c2_270, %c0_271, %c0_272] : memref<4x8x4xf32, #tpu.memory_space<vmem>>, vector<1x8x4xf32>
    %804 = vector.shape_cast %803 : vector<1x8x4xf32> to vector<8x4xf32>
    %805 = vector.extract_strided_slice %804 {offsets = [0, 0], sizes = [8, 1], strides = [1, 1]} : vector<8x4xf32> to vector<8x1xf32>
    %806 = vector.extract_strided_slice %629 {offsets = [0, 0], sizes = [1, 256], strides = [1, 1]} : vector<4x256xf32> to vector<1x256xf32>
    %807 = vector.broadcast %805 : vector<8x1xf32> to vector<8x256xf32>
    %808 = vector.broadcast %806 : vector<1x256xf32> to vector<8x256xf32>
    %809 = arith.mulf %807, %808 : vector<8x256xf32>
    %810 = arith.addf %802, %809 : vector<8x256xf32>
    %811 = vector.extract_strided_slice %804 {offsets = [0, 1], sizes = [8, 1], strides = [1, 1]} : vector<8x4xf32> to vector<8x1xf32>
    %812 = vector.extract_strided_slice %629 {offsets = [1, 0], sizes = [1, 256], strides = [1, 1]} : vector<4x256xf32> to vector<1x256xf32>
    %813 = vector.broadcast %811 : vector<8x1xf32> to vector<8x256xf32>
    %814 = vector.broadcast %812 : vector<1x256xf32> to vector<8x256xf32>
    %815 = arith.mulf %813, %814 : vector<8x256xf32>
    %816 = arith.addf %810, %815 : vector<8x256xf32>
    %817 = vector.extract_strided_slice %804 {offsets = [0, 2], sizes = [8, 1], strides = [1, 1]} : vector<8x4xf32> to vector<8x1xf32>
    %818 = vector.extract_strided_slice %629 {offsets = [2, 0], sizes = [1, 256], strides = [1, 1]} : vector<4x256xf32> to vector<1x256xf32>
    %819 = vector.broadcast %817 : vector<8x1xf32> to vector<8x256xf32>
    %820 = vector.broadcast %818 : vector<1x256xf32> to vector<8x256xf32>
    %821 = arith.mulf %819, %820 : vector<8x256xf32>
    %822 = arith.addf %816, %821 : vector<8x256xf32>
    %823 = vector.extract_strided_slice %804 {offsets = [0, 3], sizes = [8, 1], strides = [1, 1]} : vector<8x4xf32> to vector<8x1xf32>
    %824 = vector.extract_strided_slice %629 {offsets = [3, 0], sizes = [1, 256], strides = [1, 1]} : vector<4x256xf32> to vector<1x256xf32>
    %825 = vector.broadcast %823 : vector<8x1xf32> to vector<8x256xf32>
    %826 = vector.broadcast %824 : vector<1x256xf32> to vector<8x256xf32>
    %827 = arith.mulf %825, %826 : vector<8x256xf32>
    %828 = arith.addf %822, %827 : vector<8x256xf32>
    %c3_273 = arith.constant 3 : index
    %c0_274 = arith.constant 0 : index
    %c0_275 = arith.constant 0 : index
    %829 = vector.load %arg22[%c3_273, %c0_274, %c0_275] : memref<4x8x4xf32, #tpu.memory_space<vmem>>, vector<1x8x4xf32>
    %830 = vector.shape_cast %829 : vector<1x8x4xf32> to vector<8x4xf32>
    %831 = vector.extract_strided_slice %830 {offsets = [0, 0], sizes = [8, 1], strides = [1, 1]} : vector<8x4xf32> to vector<8x1xf32>
    %832 = vector.extract_strided_slice %751 {offsets = [0, 0], sizes = [1, 256], strides = [1, 1]} : vector<4x256xf32> to vector<1x256xf32>
    %833 = vector.broadcast %831 : vector<8x1xf32> to vector<8x256xf32>
    %834 = vector.broadcast %832 : vector<1x256xf32> to vector<8x256xf32>
    %835 = arith.mulf %833, %834 : vector<8x256xf32>
    %836 = arith.addf %828, %835 : vector<8x256xf32>
    %837 = vector.extract_strided_slice %830 {offsets = [0, 1], sizes = [8, 1], strides = [1, 1]} : vector<8x4xf32> to vector<8x1xf32>
    %838 = vector.extract_strided_slice %751 {offsets = [1, 0], sizes = [1, 256], strides = [1, 1]} : vector<4x256xf32> to vector<1x256xf32>
    %839 = vector.broadcast %837 : vector<8x1xf32> to vector<8x256xf32>
    %840 = vector.broadcast %838 : vector<1x256xf32> to vector<8x256xf32>
    %841 = arith.mulf %839, %840 : vector<8x256xf32>
    %842 = arith.addf %836, %841 : vector<8x256xf32>
    %843 = vector.extract_strided_slice %830 {offsets = [0, 2], sizes = [8, 1], strides = [1, 1]} : vector<8x4xf32> to vector<8x1xf32>
    %844 = vector.extract_strided_slice %751 {offsets = [2, 0], sizes = [1, 256], strides = [1, 1]} : vector<4x256xf32> to vector<1x256xf32>
    %845 = vector.broadcast %843 : vector<8x1xf32> to vector<8x256xf32>
    %846 = vector.broadcast %844 : vector<1x256xf32> to vector<8x256xf32>
    %847 = arith.mulf %845, %846 : vector<8x256xf32>
    %848 = arith.addf %842, %847 : vector<8x256xf32>
    %849 = vector.extract_strided_slice %830 {offsets = [0, 3], sizes = [8, 1], strides = [1, 1]} : vector<8x4xf32> to vector<8x1xf32>
    %850 = vector.extract_strided_slice %751 {offsets = [3, 0], sizes = [1, 256], strides = [1, 1]} : vector<4x256xf32> to vector<1x256xf32>
    %851 = vector.broadcast %849 : vector<8x1xf32> to vector<8x256xf32>
    %852 = vector.broadcast %850 : vector<1x256xf32> to vector<8x256xf32>
    %853 = arith.mulf %851, %852 : vector<8x256xf32>
    %854 = arith.addf %848, %853 : vector<8x256xf32>
    %c0_276 = arith.constant 0 : index
    %c0_277 = arith.constant 0 : index
    %855 = vector.load %arg23[%c0_276, %c0_277] : memref<8x1xf32, #tpu.memory_space<vmem>>, vector<8x1xf32>
    %856 = vector.broadcast %855 : vector<8x1xf32> to vector<8x256xf32>
    %857 = arith.addf %854, %856 : vector<8x256xf32>
    %cst_278 = arith.constant 0.000000e+00 : f32
    %858 = vector.broadcast %cst_278 : f32 to vector<8x256xf32>
    %859 = arith.maximumf %857, %858 : vector<8x256xf32>
    %860 = arith.addf %859, %329 : vector<8x256xf32>
    %861 = tpu.concatenate %229, %860 in 0 : vector<8x256xf32>, vector<8x256xf32> -> vector<16x256xf32>
    %c0_279 = arith.constant 0 : index
    %c0_280 = arith.constant 0 : index
    %862 = vector.load %arg25[%c0_279, %c0_280] : memref<32x1xf32, #tpu.memory_space<vmem>>, vector<32x1xf32>
    %c17_i32_281 = arith.constant 17 : i32
    %863 = tpu.dynamic_rotate %861 by %c17_i32_281 dim 1 : vector<16x256xf32>, i32 -> vector<16x256xf32>
    %cst_282 = arith.constant 0.000000e+00 : f32
    %864 = vector.shape_cast %11 : vector<1x256xi1> to vector<1x256xi1>
    %865 = vector.broadcast %864 : vector<1x256xi1> to vector<16x256xi1>
    %866 = vector.broadcast %cst_282 : f32 to vector<16x256xf32>
    %867 = arith.select %865, %863, %866 : vector<16x256xi1>, vector<16x256xf32>
    %868 = arith.truncf %867 : vector<16x256xf32> to vector<16x256xbf16>
    %c0_283 = arith.constant 0 : index
    %c0_284 = arith.constant 0 : index
    %c0_285 = arith.constant 0 : index
    %869 = vector.load %arg24[%c0_283, %c0_284, %c0_285] : memref<9x32x16xf32, #tpu.memory_space<vmem>>, vector<1x32x16xf32>
    %870 = vector.shape_cast %869 : vector<1x32x16xf32> to vector<32x16xf32>
    %871 = arith.truncf %870 : vector<32x16xf32> to vector<32x16xbf16>
    %cst_286 = arith.constant dense<0.000000e+00> : vector<32x256xf32>
    %872 = tpu.matmul %871, %868, %cst_286 {dimension_numbers = #tpu.dot_dimension_numbers<[1], [0], [0], [1], [0, 0, 1, 1], [], []>} : vector<32x16xbf16>, vector<16x256xbf16>, vector<32x256xf32> -> vector<32x256xf32>
    %c16_i32_287 = arith.constant 16 : i32
    %873 = tpu.dynamic_rotate %861 by %c16_i32_287 dim 1 : vector<16x256xf32>, i32 -> vector<16x256xf32>
    %cst_288 = arith.constant 0.000000e+00 : f32
    %874 = vector.shape_cast %4 : vector<1x256xi1> to vector<1x256xi1>
    %875 = vector.broadcast %874 : vector<1x256xi1> to vector<16x256xi1>
    %876 = vector.broadcast %cst_288 : f32 to vector<16x256xf32>
    %877 = arith.select %875, %873, %876 : vector<16x256xi1>, vector<16x256xf32>
    %878 = arith.truncf %877 : vector<16x256xf32> to vector<16x256xbf16>
    %c1_289 = arith.constant 1 : index
    %c0_290 = arith.constant 0 : index
    %c0_291 = arith.constant 0 : index
    %879 = vector.load %arg24[%c1_289, %c0_290, %c0_291] : memref<9x32x16xf32, #tpu.memory_space<vmem>>, vector<1x32x16xf32>
    %880 = vector.shape_cast %879 : vector<1x32x16xf32> to vector<32x16xf32>
    %881 = arith.truncf %880 : vector<32x16xf32> to vector<32x16xbf16>
    %cst_292 = arith.constant dense<0.000000e+00> : vector<32x256xf32>
    %882 = tpu.matmul %881, %878, %cst_292 {dimension_numbers = #tpu.dot_dimension_numbers<[1], [0], [0], [1], [0, 0, 1, 1], [], []>} : vector<32x16xbf16>, vector<16x256xbf16>, vector<32x256xf32> -> vector<32x256xf32>
    %883 = arith.addf %872, %882 : vector<32x256xf32>
    %c15_i32_293 = arith.constant 15 : i32
    %884 = tpu.dynamic_rotate %861 by %c15_i32_293 dim 1 : vector<16x256xf32>, i32 -> vector<16x256xf32>
    %cst_294 = arith.constant 0.000000e+00 : f32
    %885 = vector.shape_cast %12 : vector<1x256xi1> to vector<1x256xi1>
    %886 = vector.broadcast %885 : vector<1x256xi1> to vector<16x256xi1>
    %887 = vector.broadcast %cst_294 : f32 to vector<16x256xf32>
    %888 = arith.select %886, %884, %887 : vector<16x256xi1>, vector<16x256xf32>
    %889 = arith.truncf %888 : vector<16x256xf32> to vector<16x256xbf16>
    %c2_295 = arith.constant 2 : index
    %c0_296 = arith.constant 0 : index
    %c0_297 = arith.constant 0 : index
    %890 = vector.load %arg24[%c2_295, %c0_296, %c0_297] : memref<9x32x16xf32, #tpu.memory_space<vmem>>, vector<1x32x16xf32>
    %891 = vector.shape_cast %890 : vector<1x32x16xf32> to vector<32x16xf32>
    %892 = arith.truncf %891 : vector<32x16xf32> to vector<32x16xbf16>
    %cst_298 = arith.constant dense<0.000000e+00> : vector<32x256xf32>
    %893 = tpu.matmul %892, %889, %cst_298 {dimension_numbers = #tpu.dot_dimension_numbers<[1], [0], [0], [1], [0, 0, 1, 1], [], []>} : vector<32x16xbf16>, vector<16x256xbf16>, vector<32x256xf32> -> vector<32x256xf32>
    %894 = arith.addf %883, %893 : vector<32x256xf32>
    %c1_i32_299 = arith.constant 1 : i32
    %895 = tpu.dynamic_rotate %861 by %c1_i32_299 dim 1 : vector<16x256xf32>, i32 -> vector<16x256xf32>
    %cst_300 = arith.constant 0.000000e+00 : f32
    %896 = vector.shape_cast %8 : vector<1x256xi1> to vector<1x256xi1>
    %897 = vector.broadcast %896 : vector<1x256xi1> to vector<16x256xi1>
    %898 = vector.broadcast %cst_300 : f32 to vector<16x256xf32>
    %899 = arith.select %897, %895, %898 : vector<16x256xi1>, vector<16x256xf32>
    %900 = arith.truncf %899 : vector<16x256xf32> to vector<16x256xbf16>
    %c3_301 = arith.constant 3 : index
    %c0_302 = arith.constant 0 : index
    %c0_303 = arith.constant 0 : index
    %901 = vector.load %arg24[%c3_301, %c0_302, %c0_303] : memref<9x32x16xf32, #tpu.memory_space<vmem>>, vector<1x32x16xf32>
    %902 = vector.shape_cast %901 : vector<1x32x16xf32> to vector<32x16xf32>
    %903 = arith.truncf %902 : vector<32x16xf32> to vector<32x16xbf16>
    %cst_304 = arith.constant dense<0.000000e+00> : vector<32x256xf32>
    %904 = tpu.matmul %903, %900, %cst_304 {dimension_numbers = #tpu.dot_dimension_numbers<[1], [0], [0], [1], [0, 0, 1, 1], [], []>} : vector<32x16xbf16>, vector<16x256xbf16>, vector<32x256xf32> -> vector<32x256xf32>
    %905 = arith.addf %894, %904 : vector<32x256xf32>
    %906 = arith.truncf %861 : vector<16x256xf32> to vector<16x256xbf16>
    %c4_305 = arith.constant 4 : index
    %c0_306 = arith.constant 0 : index
    %c0_307 = arith.constant 0 : index
    %907 = vector.load %arg24[%c4_305, %c0_306, %c0_307] : memref<9x32x16xf32, #tpu.memory_space<vmem>>, vector<1x32x16xf32>
    %908 = vector.shape_cast %907 : vector<1x32x16xf32> to vector<32x16xf32>
    %909 = arith.truncf %908 : vector<32x16xf32> to vector<32x16xbf16>
    %cst_308 = arith.constant dense<0.000000e+00> : vector<32x256xf32>
    %910 = tpu.matmul %909, %906, %cst_308 {dimension_numbers = #tpu.dot_dimension_numbers<[1], [0], [0], [1], [0, 0, 1, 1], [], []>} : vector<32x16xbf16>, vector<16x256xbf16>, vector<32x256xf32> -> vector<32x256xf32>
    %911 = arith.addf %905, %910 : vector<32x256xf32>
    %c255_i32_309 = arith.constant 255 : i32
    %912 = tpu.dynamic_rotate %861 by %c255_i32_309 dim 1 : vector<16x256xf32>, i32 -> vector<16x256xf32>
    %cst_310 = arith.constant 0.000000e+00 : f32
    %913 = vector.shape_cast %10 : vector<1x256xi1> to vector<1x256xi1>
    %914 = vector.broadcast %913 : vector<1x256xi1> to vector<16x256xi1>
    %915 = vector.broadcast %cst_310 : f32 to vector<16x256xf32>
    %916 = arith.select %914, %912, %915 : vector<16x256xi1>, vector<16x256xf32>
    %917 = arith.truncf %916 : vector<16x256xf32> to vector<16x256xbf16>
    %c5_311 = arith.constant 5 : index
    %c0_312 = arith.constant 0 : index
    %c0_313 = arith.constant 0 : index
    %918 = vector.load %arg24[%c5_311, %c0_312, %c0_313] : memref<9x32x16xf32, #tpu.memory_space<vmem>>, vector<1x32x16xf32>
    %919 = vector.shape_cast %918 : vector<1x32x16xf32> to vector<32x16xf32>
    %920 = arith.truncf %919 : vector<32x16xf32> to vector<32x16xbf16>
    %cst_314 = arith.constant dense<0.000000e+00> : vector<32x256xf32>
    %921 = tpu.matmul %920, %917, %cst_314 {dimension_numbers = #tpu.dot_dimension_numbers<[1], [0], [0], [1], [0, 0, 1, 1], [], []>} : vector<32x16xbf16>, vector<16x256xbf16>, vector<32x256xf32> -> vector<32x256xf32>
    %922 = arith.addf %911, %921 : vector<32x256xf32>
    %c241_i32_315 = arith.constant 241 : i32
    %923 = tpu.dynamic_rotate %861 by %c241_i32_315 dim 1 : vector<16x256xf32>, i32 -> vector<16x256xf32>
    %cst_316 = arith.constant 0.000000e+00 : f32
    %924 = vector.shape_cast %13 : vector<1x256xi1> to vector<1x256xi1>
    %925 = vector.broadcast %924 : vector<1x256xi1> to vector<16x256xi1>
    %926 = vector.broadcast %cst_316 : f32 to vector<16x256xf32>
    %927 = arith.select %925, %923, %926 : vector<16x256xi1>, vector<16x256xf32>
    %928 = arith.truncf %927 : vector<16x256xf32> to vector<16x256xbf16>
    %c6_317 = arith.constant 6 : index
    %c0_318 = arith.constant 0 : index
    %c0_319 = arith.constant 0 : index
    %929 = vector.load %arg24[%c6_317, %c0_318, %c0_319] : memref<9x32x16xf32, #tpu.memory_space<vmem>>, vector<1x32x16xf32>
    %930 = vector.shape_cast %929 : vector<1x32x16xf32> to vector<32x16xf32>
    %931 = arith.truncf %930 : vector<32x16xf32> to vector<32x16xbf16>
    %cst_320 = arith.constant dense<0.000000e+00> : vector<32x256xf32>
    %932 = tpu.matmul %931, %928, %cst_320 {dimension_numbers = #tpu.dot_dimension_numbers<[1], [0], [0], [1], [0, 0, 1, 1], [], []>} : vector<32x16xbf16>, vector<16x256xbf16>, vector<32x256xf32> -> vector<32x256xf32>
    %933 = arith.addf %922, %932 : vector<32x256xf32>
    %c240_i32_321 = arith.constant 240 : i32
    %934 = tpu.dynamic_rotate %861 by %c240_i32_321 dim 1 : vector<16x256xf32>, i32 -> vector<16x256xf32>
    %cst_322 = arith.constant 0.000000e+00 : f32
    %935 = vector.shape_cast %6 : vector<1x256xi1> to vector<1x256xi1>
    %936 = vector.broadcast %935 : vector<1x256xi1> to vector<16x256xi1>
    %937 = vector.broadcast %cst_322 : f32 to vector<16x256xf32>
    %938 = arith.select %936, %934, %937 : vector<16x256xi1>, vector<16x256xf32>
    %939 = arith.truncf %938 : vector<16x256xf32> to vector<16x256xbf16>
    %c7_323 = arith.constant 7 : index
    %c0_324 = arith.constant 0 : index
    %c0_325 = arith.constant 0 : index
    %940 = vector.load %arg24[%c7_323, %c0_324, %c0_325] : memref<9x32x16xf32, #tpu.memory_space<vmem>>, vector<1x32x16xf32>
    %941 = vector.shape_cast %940 : vector<1x32x16xf32> to vector<32x16xf32>
    %942 = arith.truncf %941 : vector<32x16xf32> to vector<32x16xbf16>
    %cst_326 = arith.constant dense<0.000000e+00> : vector<32x256xf32>
    %943 = tpu.matmul %942, %939, %cst_326 {dimension_numbers = #tpu.dot_dimension_numbers<[1], [0], [0], [1], [0, 0, 1, 1], [], []>} : vector<32x16xbf16>, vector<16x256xbf16>, vector<32x256xf32> -> vector<32x256xf32>
    %944 = arith.addf %933, %943 : vector<32x256xf32>
    %c239_i32_327 = arith.constant 239 : i32
    %945 = tpu.dynamic_rotate %861 by %c239_i32_327 dim 1 : vector<16x256xf32>, i32 -> vector<16x256xf32>
    %cst_328 = arith.constant 0.000000e+00 : f32
    %946 = vector.shape_cast %14 : vector<1x256xi1> to vector<1x256xi1>
    %947 = vector.broadcast %946 : vector<1x256xi1> to vector<16x256xi1>
    %948 = vector.broadcast %cst_328 : f32 to vector<16x256xf32>
    %949 = arith.select %947, %945, %948 : vector<16x256xi1>, vector<16x256xf32>
    %950 = arith.truncf %949 : vector<16x256xf32> to vector<16x256xbf16>
    %c8_329 = arith.constant 8 : index
    %c0_330 = arith.constant 0 : index
    %c0_331 = arith.constant 0 : index
    %951 = vector.load %arg24[%c8_329, %c0_330, %c0_331] : memref<9x32x16xf32, #tpu.memory_space<vmem>>, vector<1x32x16xf32>
    %952 = vector.shape_cast %951 : vector<1x32x16xf32> to vector<32x16xf32>
    %953 = arith.truncf %952 : vector<32x16xf32> to vector<32x16xbf16>
    %cst_332 = arith.constant dense<0.000000e+00> : vector<32x256xf32>
    %954 = tpu.matmul %953, %950, %cst_332 {dimension_numbers = #tpu.dot_dimension_numbers<[1], [0], [0], [1], [0, 0, 1, 1], [], []>} : vector<32x16xbf16>, vector<16x256xbf16>, vector<32x256xf32> -> vector<32x256xf32>
    %955 = arith.addf %944, %954 : vector<32x256xf32>
    %956 = vector.broadcast %862 : vector<32x1xf32> to vector<32x256xf32>
    %957 = arith.addf %955, %956 : vector<32x256xf32>
    %cst_333 = arith.constant 0.000000e+00 : f32
    %958 = vector.broadcast %cst_333 : f32 to vector<32x256xf32>
    %959 = arith.maximumf %957, %958 : vector<32x256xf32>
    %c0_334 = arith.constant 0 : index
    %c0_335 = arith.constant 0 : index
    %960 = vector.load %arg27[%c0_334, %c0_335] : memref<16x1xf32, #tpu.memory_space<vmem>>, vector<16x1xf32>
    %c17_i32_336 = arith.constant 17 : i32
    %961 = tpu.dynamic_rotate %959 by %c17_i32_336 dim 1 : vector<32x256xf32>, i32 -> vector<32x256xf32>
    %cst_337 = arith.constant 0.000000e+00 : f32
    %962 = vector.shape_cast %11 : vector<1x256xi1> to vector<1x256xi1>
    %963 = vector.broadcast %962 : vector<1x256xi1> to vector<32x256xi1>
    %964 = vector.broadcast %cst_337 : f32 to vector<32x256xf32>
    %965 = arith.select %963, %961, %964 : vector<32x256xi1>, vector<32x256xf32>
    %966 = arith.truncf %965 : vector<32x256xf32> to vector<32x256xbf16>
    %c0_338 = arith.constant 0 : index
    %c0_339 = arith.constant 0 : index
    %c0_340 = arith.constant 0 : index
    %967 = vector.load %arg26[%c0_338, %c0_339, %c0_340] : memref<9x16x32xf32, #tpu.memory_space<vmem>>, vector<1x16x32xf32>
    %968 = vector.shape_cast %967 : vector<1x16x32xf32> to vector<16x32xf32>
    %969 = arith.truncf %968 : vector<16x32xf32> to vector<16x32xbf16>
    %cst_341 = arith.constant dense<0.000000e+00> : vector<16x256xf32>
    %970 = tpu.matmul %969, %966, %cst_341 {dimension_numbers = #tpu.dot_dimension_numbers<[1], [0], [0], [1], [0, 0, 1, 1], [], []>} : vector<16x32xbf16>, vector<32x256xbf16>, vector<16x256xf32> -> vector<16x256xf32>
    %c16_i32_342 = arith.constant 16 : i32
    %971 = tpu.dynamic_rotate %959 by %c16_i32_342 dim 1 : vector<32x256xf32>, i32 -> vector<32x256xf32>
    %cst_343 = arith.constant 0.000000e+00 : f32
    %972 = vector.shape_cast %4 : vector<1x256xi1> to vector<1x256xi1>
    %973 = vector.broadcast %972 : vector<1x256xi1> to vector<32x256xi1>
    %974 = vector.broadcast %cst_343 : f32 to vector<32x256xf32>
    %975 = arith.select %973, %971, %974 : vector<32x256xi1>, vector<32x256xf32>
    %976 = arith.truncf %975 : vector<32x256xf32> to vector<32x256xbf16>
    %c1_344 = arith.constant 1 : index
    %c0_345 = arith.constant 0 : index
    %c0_346 = arith.constant 0 : index
    %977 = vector.load %arg26[%c1_344, %c0_345, %c0_346] : memref<9x16x32xf32, #tpu.memory_space<vmem>>, vector<1x16x32xf32>
    %978 = vector.shape_cast %977 : vector<1x16x32xf32> to vector<16x32xf32>
    %979 = arith.truncf %978 : vector<16x32xf32> to vector<16x32xbf16>
    %cst_347 = arith.constant dense<0.000000e+00> : vector<16x256xf32>
    %980 = tpu.matmul %979, %976, %cst_347 {dimension_numbers = #tpu.dot_dimension_numbers<[1], [0], [0], [1], [0, 0, 1, 1], [], []>} : vector<16x32xbf16>, vector<32x256xbf16>, vector<16x256xf32> -> vector<16x256xf32>
    %981 = arith.addf %970, %980 : vector<16x256xf32>
    %c15_i32_348 = arith.constant 15 : i32
    %982 = tpu.dynamic_rotate %959 by %c15_i32_348 dim 1 : vector<32x256xf32>, i32 -> vector<32x256xf32>
    %cst_349 = arith.constant 0.000000e+00 : f32
    %983 = vector.shape_cast %12 : vector<1x256xi1> to vector<1x256xi1>
    %984 = vector.broadcast %983 : vector<1x256xi1> to vector<32x256xi1>
    %985 = vector.broadcast %cst_349 : f32 to vector<32x256xf32>
    %986 = arith.select %984, %982, %985 : vector<32x256xi1>, vector<32x256xf32>
    %987 = arith.truncf %986 : vector<32x256xf32> to vector<32x256xbf16>
    %c2_350 = arith.constant 2 : index
    %c0_351 = arith.constant 0 : index
    %c0_352 = arith.constant 0 : index
    %988 = vector.load %arg26[%c2_350, %c0_351, %c0_352] : memref<9x16x32xf32, #tpu.memory_space<vmem>>, vector<1x16x32xf32>
    %989 = vector.shape_cast %988 : vector<1x16x32xf32> to vector<16x32xf32>
    %990 = arith.truncf %989 : vector<16x32xf32> to vector<16x32xbf16>
    %cst_353 = arith.constant dense<0.000000e+00> : vector<16x256xf32>
    %991 = tpu.matmul %990, %987, %cst_353 {dimension_numbers = #tpu.dot_dimension_numbers<[1], [0], [0], [1], [0, 0, 1, 1], [], []>} : vector<16x32xbf16>, vector<32x256xbf16>, vector<16x256xf32> -> vector<16x256xf32>
    %992 = arith.addf %981, %991 : vector<16x256xf32>
    %c1_i32_354 = arith.constant 1 : i32
    %993 = tpu.dynamic_rotate %959 by %c1_i32_354 dim 1 : vector<32x256xf32>, i32 -> vector<32x256xf32>
    %cst_355 = arith.constant 0.000000e+00 : f32
    %994 = vector.shape_cast %8 : vector<1x256xi1> to vector<1x256xi1>
    %995 = vector.broadcast %994 : vector<1x256xi1> to vector<32x256xi1>
    %996 = vector.broadcast %cst_355 : f32 to vector<32x256xf32>
    %997 = arith.select %995, %993, %996 : vector<32x256xi1>, vector<32x256xf32>
    %998 = arith.truncf %997 : vector<32x256xf32> to vector<32x256xbf16>
    %c3_356 = arith.constant 3 : index
    %c0_357 = arith.constant 0 : index
    %c0_358 = arith.constant 0 : index
    %999 = vector.load %arg26[%c3_356, %c0_357, %c0_358] : memref<9x16x32xf32, #tpu.memory_space<vmem>>, vector<1x16x32xf32>
    %1000 = vector.shape_cast %999 : vector<1x16x32xf32> to vector<16x32xf32>
    %1001 = arith.truncf %1000 : vector<16x32xf32> to vector<16x32xbf16>
    %cst_359 = arith.constant dense<0.000000e+00> : vector<16x256xf32>
    %1002 = tpu.matmul %1001, %998, %cst_359 {dimension_numbers = #tpu.dot_dimension_numbers<[1], [0], [0], [1], [0, 0, 1, 1], [], []>} : vector<16x32xbf16>, vector<32x256xbf16>, vector<16x256xf32> -> vector<16x256xf32>
    %1003 = arith.addf %992, %1002 : vector<16x256xf32>
    %1004 = arith.truncf %959 : vector<32x256xf32> to vector<32x256xbf16>
    %c4_360 = arith.constant 4 : index
    %c0_361 = arith.constant 0 : index
    %c0_362 = arith.constant 0 : index
    %1005 = vector.load %arg26[%c4_360, %c0_361, %c0_362] : memref<9x16x32xf32, #tpu.memory_space<vmem>>, vector<1x16x32xf32>
    %1006 = vector.shape_cast %1005 : vector<1x16x32xf32> to vector<16x32xf32>
    %1007 = arith.truncf %1006 : vector<16x32xf32> to vector<16x32xbf16>
    %cst_363 = arith.constant dense<0.000000e+00> : vector<16x256xf32>
    %1008 = tpu.matmul %1007, %1004, %cst_363 {dimension_numbers = #tpu.dot_dimension_numbers<[1], [0], [0], [1], [0, 0, 1, 1], [], []>} : vector<16x32xbf16>, vector<32x256xbf16>, vector<16x256xf32> -> vector<16x256xf32>
    %1009 = arith.addf %1003, %1008 : vector<16x256xf32>
    %c255_i32_364 = arith.constant 255 : i32
    %1010 = tpu.dynamic_rotate %959 by %c255_i32_364 dim 1 : vector<32x256xf32>, i32 -> vector<32x256xf32>
    %cst_365 = arith.constant 0.000000e+00 : f32
    %1011 = vector.shape_cast %10 : vector<1x256xi1> to vector<1x256xi1>
    %1012 = vector.broadcast %1011 : vector<1x256xi1> to vector<32x256xi1>
    %1013 = vector.broadcast %cst_365 : f32 to vector<32x256xf32>
    %1014 = arith.select %1012, %1010, %1013 : vector<32x256xi1>, vector<32x256xf32>
    %1015 = arith.truncf %1014 : vector<32x256xf32> to vector<32x256xbf16>
    %c5_366 = arith.constant 5 : index
    %c0_367 = arith.constant 0 : index
    %c0_368 = arith.constant 0 : index
    %1016 = vector.load %arg26[%c5_366, %c0_367, %c0_368] : memref<9x16x32xf32, #tpu.memory_space<vmem>>, vector<1x16x32xf32>
    %1017 = vector.shape_cast %1016 : vector<1x16x32xf32> to vector<16x32xf32>
    %1018 = arith.truncf %1017 : vector<16x32xf32> to vector<16x32xbf16>
    %cst_369 = arith.constant dense<0.000000e+00> : vector<16x256xf32>
    %1019 = tpu.matmul %1018, %1015, %cst_369 {dimension_numbers = #tpu.dot_dimension_numbers<[1], [0], [0], [1], [0, 0, 1, 1], [], []>} : vector<16x32xbf16>, vector<32x256xbf16>, vector<16x256xf32> -> vector<16x256xf32>
    %1020 = arith.addf %1009, %1019 : vector<16x256xf32>
    %c241_i32_370 = arith.constant 241 : i32
    %1021 = tpu.dynamic_rotate %959 by %c241_i32_370 dim 1 : vector<32x256xf32>, i32 -> vector<32x256xf32>
    %cst_371 = arith.constant 0.000000e+00 : f32
    %1022 = vector.shape_cast %13 : vector<1x256xi1> to vector<1x256xi1>
    %1023 = vector.broadcast %1022 : vector<1x256xi1> to vector<32x256xi1>
    %1024 = vector.broadcast %cst_371 : f32 to vector<32x256xf32>
    %1025 = arith.select %1023, %1021, %1024 : vector<32x256xi1>, vector<32x256xf32>
    %1026 = arith.truncf %1025 : vector<32x256xf32> to vector<32x256xbf16>
    %c6_372 = arith.constant 6 : index
    %c0_373 = arith.constant 0 : index
    %c0_374 = arith.constant 0 : index
    %1027 = vector.load %arg26[%c6_372, %c0_373, %c0_374] : memref<9x16x32xf32, #tpu.memory_space<vmem>>, vector<1x16x32xf32>
    %1028 = vector.shape_cast %1027 : vector<1x16x32xf32> to vector<16x32xf32>
    %1029 = arith.truncf %1028 : vector<16x32xf32> to vector<16x32xbf16>
    %cst_375 = arith.constant dense<0.000000e+00> : vector<16x256xf32>
    %1030 = tpu.matmul %1029, %1026, %cst_375 {dimension_numbers = #tpu.dot_dimension_numbers<[1], [0], [0], [1], [0, 0, 1, 1], [], []>} : vector<16x32xbf16>, vector<32x256xbf16>, vector<16x256xf32> -> vector<16x256xf32>
    %1031 = arith.addf %1020, %1030 : vector<16x256xf32>
    %c240_i32_376 = arith.constant 240 : i32
    %1032 = tpu.dynamic_rotate %959 by %c240_i32_376 dim 1 : vector<32x256xf32>, i32 -> vector<32x256xf32>
    %cst_377 = arith.constant 0.000000e+00 : f32
    %1033 = vector.shape_cast %6 : vector<1x256xi1> to vector<1x256xi1>
    %1034 = vector.broadcast %1033 : vector<1x256xi1> to vector<32x256xi1>
    %1035 = vector.broadcast %cst_377 : f32 to vector<32x256xf32>
    %1036 = arith.select %1034, %1032, %1035 : vector<32x256xi1>, vector<32x256xf32>
    %1037 = arith.truncf %1036 : vector<32x256xf32> to vector<32x256xbf16>
    %c7_378 = arith.constant 7 : index
    %c0_379 = arith.constant 0 : index
    %c0_380 = arith.constant 0 : index
    %1038 = vector.load %arg26[%c7_378, %c0_379, %c0_380] : memref<9x16x32xf32, #tpu.memory_space<vmem>>, vector<1x16x32xf32>
    %1039 = vector.shape_cast %1038 : vector<1x16x32xf32> to vector<16x32xf32>
    %1040 = arith.truncf %1039 : vector<16x32xf32> to vector<16x32xbf16>
    %cst_381 = arith.constant dense<0.000000e+00> : vector<16x256xf32>
    %1041 = tpu.matmul %1040, %1037, %cst_381 {dimension_numbers = #tpu.dot_dimension_numbers<[1], [0], [0], [1], [0, 0, 1, 1], [], []>} : vector<16x32xbf16>, vector<32x256xbf16>, vector<16x256xf32> -> vector<16x256xf32>
    %1042 = arith.addf %1031, %1041 : vector<16x256xf32>
    %c239_i32_382 = arith.constant 239 : i32
    %1043 = tpu.dynamic_rotate %959 by %c239_i32_382 dim 1 : vector<32x256xf32>, i32 -> vector<32x256xf32>
    %cst_383 = arith.constant 0.000000e+00 : f32
    %1044 = vector.shape_cast %14 : vector<1x256xi1> to vector<1x256xi1>
    %1045 = vector.broadcast %1044 : vector<1x256xi1> to vector<32x256xi1>
    %1046 = vector.broadcast %cst_383 : f32 to vector<32x256xf32>
    %1047 = arith.select %1045, %1043, %1046 : vector<32x256xi1>, vector<32x256xf32>
    %1048 = arith.truncf %1047 : vector<32x256xf32> to vector<32x256xbf16>
    %c8_384 = arith.constant 8 : index
    %c0_385 = arith.constant 0 : index
    %c0_386 = arith.constant 0 : index
    %1049 = vector.load %arg26[%c8_384, %c0_385, %c0_386] : memref<9x16x32xf32, #tpu.memory_space<vmem>>, vector<1x16x32xf32>
    %1050 = vector.shape_cast %1049 : vector<1x16x32xf32> to vector<16x32xf32>
    %1051 = arith.truncf %1050 : vector<16x32xf32> to vector<16x32xbf16>
    %cst_387 = arith.constant dense<0.000000e+00> : vector<16x256xf32>
    %1052 = tpu.matmul %1051, %1048, %cst_387 {dimension_numbers = #tpu.dot_dimension_numbers<[1], [0], [0], [1], [0, 0, 1, 1], [], []>} : vector<16x32xbf16>, vector<32x256xbf16>, vector<16x256xf32> -> vector<16x256xf32>
    %1053 = arith.addf %1042, %1052 : vector<16x256xf32>
    %1054 = vector.broadcast %960 : vector<16x1xf32> to vector<16x256xf32>
    %1055 = arith.addf %1053, %1054 : vector<16x256xf32>
    %cst_388 = arith.constant 0.000000e+00 : f32
    %1056 = vector.broadcast %cst_388 : f32 to vector<16x256xf32>
    %1057 = arith.maximumf %1055, %1056 : vector<16x256xf32>
    %c0_389 = arith.constant 0 : index
    %c0_390 = arith.constant 0 : index
    %1058 = vector.load %arg28[%c0_389, %c0_390] : memref<1x16xf32, #tpu.memory_space<vmem>>, vector<1x16xf32>
    %c0_391 = arith.constant 0 : index
    %c0_392 = arith.constant 0 : index
    %1059 = vector.load %arg29[%c0_391, %c0_392] : memref<1x1xf32, #tpu.memory_space<vmem>>, vector<1x1xf32>
    %1060 = vector.extract_strided_slice %1058 {offsets = [0, 0], sizes = [1, 1], strides = [1, 1]} : vector<1x16xf32> to vector<1x1xf32>
    %1061 = vector.extract_strided_slice %1057 {offsets = [0, 0], sizes = [1, 256], strides = [1, 1]} : vector<16x256xf32> to vector<1x256xf32>
    %1062 = vector.broadcast %1060 : vector<1x1xf32> to vector<1x256xf32>
    %1063 = arith.mulf %1062, %1061 : vector<1x256xf32>
    %1064 = vector.extract_strided_slice %1058 {offsets = [0, 1], sizes = [1, 1], strides = [1, 1]} : vector<1x16xf32> to vector<1x1xf32>
    %1065 = vector.extract_strided_slice %1057 {offsets = [1, 0], sizes = [1, 256], strides = [1, 1]} : vector<16x256xf32> to vector<1x256xf32>
    %1066 = vector.broadcast %1064 : vector<1x1xf32> to vector<1x256xf32>
    %1067 = arith.mulf %1066, %1065 : vector<1x256xf32>
    %1068 = arith.addf %1063, %1067 : vector<1x256xf32>
    %1069 = vector.extract_strided_slice %1058 {offsets = [0, 2], sizes = [1, 1], strides = [1, 1]} : vector<1x16xf32> to vector<1x1xf32>
    %1070 = vector.extract_strided_slice %1057 {offsets = [2, 0], sizes = [1, 256], strides = [1, 1]} : vector<16x256xf32> to vector<1x256xf32>
    %1071 = vector.broadcast %1069 : vector<1x1xf32> to vector<1x256xf32>
    %1072 = arith.mulf %1071, %1070 : vector<1x256xf32>
    %1073 = arith.addf %1068, %1072 : vector<1x256xf32>
    %1074 = vector.extract_strided_slice %1058 {offsets = [0, 3], sizes = [1, 1], strides = [1, 1]} : vector<1x16xf32> to vector<1x1xf32>
    %1075 = vector.extract_strided_slice %1057 {offsets = [3, 0], sizes = [1, 256], strides = [1, 1]} : vector<16x256xf32> to vector<1x256xf32>
    %1076 = vector.broadcast %1074 : vector<1x1xf32> to vector<1x256xf32>
    %1077 = arith.mulf %1076, %1075 : vector<1x256xf32>
    %1078 = arith.addf %1073, %1077 : vector<1x256xf32>
    %1079 = vector.extract_strided_slice %1058 {offsets = [0, 4], sizes = [1, 1], strides = [1, 1]} : vector<1x16xf32> to vector<1x1xf32>
    %1080 = vector.extract_strided_slice %1057 {offsets = [4, 0], sizes = [1, 256], strides = [1, 1]} : vector<16x256xf32> to vector<1x256xf32>
    %1081 = vector.broadcast %1079 : vector<1x1xf32> to vector<1x256xf32>
    %1082 = arith.mulf %1081, %1080 : vector<1x256xf32>
    %1083 = arith.addf %1078, %1082 : vector<1x256xf32>
    %1084 = vector.extract_strided_slice %1058 {offsets = [0, 5], sizes = [1, 1], strides = [1, 1]} : vector<1x16xf32> to vector<1x1xf32>
    %1085 = vector.extract_strided_slice %1057 {offsets = [5, 0], sizes = [1, 256], strides = [1, 1]} : vector<16x256xf32> to vector<1x256xf32>
    %1086 = vector.broadcast %1084 : vector<1x1xf32> to vector<1x256xf32>
    %1087 = arith.mulf %1086, %1085 : vector<1x256xf32>
    %1088 = arith.addf %1083, %1087 : vector<1x256xf32>
    %1089 = vector.extract_strided_slice %1058 {offsets = [0, 6], sizes = [1, 1], strides = [1, 1]} : vector<1x16xf32> to vector<1x1xf32>
    %1090 = vector.extract_strided_slice %1057 {offsets = [6, 0], sizes = [1, 256], strides = [1, 1]} : vector<16x256xf32> to vector<1x256xf32>
    %1091 = vector.broadcast %1089 : vector<1x1xf32> to vector<1x256xf32>
    %1092 = arith.mulf %1091, %1090 : vector<1x256xf32>
    %1093 = arith.addf %1088, %1092 : vector<1x256xf32>
    %1094 = vector.extract_strided_slice %1058 {offsets = [0, 7], sizes = [1, 1], strides = [1, 1]} : vector<1x16xf32> to vector<1x1xf32>
    %1095 = vector.extract_strided_slice %1057 {offsets = [7, 0], sizes = [1, 256], strides = [1, 1]} : vector<16x256xf32> to vector<1x256xf32>
    %1096 = vector.broadcast %1094 : vector<1x1xf32> to vector<1x256xf32>
    %1097 = arith.mulf %1096, %1095 : vector<1x256xf32>
    %1098 = arith.addf %1093, %1097 : vector<1x256xf32>
    %1099 = vector.extract_strided_slice %1058 {offsets = [0, 8], sizes = [1, 1], strides = [1, 1]} : vector<1x16xf32> to vector<1x1xf32>
    %1100 = vector.extract_strided_slice %1057 {offsets = [8, 0], sizes = [1, 256], strides = [1, 1]} : vector<16x256xf32> to vector<1x256xf32>
    %1101 = vector.broadcast %1099 : vector<1x1xf32> to vector<1x256xf32>
    %1102 = arith.mulf %1101, %1100 : vector<1x256xf32>
    %1103 = arith.addf %1098, %1102 : vector<1x256xf32>
    %1104 = vector.extract_strided_slice %1058 {offsets = [0, 9], sizes = [1, 1], strides = [1, 1]} : vector<1x16xf32> to vector<1x1xf32>
    %1105 = vector.extract_strided_slice %1057 {offsets = [9, 0], sizes = [1, 256], strides = [1, 1]} : vector<16x256xf32> to vector<1x256xf32>
    %1106 = vector.broadcast %1104 : vector<1x1xf32> to vector<1x256xf32>
    %1107 = arith.mulf %1106, %1105 : vector<1x256xf32>
    %1108 = arith.addf %1103, %1107 : vector<1x256xf32>
    %1109 = vector.extract_strided_slice %1058 {offsets = [0, 10], sizes = [1, 1], strides = [1, 1]} : vector<1x16xf32> to vector<1x1xf32>
    %1110 = vector.extract_strided_slice %1057 {offsets = [10, 0], sizes = [1, 256], strides = [1, 1]} : vector<16x256xf32> to vector<1x256xf32>
    %1111 = vector.broadcast %1109 : vector<1x1xf32> to vector<1x256xf32>
    %1112 = arith.mulf %1111, %1110 : vector<1x256xf32>
    %1113 = arith.addf %1108, %1112 : vector<1x256xf32>
    %1114 = vector.extract_strided_slice %1058 {offsets = [0, 11], sizes = [1, 1], strides = [1, 1]} : vector<1x16xf32> to vector<1x1xf32>
    %1115 = vector.extract_strided_slice %1057 {offsets = [11, 0], sizes = [1, 256], strides = [1, 1]} : vector<16x256xf32> to vector<1x256xf32>
    %1116 = vector.broadcast %1114 : vector<1x1xf32> to vector<1x256xf32>
    %1117 = arith.mulf %1116, %1115 : vector<1x256xf32>
    %1118 = arith.addf %1113, %1117 : vector<1x256xf32>
    %1119 = vector.extract_strided_slice %1058 {offsets = [0, 12], sizes = [1, 1], strides = [1, 1]} : vector<1x16xf32> to vector<1x1xf32>
    %1120 = vector.extract_strided_slice %1057 {offsets = [12, 0], sizes = [1, 256], strides = [1, 1]} : vector<16x256xf32> to vector<1x256xf32>
    %1121 = vector.broadcast %1119 : vector<1x1xf32> to vector<1x256xf32>
    %1122 = arith.mulf %1121, %1120 : vector<1x256xf32>
    %1123 = arith.addf %1118, %1122 : vector<1x256xf32>
    %1124 = vector.extract_strided_slice %1058 {offsets = [0, 13], sizes = [1, 1], strides = [1, 1]} : vector<1x16xf32> to vector<1x1xf32>
    %1125 = vector.extract_strided_slice %1057 {offsets = [13, 0], sizes = [1, 256], strides = [1, 1]} : vector<16x256xf32> to vector<1x256xf32>
    %1126 = vector.broadcast %1124 : vector<1x1xf32> to vector<1x256xf32>
    %1127 = arith.mulf %1126, %1125 : vector<1x256xf32>
    %1128 = arith.addf %1123, %1127 : vector<1x256xf32>
    %1129 = vector.extract_strided_slice %1058 {offsets = [0, 14], sizes = [1, 1], strides = [1, 1]} : vector<1x16xf32> to vector<1x1xf32>
    %1130 = vector.extract_strided_slice %1057 {offsets = [14, 0], sizes = [1, 256], strides = [1, 1]} : vector<16x256xf32> to vector<1x256xf32>
    %1131 = vector.broadcast %1129 : vector<1x1xf32> to vector<1x256xf32>
    %1132 = arith.mulf %1131, %1130 : vector<1x256xf32>
    %1133 = arith.addf %1128, %1132 : vector<1x256xf32>
    %1134 = vector.extract_strided_slice %1058 {offsets = [0, 15], sizes = [1, 1], strides = [1, 1]} : vector<1x16xf32> to vector<1x1xf32>
    %1135 = vector.extract_strided_slice %1057 {offsets = [15, 0], sizes = [1, 256], strides = [1, 1]} : vector<16x256xf32> to vector<1x256xf32>
    %1136 = vector.broadcast %1134 : vector<1x1xf32> to vector<1x256xf32>
    %1137 = arith.mulf %1136, %1135 : vector<1x256xf32>
    %1138 = arith.addf %1133, %1137 : vector<1x256xf32>
    %1139 = vector.broadcast %1059 : vector<1x1xf32> to vector<1x256xf32>
    %1140 = arith.addf %1138, %1139 : vector<1x256xf32>
    %c0_393 = arith.constant 0 : index
    %c0_394 = arith.constant 0 : index
    %c0_395 = arith.constant 0 : index
    %1141 = vector.load %arg30[%c0_393, %c0_394, %c0_395] : memref<1x1x256xf32, #tpu.memory_space<vmem>>, vector<1x1x256xf32>
    %1142 = vector.shape_cast %1141 : vector<1x1x256xf32> to vector<1x256xf32>
    %1143 = vector.shape_cast %1140 : vector<1x256xf32> to vector<1x1x256xf32>
    tpu.vector_store %arg30[%c0_393, %c0_394, %c0_395], %1143 {strides = array<i32>} : memref<1x1x256xf32, #tpu.memory_space<vmem>>, vector<1x1x256xf32>,
    return
  }
  func.func @transform_0(%arg0: i32) -> (i32, i32, i32) {
    %c0_i32 = arith.constant 0 : i32
    %c0_i32_0 = arith.constant 0 : i32
    %c0_i32_1 = arith.constant 0 : i32
    return %arg0, %c0_i32, %c0_i32_0 : i32, i32, i32
  }
  func.func @transform_1(%arg0: i32) -> (i32, i32, i32) {
    %c0_i32 = arith.constant 0 : i32
    %c0_i32_0 = arith.constant 0 : i32
    %c0_i32_1 = arith.constant 0 : i32
    return %arg0, %c0_i32, %c0_i32_0 : i32, i32, i32
  }
  func.func @transform_2(%arg0: i32) -> (i32, i32, i32) {
    %c0_i32 = arith.constant 0 : i32
    %c0_i32_0 = arith.constant 0 : i32
    %c0_i32_1 = arith.constant 0 : i32
    return %arg0, %c0_i32, %c0_i32_0 : i32, i32, i32
  }
  func.func @transform_3(%arg0: i32) -> (i32, i32) {
    %c0_i32 = arith.constant 0 : i32
    %c0_i32_0 = arith.constant 0 : i32
    %c0_i32_1 = arith.constant 0 : i32
    return %c0_i32, %c0_i32_0 : i32, i32
  }
  func.func @transform_4(%arg0: i32) -> (i32, i32) {
    %c0_i32 = arith.constant 0 : i32
    %c0_i32_0 = arith.constant 0 : i32
    %c0_i32_1 = arith.constant 0 : i32
    return %c0_i32, %c0_i32_0 : i32, i32
  }
  func.func @transform_5(%arg0: i32) -> (i32, i32) {
    %c0_i32 = arith.constant 0 : i32
    %c0_i32_0 = arith.constant 0 : i32
    %c0_i32_1 = arith.constant 0 : i32
    return %c0_i32, %c0_i32_0 : i32, i32
  }
  func.func @transform_6(%arg0: i32) -> (i32, i32) {
    %c0_i32 = arith.constant 0 : i32
    %c0_i32_0 = arith.constant 0 : i32
    %c0_i32_1 = arith.constant 0 : i32
    return %c0_i32, %c0_i32_0 : i32, i32
  }
  func.func @transform_7(%arg0: i32) -> (i32, i32) {
    %c0_i32 = arith.constant 0 : i32
    %c0_i32_0 = arith.constant 0 : i32
    %c0_i32_1 = arith.constant 0 : i32
    return %c0_i32, %c0_i32_0 : i32, i32
  }
  func.func @transform_8(%arg0: i32) -> (i32, i32) {
    %c0_i32 = arith.constant 0 : i32
    %c0_i32_0 = arith.constant 0 : i32
    %c0_i32_1 = arith.constant 0 : i32
    return %c0_i32, %c0_i32_0 : i32, i32
  }
  func.func @transform_9(%arg0: i32) -> (i32, i32) {
    %c0_i32 = arith.constant 0 : i32
    %c0_i32_0 = arith.constant 0 : i32
    %c0_i32_1 = arith.constant 0 : i32
    return %c0_i32, %c0_i32_0 : i32, i32
  }
  func.func @transform_10(%arg0: i32) -> (i32, i32) {
    %c0_i32 = arith.constant 0 : i32
    %c0_i32_0 = arith.constant 0 : i32
    %c0_i32_1 = arith.constant 0 : i32
    return %c0_i32, %c0_i32_0 : i32, i32
  }
  func.func @transform_11(%arg0: i32) -> (i32, i32, i32) {
    %c0_i32 = arith.constant 0 : i32
    %c0_i32_0 = arith.constant 0 : i32
    %c0_i32_1 = arith.constant 0 : i32
    %c0_i32_2 = arith.constant 0 : i32
    return %c0_i32, %c0_i32_0, %c0_i32_1 : i32, i32, i32
  }
  func.func @transform_12(%arg0: i32) -> (i32, i32) {
    %c0_i32 = arith.constant 0 : i32
    %c0_i32_0 = arith.constant 0 : i32
    %c0_i32_1 = arith.constant 0 : i32
    return %c0_i32, %c0_i32_0 : i32, i32
  }
  func.func @transform_13(%arg0: i32) -> (i32, i32, i32) {
    %c0_i32 = arith.constant 0 : i32
    %c0_i32_0 = arith.constant 0 : i32
    %c0_i32_1 = arith.constant 0 : i32
    %c0_i32_2 = arith.constant 0 : i32
    return %c0_i32, %c0_i32_0, %c0_i32_1 : i32, i32, i32
  }
  func.func @transform_14(%arg0: i32) -> (i32, i32) {
    %c0_i32 = arith.constant 0 : i32
    %c0_i32_0 = arith.constant 0 : i32
    %c0_i32_1 = arith.constant 0 : i32
    return %c0_i32, %c0_i32_0 : i32, i32
  }
  func.func @transform_15(%arg0: i32) -> (i32, i32) {
    %c0_i32 = arith.constant 0 : i32
    %c0_i32_0 = arith.constant 0 : i32
    %c0_i32_1 = arith.constant 0 : i32
    return %c0_i32, %c0_i32_0 : i32, i32
  }
  func.func @transform_16(%arg0: i32) -> (i32, i32) {
    %c0_i32 = arith.constant 0 : i32
    %c0_i32_0 = arith.constant 0 : i32
    %c0_i32_1 = arith.constant 0 : i32
    return %c0_i32, %c0_i32_0 : i32, i32
  }
  func.func @transform_17(%arg0: i32) -> (i32, i32, i32) {
    %c0_i32 = arith.constant 0 : i32
    %c0_i32_0 = arith.constant 0 : i32
    %c0_i32_1 = arith.constant 0 : i32
    %c0_i32_2 = arith.constant 0 : i32
    return %c0_i32, %c0_i32_0, %c0_i32_1 : i32, i32, i32
  }
  func.func @transform_18(%arg0: i32) -> (i32, i32, i32) {
    %c0_i32 = arith.constant 0 : i32
    %c0_i32_0 = arith.constant 0 : i32
    %c0_i32_1 = arith.constant 0 : i32
    %c0_i32_2 = arith.constant 0 : i32
    return %c0_i32, %c0_i32_0, %c0_i32_1 : i32, i32, i32
  }
  func.func @transform_19(%arg0: i32) -> (i32, i32, i32) {
    %c0_i32 = arith.constant 0 : i32
    %c0_i32_0 = arith.constant 0 : i32
    %c0_i32_1 = arith.constant 0 : i32
    %c0_i32_2 = arith.constant 0 : i32
    return %c0_i32, %c0_i32_0, %c0_i32_1 : i32, i32, i32
  }
  func.func @transform_20(%arg0: i32) -> (i32, i32, i32) {
    %c0_i32 = arith.constant 0 : i32
    %c0_i32_0 = arith.constant 0 : i32
    %c0_i32_1 = arith.constant 0 : i32
    %c0_i32_2 = arith.constant 0 : i32
    return %c0_i32, %c0_i32_0, %c0_i32_1 : i32, i32, i32
  }
  func.func @transform_21(%arg0: i32) -> (i32, i32, i32) {
    %c0_i32 = arith.constant 0 : i32
    %c0_i32_0 = arith.constant 0 : i32
    %c0_i32_1 = arith.constant 0 : i32
    %c0_i32_2 = arith.constant 0 : i32
    return %c0_i32, %c0_i32_0, %c0_i32_1 : i32, i32, i32
  }
  func.func @transform_22(%arg0: i32) -> (i32, i32) {
    %c0_i32 = arith.constant 0 : i32
    %c0_i32_0 = arith.constant 0 : i32
    %c0_i32_1 = arith.constant 0 : i32
    return %c0_i32, %c0_i32_0 : i32, i32
  }
  func.func @transform_23(%arg0: i32) -> (i32, i32, i32) {
    %c0_i32 = arith.constant 0 : i32
    %c0_i32_0 = arith.constant 0 : i32
    %c0_i32_1 = arith.constant 0 : i32
    %c0_i32_2 = arith.constant 0 : i32
    return %c0_i32, %c0_i32_0, %c0_i32_1 : i32, i32, i32
  }
  func.func @transform_24(%arg0: i32) -> (i32, i32) {
    %c0_i32 = arith.constant 0 : i32
    %c0_i32_0 = arith.constant 0 : i32
    %c0_i32_1 = arith.constant 0 : i32
    return %c0_i32, %c0_i32_0 : i32, i32
  }
  func.func @transform_25(%arg0: i32) -> (i32, i32, i32) {
    %c0_i32 = arith.constant 0 : i32
    %c0_i32_0 = arith.constant 0 : i32
    %c0_i32_1 = arith.constant 0 : i32
    %c0_i32_2 = arith.constant 0 : i32
    return %c0_i32, %c0_i32_0, %c0_i32_1 : i32, i32, i32
  }
  func.func @transform_26(%arg0: i32) -> (i32, i32) {
    %c0_i32 = arith.constant 0 : i32
    %c0_i32_0 = arith.constant 0 : i32
    %c0_i32_1 = arith.constant 0 : i32
    return %c0_i32, %c0_i32_0 : i32, i32
  }
  func.func @transform_27(%arg0: i32) -> (i32, i32) {
    %c0_i32 = arith.constant 0 : i32
    %c0_i32_0 = arith.constant 0 : i32
    %c0_i32_1 = arith.constant 0 : i32
    return %c0_i32, %c0_i32_0 : i32, i32
  }
  func.func @transform_28(%arg0: i32) -> (i32, i32) {
    %c0_i32 = arith.constant 0 : i32
    %c0_i32_0 = arith.constant 0 : i32
    %c0_i32_1 = arith.constant 0 : i32
    return %c0_i32, %c0_i32_0 : i32, i32
  }
  func.func @transform_29(%arg0: i32) -> (i32, i32, i32) {
    %c0_i32 = arith.constant 0 : i32
    %c0_i32_0 = arith.constant 0 : i32
    %c0_i32_1 = arith.constant 0 : i32
    return %arg0, %c0_i32, %c0_i32_0 : i32, i32, i32
  }
}

</mosaic_0001>

<llo_original>
// kernel: detail_enhancement_forward.1
$region0: #{detail_enhancement_forward.1}
  #allocation0 [shape = 'u32[]', space=smem, size = 0x4, offset = 0x4, fixed_abs, tag = 'smem constant byte address 0x4 - core index']
  #allocation1 [shape = 'u32[144,128]{1,0:T(1,128)}', space=vmem, size = 0x12000, scoped, tag = 'internal scratch']
  #allocation2 [shape = 'f32[1,1]{1,0:T(1,128)S(1)}', space=vmem, size = 0x200, scoped, tag = 'scoped memory for detail_enhancement_forward.1']
  %s0 = inlined_call_operand.smem [shape: u32[30], index: -1, kind: input, shape index: {}]
  %s1 = sld [smem:[%s0]]
  %s2 = scalar_lea.smem %s0, 1
  %s3 = sld [smem:[%s2]]
  %s4 = scalar_lea.smem %s0, 2
  %s5 = sld [smem:[%s4]]
  %s6 = scalar_lea.smem %s0, 3
  %s7 = sld [smem:[%s6]]
  %s8 = scalar_lea.smem %s0, 4
  %s9 = sld [smem:[%s8]]
  %s10 = scalar_lea.smem %s0, 5
  %s11 = sld [smem:[%s10]]
  %s12 = scalar_lea.smem %s0, 6
  %s13 = sld [smem:[%s12]]
  %s14 = scalar_lea.smem %s0, 7
  %s15 = sld [smem:[%s14]]
  %s16 = scalar_lea.smem %s0, 8
  %s17 = sld [smem:[%s16]]
  %s18 = scalar_lea.smem %s0, 9
  %s19 = sld [smem:[%s18]]
  %s20 = scalar_lea.smem %s0, 10
  %s21 = sld [smem:[%s20]]
  %s22 = scalar_lea.smem %s0, 11
  %s23 = sld [smem:[%s22]]
  %s24 = scalar_lea.smem %s0, 12
  %s25 = sld [smem:[%s24]]
  %s26 = scalar_lea.smem %s0, 13
  %s27 = sld [smem:[%s26]]
  %s28 = scalar_lea.smem %s0, 14
  %s29 = sld [smem:[%s28]]
  %s30 = scalar_lea.smem %s0, 15
  %s31 = sld [smem:[%s30]]
  %s32 = scalar_lea.smem %s0, 16
  %s33 = sld [smem:[%s32]]
  %s34 = scalar_lea.smem %s0, 17
  %s35 = sld [smem:[%s34]]
  %s36 = scalar_lea.smem %s0, 18
  %s37 = sld [smem:[%s36]]
  %s38 = scalar_lea.smem %s0, 19
  %s39 = sld [smem:[%s38]]
  %s40 = scalar_lea.smem %s0, 20
  %s41 = sld [smem:[%s40]]
  %s42 = scalar_lea.smem %s0, 21
  %s43 = sld [smem:[%s42]]
  %s44 = scalar_lea.smem %s0, 22
  %s45 = sld [smem:[%s44]]
  %s46 = scalar_lea.smem %s0, 23
  %s47 = sld [smem:[%s46]]
  %s48 = scalar_lea.smem %s0, 24
  %s49 = sld [smem:[%s48]]
  %s50 = scalar_lea.smem %s0, 25
  %s51 = sld [smem:[%s50]]
  %s52 = scalar_lea.smem %s0, 26
  %s53 = sld [smem:[%s52]]
  %s54 = scalar_lea.smem %s0, 27
  %s55 = sld [smem:[%s54]]
  %s56 = scalar_lea.smem %s0, 28
  %s57 = sld [smem:[%s56]]
  %s58 = scalar_lea.smem %s0, 29
  %s59 = sld [smem:[%s58]]
  %s60 = sld [smem:[#allocation0]]
  $region209: #{detail_enhancement_forward.1} parent=0
    _
  %s62 = ssub.s32 1, %s60
  %s63 = scalar_select 0, %s62, %s60
  %v64 = vstv %s57
  %65 = vst [vmem:[#allocation2] sm:$0x1] %v64
  $region1: #{detail_enhancement_forward.1} parent=0
    #allocation3 [shape = 'u8[36864]{0}', space=vmem, size = 0x9000, scoped, tag = 'input window, operand 11, single buffered']
    #allocation4 [shape = 's32[2]{0}', space=sflag, size = 0x8, scoped, tag = 'scoped memory for detail_enhancement_forward.1']
    #allocation5 [shape = 'u8[4096]{0}', space=vmem, size = 0x1000, scoped, tag = 'input window, operand 12, single buffered']
    #allocation6 [shape = 's32[1]{0}', space=sflag, size = 0x4, scoped, tag = 'scoped memory for detail_enhancement_forward.1']
    #allocation7 [shape = 'u8[36864]{0}', space=vmem, size = 0x9000, scoped, tag = 'input window, operand 13, single buffered']
    #allocation8 [shape = 'u8[4096]{0}', space=vmem, size = 0x1000, scoped, tag = 'input window, operand 14, single buffered']
    #allocation9 [shape = 's32[1]{0}', space=sflag, size = 0x4, scoped, tag = 'scoped memory for detail_enhancement_forward.1']
    #allocation10 [shape = 'u8[2048]{0}', space=vmem, size = 0x800, scoped, tag = 'input window, operand 15, single buffered']
    #allocation11 [shape = 'u8[2048]{0}', space=vmem, size = 0x800, scoped, tag = 'input window, operand 16, single buffered']
    #allocation12 [shape = 's32[1]{0}', space=sflag, size = 0x4, scoped, tag = 'scoped memory for detail_enhancement_forward.1']
    #allocation13 [shape = 'u8[6144]{0}', space=vmem, size = 0x1800, scoped, tag = 'input window, operand 17, single buffered']
    #allocation14 [shape = 'u8[6144]{0}', space=vmem, size = 0x1800, scoped, tag = 'input window, operand 18, single buffered']
    #allocation15 [shape = 's32[1]{0}', space=sflag, size = 0x4, scoped, tag = 'scoped memory for detail_enhancement_forward.1']
    #allocation16 [shape = 'u8[6144]{0}', space=vmem, size = 0x1800, scoped, tag = 'input window, operand 19, single buffered']
    #allocation17 [shape = 'u8[6144]{0}', space=vmem, size = 0x1800, scoped, tag = 'input window, operand 20, single buffered']
    #allocation18 [shape = 's32[1]{0}', space=sflag, size = 0x4, scoped, tag = 'scoped memory for detail_enhancement_forward.1']
    #allocation19 [shape = 'u8[16384]{0}', space=vmem, size = 0x4000, scoped, tag = 'input window, operand 21, single buffered']
    #allocation20 [shape = 'u8[4096]{0}', space=vmem, size = 0x1000, scoped, tag = 'input window, operand 22, single buffered']
    #allocation21 [shape = 's32[1]{0}', space=sflag, size = 0x4, scoped, tag = 'scoped memory for detail_enhancement_forward.1']
    #allocation22 [shape = 'u8[16384]{0}', space=vmem, size = 0x4000, scoped, tag = 'input window, operand 24, single buffered']
    #allocation23 [shape = 'u8[8192]{0}', space=vmem, size = 0x2000, scoped, tag = 'input window, operand 26, single buffered']
    #allocation24 [shape = 's32[1]{0}', space=sflag, size = 0x4, scoped, tag = 'scoped memory for detail_enhancement_forward.1']
    #allocation25 [shape = 'u8[512]{0}', space=vmem, size = 0x400, scoped, tag = 'input window, operand 27, single buffered']
    %66 = vsyncpa [#allocation4], 0
    %67 = vsyncpa [#allocation6], 0
    %68 = vsyncpa [#allocation9], 0
    %69 = vsyncpa [#allocation12], 0
    %70 = vsyncpa [#allocation15], 0
    %71 = vsyncpa [#allocation18], 0
    %72 = vsyncpa [#allocation21], 0
    %73 = vsyncpa [#allocation24], 0
    loop: start=0, step=1, limit=4
    $region2: #{detail_enhancement_forward.1} parent=1 // loop_pre_header
      _
    $region3: #{detail_enhancement_forward.1} parent=1 // loop_header
      %s75 = sphi 0, %s79
      %p76 = scmp.ge.s32.totalorder %s75, 4
      %s85 = sphi 0, %s87
      %s88 = sphi 0, %s85
      %s89 = sphi 0, %s88
      %s105 = sphi 0, %s89
      %s111 = sphi 0, %s113
      %s114 = sphi 0, %s111
      %s115 = sphi 0, %s114
      %s131 = sphi 0, %s115
      %s137 = sphi 0, %s139
      %s140 = sphi 0, %s137
      %s141 = sphi 0, %s140
      %s157 = sphi 0, %s141
      %s161 = sphi 0, %s161
      %s163 = sphi 0, %s161
      %s164 = sphi 0, %s163
      %s178 = sphi 0, %s164
      %s182 = sphi 0, %s182
      %s184 = sphi 0, %s182
      %s185 = sphi 0, %s184
      %s199 = sphi 0, %s185
      %s203 = sphi 0, %s203
      %s205 = sphi 0, %s203
      %s206 = sphi 0, %s205
      %s220 = sphi 0, %s206
      %s224 = sphi 0, %s224
      %s226 = sphi 0, %s224
      %s227 = sphi 0, %s226
      %s241 = sphi 0, %s227
      %s245 = sphi 0, %s245
      %s247 = sphi 0, %s245
      %s248 = sphi 0, %s247
      %s262 = sphi 0, %s248
      %s266 = sphi 0, %s266
      %s268 = sphi 0, %s266
      %s269 = sphi 0, %s268
      %s283 = sphi 0, %s269
      %s287 = sphi 0, %s287
      %s289 = sphi 0, %s287
      %s290 = sphi 0, %s289
      %s304 = sphi 0, %s290
      %s308 = sphi 0, %s308
      %s310 = sphi 0, %s308
      %s311 = sphi 0, %s310
      %s325 = sphi 0, %s311
      %s329 = sphi 0, %s329
      %s331 = sphi 0, %s329
      %s332 = sphi 0, %s331
      %s346 = sphi 0, %s332
      %s350 = sphi 0, %s350
      %s352 = sphi 0, %s350
      %s353 = sphi 0, %s352
      %s367 = sphi 0, %s353
      %s371 = sphi 0, %s371
      %s373 = sphi 0, %s371
      %s374 = sphi 0, %s373
      %s388 = sphi 0, %s374
      %s392 = sphi 0, %s392
      %s394 = sphi 0, %s392
      %s395 = sphi 0, %s394
      %s409 = sphi 0, %s395
      %s413 = sphi 0, %s413
      %s415 = sphi 0, %s413
      %s416 = sphi 0, %s415
      %s430 = sphi 0, %s416
      %s434 = sphi 0, %s434
      %s436 = sphi 0, %s434
      %s437 = sphi 0, %s436
      %s451 = sphi 0, %s437
      %s455 = sphi 0, %s455
      %s457 = sphi 0, %s455
      %s458 = sphi 0, %s457
      %s472 = sphi 0, %s458
      %s476 = sphi 0, %s476
      %s478 = sphi 0, %s476
      %s479 = sphi 0, %s478
      %s493 = sphi 0, %s479
      %s497 = sphi 0, %s497
      %s499 = sphi 0, %s497
      %s500 = sphi 0, %s499
      %s514 = sphi 0, %s500
      %s518 = sphi 0, %s518
      %s520 = sphi 0, %s518
      %s521 = sphi 0, %s520
      %s535 = sphi 0, %s521
      %s539 = sphi 0, %s539
      %s541 = sphi 0, %s539
      %s542 = sphi 0, %s541
      %s556 = sphi 0, %s542
      %s560 = sphi 0, %s560
      %s562 = sphi 0, %s560
      %s563 = sphi 0, %s562
      %s577 = sphi 0, %s563
      %s581 = sphi 0, %s581
      %s583 = sphi 0, %s581
      %s584 = sphi 0, %s583
      %s598 = sphi 0, %s584
      %s602 = sphi 0, %s602
      %s604 = sphi 0, %s602
      %s605 = sphi 0, %s604
      %s619 = sphi 0, %s605
      %s623 = sphi 0, %s623
      %s625 = sphi 0, %s623
      %s626 = sphi 0, %s625
      %s640 = sphi 0, %s626
      %s644 = sphi 0, %s644
      %s646 = sphi 0, %s644
      %s647 = sphi 0, %s646
      %s661 = sphi 0, %s647
      %s665 = sphi 0, %s665
      %s667 = sphi 0, %s665
      %s668 = sphi 0, %s667
      %s682 = sphi 0, %s668
      %s686 = sphi 0, %s686
      %s688 = sphi 0, %s686
      %s689 = sphi 0, %s688
      %s703 = sphi 0, %s689
      %s709 = sphi 0, %s711
      %s712 = sphi 0, %s709
      %s713 = sphi 0, %s712
      %s729 = sphi 0, %s713
    $region4: #{detail_enhancement_forward.1} parent=1 // loop_header_branch
      %78 = sbr.rel (%p76) target = $region8
    $region5: #{detail_enhancement_forward.1} parent=1 // loop_body
      %s80 = ssub.s32 %s75, 1
      %s81 = ssub.s32 %s75, 2
      %s82 = sadd.s32 %s75, 1
      %s83 = ssub.s32 %s75, %s82
      %p84 = scmp.eq.s32.totalorder %s83, 0
      %s86 = sadd.s32 %s85, 1
      %s87 = scalar_select %p84, %s85, %s86
      %p90 = pneg %p84
      %p91 = scmp.eq.s32.totalorder %s75, 1
      %p92 = por %p90, %p91
      %p93 = scmp.ne.s32.totalorder %s85, %s88
      %p94 = scmp.eq.s32.totalorder %s75, 0
      %p95 = por %p93, %p94
      %p96 = scmp.ne.s32.totalorder %s85, %s88
      %p97 = scmp.eq.s32.totalorder %s80, 1
      %p98 = por %p96, %p97
      %p99 = scmp.ne.s32.totalorder %s88, %s89
      %p100 = scmp.eq.s32.totalorder %s80, 0
      %p101 = por %p99, %p100
      %p102 = scmp.ne.s32.totalorder %s88, %s89
      %p103 = scmp.eq.s32.totalorder %s81, 1
      %p104 = por %p102, %p103
      %p106 = scmp.ne.s32.totalorder %s89, %s105
      %p107 = scmp.eq.s32.totalorder %s81, 0
      %p108 = por %p106, %p107
      %s109 = ssub.s32 %s75, %s82
      %p110 = scmp.eq.s32.totalorder %s109, 0
      %s112 = sadd.s32 %s111, 1
      %s113 = scalar_select %p110, %s111, %s112
      %p116 = pneg %p110
      %p117 = scmp.eq.s32.totalorder %s75, 1
      %p118 = por %p116, %p117
      %p119 = scmp.ne.s32.totalorder %s111, %s114
      %p120 = scmp.eq.s32.totalorder %s75, 0
      %p121 = por %p119, %p120
      %p122 = scmp.ne.s32.totalorder %s111, %s114
      %p123 = scmp.eq.s32.totalorder %s80, 1
      %p124 = por %p122, %p123
      %p125 = scmp.ne.s32.totalorder %s114, %s115
      %p126 = scmp.eq.s32.totalorder %s80, 0
      %p127 = por %p125, %p126
      %p128 = scmp.ne.s32.totalorder %s114, %s115
      %p129 = scmp.eq.s32.totalorder %s81, 1
      %p130 = por %p128, %p129
      %p132 = scmp.ne.s32.totalorder %s115, %s131
      %p133 = scmp.eq.s32.totalorder %s81, 0
      %p134 = por %p132, %p133
      %s135 = ssub.s32 %s75, %s82
      %p136 = scmp.eq.s32.totalorder %s135, 0
      %s138 = sadd.s32 %s137, 1
      %s139 = scalar_select %p136, %s137, %s138
      %p142 = pneg %p136
      %p143 = scmp.eq.s32.totalorder %s75, 1
      %p144 = por %p142, %p143
      %p145 = scmp.ne.s32.totalorder %s137, %s140
      %p146 = scmp.eq.s32.totalorder %s75, 0
      %p147 = por %p145, %p146
      %p148 = scmp.ne.s32.totalorder %s137, %s140
      %p149 = scmp.eq.s32.totalorder %s80, 1
      %p150 = por %p148, %p149
      %p151 = scmp.ne.s32.totalorder %s140, %s141
      %p152 = scmp.eq.s32.totalorder %s80, 0
      %p153 = por %p151, %p152
      %p154 = scmp.ne.s32.totalorder %s140, %s141
      %p155 = scmp.eq.s32.totalorder %s81, 1
      %p156 = por %p154, %p155
      %p158 = scmp.ne.s32.totalorder %s141, %s157
      %p159 = scmp.eq.s32.totalorder %s81, 0
      %p160 = por %p158, %p159
      %s162 = sadd.s32 %s161, 1
      %p165 = scmp.eq.s32.totalorder %s75, 1
      %p166 = scmp.ne.s32.totalorder %s161, %s163
      %p167 = scmp.eq.s32.totalorder %s75, 0
      %p168 = por %p166, %p167
      %p169 = scmp.ne.s32.totalorder %s161, %s163
      %p170 = scmp.eq.s32.totalorder %s80, 1
      %p171 = por %p169, %p170
      %p172 = scmp.ne.s32.totalorder %s163, %s164
      %p173 = scmp.eq.s32.totalorder %s80, 0
      %p174 = por %p172, %p173
      %p175 = scmp.ne.s32.totalorder %s163, %s164
      %p176 = scmp.eq.s32.totalorder %s81, 1
      %p177 = por %p175, %p176
      %p179 = scmp.ne.s32.totalorder %s164, %s178
      %p180 = scmp.eq.s32.totalorder %s81, 0
      %p181 = por %p179, %p180
      %s183 = sadd.s32 %s182, 1
      %p186 = scmp.eq.s32.totalorder %s75, 1
      %p187 = scmp.ne.s32.totalorder %s182, %s184
      %p188 = scmp.eq.s32.totalorder %s75, 0
      %p189 = por %p187, %p188
      %p190 = scmp.ne.s32.totalorder %s182, %s184
      %p191 = scmp.eq.s32.totalorder %s80, 1
      %p192 = por %p190, %p191
      %p193 = scmp.ne.s32.totalorder %s184, %s185
      %p194 = scmp.eq.s32.totalorder %s80, 0
      %p195 = por %p193, %p194
      %p196 = scmp.ne.s32.totalorder %s184, %s185
      %p197 = scmp.eq.s32.totalorder %s81, 1
      %p198 = por %p196, %p197
      %p200 = scmp.ne.s32.totalorder %s185, %s199
      %p201 = scmp.eq.s32.totalorder %s81, 0
      %p202 = por %p200, %p201
      %s204 = sadd.s32 %s203, 1
      %p207 = scmp.eq.s32.totalorder %s75, 1
      %p208 = scmp.ne.s32.totalorder %s203, %s205
      %p209 = scmp.eq.s32.totalorder %s75, 0
      %p210 = por %p208, %p209
      %p211 = scmp.ne.s32.totalorder %s203, %s205
      %p212 = scmp.eq.s32.totalorder %s80, 1
      %p213 = por %p211, %p212
      %p214 = scmp.ne.s32.totalorder %s205, %s206
      %p215 = scmp.eq.s32.totalorder %s80, 0
      %p216 = por %p214, %p215
      %p217 = scmp.ne.s32.totalorder %s205, %s206
      %p218 = scmp.eq.s32.totalorder %s81, 1
      %p219 = por %p217, %p218
      %p221 = scmp.ne.s32.totalorder %s206, %s220
      %p222 = scmp.eq.s32.totalorder %s81, 0
      %p223 = por %p221, %p222
      %s225 = sadd.s32 %s224, 1
      %p228 = scmp.eq.s32.totalorder %s75, 1
      %p229 = scmp.ne.s32.totalorder %s224, %s226
      %p230 = scmp.eq.s32.totalorder %s75, 0
      %p231 = por %p229, %p230
      %p232 = scmp.ne.s32.totalorder %s224, %s226
      %p233 = scmp.eq.s32.totalorder %s80, 1
      %p234 = por %p232, %p233
      %p235 = scmp.ne.s32.totalorder %s226, %s227
      %p236 = scmp.eq.s32.totalorder %s80, 0
      %p237 = por %p235, %p236
      %p238 = scmp.ne.s32.totalorder %s226, %s227
      %p239 = scmp.eq.s32.totalorder %s81, 1
      %p240 = por %p238, %p239
      %p242 = scmp.ne.s32.totalorder %s227, %s241
      %p243 = scmp.eq.s32.totalorder %s81, 0
      %p244 = por %p242, %p243
      %s246 = sadd.s32 %s245, 1
      %p249 = scmp.eq.s32.totalorder %s75, 1
      %p250 = scmp.ne.s32.totalorder %s245, %s247
      %p251 = scmp.eq.s32.totalorder %s75, 0
      %p252 = por %p250, %p251
      %p253 = scmp.ne.s32.totalorder %s245, %s247
      %p254 = scmp.eq.s32.totalorder %s80, 1
      %p255 = por %p253, %p254
      %p256 = scmp.ne.s32.totalorder %s247, %s248
      %p257 = scmp.eq.s32.totalorder %s80, 0
      %p258 = por %p256, %p257
      %p259 = scmp.ne.s32.totalorder %s247, %s248
      %p260 = scmp.eq.s32.totalorder %s81, 1
      %p261 = por %p259, %p260
      %p263 = scmp.ne.s32.totalorder %s248, %s262
      %p264 = scmp.eq.s32.totalorder %s81, 0
      %p265 = por %p263, %p264
      %s267 = sadd.s32 %s266, 1
      %p270 = scmp.eq.s32.totalorder %s75, 1
      %p271 = scmp.ne.s32.totalorder %s266, %s268
      %p272 = scmp.eq.s32.totalorder %s75, 0
      %p273 = por %p271, %p272
      %p274 = scmp.ne.s32.totalorder %s266, %s268
      %p275 = scmp.eq.s32.totalorder %s80, 1
      %p276 = por %p274, %p275
      %p277 = scmp.ne.s32.totalorder %s268, %s269
      %p278 = scmp.eq.s32.totalorder %s80, 0
      %p279 = por %p277, %p278
      %p280 = scmp.ne.s32.totalorder %s268, %s269
      %p281 = scmp.eq.s32.totalorder %s81, 1
      %p282 = por %p280, %p281
      %p284 = scmp.ne.s32.totalorder %s269, %s283
      %p285 = scmp.eq.s32.totalorder %s81, 0
      %p286 = por %p284, %p285
      %s288 = sadd.s32 %s287, 1
      %p291 = scmp.eq.s32.totalorder %s75, 1
      %p292 = scmp.ne.s32.totalorder %s287, %s289
      %p293 = scmp.eq.s32.totalorder %s75, 0
      %p294 = por %p292, %p293
      %p295 = scmp.ne.s32.totalorder %s287, %s289
      %p296 = scmp.eq.s32.totalorder %s80, 1
      %p297 = por %p295, %p296
      %p298 = scmp.ne.s32.totalorder %s289, %s290
      %p299 = scmp.eq.s32.totalorder %s80, 0
      %p300 = por %p298, %p299
      %p301 = scmp.ne.s32.totalorder %s289, %s290
      %p302 = scmp.eq.s32.totalorder %s81, 1
      %p303 = por %p301, %p302
      %p305 = scmp.ne.s32.totalorder %s290, %s304
      %p306 = scmp.eq.s32.totalorder %s81, 0
      %p307 = por %p305, %p306
      %s309 = sadd.s32 %s308, 1
      %p312 = scmp.eq.s32.totalorder %s75, 1
      %p313 = scmp.ne.s32.totalorder %s308, %s310
      %p314 = scmp.eq.s32.totalorder %s75, 0
      %p315 = por %p313, %p314
      %p316 = scmp.ne.s32.totalorder %s308, %s310
      %p317 = scmp.eq.s32.totalorder %s80, 1
      %p318 = por %p316, %p317
      %p319 = scmp.ne.s32.totalorder %s310, %s311
      %p320 = scmp.eq.s32.totalorder %s80, 0
      %p321 = por %p319, %p320
      %p322 = scmp.ne.s32.totalorder %s310, %s311
      %p323 = scmp.eq.s32.totalorder %s81, 1
      %p324 = por %p322, %p323
      %p326 = scmp.ne.s32.totalorder %s311, %s325
      %p327 = scmp.eq.s32.totalorder %s81, 0
      %p328 = por %p326, %p327
      %s330 = sadd.s32 %s329, 1
      %p333 = scmp.eq.s32.totalorder %s75, 1
      %p334 = scmp.ne.s32.totalorder %s329, %s331
      %p335 = scmp.eq.s32.totalorder %s75, 0
      %p336 = por %p334, %p335
      %p337 = scmp.ne.s32.totalorder %s329, %s331
      %p338 = scmp.eq.s32.totalorder %s80, 1
      %p339 = por %p337, %p338
      %p340 = scmp.ne.s32.totalorder %s331, %s332
      %p341 = scmp.eq.s32.totalorder %s80, 0
      %p342 = por %p340, %p341
      %p343 = scmp.ne.s32.totalorder %s331, %s332
      %p344 = scmp.eq.s32.totalorder %s81, 1
      %p345 = por %p343, %p344
      %p347 = scmp.ne.s32.totalorder %s332, %s346
      %p348 = scmp.eq.s32.totalorder %s81, 0
      %p349 = por %p347, %p348
      %s351 = sadd.s32 %s350, 1
      %p354 = scmp.eq.s32.totalorder %s75, 1
      %p355 = scmp.ne.s32.totalorder %s350, %s352
      %p356 = scmp.eq.s32.totalorder %s75, 0
      %p357 = por %p355, %p356
      %p358 = scmp.ne.s32.totalorder %s350, %s352
      %p359 = scmp.eq.s32.totalorder %s80, 1
      %p360 = por %p358, %p359
      %p361 = scmp.ne.s32.totalorder %s352, %s353
      %p362 = scmp.eq.s32.totalorder %s80, 0
      %p363 = por %p361, %p362
      %p364 = scmp.ne.s32.totalorder %s352, %s353
      %p365 = scmp.eq.s32.totalorder %s81, 1
      %p366 = por %p364, %p365
      %p368 = scmp.ne.s32.totalorder %s353, %s367
      %p369 = scmp.eq.s32.totalorder %s81, 0
      %p370 = por %p368, %p369
      %s372 = sadd.s32 %s371, 1
      %p375 = scmp.eq.s32.totalorder %s75, 1
      %p376 = scmp.ne.s32.totalorder %s371, %s373
      %p377 = scmp.eq.s32.totalorder %s75, 0
      %p378 = por %p376, %p377
      %p379 = scmp.ne.s32.totalorder %s371, %s373
      %p380 = scmp.eq.s32.totalorder %s80, 1
      %p381 = por %p379, %p380
      %p382 = scmp.ne.s32.totalorder %s373, %s374
      %p383 = scmp.eq.s32.totalorder %s80, 0
      %p384 = por %p382, %p383
      %p385 = scmp.ne.s32.totalorder %s373, %s374
      %p386 = scmp.eq.s32.totalorder %s81, 1
      %p387 = por %p385, %p386
      %p389 = scmp.ne.s32.totalorder %s374, %s388
      %p390 = scmp.eq.s32.totalorder %s81, 0
      %p391 = por %p389, %p390
      %s393 = sadd.s32 %s392, 1
      %p396 = scmp.eq.s32.totalorder %s75, 1
      %p397 = scmp.ne.s32.totalorder %s392, %s394
      %p398 = scmp.eq.s32.totalorder %s75, 0
      %p399 = por %p397, %p398
      %p400 = scmp.ne.s32.totalorder %s392, %s394
      %p401 = scmp.eq.s32.totalorder %s80, 1
      %p402 = por %p400, %p401
      %p403 = scmp.ne.s32.totalorder %s394, %s395
      %p404 = scmp.eq.s32.totalorder %s80, 0
      %p405 = por %p403, %p404
      %p406 = scmp.ne.s32.totalorder %s394, %s395
      %p407 = scmp.eq.s32.totalorder %s81, 1
      %p408 = por %p406, %p407
      %p410 = scmp.ne.s32.totalorder %s395, %s409
      %p411 = scmp.eq.s32.totalorder %s81, 0
      %p412 = por %p410, %p411
      %s414 = sadd.s32 %s413, 1
      %p417 = scmp.eq.s32.totalorder %s75, 1
      %p418 = scmp.ne.s32.totalorder %s413, %s415
      %p419 = scmp.eq.s32.totalorder %s75, 0
      %p420 = por %p418, %p419
      %p421 = scmp.ne.s32.totalorder %s413, %s415
      %p422 = scmp.eq.s32.totalorder %s80, 1
      %p423 = por %p421, %p422
      %p424 = scmp.ne.s32.totalorder %s415, %s416
      %p425 = scmp.eq.s32.totalorder %s80, 0
      %p426 = por %p424, %p425
      %p427 = scmp.ne.s32.totalorder %s415, %s416
      %p428 = scmp.eq.s32.totalorder %s81, 1
      %p429 = por %p427, %p428
      %p431 = scmp.ne.s32.totalorder %s416, %s430
      %p432 = scmp.eq.s32.totalorder %s81, 0
      %p433 = por %p431, %p432
      %s435 = sadd.s32 %s434, 1
      %p438 = scmp.eq.s32.totalorder %s75, 1
      %p439 = scmp.ne.s32.totalorder %s434, %s436
      %p440 = scmp.eq.s32.totalorder %s75, 0
      %p441 = por %p439, %p440
      %p442 = scmp.ne.s32.totalorder %s434, %s436
      %p443 = scmp.eq.s32.totalorder %s80, 1
      %p444 = por %p442, %p443
      %p445 = scmp.ne.s32.totalorder %s436, %s437
      %p446 = scmp.eq.s32.totalorder %s80, 0
      %p447 = por %p445, %p446
      %p448 = scmp.ne.s32.totalorder %s436, %s437
      %p449 = scmp.eq.s32.totalorder %s81, 1
      %p450 = por %p448, %p449
      %p452 = scmp.ne.s32.totalorder %s437, %s451
      %p453 = scmp.eq.s32.totalorder %s81, 0
      %p454 = por %p452, %p453
      %s456 = sadd.s32 %s455, 1
      %p459 = scmp.eq.s32.totalorder %s75, 1
      %p460 = scmp.ne.s32.totalorder %s455, %s457
      %p461 = scmp.eq.s32.totalorder %s75, 0
      %p462 = por %p460, %p461
      %p463 = scmp.ne.s32.totalorder %s455, %s457
      %p464 = scmp.eq.s32.totalorder %s80, 1
      %p465 = por %p463, %p464
      %p466 = scmp.ne.s32.totalorder %s457, %s458
      %p467 = scmp.eq.s32.totalorder %s80, 0
      %p468 = por %p466, %p467
      %p469 = scmp.ne.s32.totalorder %s457, %s458
      %p470 = scmp.eq.s32.totalorder %s81, 1
      %p471 = por %p469, %p470
      %p473 = scmp.ne.s32.totalorder %s458, %s472
      %p474 = scmp.eq.s32.totalorder %s81, 0
      %p475 = por %p473, %p474
      %s477 = sadd.s32 %s476, 1
      %p480 = scmp.eq.s32.totalorder %s75, 1
      %p481 = scmp.ne.s32.totalorder %s476, %s478
      %p482 = scmp.eq.s32.totalorder %s75, 0
      %p483 = por %p481, %p482
      %p484 = scmp.ne.s32.totalorder %s476, %s478
      %p485 = scmp.eq.s32.totalorder %s80, 1
      %p486 = por %p484, %p485
      %p487 = scmp.ne.s32.totalorder %s478, %s479
      %p488 = scmp.eq.s32.totalorder %s80, 0
      %p489 = por %p487, %p488
      %p490 = scmp.ne.s32.totalorder %s478, %s479
      %p491 = scmp.eq.s32.totalorder %s81, 1
      %p492 = por %p490, %p491
      %p494 = scmp.ne.s32.totalorder %s479, %s493
      %p495 = scmp.eq.s32.totalorder %s81, 0
      %p496 = por %p494, %p495
      %s498 = sadd.s32 %s497, 1
      %p501 = scmp.eq.s32.totalorder %s75, 1
      %p502 = scmp.ne.s32.totalorder %s497, %s499
      %p503 = scmp.eq.s32.totalorder %s75, 0
      %p504 = por %p502, %p503
      %p505 = scmp.ne.s32.totalorder %s497, %s499
      %p506 = scmp.eq.s32.totalorder %s80, 1
      %p507 = por %p505, %p506
      %p508 = scmp.ne.s32.totalorder %s499, %s500
      %p509 = scmp.eq.s32.totalorder %s80, 0
      %p510 = por %p508, %p509
      %p511 = scmp.ne.s32.totalorder %s499, %s500
      %p512 = scmp.eq.s32.totalorder %s81, 1
      %p513 = por %p511, %p512
      %p515 = scmp.ne.s32.totalorder %s500, %s514
      %p516 = scmp.eq.s32.totalorder %s81, 0
      %p517 = por %p515, %p516
      %s519 = sadd.s32 %s518, 1
      %p522 = scmp.eq.s32.totalorder %s75, 1
      %p523 = scmp.ne.s32.totalorder %s518, %s520
      %p524 = scmp.eq.s32.totalorder %s75, 0
      %p525 = por %p523, %p524
      %p526 = scmp.ne.s32.totalorder %s518, %s520
      %p527 = scmp.eq.s32.totalorder %s80, 1
      %p528 = por %p526, %p527
      %p529 = scmp.ne.s32.totalorder %s520, %s521
      %p530 = scmp.eq.s32.totalorder %s80, 0
      %p531 = por %p529, %p530
      %p532 = scmp.ne.s32.totalorder %s520, %s521
      %p533 = scmp.eq.s32.totalorder %s81, 1
      %p534 = por %p532, %p533
      %p536 = scmp.ne.s32.totalorder %s521, %s535
      %p537 = scmp.eq.s32.totalorder %s81, 0
      %p538 = por %p536, %p537
      %s540 = sadd.s32 %s539, 1
      %p543 = scmp.eq.s32.totalorder %s75, 1
      %p544 = scmp.ne.s32.totalorder %s539, %s541
      %p545 = scmp.eq.s32.totalorder %s75, 0
      %p546 = por %p544, %p545
      %p547 = scmp.ne.s32.totalorder %s539, %s541
      %p548 = scmp.eq.s32.totalorder %s80, 1
      %p549 = por %p547, %p548
      %p550 = scmp.ne.s32.totalorder %s541, %s542
      %p551 = scmp.eq.s32.totalorder %s80, 0
      %p552 = por %p550, %p551
      %p553 = scmp.ne.s32.totalorder %s541, %s542
      %p554 = scmp.eq.s32.totalorder %s81, 1
      %p555 = por %p553, %p554
      %p557 = scmp.ne.s32.totalorder %s542, %s556
      %p558 = scmp.eq.s32.totalorder %s81, 0
      %p559 = por %p557, %p558
      %s561 = sadd.s32 %s560, 1
      %p564 = scmp.eq.s32.totalorder %s75, 1
      %p565 = scmp.ne.s32.totalorder %s560, %s562
      %p566 = scmp.eq.s32.totalorder %s75, 0
      %p567 = por %p565, %p566
      %p568 = scmp.ne.s32.totalorder %s560, %s562
      %p569 = scmp.eq.s32.totalorder %s80, 1
      %p570 = por %p568, %p569
      %p571 = scmp.ne.s32.totalorder %s562, %s563
      %p572 = scmp.eq.s32.totalorder %s80, 0
      %p573 = por %p571, %p572
      %p574 = scmp.ne.s32.totalorder %s562, %s563
      %p575 = scmp.eq.s32.totalorder %s81, 1
      %p576 = por %p574, %p575
      %p578 = scmp.ne.s32.totalorder %s563, %s577
      %p579 = scmp.eq.s32.totalorder %s81, 0
      %p580 = por %p578, %p579
      %s582 = sadd.s32 %s581, 1
      %p585 = scmp.eq.s32.totalorder %s75, 1
      %p586 = scmp.ne.s32.totalorder %s581, %s583
      %p587 = scmp.eq.s32.totalorder %s75, 0
      %p588 = por %p586, %p587
      %p589 = scmp.ne.s32.totalorder %s581, %s583
      %p590 = scmp.eq.s32.totalorder %s80, 1
      %p591 = por %p589, %p590
      %p592 = scmp.ne.s32.totalorder %s583, %s584
      %p593 = scmp.eq.s32.totalorder %s80, 0
      %p594 = por %p592, %p593
      %p595 = scmp.ne.s32.totalorder %s583, %s584
      %p596 = scmp.eq.s32.totalorder %s81, 1
      %p597 = por %p595, %p596
      %p599 = scmp.ne.s32.totalorder %s584, %s598
      %p600 = scmp.eq.s32.totalorder %s81, 0
      %p601 = por %p599, %p600
      %s603 = sadd.s32 %s602, 1
      %p606 = scmp.eq.s32.totalorder %s75, 1
      %p607 = scmp.ne.s32.totalorder %s602, %s604
      %p608 = scmp.eq.s32.totalorder %s75, 0
      %p609 = por %p607, %p608
      %p610 = scmp.ne.s32.totalorder %s602, %s604
      %p611 = scmp.eq.s32.totalorder %s80, 1
      %p612 = por %p610, %p611
      %p613 = scmp.ne.s32.totalorder %s604, %s605
      %p614 = scmp.eq.s32.totalorder %s80, 0
      %p615 = por %p613, %p614
      %p616 = scmp.ne.s32.totalorder %s604, %s605
      %p617 = scmp.eq.s32.totalorder %s81, 1
      %p618 = por %p616, %p617
      %p620 = scmp.ne.s32.totalorder %s605, %s619
      %p621 = scmp.eq.s32.totalorder %s81, 0
      %p622 = por %p620, %p621
      %s624 = sadd.s32 %s623, 1
      %p627 = scmp.eq.s32.totalorder %s75, 1
      %p628 = scmp.ne.s32.totalorder %s623, %s625
      %p629 = scmp.eq.s32.totalorder %s75, 0
      %p630 = por %p628, %p629
      %p631 = scmp.ne.s32.totalorder %s623, %s625
      %p632 = scmp.eq.s32.totalorder %s80, 1
      %p633 = por %p631, %p632
      %p634 = scmp.ne.s32.totalorder %s625, %s626
      %p635 = scmp.eq.s32.totalorder %s80, 0
      %p636 = por %p634, %p635
      %p637 = scmp.ne.s32.totalorder %s625, %s626
      %p638 = scmp.eq.s32.totalorder %s81, 1
      %p639 = por %p637, %p638
      %p641 = scmp.ne.s32.totalorder %s626, %s640
      %p642 = scmp.eq.s32.totalorder %s81, 0
      %p643 = por %p641, %p642
      %s645 = sadd.s32 %s644, 1
      %p648 = scmp.eq.s32.totalorder %s75, 1
      %p649 = scmp.ne.s32.totalorder %s644, %s646
      %p650 = scmp.eq.s32.totalorder %s75, 0
      %p651 = por %p649, %p650
      %p652 = scmp.ne.s32.totalorder %s644, %s646
      %p653 = scmp.eq.s32.totalorder %s80, 1
      %p654 = por %p652, %p653
      %p655 = scmp.ne.s32.totalorder %s646, %s647
      %p656 = scmp.eq.s32.totalorder %s80, 0
      %p657 = por %p655, %p656
      %p658 = scmp.ne.s32.totalorder %s646, %s647
      %p659 = scmp.eq.s32.totalorder %s81, 1
      %p660 = por %p658, %p659
      %p662 = scmp.ne.s32.totalorder %s647, %s661
      %p663 = scmp.eq.s32.totalorder %s81, 0
      %p664 = por %p662, %p663
      %s666 = sadd.s32 %s665, 1
      %p669 = scmp.eq.s32.totalorder %s75, 1
      %p670 = scmp.ne.s32.totalorder %s665, %s667
      %p671 = scmp.eq.s32.totalorder %s75, 0
      %p672 = por %p670, %p671
      %p673 = scmp.ne.s32.totalorder %s665, %s667
      %p674 = scmp.eq.s32.totalorder %s80, 1
      %p675 = por %p673, %p674
      %p676 = scmp.ne.s32.totalorder %s667, %s668
      %p677 = scmp.eq.s32.totalorder %s80, 0
      %p678 = por %p676, %p677
      %p679 = scmp.ne.s32.totalorder %s667, %s668
      %p680 = scmp.eq.s32.totalorder %s81, 1
      %p681 = por %p679, %p680
      %p683 = scmp.ne.s32.totalorder %s668, %s682
      %p684 = scmp.eq.s32.totalorder %s81, 0
      %p685 = por %p683, %p684
      %s687 = sadd.s32 %s686, 1
      %p690 = scmp.eq.s32.totalorder %s75, 1
      %p691 = scmp.ne.s32.totalorder %s686, %s688
      %p692 = scmp.eq.s32.totalorder %s75, 0
      %p693 = por %p691, %p692
      %p694 = scmp.ne.s32.totalorder %s686, %s688
      %p695 = scmp.eq.s32.totalorder %s80, 1
      %p696 = por %p694, %p695
      %p697 = scmp.ne.s32.totalorder %s688, %s689
      %p698 = scmp.eq.s32.totalorder %s80, 0
      %p699 = por %p697, %p698
      %p700 = scmp.ne.s32.totalorder %s688, %s689
      %p701 = scmp.eq.s32.totalorder %s81, 1
      %p702 = por %p700, %p701
      %p704 = scmp.ne.s32.totalorder %s689, %s703
      %p705 = scmp.eq.s32.totalorder %s81, 0
      %p706 = por %p704, %p705
      %s707 = ssub.s32 %s75, %s82
      %p708 = scmp.eq.s32.totalorder %s707, 0
      %s710 = sadd.s32 %s709, 1
      %s711 = scalar_select %p708, %s709, %s710
      %p714 = pneg %p708
      %p715 = scmp.eq.s32.totalorder %s75, 1
      %p716 = por %p714, %p715
      %p717 = scmp.ne.s32.totalorder %s709, %s712
      %p718 = scmp.eq.s32.totalorder %s75, 0
      %p719 = por %p717, %p718
      %p720 = scmp.ne.s32.totalorder %s709, %s712
      %p721 = scmp.eq.s32.totalorder %s80, 1
      %p722 = por %p720, %p721
      %p723 = scmp.ne.s32.totalorder %s712, %s713
      %p724 = scmp.eq.s32.totalorder %s80, 0
      %p725 = por %p723, %p724
      %p726 = scmp.ne.s32.totalorder %s712, %s713
      %p727 = scmp.eq.s32.totalorder %s81, 1
      %p728 = por %p726, %p727
      %p730 = scmp.ne.s32.totalorder %s713, %s729
      %p731 = scmp.eq.s32.totalorder %s81, 0
      %p732 = por %p730, %p731
      %p733 = scmp.le.s32.totalorder 1, %s75
      %p734 = scmp.lt.s32.totalorder %s75, 3
      %p735 = pnand %p733, %p734
      %p736 = pneg %p735
      // Predicated region
      $region9: #{detail_enhancement_forward.1} parent=5 // pred_check
        _
      $region10: #{detail_enhancement_forward.1} parent=5 // pred_check_branch
        %738 = sbr.rel (%p735) target = $region12
      $region11: #{detail_enhancement_forward.1} parent=5 // pred_region
        %s739 = ssub.s32 %s75, 1
        // Predicated region
        $region13: #{detail_enhancement_forward.1} parent=11 // pred_check
          %p740 = pneg %p174
        $region14: #{detail_enhancement_forward.1} parent=11 // pred_check_branch
          %742 = sbr.rel (%p740) target = $region16
        $region15: #{detail_enhancement_forward.1} parent=11 // pred_region
          _
        $region16: #{detail_enhancement_forward.1} parent=11 // pred_fallthru
          _
        // Predicated region
        $region17: #{detail_enhancement_forward.1} parent=11 // pred_check
          %p743 = pneg %p195
        $region18: #{detail_enhancement_forward.1} parent=11 // pred_check_branch
          %745 = sbr.rel (%p743) target = $region20
        $region19: #{detail_enhancement_forward.1} parent=11 // pred_region
          _
        $region20: #{detail_enhancement_forward.1} parent=11 // pred_fallthru
          _
        // Predicated region
        $region21: #{detail_enhancement_forward.1} parent=11 // pred_check
          %p746 = pneg %p216
        $region22: #{detail_enhancement_forward.1} parent=11 // pred_check_branch
          %748 = sbr.rel (%p746) target = $region24
        $region23: #{detail_enhancement_forward.1} parent=11 // pred_region
          _
        $region24: #{detail_enhancement_forward.1} parent=11 // pred_fallthru
          _
        // Predicated region
        $region25: #{detail_enhancement_forward.1} parent=11 // pred_check
          %p749 = pneg %p237
        $region26: #{detail_enhancement_forward.1} parent=11 // pred_check_branch
          %751 = sbr.rel (%p749) target = $region28
        $region27: #{detail_enhancement_forward.1} parent=11 // pred_region
          _
        $region28: #{detail_enhancement_forward.1} parent=11 // pred_fallthru
          _
        // Predicated region
        $region29: #{detail_enhancement_forward.1} parent=11 // pred_check
          %p752 = pneg %p258
        $region30: #{detail_enhancement_forward.1} parent=11 // pred_check_branch
          %754 = sbr.rel (%p752) target = $region32
        $region31: #{detail_enhancement_forward.1} parent=11 // pred_region
          _
        $region32: #{detail_enhancement_forward.1} parent=11 // pred_fallthru
          _
        // Predicated region
        $region33: #{detail_enhancement_forward.1} parent=11 // pred_check
          %p755 = pneg %p279
        $region34: #{detail_enhancement_forward.1} parent=11 // pred_check_branch
          %757 = sbr.rel (%p755) target = $region36
        $region35: #{detail_enhancement_forward.1} parent=11 // pred_region
          _
        $region36: #{detail_enhancement_forward.1} parent=11 // pred_fallthru
          _
        // Predicated region
        $region37: #{detail_enhancement_forward.1} parent=11 // pred_check
          %p758 = pneg %p300
        $region38: #{detail_enhancement_forward.1} parent=11 // pred_check_branch
          %760 = sbr.rel (%p758) target = $region40
        $region39: #{detail_enhancement_forward.1} parent=11 // pred_region
          _
        $region40: #{detail_enhancement_forward.1} parent=11 // pred_fallthru
          _
        // Predicated region
        $region41: #{detail_enhancement_forward.1} parent=11 // pred_check
          %p761 = pneg %p321
        $region42: #{detail_enhancement_forward.1} parent=11 // pred_check_branch
          %763 = sbr.rel (%p761) target = $region44
        $region43: #{detail_enhancement_forward.1} parent=11 // pred_region
          _
        $region44: #{detail_enhancement_forward.1} parent=11 // pred_fallthru
          _
        // Predicated region
        $region45: #{detail_enhancement_forward.1} parent=11 // pred_check
          %p764 = pneg %p342
        $region46: #{detail_enhancement_forward.1} parent=11 // pred_check_branch
          %766 = sbr.rel (%p764) target = $region48
        $region47: #{detail_enhancement_forward.1} parent=11 // pred_region
          %s768 = ssub.s32 1152, 1152
          %769 = vsyncadd [#allocation4], %s768
          %s770 = sshll.u32 [#allocation3], 4
          %s771 = int_to_ptr.vmem [resolvable:$true] %s770
          %776 = dma.hbm_to_vmem [thread:$0]  %s23, 1152, %s771, [#allocation4], 128, 128, 8
        $region48: #{detail_enhancement_forward.1} parent=11 // pred_fallthru
          _
        // Predicated region
        $region49: #{detail_enhancement_forward.1} parent=11 // pred_check
          %p777 = pneg %p363
        $region50: #{detail_enhancement_forward.1} parent=11 // pred_check_branch
          %779 = sbr.rel (%p777) target = $region52
        $region51: #{detail_enhancement_forward.1} parent=11 // pred_region
          %s781 = ssub.s32 128, 128
          %782 = vsyncadd [#allocation6], %s781
          %s784 = sshll.u32 [#allocation5], 4
          %s785 = int_to_ptr.vmem [resolvable:$true] %s784
          %787 = dma.hbm_to_vmem [thread:$0]  %s25, 128, %s785, [#allocation6]
        $region52: #{detail_enhancement_forward.1} parent=11 // pred_fallthru
          _
        // Predicated region
        $region53: #{detail_enhancement_forward.1} parent=11 // pred_check
          %p788 = pneg %p384
        $region54: #{detail_enhancement_forward.1} parent=11 // pred_check_branch
          %790 = sbr.rel (%p788) target = $region56
        $region55: #{detail_enhancement_forward.1} parent=11 // pred_region
          %s792 = ssub.s32 1152, 1152
          %793 = vsyncadd [#allocation6], %s792
          %s794 = sshll.u32 [#allocation7], 4
          %s795 = int_to_ptr.vmem [resolvable:$true] %s794
          %800 = dma.hbm_to_vmem [thread:$0]  %s27, 1152, %s795, [#allocation6], 128, 128, 8
        $region56: #{detail_enhancement_forward.1} parent=11 // pred_fallthru
          _
        // Predicated region
        $region57: #{detail_enhancement_forward.1} parent=11 // pred_check
          %p801 = pneg %p405
        $region58: #{detail_enhancement_forward.1} parent=11 // pred_check_branch
          %803 = sbr.rel (%p801) target = $region60
        $region59: #{detail_enhancement_forward.1} parent=11 // pred_region
          %s805 = ssub.s32 128, 128
          %806 = vsyncadd [#allocation9], %s805
          %s808 = sshll.u32 [#allocation8], 4
          %s809 = int_to_ptr.vmem [resolvable:$true] %s808
          %811 = dma.hbm_to_vmem [thread:$0]  %s29, 128, %s809, [#allocation9]
        $region60: #{detail_enhancement_forward.1} parent=11 // pred_fallthru
          _
        // Predicated region
        $region61: #{detail_enhancement_forward.1} parent=11 // pred_check
          %p812 = pneg %p426
        $region62: #{detail_enhancement_forward.1} parent=11 // pred_check_branch
          %814 = sbr.rel (%p812) target = $region64
        $region63: #{detail_enhancement_forward.1} parent=11 // pred_region
          %s816 = ssub.s32 64, 64
          %817 = vsyncadd [#allocation9], %s816
          %s819 = sshll.u32 [#allocation10], 4
          %s820 = int_to_ptr.vmem [resolvable:$true] %s819
          %822 = dma.hbm_to_vmem [thread:$0]  %s31, 64, %s820, [#allocation9]
        $region64: #{detail_enhancement_forward.1} parent=11 // pred_fallthru
          _
        // Predicated region
        $region65: #{detail_enhancement_forward.1} parent=11 // pred_check
          %p823 = pneg %p447
        $region66: #{detail_enhancement_forward.1} parent=11 // pred_check_branch
          %825 = sbr.rel (%p823) target = $region68
        $region67: #{detail_enhancement_forward.1} parent=11 // pred_region
          %s827 = ssub.s32 64, 64
          %828 = vsyncadd [#allocation12], %s827
          %s830 = sshll.u32 [#allocation11], 4
          %s831 = int_to_ptr.vmem [resolvable:$true] %s830
          %833 = dma.hbm_to_vmem [thread:$0]  %s33, 64, %s831, [#allocation12]
        $region68: #{detail_enhancement_forward.1} parent=11 // pred_fallthru
          _
        // Predicated region
        $region69: #{detail_enhancement_forward.1} parent=11 // pred_check
          %p834 = pneg %p468
        $region70: #{detail_enhancement_forward.1} parent=11 // pred_check_branch
          %836 = sbr.rel (%p834) target = $region72
        $region71: #{detail_enhancement_forward.1} parent=11 // pred_region
          %s838 = ssub.s32 192, 192
          %839 = vsyncadd [#allocation12], %s838
          %s840 = sshll.u32 [#allocation13], 4
          %s841 = int_to_ptr.vmem [resolvable:$true] %s840
          %846 = dma.hbm_to_vmem [thread:$0]  %s35, 192, %s841, [#allocation12], 64, 64, 4
        $region72: #{detail_enhancement_forward.1} parent=11 // pred_fallthru
          _
        // Predicated region
        $region73: #{detail_enhancement_forward.1} parent=11 // pred_check
          %p847 = pneg %p489
        $region74: #{detail_enhancement_forward.1} parent=11 // pred_check_branch
          %849 = sbr.rel (%p847) target = $region76
        $region75: #{detail_enhancement_forward.1} parent=11 // pred_region
          %s851 = ssub.s32 192, 192
          %852 = vsyncadd [#allocation15], %s851
          %s853 = sshll.u32 [#allocation14], 4
          %s854 = int_to_ptr.vmem [resolvable:$true] %s853
          %859 = dma.hbm_to_vmem [thread:$0]  %s37, 192, %s854, [#allocation15], 64, 64, 4
        $region76: #{detail_enhancement_forward.1} parent=11 // pred_fallthru
          _
        // Predicated region
        $region77: #{detail_enhancement_forward.1} parent=11 // pred_check
          %p860 = pneg %p510
        $region78: #{detail_enhancement_forward.1} parent=11 // pred_check_branch
          %862 = sbr.rel (%p860) target = $region80
        $region79: #{detail_enhancement_forward.1} parent=11 // pred_region
          %s864 = ssub.s32 192, 192
          %865 = vsyncadd [#allocation15], %s864
          %s866 = sshll.u32 [#allocation16], 4
          %s867 = int_to_ptr.vmem [resolvable:$true] %s866
          %872 = dma.hbm_to_vmem [thread:$0]  %s39, 192, %s867, [#allocation15], 64, 64, 4
        $region80: #{detail_enhancement_forward.1} parent=11 // pred_fallthru
          _
        // Predicated region
        $region81: #{detail_enhancement_forward.1} parent=11 // pred_check
          %p873 = pneg %p531
        $region82: #{detail_enhancement_forward.1} parent=11 // pred_check_branch
          %875 = sbr.rel (%p873) target = $region84
        $region83: #{detail_enhancement_forward.1} parent=11 // pred_region
          %s877 = ssub.s32 192, 192
          %878 = vsyncadd [#allocation18], %s877
          %s879 = sshll.u32 [#allocation17], 4
          %s880 = int_to_ptr.vmem [resolvable:$true] %s879
          %885 = dma.hbm_to_vmem [thread:$0]  %s41, 192, %s880, [#allocation18], 64, 64, 4
        $region84: #{detail_enhancement_forward.1} parent=11 // pred_fallthru
          _
        // Predicated region
        $region85: #{detail_enhancement_forward.1} parent=11 // pred_check
          %p886 = pneg %p552
        $region86: #{detail_enhancement_forward.1} parent=11 // pred_check_branch
          %888 = sbr.rel (%p886) target = $region88
        $region87: #{detail_enhancement_forward.1} parent=11 // pred_region
          %s890 = ssub.s32 512, 512
          %891 = vsyncadd [#allocation18], %s890
          %s892 = sshll.u32 [#allocation19], 4
          %s893 = int_to_ptr.vmem [resolvable:$true] %s892
          %898 = dma.hbm_to_vmem [thread:$0]  %s43, 512, %s893, [#allocation18], 128, 128, 8
        $region88: #{detail_enhancement_forward.1} parent=11 // pred_fallthru
          _
        // Predicated region
        $region89: #{detail_enhancement_forward.1} parent=11 // pred_check
          %p899 = pneg %p573
        $region90: #{detail_enhancement_forward.1} parent=11 // pred_check_branch
          %901 = sbr.rel (%p899) target = $region92
        $region91: #{detail_enhancement_forward.1} parent=11 // pred_region
          %s903 = ssub.s32 128, 128
          %904 = vsyncadd [#allocation21], %s903
          %s906 = sshll.u32 [#allocation20], 4
          %s907 = int_to_ptr.vmem [resolvable:$true] %s906
          %909 = dma.hbm_to_vmem [thread:$0]  %s45, 128, %s907, [#allocation21]
        $region92: #{detail_enhancement_forward.1} parent=11 // pred_fallthru
          _
        // Predicated region
        $region93: #{detail_enhancement_forward.1} parent=11 // pred_check
          %p910 = pneg %p594
        $region94: #{detail_enhancement_forward.1} parent=11 // pred_check_branch
          %912 = sbr.rel (%p910) target = $region96
        $region95: #{detail_enhancement_forward.1} parent=11 // pred_region
          _
        $region96: #{detail_enhancement_forward.1} parent=11 // pred_fallthru
          _
        // Predicated region
        $region97: #{detail_enhancement_forward.1} parent=11 // pred_check
          %p913 = pneg %p615
        $region98: #{detail_enhancement_forward.1} parent=11 // pred_check_branch
          %915 = sbr.rel (%p913) target = $region100
        $region99: #{detail_enhancement_forward.1} parent=11 // pred_region
          %s917 = ssub.s32 512, 512
          %918 = vsyncadd [#allocation21], %s917
          %s919 = sshll.u32 [#allocation22], 4
          %s920 = int_to_ptr.vmem [resolvable:$true] %s919
          %925 = dma.hbm_to_vmem [thread:$0]  %s49, 512, %s920, [#allocation21], 128, 128, 8
        $region100: #{detail_enhancement_forward.1} parent=11 // pred_fallthru
          _
        // Predicated region
        $region101: #{detail_enhancement_forward.1} parent=11 // pred_check
          %p926 = pneg %p636
        $region102: #{detail_enhancement_forward.1} parent=11 // pred_check_branch
          %928 = sbr.rel (%p926) target = $region104
        $region103: #{detail_enhancement_forward.1} parent=11 // pred_region
          _
        $region104: #{detail_enhancement_forward.1} parent=11 // pred_fallthru
          _
        // Predicated region
        $region105: #{detail_enhancement_forward.1} parent=11 // pred_check
          %p929 = pneg %p657
        $region106: #{detail_enhancement_forward.1} parent=11 // pred_check_branch
          %931 = sbr.rel (%p929) target = $region108
        $region107: #{detail_enhancement_forward.1} parent=11 // pred_region
          %s933 = ssub.s32 256, 256
          %934 = vsyncadd [#allocation24], %s933
          %s935 = sshll.u32 [#allocation23], 4
          %s936 = int_to_ptr.vmem [resolvable:$true] %s935
          %941 = dma.hbm_to_vmem [thread:$0]  %s53, 256, %s936, [#allocation24], 128, 128, 8
        $region108: #{detail_enhancement_forward.1} parent=11 // pred_fallthru
          _
        // Predicated region
        $region109: #{detail_enhancement_forward.1} parent=11 // pred_check
          %p942 = pneg %p678
        $region110: #{detail_enhancement_forward.1} parent=11 // pred_check_branch
          %944 = sbr.rel (%p942) target = $region112
        $region111: #{detail_enhancement_forward.1} parent=11 // pred_region
          %s946 = ssub.s32 16, 16
          %947 = vsyncadd [#allocation24], %s946
          %s949 = sshll.u32 [#allocation25], 4
          %s950 = int_to_ptr.vmem [resolvable:$true] %s949
          %952 = dma.hbm_to_vmem [thread:$0]  %s55, 16, %s950, [#allocation24]
        $region112: #{detail_enhancement_forward.1} parent=11 // pred_fallthru
          _
        // Predicated region
        $region113: #{detail_enhancement_forward.1} parent=11 // pred_check
          %p953 = pneg %p699
        $region114: #{detail_enhancement_forward.1} parent=11 // pred_check_branch
          %955 = sbr.rel (%p953) target = $region116
        $region115: #{detail_enhancement_forward.1} parent=11 // pred_region
          _
        $region116: #{detail_enhancement_forward.1} parent=11 // pred_fallthru
          _
      $region12: #{detail_enhancement_forward.1} parent=5 // pred_fallthru
        _
      %p956 = scmp.lt.s32.totalorder %s75, 2
      // Predicated region
      $region117: #{detail_enhancement_forward.1} parent=5 // pred_check
        %p957 = pneg %p956
      $region118: #{detail_enhancement_forward.1} parent=5 // pred_check_branch
        %959 = sbr.rel (%p957) target = $region120
      $region119: #{detail_enhancement_forward.1} parent=5 // pred_region
        // Predicated region
        $region121: #{detail_enhancement_forward.1} parent=119 // pred_check
          %p960 = pneg %p95
        $region122: #{detail_enhancement_forward.1} parent=119 // pred_check_branch
          %962 = sbr.rel (%p960) target = $region124
        $region123: #{detail_enhancement_forward.1} parent=119 // pred_region
          %p963 = scmp.lt.s32.totalorder %s75, 1
          %s964 = scalar_select %p963, %s75, 1
          %s965 = smul.addr %s964, 2
          %s966 = smul.addr %s965, 8
          %s967 = scalar_lea.vmem %s1, %s966
        $region124: #{detail_enhancement_forward.1} parent=119 // pred_fallthru
          _
        // Predicated region
        $region125: #{detail_enhancement_forward.1} parent=119 // pred_check
          %p968 = pneg %p121
        $region126: #{detail_enhancement_forward.1} parent=119 // pred_check_branch
          %970 = sbr.rel (%p968) target = $region128
        $region127: #{detail_enhancement_forward.1} parent=119 // pred_region
          %p971 = scmp.lt.s32.totalorder %s75, 1
          %s972 = scalar_select %p971, %s75, 1
          %s973 = smul.addr %s972, 8
          %s974 = scalar_lea.vmem %s3, %s973
        $region128: #{detail_enhancement_forward.1} parent=119 // pred_fallthru
          _
        // Predicated region
        $region129: #{detail_enhancement_forward.1} parent=119 // pred_check
          %p975 = pneg %p147
        $region130: #{detail_enhancement_forward.1} parent=119 // pred_check_branch
          %977 = sbr.rel (%p975) target = $region132
        $region131: #{detail_enhancement_forward.1} parent=119 // pred_region
          %p978 = scmp.lt.s32.totalorder %s75, 1
          %s979 = scalar_select %p978, %s75, 1
          %s980 = smul.addr %s979, 8
          %s981 = scalar_lea.vmem %s5, %s980
        $region132: #{detail_enhancement_forward.1} parent=119 // pred_fallthru
          _
      $region120: #{detail_enhancement_forward.1} parent=5 // pred_fallthru
        _
      %p982 = scmp.le.s32.totalorder 1, %s75
      %p983 = scmp.lt.s32.totalorder %s75, 3
      %p984 = pnand %p982, %p983
      %p985 = pneg %p984
      // Predicated region
      $region133: #{detail_enhancement_forward.1} parent=5 // pred_check
        _
      $region134: #{detail_enhancement_forward.1} parent=5 // pred_check_branch
        %987 = sbr.rel (%p984) target = $region136
      $region135: #{detail_enhancement_forward.1} parent=5 // pred_region
        %s988 = ssub.s32 %s75, 1
        // Predicated region
        $region137: #{detail_enhancement_forward.1} parent=135 // pred_check
          %p989 = pneg %p342
        $region138: #{detail_enhancement_forward.1} parent=135 // pred_check_branch
          %991 = sbr.rel (%p989) target = $region140
        $region139: #{detail_enhancement_forward.1} parent=135 // pred_region
          %992 = dma.done [#allocation4], 1152
        $region140: #{detail_enhancement_forward.1} parent=135 // pred_fallthru
          _
        // Predicated region
        $region141: #{detail_enhancement_forward.1} parent=135 // pred_check
          %p993 = pneg %p363
        $region142: #{detail_enhancement_forward.1} parent=135 // pred_check_branch
          %995 = sbr.rel (%p993) target = $region144
        $region143: #{detail_enhancement_forward.1} parent=135 // pred_region
          %996 = dma.done [#allocation6], 128
        $region144: #{detail_enhancement_forward.1} parent=135 // pred_fallthru
          _
        // Predicated region
        $region145: #{detail_enhancement_forward.1} parent=135 // pred_check
          %p997 = pneg %p384
        $region146: #{detail_enhancement_forward.1} parent=135 // pred_check_branch
          %999 = sbr.rel (%p997) target = $region148
        $region147: #{detail_enhancement_forward.1} parent=135 // pred_region
          %1000 = dma.done [#allocation6], 1152
        $region148: #{detail_enhancement_forward.1} parent=135 // pred_fallthru
          _
        // Predicated region
        $region149: #{detail_enhancement_forward.1} parent=135 // pred_check
          %p1001 = pneg %p405
        $region150: #{detail_enhancement_forward.1} parent=135 // pred_check_branch
          %1003 = sbr.rel (%p1001) target = $region152
        $region151: #{detail_enhancement_forward.1} parent=135 // pred_region
          %1004 = dma.done [#allocation9], 128
        $region152: #{detail_enhancement_forward.1} parent=135 // pred_fallthru
          _
        // Predicated region
        $region153: #{detail_enhancement_forward.1} parent=135 // pred_check
          %p1005 = pneg %p426
        $region154: #{detail_enhancement_forward.1} parent=135 // pred_check_branch
          %1007 = sbr.rel (%p1005) target = $region156
        $region155: #{detail_enhancement_forward.1} parent=135 // pred_region
          %1008 = dma.done [#allocation9], 64
        $region156: #{detail_enhancement_forward.1} parent=135 // pred_fallthru
          _
        // Predicated region
        $region157: #{detail_enhancement_forward.1} parent=135 // pred_check
          %p1009 = pneg %p447
        $region158: #{detail_enhancement_forward.1} parent=135 // pred_check_branch
          %1011 = sbr.rel (%p1009) target = $region160
        $region159: #{detail_enhancement_forward.1} parent=135 // pred_region
          %1012 = dma.done [#allocation12], 64
        $region160: #{detail_enhancement_forward.1} parent=135 // pred_fallthru
          _
        // Predicated region
        $region161: #{detail_enhancement_forward.1} parent=135 // pred_check
          %p1013 = pneg %p468
        $region162: #{detail_enhancement_forward.1} parent=135 // pred_check_branch
          %1015 = sbr.rel (%p1013) target = $region164
        $region163: #{detail_enhancement_forward.1} parent=135 // pred_region
          %1016 = dma.done [#allocation12], 192
        $region164: #{detail_enhancement_forward.1} parent=135 // pred_fallthru
          _
        // Predicated region
        $region165: #{detail_enhancement_forward.1} parent=135 // pred_check
          %p1017 = pneg %p489
        $region166: #{detail_enhancement_forward.1} parent=135 // pred_check_branch
          %1019 = sbr.rel (%p1017) target = $region168
        $region167: #{detail_enhancement_forward.1} parent=135 // pred_region
          %1020 = dma.done [#allocation15], 192
        $region168: #{detail_enhancement_forward.1} parent=135 // pred_fallthru
          _
        // Predicated region
        $region169: #{detail_enhancement_forward.1} parent=135 // pred_check
          %p1021 = pneg %p510
        $region170: #{detail_enhancement_forward.1} parent=135 // pred_check_branch
          %1023 = sbr.rel (%p1021) target = $region172
        $region171: #{detail_enhancement_forward.1} parent=135 // pred_region
          %1024 = dma.done [#allocation15], 192
        $region172: #{detail_enhancement_forward.1} parent=135 // pred_fallthru
          _
        // Predicated region
        $region173: #{detail_enhancement_forward.1} parent=135 // pred_check
          %p1025 = pneg %p531
        $region174: #{detail_enhancement_forward.1} parent=135 // pred_check_branch
          %1027 = sbr.rel (%p1025) target = $region176
        $region175: #{detail_enhancement_forward.1} parent=135 // pred_region
          %1028 = dma.done [#allocation18], 192
        $region176: #{detail_enhancement_forward.1} parent=135 // pred_fallthru
          _
        // Predicated region
        $region177: #{detail_enhancement_forward.1} parent=135 // pred_check
          %p1029 = pneg %p552
        $region178: #{detail_enhancement_forward.1} parent=135 // pred_check_branch
          %1031 = sbr.rel (%p1029) target = $region180
        $region179: #{detail_enhancement_forward.1} parent=135 // pred_region
          %1032 = dma.done [#allocation18], 512
        $region180: #{detail_enhancement_forward.1} parent=135 // pred_fallthru
          _
        // Predicated region
        $region181: #{detail_enhancement_forward.1} parent=135 // pred_check
          %p1033 = pneg %p573
        $region182: #{detail_enhancement_forward.1} parent=135 // pred_check_branch
          %1035 = sbr.rel (%p1033) target = $region184
        $region183: #{detail_enhancement_forward.1} parent=135 // pred_region
          %1036 = dma.done [#allocation21], 128
        $region184: #{detail_enhancement_forward.1} parent=135 // pred_fallthru
          _
        // Predicated region
        $region185: #{detail_enhancement_forward.1} parent=135 // pred_check
          %p1037 = pneg %p615
        $region186: #{detail_enhancement_forward.1} parent=135 // pred_check_branch
          %1039 = sbr.rel (%p1037) target = $region188
        $region187: #{detail_enhancement_forward.1} parent=135 // pred_region
          %1040 = dma.done [#allocation21], 512
        $region188: #{detail_enhancement_forward.1} parent=135 // pred_fallthru
          _
        // Predicated region
        $region189: #{detail_enhancement_forward.1} parent=135 // pred_check
          %p1041 = pneg %p657
        $region190: #{detail_enhancement_forward.1} parent=135 // pred_check_branch
          %1043 = sbr.rel (%p1041) target = $region192
        $region191: #{detail_enhancement_forward.1} parent=135 // pred_region
          %1044 = dma.done [#allocation24], 256
        $region192: #{detail_enhancement_forward.1} parent=135 // pred_fallthru
          _
        // Predicated region
        $region193: #{detail_enhancement_forward.1} parent=135 // pred_check
          %p1045 = pneg %p678
        $region194: #{detail_enhancement_forward.1} parent=135 // pred_check_branch
          %1047 = sbr.rel (%p1045) target = $region196
        $region195: #{detail_enhancement_forward.1} parent=135 // pred_region
          %1048 = dma.done [#allocation24], 16
        $region196: #{detail_enhancement_forward.1} parent=135 // pred_fallthru
          _
        %p1049 = scmp.lt.s32.totalorder %s80, 1
        %s1050 = scalar_select %p1049, %s80, 1
        %s1051 = smul.addr %s1050, 2
        %s1052 = smul.addr %s1051, 8
        %s1053 = scalar_lea.vmem %s1, %s1052
        %p1054 = pneg %p101
        %p1055 = pneg %p98
        %p1056 = scmp.lt.s32.totalorder %s80, 1
        %s1057 = scalar_select %p1056, %s80, 1
        %s1058 = smul.addr %s1057, 8
        %s1059 = scalar_lea.vmem %s3, %s1058
        %p1060 = pneg %p127
        %p1061 = pneg %p124
        %p1062 = scmp.lt.s32.totalorder %s80, 1
        %s1063 = scalar_select %p1062, %s80, 1
        %s1064 = smul.addr %s1063, 8
        %s1065 = scalar_lea.vmem %s5, %s1064
        %p1066 = pneg %p153
        %p1067 = pneg %p150
        %p1068 = pneg %p174
        %p1069 = pneg %p171
        %p1070 = pneg %p195
        %p1071 = pneg %p192
        %p1072 = pneg %p216
        %p1073 = pneg %p213
        %p1074 = pneg %p237
        %p1075 = pneg %p234
        %p1076 = pneg %p258
        %p1077 = pneg %p255
        %p1078 = pneg %p279
        %p1079 = pneg %p276
        %p1080 = pneg %p300
        %p1081 = pneg %p297
        %p1082 = pneg %p321
        %p1083 = pneg %p318
        %p1084 = pneg %p342
        %p1085 = pneg %p339
        %p1086 = pneg %p363
        %p1087 = pneg %p360
        %p1088 = pneg %p384
        %p1089 = pneg %p381
        %p1090 = pneg %p405
        %p1091 = pneg %p402
        %p1092 = pneg %p426
        %p1093 = pneg %p423
        %p1094 = pneg %p447
        %p1095 = pneg %p444
        %p1096 = pneg %p468
        %p1097 = pneg %p465
        %p1098 = pneg %p489
        %p1099 = pneg %p486
        %p1100 = pneg %p510
        %p1101 = pneg %p507
        %p1102 = pneg %p531
        %p1103 = pneg %p528
        %p1104 = pneg %p552
        %p1105 = pneg %p549
        %p1106 = pneg %p573
        %p1107 = pneg %p570
        %p1108 = pneg %p594
        %p1109 = pneg %p591
        %p1110 = pneg %p615
        %p1111 = pneg %p612
        %p1112 = pneg %p636
        %p1113 = pneg %p633
        %p1114 = pneg %p657
        %p1115 = pneg %p654
        %p1116 = pneg %p678
        %p1117 = pneg %p675
        %p1118 = pneg %p699
        %p1119 = pneg %p696
        %p1120 = pneg %p725
        %p1121 = pneg %p722
        %p1122 = scmp.lt.s32.totalorder %s80, 1
        %s1123 = scalar_select %p1122, %s80, 1
        %s1124 = smul.addr %s1123, 2
        %s1125 = scalar_lea.vmem %s59, %s1124
        %p1126 = scmp.lt.s32.totalorder %s80, 1
        %s1127 = scalar_select %p1126, %s80, 1
        %s1128 = smul.addr %s1127, 2
        %s1129 = smul.addr %s1128, 8
        %s1130 = scalar_lea.vmem %s1, %s1129
        %p1131 = scmp.lt.s32.totalorder %s80, 1
        %s1132 = scalar_select %p1131, %s80, 1
        %s1133 = smul.addr %s1132, 8
        %s1134 = scalar_lea.vmem %s3, %s1133
        %p1135 = scmp.lt.s32.totalorder %s80, 1
        %s1136 = scalar_select %p1135, %s80, 1
        %s1137 = smul.addr %s1136, 8
        %s1138 = scalar_lea.vmem %s5, %s1137
        %p1139 = scmp.lt.s32.totalorder %s80, 1
        %s1140 = scalar_select %p1139, %s80, 1
        %s1141 = smul.addr %s1140, 2
        %s1142 = scalar_lea.vmem %s59, %s1141
        %v1144 = vlaneseq
        %v1145 = vand.u32 %v1144, 127
        %v1146 = vadd.s32 %v1145, 128
        %v1147 = vand.u32 %v1145, 15
        %v1148 = vand.u32 %v1146, 15
        %vm1149 = vcmp.ge.s32.totalorder %v1145, 16
        %vm1150 = vcmp.ge.s32.totalorder %v1146, 16
        %vm1151 = vcmp.lt.s32.totalorder %v1145, 240
        %vm1152 = vcmp.lt.s32.totalorder %v1146, 240
        %vm1153 = vcmp.ge.s32.totalorder %v1147, 1
        %vm1154 = vcmp.ge.s32.totalorder %v1148, 1
        %vm1155 = vcmp.le.s32.totalorder %v1147, 14
        %vm1156 = vcmp.le.s32.totalorder %v1148, 14
        %vm1157 = vmand %vm1149, %vm1153
        %vm1158 = vmand %vm1150, %vm1154
        %vm1159 = vmand %vm1149, %vm1155
        %vm1160 = vmand %vm1150, %vm1156
        %vm1161 = vmand %vm1151, %vm1153
        %vm1162 = vmand %vm1152, %vm1154
        %vm1163 = vmand %vm1151, %vm1155
        %vm1164 = vmand %vm1152, %vm1156
        %v1165 = vld [vmem:[%s1134] sm:$0xff]
        %v1166 = vld [vmem:[%s1138] sm:$0xff]
        %v1167 = vld [vmem:[%s15] sm:$0xff]
        %v1168 = vld [vmem:[%s15 + $0x8] sm:$0xff]
        %v1169 = vld [vmem:[%s15 + $0x10] sm:$0xff]
        %v1170 = vld [vmem:[%s15 + $0x18] sm:$0xff]
        %v1171 = vld [vmem:[%s15 + $0x20] sm:$0xff]
        %v1172 = vld [vmem:[%s15 + $0x28] sm:$0xff]
        %v1173 = vld [vmem:[%s15 + $0x30] sm:$0xff]
        %v1174 = vld [vmem:[%s15 + $0x38] sm:$0xff]
        %v1175 = vld [vmem:[%s15 + $0x40] sm:$0xff]
        %v1176 = vld [vmem:[%s17] sm:$0xff]
        %v1177 = vpack.c.bf16 %v1168, %v1167
        %v1178 = vpack.c.bf16 %v1170, %v1169
        %v1179 = vpack.c.bf16 %v1172, %v1171
        %v1180 = vpack.c.bf16 %v1174, %v1173
        %v1181 = vpack.c.bf16 %v1175, %v1175
        %v1182 = vpack.c.bf16 %v1166, %v1165
        %vm1183 = vcmask 130048
        %v1185 = vsel %vm1183, %v1177, 0
        %v1188 = vsel %vm1183, %v1178, 0
        %v1191 = vsel %vm1183, %v1179, 0
        %v1194 = vsel %vm1183, %v1180, 0
        %v1197 = vsel %vm1183, %v1181, 0
        %1199 = vmatprep.subr.bf16.mxu0 0
        %1200 = vmatpush1.bf16.msra.mxu0 %v1182
        %1201 = vmatprep.subr.bf16.mxu0 0
        %1202 = vmatpush1.bf16.msra.mxu0 0
        %1203 = vmatprep.subr.bf16.mxu0 0
        %1204 = vmatpush1.bf16.msra.mxu0 0
        %1205 = vmatprep.subr.bf16.mxu0 0
        %1206 = vmatpush1.bf16.msra.mxu0 0
        %1207 = vmatprep.subr.bf16.mxu0 0
        %1208 = vmatpush1.bf16.msra.mxu0 0
        %1209 = vmatprep.subr.bf16.mxu0 0
        %1210 = vmatpush1.bf16.msra.mxu0 0
        %1211 = vmatprep.subr.bf16.mxu0 0
        %1212 = vmatpush1.bf16.msra.mxu0 0
        %1213 = vmatprep.subr.bf16.mxu0 0
        %1214 = vmatpush1.bf16.msra.mxu0 0
        %1215 = vmatprep.subr.bf16.mxu0 0
        %1216 = vmatpush1.bf16.msra.mxu0 0
        %1217 = vmatprep.subr.bf16.mxu0 0
        %1218 = vmatpush1.bf16.msra.mxu0 0
        %1219 = vmatprep.subr.bf16.mxu0 0
        %1220 = vmatpush1.bf16.msra.mxu0 0
        %1221 = vmatprep.subr.bf16.mxu0 0
        %1222 = vmatpush1.bf16.msra.mxu0 0
        %1223 = vmatprep.subr.bf16.mxu0 0
        %1224 = vmatpush1.bf16.msra.mxu0 0
        %1225 = vmatprep.subr.bf16.mxu0 0
        %1226 = vmatpush1.bf16.msra.mxu0 0
        %1227 = vmatprep.subr.bf16.mxu0 0
        %1228 = vmatpush1.bf16.msra.mxu0 0
        %1229 = vmatprep.subr.bf16.mxu0 0
        %1230 = vmatpush1.bf16.msra.mxu0 0
        %1231 = vmatprep.mubr.bf16.mxu0 0
        %1232 = vmatmul.mubr.bf16.gmra.mrb[0].mxu0 %v1185
        %v1233 = vpop.f32.mrb[0].mxu0
        %v1234 = vadd.f32 0.0, %v1233
        %v1235 = vpop.f32.mrb[0].mxu0
        %v1236 = vpop.f32.mrb[0].mxu0
        %v1237 = vadd.f32 0.0, %v1236
        %v1238 = vpop.f32.mrb[0].mxu0
        %1239 = vmatprep.mubr.bf16.mxu0 0
        %1240 = vmatmul.mubr.bf16.gmra.mrb[0].mxu0 %v1188
        %v1241 = vpop.f32.mrb[0].mxu0
        %v1242 = vadd.f32 0.0, %v1241
        %v1243 = vpop.f32.mrb[0].mxu0
        %v1244 = vpop.f32.mrb[0].mxu0
        %v1245 = vadd.f32 0.0, %v1244
        %v1246 = vpop.f32.mrb[0].mxu0
        %1247 = vmatprep.mubr.bf16.mxu0 0
        %1248 = vmatmul.mubr.bf16.gmra.mrb[0].mxu0 %v1191
        %v1249 = vpop.f32.mrb[0].mxu0
        %v1250 = vadd.f32 0.0, %v1249
        %v1251 = vpop.f32.mrb[0].mxu0
        %v1252 = vpop.f32.mrb[0].mxu0
        %v1253 = vadd.f32 0.0, %v1252
        %v1254 = vpop.f32.mrb[0].mxu0
        %1255 = vmatprep.mubr.bf16.mxu0 0
        %1256 = vmatmul.mubr.bf16.gmra.mrb[0].mxu0 %v1194
        %v1257 = vpop.f32.mrb[0].mxu0
        %v1258 = vadd.f32 0.0, %v1257
        %v1259 = vpop.f32.mrb[0].mxu0
        %v1260 = vpop.f32.mrb[0].mxu0
        %v1261 = vadd.f32 0.0, %v1260
        %v1262 = vpop.f32.mrb[0].mxu0
        %1263 = vmatprep.mubr.bf16.mxu0 0
        %1264 = vmatmul.mubr.bf16.gmra.mrb[0].mxu0 %v1197
        %v1265 = vpop.f32.mrb[0].mxu0
        %v1266 = vadd.f32 0.0, %v1265
        %v1267 = vpop.f32.mrb[0].mxu0
        %v1268 = vpop.f32.mrb[0].mxu0
        %v1269 = vpop.f32.mrb[0].mxu0
        %1270 = vdwg.mxu0
        %v1271 = vpack.c.bf16 %v1234, %v1234
        %v1272 = vld [vmem:[%s7] sm:$0xf]
        %v1273 = vld [vmem:[%s7 + $0x4] sm:$0xf]
        %v1274 = vpack.c.bf16 %v1237, %v1237
        %v1275 = vld [vmem:[%s7 + $0x8] sm:$0xf]
        %v1276 = vld [vmem:[%s7 + $0xc] sm:$0xf]
        %v1279 = vunpack.c.l.b16 %v1275
        %v1280 = vunpack.c.l.b16 %v1276
        %v1281 = vpack.c.b16 %v1280, %v1279
        %v1284 = vsel %vm1183, %v1274, 0
        %1286 = vmatprep.subr.bf16.mxu0 0
        %1287 = vmatpush1.bf16.msra.mxu0 %v1281
        %1288 = vmatprep.subr.bf16.mxu0 0
        %1289 = vmatpush1.bf16.msra.mxu0 0
        %1290 = vmatprep.subr.bf16.mxu0 0
        %1291 = vmatpush1.bf16.msra.mxu0 0
        %1292 = vmatprep.subr.bf16.mxu0 0
        %1293 = vmatpush1.bf16.msra.mxu0 0
        %1294 = vmatprep.subr.bf16.mxu0 0
        %1295 = vmatpush1.bf16.msra.mxu0 0
        %1296 = vmatprep.subr.bf16.mxu0 0
        %1297 = vmatpush1.bf16.msra.mxu0 0
        %1298 = vmatprep.subr.bf16.mxu0 0
        %1299 = vmatpush1.bf16.msra.mxu0 0
        %1300 = vmatprep.subr.bf16.mxu0 0
        %1301 = vmatpush1.bf16.msra.mxu0 0
        %1302 = vmatprep.subr.bf16.mxu0 0
        %1303 = vmatpush1.bf16.msra.mxu0 0
        %1304 = vmatprep.subr.bf16.mxu0 0
        %1305 = vmatpush1.bf16.msra.mxu0 0
        %1306 = vmatprep.subr.bf16.mxu0 0
        %1307 = vmatpush1.bf16.msra.mxu0 0
        %1308 = vmatprep.subr.bf16.mxu0 0
        %1309 = vmatpush1.bf16.msra.mxu0 0
        %1310 = vmatprep.subr.bf16.mxu0 0
        %1311 = vmatpush1.bf16.msra.mxu0 0
        %1312 = vmatprep.subr.bf16.mxu0 0
        %1313 = vmatpush1.bf16.msra.mxu0 0
        %1314 = vmatprep.subr.bf16.mxu0 0
        %1315 = vmatpush1.bf16.msra.mxu0 0
        %1316 = vmatprep.subr.bf16.mxu0 0
        %1317 = vmatpush1.bf16.msra.mxu0 0
        %1318 = vmatprep.mubr.bf16.mxu0 0
        %1319 = vmatmul.mubr.bf16.gmra.mrb[0].mxu0 %v1284
        %v1320 = vpop.f32.mrb[0].mxu0
        %v1321 = vadd.f32 0.0, %v1320
        %v1322 = vpop.f32.mrb[0].mxu0
        %v1323 = vpop.f32.mrb[0].mxu0
        %v1324 = vpop.f32.mrb[0].mxu0
        %1325 = vdwg.mxu0
        %v1328 = vunpack.c.l.b16 %v1272
        %v1329 = vunpack.c.l.b16 %v1273
        %v1330 = vpack.c.b16 %v1329, %v1328
        %v1333 = vsel %vm1183, %v1271, 0
        %1335 = vmatprep.subr.bf16.mxu0 0
        %1336 = vmatpush1.bf16.msra.mxu0 %v1330
        %1337 = vmatprep.subr.bf16.mxu0 0
        %1338 = vmatpush1.bf16.msra.mxu0 0
        %1339 = vmatprep.subr.bf16.mxu0 0
        %1340 = vmatpush1.bf16.msra.mxu0 0
        %1341 = vmatprep.subr.bf16.mxu0 0
        %1342 = vmatpush1.bf16.msra.mxu0 0
        %1343 = vmatprep.subr.bf16.mxu0 0
        %1344 = vmatpush1.bf16.msra.mxu0 0
        %1345 = vmatprep.subr.bf16.mxu0 0
        %1346 = vmatpush1.bf16.msra.mxu0 0
        %1347 = vmatprep.subr.bf16.mxu0 0
        %1348 = vmatpush1.bf16.msra.mxu0 0
        %1349 = vmatprep.subr.bf16.mxu0 0
        %1350 = vmatpush1.bf16.msra.mxu0 0
        %1351 = vmatprep.subr.bf16.mxu0 0
        %1352 = vmatpush1.bf16.msra.mxu0 0
        %1353 = vmatprep.subr.bf16.mxu0 0
        %1354 = vmatpush1.bf16.msra.mxu0 0
        %1355 = vmatprep.subr.bf16.mxu0 0
        %1356 = vmatpush1.bf16.msra.mxu0 0
        %1357 = vmatprep.subr.bf16.mxu0 0
        %1358 = vmatpush1.bf16.msra.mxu0 0
        %1359 = vmatprep.subr.bf16.mxu0 0
        %1360 = vmatpush1.bf16.msra.mxu0 0
        %1361 = vmatprep.subr.bf16.mxu0 0
        %1362 = vmatpush1.bf16.msra.mxu0 0
        %1363 = vmatprep.subr.bf16.mxu0 0
        %1364 = vmatpush1.bf16.msra.mxu0 0
        %1365 = vmatprep.subr.bf16.mxu0 0
        %1366 = vmatpush1.bf16.msra.mxu0 0
        %1367 = vmatprep.mubr.bf16.mxu0 0
        %1368 = vmatmul.mubr.bf16.gmra.mrb[0].mxu0 %v1333
        %v1369 = vpop.f32.mrb[0].mxu0
        %v1370 = vadd.f32 %v1321, %v1369
        %v1371 = vpop.f32.mrb[0].mxu0
        %v1372 = vpop.f32.mrb[0].mxu0
        %v1373 = vpop.f32.mrb[0].mxu0
        %1374 = vdwg.mxu0
        %v1375 = vpack.c.bf16 %v1242, %v1242
        %v1376 = vld [vmem:[%s7 + $0x10] sm:$0xf]
        %v1377 = vld [vmem:[%s7 + $0x14] sm:$0xf]
        %v1380 = vunpack.c.l.b16 %v1376
        %v1381 = vunpack.c.l.b16 %v1377
        %v1382 = vpack.c.b16 %v1381, %v1380
        %v1385 = vsel %vm1183, %v1375, 0
        %1387 = vmatprep.subr.bf16.mxu0 0
        %1388 = vmatpush1.bf16.msra.mxu0 %v1382
        %1389 = vmatprep.subr.bf16.mxu0 0
        %1390 = vmatpush1.bf16.msra.mxu0 0
        %1391 = vmatprep.subr.bf16.mxu0 0
        %1392 = vmatpush1.bf16.msra.mxu0 0
        %1393 = vmatprep.subr.bf16.mxu0 0
        %1394 = vmatpush1.bf16.msra.mxu0 0
        %1395 = vmatprep.subr.bf16.mxu0 0
        %1396 = vmatpush1.bf16.msra.mxu0 0
        %1397 = vmatprep.subr.bf16.mxu0 0
        %1398 = vmatpush1.bf16.msra.mxu0 0
        %1399 = vmatprep.subr.bf16.mxu0 0
        %1400 = vmatpush1.bf16.msra.mxu0 0
        %1401 = vmatprep.subr.bf16.mxu0 0
        %1402 = vmatpush1.bf16.msra.mxu0 0
        %1403 = vmatprep.subr.bf16.mxu0 0
        %1404 = vmatpush1.bf16.msra.mxu0 0
        %1405 = vmatprep.subr.bf16.mxu0 0
        %1406 = vmatpush1.bf16.msra.mxu0 0
        %1407 = vmatprep.subr.bf16.mxu0 0
        %1408 = vmatpush1.bf16.msra.mxu0 0
        %1409 = vmatprep.subr.bf16.mxu0 0
        %1410 = vmatpush1.bf16.msra.mxu0 0
        %1411 = vmatprep.subr.bf16.mxu0 0
        %1412 = vmatpush1.bf16.msra.mxu0 0
        %1413 = vmatprep.subr.bf16.mxu0 0
        %1414 = vmatpush1.bf16.msra.mxu0 0
        %1415 = vmatprep.subr.bf16.mxu0 0
        %1416 = vmatpush1.bf16.msra.mxu0 0
        %1417 = vmatprep.subr.bf16.mxu0 0
        %1418 = vmatpush1.bf16.msra.mxu0 0
        %1419 = vmatprep.mubr.bf16.mxu0 0
        %1420 = vmatmul.mubr.bf16.gmra.mrb[0].mxu0 %v1385
        %v1421 = vpop.f32.mrb[0].mxu0
        %v1422 = vadd.f32 0.0, %v1421
        %v1423 = vpop.f32.mrb[0].mxu0
        %v1424 = vpop.f32.mrb[0].mxu0
        %v1425 = vpop.f32.mrb[0].mxu0
        %1426 = vdwg.mxu0
        %v1427 = vadd.f32 %v1370, %v1422
        %v1428 = vpack.c.bf16 %v1245, %v1245
        %v1429 = vld [vmem:[%s7 + $0x18] sm:$0xf]
        %v1430 = vld [vmem:[%s7 + $0x1c] sm:$0xf]
        %v1433 = vunpack.c.l.b16 %v1429
        %v1434 = vunpack.c.l.b16 %v1430
        %v1435 = vpack.c.b16 %v1434, %v1433
        %v1438 = vsel %vm1183, %v1428, 0
        %1440 = vmatprep.subr.bf16.mxu0 0
        %1441 = vmatpush1.bf16.msra.mxu0 %v1435
        %1442 = vmatprep.subr.bf16.mxu0 0
        %1443 = vmatpush1.bf16.msra.mxu0 0
        %1444 = vmatprep.subr.bf16.mxu0 0
        %1445 = vmatpush1.bf16.msra.mxu0 0
        %1446 = vmatprep.subr.bf16.mxu0 0
        %1447 = vmatpush1.bf16.msra.mxu0 0
        %1448 = vmatprep.subr.bf16.mxu0 0
        %1449 = vmatpush1.bf16.msra.mxu0 0
        %1450 = vmatprep.subr.bf16.mxu0 0
        %1451 = vmatpush1.bf16.msra.mxu0 0
        %1452 = vmatprep.subr.bf16.mxu0 0
        %1453 = vmatpush1.bf16.msra.mxu0 0
        %1454 = vmatprep.subr.bf16.mxu0 0
        %1455 = vmatpush1.bf16.msra.mxu0 0
        %1456 = vmatprep.subr.bf16.mxu0 0
        %1457 = vmatpush1.bf16.msra.mxu0 0
        %1458 = vmatprep.subr.bf16.mxu0 0
        %1459 = vmatpush1.bf16.msra.mxu0 0
        %1460 = vmatprep.subr.bf16.mxu0 0
        %1461 = vmatpush1.bf16.msra.mxu0 0
        %1462 = vmatprep.subr.bf16.mxu0 0
        %1463 = vmatpush1.bf16.msra.mxu0 0
        %1464 = vmatprep.subr.bf16.mxu0 0
        %1465 = vmatpush1.bf16.msra.mxu0 0
        %1466 = vmatprep.subr.bf16.mxu0 0
        %1467 = vmatpush1.bf16.msra.mxu0 0
        %1468 = vmatprep.subr.bf16.mxu0 0
        %1469 = vmatpush1.bf16.msra.mxu0 0
        %1470 = vmatprep.subr.bf16.mxu0 0
        %1471 = vmatpush1.bf16.msra.mxu0 0
        %1472 = vmatprep.mubr.bf16.mxu0 0
        %1473 = vmatmul.mubr.bf16.gmra.mrb[0].mxu0 %v1438
        %v1474 = vpop.f32.mrb[0].mxu0
        %v1475 = vadd.f32 0.0, %v1474
        %v1476 = vpop.f32.mrb[0].mxu0
        %v1477 = vpop.f32.mrb[0].mxu0
        %v1478 = vpop.f32.mrb[0].mxu0
        %1479 = vdwg.mxu0
        %v1480 = vadd.f32 %v1427, %v1475
        %v1481 = vpack.c.bf16 %v1250, %v1250
        %v1482 = vld [vmem:[%s7 + $0x20] sm:$0xf]
        %v1483 = vld [vmem:[%s7 + $0x24] sm:$0xf]
        %v1486 = vunpack.c.l.b16 %v1482
        %v1487 = vunpack.c.l.b16 %v1483
        %v1488 = vpack.c.b16 %v1487, %v1486
        %v1491 = vsel %vm1183, %v1481, 0
        %1493 = vmatprep.subr.bf16.mxu0 0
        %1494 = vmatpush1.bf16.msra.mxu0 %v1488
        %1495 = vmatprep.subr.bf16.mxu0 0
        %1496 = vmatpush1.bf16.msra.mxu0 0
        %1497 = vmatprep.subr.bf16.mxu0 0
        %1498 = vmatpush1.bf16.msra.mxu0 0
        %1499 = vmatprep.subr.bf16.mxu0 0
        %1500 = vmatpush1.bf16.msra.mxu0 0
        %1501 = vmatprep.subr.bf16.mxu0 0
        %1502 = vmatpush1.bf16.msra.mxu0 0
        %1503 = vmatprep.subr.bf16.mxu0 0
        %1504 = vmatpush1.bf16.msra.mxu0 0
        %1505 = vmatprep.subr.bf16.mxu0 0
        %1506 = vmatpush1.bf16.msra.mxu0 0
        %1507 = vmatprep.subr.bf16.mxu0 0
        %1508 = vmatpush1.bf16.msra.mxu0 0
        %1509 = vmatprep.subr.bf16.mxu0 0
        %1510 = vmatpush1.bf16.msra.mxu0 0
        %1511 = vmatprep.subr.bf16.mxu0 0
        %1512 = vmatpush1.bf16.msra.mxu0 0
        %1513 = vmatprep.subr.bf16.mxu0 0
        %1514 = vmatpush1.bf16.msra.mxu0 0
        %1515 = vmatprep.subr.bf16.mxu0 0
        %1516 = vmatpush1.bf16.msra.mxu0 0
        %1517 = vmatprep.subr.bf16.mxu0 0
        %1518 = vmatpush1.bf16.msra.mxu0 0
        %1519 = vmatprep.subr.bf16.mxu0 0
        %1520 = vmatpush1.bf16.msra.mxu0 0
        %1521 = vmatprep.subr.bf16.mxu0 0
        %1522 = vmatpush1.bf16.msra.mxu0 0
        %1523 = vmatprep.subr.bf16.mxu0 0
        %1524 = vmatpush1.bf16.msra.mxu0 0
        %1525 = vmatprep.mubr.bf16.mxu0 0
        %1526 = vmatmul.mubr.bf16.gmra.mrb[0].mxu0 %v1491
        %v1527 = vpop.f32.mrb[0].mxu0
        %v1528 = vadd.f32 0.0, %v1527
        %v1529 = vpop.f32.mrb[0].mxu0
        %v1530 = vpop.f32.mrb[0].mxu0
        %v1531 = vpop.f32.mrb[0].mxu0
        %1532 = vdwg.mxu0
        %v1533 = vadd.f32 %v1480, %v1528
        %v1534 = vpack.c.bf16 %v1253, %v1253
        %v1535 = vld [vmem:[%s7 + $0x28] sm:$0xf]
        %v1536 = vld [vmem:[%s7 + $0x2c] sm:$0xf]
        %v1539 = vunpack.c.l.b16 %v1535
        %v1540 = vunpack.c.l.b16 %v1536
        %v1541 = vpack.c.b16 %v1540, %v1539
        %v1544 = vsel %vm1183, %v1534, 0
        %1546 = vmatprep.subr.bf16.mxu0 0
        %1547 = vmatpush1.bf16.msra.mxu0 %v1541
        %1548 = vmatprep.subr.bf16.mxu0 0
        %1549 = vmatpush1.bf16.msra.mxu0 0
        %1550 = vmatprep.subr.bf16.mxu0 0
        %1551 = vmatpush1.bf16.msra.mxu0 0
        %1552 = vmatprep.subr.bf16.mxu0 0
        %1553 = vmatpush1.bf16.msra.mxu0 0
        %1554 = vmatprep.subr.bf16.mxu0 0
        %1555 = vmatpush1.bf16.msra.mxu0 0
        %1556 = vmatprep.subr.bf16.mxu0 0
        %1557 = vmatpush1.bf16.msra.mxu0 0
        %1558 = vmatprep.subr.bf16.mxu0 0
        %1559 = vmatpush1.bf16.msra.mxu0 0
        %1560 = vmatprep.subr.bf16.mxu0 0
        %1561 = vmatpush1.bf16.msra.mxu0 0
        %1562 = vmatprep.subr.bf16.mxu0 0
        %1563 = vmatpush1.bf16.msra.mxu0 0
        %1564 = vmatprep.subr.bf16.mxu0 0
        %1565 = vmatpush1.bf16.msra.mxu0 0
        %1566 = vmatprep.subr.bf16.mxu0 0
        %1567 = vmatpush1.bf16.msra.mxu0 0
        %1568 = vmatprep.subr.bf16.mxu0 0
        %1569 = vmatpush1.bf16.msra.mxu0 0
        %1570 = vmatprep.subr.bf16.mxu0 0
        %1571 = vmatpush1.bf16.msra.mxu0 0
        %1572 = vmatprep.subr.bf16.mxu0 0
        %1573 = vmatpush1.bf16.msra.mxu0 0
        %1574 = vmatprep.subr.bf16.mxu0 0
        %1575 = vmatpush1.bf16.msra.mxu0 0
        %1576 = vmatprep.subr.bf16.mxu0 0
        %1577 = vmatpush1.bf16.msra.mxu0 0
        %1578 = vmatprep.mubr.bf16.mxu0 0
        %1579 = vmatmul.mubr.bf16.gmra.mrb[0].mxu0 %v1544
        %v1580 = vpop.f32.mrb[0].mxu0
        %v1581 = vadd.f32 0.0, %v1580
        %v1582 = vpop.f32.mrb[0].mxu0
        %v1583 = vpop.f32.mrb[0].mxu0
        %v1584 = vpop.f32.mrb[0].mxu0
        %1585 = vdwg.mxu0
        %v1586 = vadd.f32 %v1533, %v1581
        %v1587 = vpack.c.bf16 %v1258, %v1258
        %v1588 = vld [vmem:[%s7 + $0x30] sm:$0xf]
        %v1589 = vld [vmem:[%s7 + $0x34] sm:$0xf]
        %v1592 = vunpack.c.l.b16 %v1588
        %v1593 = vunpack.c.l.b16 %v1589
        %v1594 = vpack.c.b16 %v1593, %v1592
        %v1597 = vsel %vm1183, %v1587, 0
        %1599 = vmatprep.subr.bf16.mxu0 0
        %1600 = vmatpush1.bf16.msra.mxu0 %v1594
        %1601 = vmatprep.subr.bf16.mxu0 0
        %1602 = vmatpush1.bf16.msra.mxu0 0
        %1603 = vmatprep.subr.bf16.mxu0 0
        %1604 = vmatpush1.bf16.msra.mxu0 0
        %1605 = vmatprep.subr.bf16.mxu0 0
        %1606 = vmatpush1.bf16.msra.mxu0 0
        %1607 = vmatprep.subr.bf16.mxu0 0
        %1608 = vmatpush1.bf16.msra.mxu0 0
        %1609 = vmatprep.subr.bf16.mxu0 0
        %1610 = vmatpush1.bf16.msra.mxu0 0
        %1611 = vmatprep.subr.bf16.mxu0 0
        %1612 = vmatpush1.bf16.msra.mxu0 0
        %1613 = vmatprep.subr.bf16.mxu0 0
        %1614 = vmatpush1.bf16.msra.mxu0 0
        %1615 = vmatprep.subr.bf16.mxu0 0
        %1616 = vmatpush1.bf16.msra.mxu0 0
        %1617 = vmatprep.subr.bf16.mxu0 0
        %1618 = vmatpush1.bf16.msra.mxu0 0
        %1619 = vmatprep.subr.bf16.mxu0 0
        %1620 = vmatpush1.bf16.msra.mxu0 0
        %1621 = vmatprep.subr.bf16.mxu0 0
        %1622 = vmatpush1.bf16.msra.mxu0 0
        %1623 = vmatprep.subr.bf16.mxu0 0
        %1624 = vmatpush1.bf16.msra.mxu0 0
        %1625 = vmatprep.subr.bf16.mxu0 0
        %1626 = vmatpush1.bf16.msra.mxu0 0
        %1627 = vmatprep.subr.bf16.mxu0 0
        %1628 = vmatpush1.bf16.msra.mxu0 0
        %1629 = vmatprep.subr.bf16.mxu0 0
        %1630 = vmatpush1.bf16.msra.mxu0 0
        %1631 = vmatprep.mubr.bf16.mxu0 0
        %1632 = vmatmul.mubr.bf16.gmra.mrb[0].mxu0 %v1597
        %v1633 = vpop.f32.mrb[0].mxu0
        %v1634 = vadd.f32 0.0, %v1633
        %v1635 = vpop.f32.mrb[0].mxu0
        %v1636 = vpop.f32.mrb[0].mxu0
        %v1637 = vpop.f32.mrb[0].mxu0
        %1638 = vdwg.mxu0
        %v1639 = vadd.f32 %v1586, %v1634
        %v1640 = vpack.c.bf16 %v1261, %v1261
        %v1641 = vld [vmem:[%s7 + $0x38] sm:$0xf]
        %v1642 = vld [vmem:[%s7 + $0x3c] sm:$0xf]
        %v1645 = vunpack.c.l.b16 %v1641
        %v1646 = vunpack.c.l.b16 %v1642
        %v1647 = vpack.c.b16 %v1646, %v1645
        %v1650 = vsel %vm1183, %v1640, 0
        %1652 = vmatprep.subr.bf16.mxu0 0
        %1653 = vmatpush1.bf16.msra.mxu0 %v1647
        %1654 = vmatprep.subr.bf16.mxu0 0
        %1655 = vmatpush1.bf16.msra.mxu0 0
        %1656 = vmatprep.subr.bf16.mxu0 0
        %1657 = vmatpush1.bf16.msra.mxu0 0
        %1658 = vmatprep.subr.bf16.mxu0 0
        %1659 = vmatpush1.bf16.msra.mxu0 0
        %1660 = vmatprep.subr.bf16.mxu0 0
        %1661 = vmatpush1.bf16.msra.mxu0 0
        %1662 = vmatprep.subr.bf16.mxu0 0
        %1663 = vmatpush1.bf16.msra.mxu0 0
        %1664 = vmatprep.subr.bf16.mxu0 0
        %1665 = vmatpush1.bf16.msra.mxu0 0
        %1666 = vmatprep.subr.bf16.mxu0 0
        %1667 = vmatpush1.bf16.msra.mxu0 0
        %1668 = vmatprep.subr.bf16.mxu0 0
        %1669 = vmatpush1.bf16.msra.mxu0 0
        %1670 = vmatprep.subr.bf16.mxu0 0
        %1671 = vmatpush1.bf16.msra.mxu0 0
        %1672 = vmatprep.subr.bf16.mxu0 0
        %1673 = vmatpush1.bf16.msra.mxu0 0
        %1674 = vmatprep.subr.bf16.mxu0 0
        %1675 = vmatpush1.bf16.msra.mxu0 0
        %1676 = vmatprep.subr.bf16.mxu0 0
        %1677 = vmatpush1.bf16.msra.mxu0 0
        %1678 = vmatprep.subr.bf16.mxu0 0
        %1679 = vmatpush1.bf16.msra.mxu0 0
        %1680 = vmatprep.subr.bf16.mxu0 0
        %1681 = vmatpush1.bf16.msra.mxu0 0
        %1682 = vmatprep.subr.bf16.mxu0 0
        %1683 = vmatpush1.bf16.msra.mxu0 0
        %1684 = vmatprep.mubr.bf16.mxu0 0
        %1685 = vmatmul.mubr.bf16.gmra.mrb[0].mxu0 %v1650
        %v1686 = vpop.f32.mrb[0].mxu0
        %v1687 = vadd.f32 0.0, %v1686
        %v1688 = vpop.f32.mrb[0].mxu0
        %v1689 = vpop.f32.mrb[0].mxu0
        %v1690 = vpop.f32.mrb[0].mxu0
        %1691 = vdwg.mxu0
        %v1692 = vadd.f32 %v1639, %v1687
        %v1693 = vpack.c.bf16 %v1266, %v1266
        %v1694 = vld [vmem:[%s7 + $0x40] sm:$0xf]
        %v1695 = vld [vmem:[%s7 + $0x44] sm:$0xf]
        %v1698 = vunpack.c.l.b16 %v1694
        %v1699 = vunpack.c.l.b16 %v1695
        %v1700 = vpack.c.b16 %v1699, %v1698
        %v1703 = vsel %vm1183, %v1693, 0
        %1705 = vmatprep.subr.bf16.mxu0 0
        %1706 = vmatpush1.bf16.msra.mxu0 %v1700
        %1707 = vmatprep.subr.bf16.mxu0 0
        %1708 = vmatpush1.bf16.msra.mxu0 0
        %1709 = vmatprep.subr.bf16.mxu0 0
        %1710 = vmatpush1.bf16.msra.mxu0 0
        %1711 = vmatprep.subr.bf16.mxu0 0
        %1712 = vmatpush1.bf16.msra.mxu0 0
        %1713 = vmatprep.subr.bf16.mxu0 0
        %1714 = vmatpush1.bf16.msra.mxu0 0
        %1715 = vmatprep.subr.bf16.mxu0 0
        %1716 = vmatpush1.bf16.msra.mxu0 0
        %1717 = vmatprep.subr.bf16.mxu0 0
        %1718 = vmatpush1.bf16.msra.mxu0 0
        %1719 = vmatprep.subr.bf16.mxu0 0
        %1720 = vmatpush1.bf16.msra.mxu0 0
        %1721 = vmatprep.subr.bf16.mxu0 0
        %1722 = vmatpush1.bf16.msra.mxu0 0
        %1723 = vmatprep.subr.bf16.mxu0 0
        %1724 = vmatpush1.bf16.msra.mxu0 0
        %1725 = vmatprep.subr.bf16.mxu0 0
        %1726 = vmatpush1.bf16.msra.mxu0 0
        %1727 = vmatprep.subr.bf16.mxu0 0
        %1728 = vmatpush1.bf16.msra.mxu0 0
        %1729 = vmatprep.subr.bf16.mxu0 0
        %1730 = vmatpush1.bf16.msra.mxu0 0
        %1731 = vmatprep.subr.bf16.mxu0 0
        %1732 = vmatpush1.bf16.msra.mxu0 0
        %1733 = vmatprep.subr.bf16.mxu0 0
        %1734 = vmatpush1.bf16.msra.mxu0 0
        %1735 = vmatprep.subr.bf16.mxu0 0
        %1736 = vmatpush1.bf16.msra.mxu0 0
        %1737 = vmatprep.mubr.bf16.mxu0 0
        %1738 = vmatmul.mubr.bf16.gmra.mrb[0].mxu0 %v1703
        %v1739 = vpop.f32.mrb[0].mxu0
        %v1740 = vadd.f32 0.0, %v1739
        %v1741 = vpop.f32.mrb[0].mxu0
        %v1742 = vpop.f32.mrb[0].mxu0
        %v1743 = vpop.f32.mrb[0].mxu0
        %1744 = vdwg.mxu0
        %v1745 = vadd.f32 %v1692, %v1740
        %1747 = vset.pattern.permute.xlu0 0
        %1748 = vperm.xlu0 %1747, %v1176
        %v1749 = vpop.permute.xlu0 %1748
        %v1751 = vadd.f32 %v1745, %v1749
        %v1752 = vmax.f32 %v1751, 0.0
        %v1753 = vpack.c.bf16 %v1752, %v1752
        %v1754 = vld [vmem:[%s11] sm:$0xf]
        %v1755 = vld [vmem:[%s11 + $0x4] sm:$0xf]
        %v1758 = vunpack.c.l.b16 %v1754
        %v1759 = vunpack.c.l.b16 %v1755
        %v1760 = vpack.c.b16 %v1759, %v1758
        %v1763 = vsel %vm1183, %v1753, 0
        %1765 = vmatprep.subr.bf16.mxu0 0
        %1766 = vmatpush1.bf16.msra.mxu0 %v1760
        %1767 = vmatprep.subr.bf16.mxu0 0
        %1768 = vmatpush1.bf16.msra.mxu0 0
        %1769 = vmatprep.subr.bf16.mxu0 0
        %1770 = vmatpush1.bf16.msra.mxu0 0
        %1771 = vmatprep.subr.bf16.mxu0 0
        %1772 = vmatpush1.bf16.msra.mxu0 0
        %1773 = vmatprep.subr.bf16.mxu0 0
        %1774 = vmatpush1.bf16.msra.mxu0 0
        %1775 = vmatprep.subr.bf16.mxu0 0
        %1776 = vmatpush1.bf16.msra.mxu0 0
        %1777 = vmatprep.subr.bf16.mxu0 0
        %1778 = vmatpush1.bf16.msra.mxu0 0
        %1779 = vmatprep.subr.bf16.mxu0 0
        %1780 = vmatpush1.bf16.msra.mxu0 0
        %1781 = vmatprep.subr.bf16.mxu0 0
        %1782 = vmatpush1.bf16.msra.mxu0 0
        %1783 = vmatprep.subr.bf16.mxu0 0
        %1784 = vmatpush1.bf16.msra.mxu0 0
        %1785 = vmatprep.subr.bf16.mxu0 0
        %1786 = vmatpush1.bf16.msra.mxu0 0
        %1787 = vmatprep.subr.bf16.mxu0 0
        %1788 = vmatpush1.bf16.msra.mxu0 0
        %1789 = vmatprep.subr.bf16.mxu0 0
        %1790 = vmatpush1.bf16.msra.mxu0 0
        %1791 = vmatprep.subr.bf16.mxu0 0
        %1792 = vmatpush1.bf16.msra.mxu0 0
        %1793 = vmatprep.subr.bf16.mxu0 0
        %1794 = vmatpush1.bf16.msra.mxu0 0
        %1795 = vmatprep.subr.bf16.mxu0 0
        %1796 = vmatpush1.bf16.msra.mxu0 0
        %1797 = vmatprep.mubr.bf16.mxu0 0
        %1798 = vmatmul.mubr.bf16.gmra.mrb[0].mxu0 %v1763
        %v1799 = vpop.f32.mrb[0].mxu0
        %v1800 = vadd.f32 0.0, %v1799
        %v1801 = vpop.f32.mrb[0].mxu0
        %v1802 = vpop.f32.mrb[0].mxu0
        %v1803 = vpop.f32.mrb[0].mxu0
        %1804 = vdwg.mxu0
        %v1805 = vld [vmem:[%s19] sm:$0xff]
        %v1806 = vld [vmem:[%s19 + $0x8] sm:$0xff]
        %v1807 = vld [vmem:[%s19 + $0x10] sm:$0xff]
        %v1808 = vld [vmem:[%s19 + $0x18] sm:$0xff]
        %v1809 = vld [vmem:[%s19 + $0x20] sm:$0xff]
        %v1810 = vld [vmem:[%s19 + $0x28] sm:$0xff]
        %v1811 = vld [vmem:[%s19 + $0x30] sm:$0xff]
        %v1812 = vld [vmem:[%s19 + $0x38] sm:$0xff]
        %v1813 = vld [vmem:[%s19 + $0x40] sm:$0xff]
        %v1814 = vld [vmem:[%s21] sm:$0xff]
        %v1815 = vpack.c.bf16 %v1806, %v1805
        %v1816 = vpack.c.bf16 %v1808, %v1807
        %v1817 = vpack.c.bf16 %v1810, %v1809
        %v1818 = vpack.c.bf16 %v1812, %v1811
        %v1819 = vpack.c.bf16 %v1813, %v1813
        %v1820 = vpack.c.bf16 %v1800, %v1800
        %vm1821 = vcmask 64512
        %v1823 = vsel %vm1821, %v1815, 0
        %v1826 = vsel %vm1821, %v1816, 0
        %v1829 = vsel %vm1821, %v1817, 0
        %v1832 = vsel %vm1821, %v1818, 0
        %v1835 = vsel %vm1821, %v1819, 0
        %vm1837 = vcmask 1043456
        %v1839 = vsel %vm1837, %v1820, 0
        %1841 = vmatprep.subr.bf16.mxu0 0
        %1842 = vmatpush1.bf16.msra.mxu0 %v1839
        %1843 = vmatprep.subr.bf16.mxu0 0
        %1844 = vmatpush1.bf16.msra.mxu0 0
        %1845 = vmatprep.subr.bf16.mxu0 0
        %1846 = vmatpush1.bf16.msra.mxu0 0
        %1847 = vmatprep.subr.bf16.mxu0 0
        %1848 = vmatpush1.bf16.msra.mxu0 0
        %1849 = vmatprep.subr.bf16.mxu0 0
        %1850 = vmatpush1.bf16.msra.mxu0 0
        %1851 = vmatprep.subr.bf16.mxu0 0
        %1852 = vmatpush1.bf16.msra.mxu0 0
        %1853 = vmatprep.subr.bf16.mxu0 0
        %1854 = vmatpush1.bf16.msra.mxu0 0
        %1855 = vmatprep.subr.bf16.mxu0 0
        %1856 = vmatpush1.bf16.msra.mxu0 0
        %1857 = vmatprep.subr.bf16.mxu0 0
        %1858 = vmatpush1.bf16.msra.mxu0 0
        %1859 = vmatprep.subr.bf16.mxu0 0
        %1860 = vmatpush1.bf16.msra.mxu0 0
        %1861 = vmatprep.subr.bf16.mxu0 0
        %1862 = vmatpush1.bf16.msra.mxu0 0
        %1863 = vmatprep.subr.bf16.mxu0 0
        %1864 = vmatpush1.bf16.msra.mxu0 0
        %1865 = vmatprep.subr.bf16.mxu0 0
        %1866 = vmatpush1.bf16.msra.mxu0 0
        %1867 = vmatprep.subr.bf16.mxu0 0
        %1868 = vmatpush1.bf16.msra.mxu0 0
        %1869 = vmatprep.subr.bf16.mxu0 0
        %1870 = vmatpush1.bf16.msra.mxu0 0
        %1871 = vmatprep.subr.bf16.mxu0 0
        %1872 = vmatpush1.bf16.msra.mxu0 0
        %1873 = vmatprep.mubr.bf16.mxu0 0
        %1874 = vmatmul.mubr.bf16.gmra.mrb[0].mxu0 %v1823
        %v1875 = vpop.f32.mrb[0].mxu0
        %v1876 = vadd.f32 0.0, %v1875
        %v1877 = vpop.f32.mrb[0].mxu0
        %v1878 = vpop.f32.mrb[0].mxu0
        %v1879 = vadd.f32 0.0, %v1878
        %v1880 = vpop.f32.mrb[0].mxu0
        %1881 = vmatprep.mubr.bf16.mxu0 0
        %1882 = vmatmul.mubr.bf16.gmra.mrb[0].mxu0 %v1826
        %v1883 = vpop.f32.mrb[0].mxu0
        %v1884 = vadd.f32 0.0, %v1883
        %v1885 = vpop.f32.mrb[0].mxu0
        %v1886 = vpop.f32.mrb[0].mxu0
        %v1887 = vadd.f32 0.0, %v1886
        %v1888 = vpop.f32.mrb[0].mxu0
        %1889 = vmatprep.mubr.bf16.mxu0 0
        %1890 = vmatmul.mubr.bf16.gmra.mrb[0].mxu0 %v1829
        %v1891 = vpop.f32.mrb[0].mxu0
        %v1892 = vadd.f32 0.0, %v1891
        %v1893 = vpop.f32.mrb[0].mxu0
        %v1894 = vpop.f32.mrb[0].mxu0
        %v1895 = vadd.f32 0.0, %v1894
        %v1896 = vpop.f32.mrb[0].mxu0
        %1897 = vmatprep.mubr.bf16.mxu0 0
        %1898 = vmatmul.mubr.bf16.gmra.mrb[0].mxu0 %v1832
        %v1899 = vpop.f32.mrb[0].mxu0
        %v1900 = vadd.f32 0.0, %v1899
        %v1901 = vpop.f32.mrb[0].mxu0
        %v1902 = vpop.f32.mrb[0].mxu0
        %v1903 = vadd.f32 0.0, %v1902
        %v1904 = vpop.f32.mrb[0].mxu0
        %1905 = vmatprep.mubr.bf16.mxu0 0
        %1906 = vmatmul.mubr.bf16.gmra.mrb[0].mxu0 %v1835
        %v1907 = vpop.f32.mrb[0].mxu0
        %v1908 = vadd.f32 0.0, %v1907
        %v1909 = vpop.f32.mrb[0].mxu0
        %v1910 = vpop.f32.mrb[0].mxu0
        %v1911 = vpop.f32.mrb[0].mxu0
        %1912 = vdwg.mxu0
        %v1913 = vpack.c.bf16 %v1876, %v1876
        %v1914 = vld [vmem:[%s9] sm:$0xf]
        %v1915 = vld [vmem:[%s9 + $0x4] sm:$0xf]
        %v1916 = vld [vmem:[%s9 + $0x8] sm:$0xf]
        %v1917 = vld [vmem:[%s9 + $0xc] sm:$0xf]
        %v1918 = vld [vmem:[%s9 + $0x10] sm:$0xf]
        %v1919 = vld [vmem:[%s9 + $0x14] sm:$0xf]
        %v1920 = vld [vmem:[%s9 + $0x18] sm:$0xf]
        %v1921 = vld [vmem:[%s9 + $0x1c] sm:$0xf]
        %v1922 = vpack.c.bf16 %v1879, %v1879
        %v1923 = vld [vmem:[%s9 + $0x20] sm:$0xf]
        %v1924 = vld [vmem:[%s9 + $0x24] sm:$0xf]
        %v1925 = vld [vmem:[%s9 + $0x28] sm:$0xf]
        %v1926 = vld [vmem:[%s9 + $0x2c] sm:$0xf]
        %v1927 = vld [vmem:[%s9 + $0x30] sm:$0xf]
        %v1928 = vld [vmem:[%s9 + $0x34] sm:$0xf]
        %v1929 = vld [vmem:[%s9 + $0x38] sm:$0xf]
        %v1930 = vld [vmem:[%s9 + $0x3c] sm:$0xf]
        %v1939 = vunpack.c.l.b16 %v1923
        %v1940 = vunpack.c.l.b16 %v1924
        %v1941 = vunpack.c.l.b16 %v1925
        %v1942 = vunpack.c.l.b16 %v1926
        %v1943 = vunpack.c.l.b16 %v1927
        %v1944 = vunpack.c.l.b16 %v1928
        %v1945 = vunpack.c.l.b16 %v1929
        %v1946 = vunpack.c.l.b16 %v1930
        %v1947 = vpack.c.b16 %v1940, %v1939
        %v1948 = vpack.c.b16 %v1942, %v1941
        %v1949 = vpack.c.b16 %v1944, %v1943
        %v1950 = vpack.c.b16 %v1946, %v1945
        %vm1955 = vcmask 523264
        %v1957 = vsel %vm1955, %v1922, 0
        %1959 = vmatprep.subr.bf16.mxu0 0
        %1960 = vmatpush1.bf16.msra.mxu0 %v1947
        %1961 = vmatprep.subr.bf16.mxu0 0
        %1962 = vmatpush1.bf16.msra.mxu0 %v1948
        %1963 = vmatprep.subr.bf16.mxu0 0
        %1964 = vmatpush1.bf16.msra.mxu0 %v1949
        %1965 = vmatprep.subr.bf16.mxu0 0
        %1966 = vmatpush1.bf16.msra.mxu0 %v1950
        %1967 = vmatprep.subr.bf16.mxu0 0
        %1968 = vmatpush1.bf16.msra.mxu0 0
        %1969 = vmatprep.subr.bf16.mxu0 0
        %1970 = vmatpush1.bf16.msra.mxu0 0
        %1971 = vmatprep.subr.bf16.mxu0 0
        %1972 = vmatpush1.bf16.msra.mxu0 0
        %1973 = vmatprep.subr.bf16.mxu0 0
        %1974 = vmatpush1.bf16.msra.mxu0 0
        %1975 = vmatprep.subr.bf16.mxu0 0
        %1976 = vmatpush1.bf16.msra.mxu0 0
        %1977 = vmatprep.subr.bf16.mxu0 0
        %1978 = vmatpush1.bf16.msra.mxu0 0
        %1979 = vmatprep.subr.bf16.mxu0 0
        %1980 = vmatpush1.bf16.msra.mxu0 0
        %1981 = vmatprep.subr.bf16.mxu0 0
        %1982 = vmatpush1.bf16.msra.mxu0 0
        %1983 = vmatprep.subr.bf16.mxu0 0
        %1984 = vmatpush1.bf16.msra.mxu0 0
        %1985 = vmatprep.subr.bf16.mxu0 0
        %1986 = vmatpush1.bf16.msra.mxu0 0
        %1987 = vmatprep.subr.bf16.mxu0 0
        %1988 = vmatpush1.bf16.msra.mxu0 0
        %1989 = vmatprep.subr.bf16.mxu0 0
        %1990 = vmatpush1.bf16.msra.mxu0 0
        %1991 = vmatprep.mubr.bf16.mxu0 0
        %1992 = vmatmul.mubr.bf16.gmra.mrb[0].mxu0 %v1957
        %v1993 = vpop.f32.mrb[0].mxu0
        %v1994 = vadd.f32 0.0, %v1993
        %v1995 = vpop.f32.mrb[0].mxu0
        %v1996 = vpop.f32.mrb[0].mxu0
        %v1997 = vpop.f32.mrb[0].mxu0
        %1998 = vdwg.mxu0
        %v2007 = vunpack.c.l.b16 %v1914
        %v2008 = vunpack.c.l.b16 %v1915
        %v2009 = vunpack.c.l.b16 %v1916
        %v2010 = vunpack.c.l.b16 %v1917
        %v2011 = vunpack.c.l.b16 %v1918
        %v2012 = vunpack.c.l.b16 %v1919
        %v2013 = vunpack.c.l.b16 %v1920
        %v2014 = vunpack.c.l.b16 %v1921
        %v2015 = vpack.c.b16 %v2008, %v2007
        %v2016 = vpack.c.b16 %v2010, %v2009
        %v2017 = vpack.c.b16 %v2012, %v2011
        %v2018 = vpack.c.b16 %v2014, %v2013
        %v2024 = vsel %vm1955, %v1913, 0
        %2026 = vmatprep.subr.bf16.mxu0 0
        %2027 = vmatpush1.bf16.msra.mxu0 %v2015
        %2028 = vmatprep.subr.bf16.mxu0 0
        %2029 = vmatpush1.bf16.msra.mxu0 %v2016
        %2030 = vmatprep.subr.bf16.mxu0 0
        %2031 = vmatpush1.bf16.msra.mxu0 %v2017
        %2032 = vmatprep.subr.bf16.mxu0 0
        %2033 = vmatpush1.bf16.msra.mxu0 %v2018
        %2034 = vmatprep.subr.bf16.mxu0 0
        %2035 = vmatpush1.bf16.msra.mxu0 0
        %2036 = vmatprep.subr.bf16.mxu0 0
        %2037 = vmatpush1.bf16.msra.mxu0 0
        %2038 = vmatprep.subr.bf16.mxu0 0
        %2039 = vmatpush1.bf16.msra.mxu0 0
        %2040 = vmatprep.subr.bf16.mxu0 0
        %2041 = vmatpush1.bf16.msra.mxu0 0
        %2042 = vmatprep.subr.bf16.mxu0 0
        %2043 = vmatpush1.bf16.msra.mxu0 0
        %2044 = vmatprep.subr.bf16.mxu0 0
        %2045 = vmatpush1.bf16.msra.mxu0 0
        %2046 = vmatprep.subr.bf16.mxu0 0
        %2047 = vmatpush1.bf16.msra.mxu0 0
        %2048 = vmatprep.subr.bf16.mxu0 0
        %2049 = vmatpush1.bf16.msra.mxu0 0
        %2050 = vmatprep.subr.bf16.mxu0 0
        %2051 = vmatpush1.bf16.msra.mxu0 0
        %2052 = vmatprep.subr.bf16.mxu0 0
        %2053 = vmatpush1.bf16.msra.mxu0 0
        %2054 = vmatprep.subr.bf16.mxu0 0
        %2055 = vmatpush1.bf16.msra.mxu0 0
        %2056 = vmatprep.subr.bf16.mxu0 0
        %2057 = vmatpush1.bf16.msra.mxu0 0
        %2058 = vmatprep.mubr.bf16.mxu0 0
        %2059 = vmatmul.mubr.bf16.gmra.mrb[0].mxu0 %v2024
        %v2060 = vpop.f32.mrb[0].mxu0
        %v2061 = vadd.f32 %v1994, %v2060
        %v2062 = vpop.f32.mrb[0].mxu0
        %v2063 = vpop.f32.mrb[0].mxu0
        %v2064 = vpop.f32.mrb[0].mxu0
        %2065 = vdwg.mxu0
        %v2066 = vpack.c.bf16 %v1884, %v1884
        %v2067 = vld [vmem:[%s9 + $0x40] sm:$0xf]
        %v2068 = vld [vmem:[%s9 + $0x44] sm:$0xf]
        %v2069 = vld [vmem:[%s9 + $0x48] sm:$0xf]
        %v2070 = vld [vmem:[%s9 + $0x4c] sm:$0xf]
        %v2071 = vld [vmem:[%s9 + $0x50] sm:$0xf]
        %v2072 = vld [vmem:[%s9 + $0x54] sm:$0xf]
        %v2073 = vld [vmem:[%s9 + $0x58] sm:$0xf]
        %v2074 = vld [vmem:[%s9 + $0x5c] sm:$0xf]
        %v2083 = vunpack.c.l.b16 %v2067
        %v2084 = vunpack.c.l.b16 %v2068
        %v2085 = vunpack.c.l.b16 %v2069
        %v2086 = vunpack.c.l.b16 %v2070
        %v2087 = vunpack.c.l.b16 %v2071
        %v2088 = vunpack.c.l.b16 %v2072
        %v2089 = vunpack.c.l.b16 %v2073
        %v2090 = vunpack.c.l.b16 %v2074
        %v2091 = vpack.c.b16 %v2084, %v2083
        %v2092 = vpack.c.b16 %v2086, %v2085
        %v2093 = vpack.c.b16 %v2088, %v2087
        %v2094 = vpack.c.b16 %v2090, %v2089
        %v2100 = vsel %vm1955, %v2066, 0
        %2102 = vmatprep.subr.bf16.mxu0 0
        %2103 = vmatpush1.bf16.msra.mxu0 %v2091
        %2104 = vmatprep.subr.bf16.mxu0 0
        %2105 = vmatpush1.bf16.msra.mxu0 %v2092
        %2106 = vmatprep.subr.bf16.mxu0 0
        %2107 = vmatpush1.bf16.msra.mxu0 %v2093
        %2108 = vmatprep.subr.bf16.mxu0 0
        %2109 = vmatpush1.bf16.msra.mxu0 %v2094
        %2110 = vmatprep.subr.bf16.mxu0 0
        %2111 = vmatpush1.bf16.msra.mxu0 0
        %2112 = vmatprep.subr.bf16.mxu0 0
        %2113 = vmatpush1.bf16.msra.mxu0 0
        %2114 = vmatprep.subr.bf16.mxu0 0
        %2115 = vmatpush1.bf16.msra.mxu0 0
        %2116 = vmatprep.subr.bf16.mxu0 0
        %2117 = vmatpush1.bf16.msra.mxu0 0
        %2118 = vmatprep.subr.bf16.mxu0 0
        %2119 = vmatpush1.bf16.msra.mxu0 0
        %2120 = vmatprep.subr.bf16.mxu0 0
        %2121 = vmatpush1.bf16.msra.mxu0 0
        %2122 = vmatprep.subr.bf16.mxu0 0
        %2123 = vmatpush1.bf16.msra.mxu0 0
        %2124 = vmatprep.subr.bf16.mxu0 0
        %2125 = vmatpush1.bf16.msra.mxu0 0
        %2126 = vmatprep.subr.bf16.mxu0 0
        %2127 = vmatpush1.bf16.msra.mxu0 0
        %2128 = vmatprep.subr.bf16.mxu0 0
        %2129 = vmatpush1.bf16.msra.mxu0 0
        %2130 = vmatprep.subr.bf16.mxu0 0
        %2131 = vmatpush1.bf16.msra.mxu0 0
        %2132 = vmatprep.subr.bf16.mxu0 0
        %2133 = vmatpush1.bf16.msra.mxu0 0
        %2134 = vmatprep.mubr.bf16.mxu0 0
        %2135 = vmatmul.mubr.bf16.gmra.mrb[0].mxu0 %v2100
        %v2136 = vpop.f32.mrb[0].mxu0
        %v2137 = vadd.f32 0.0, %v2136
        %v2138 = vpop.f32.mrb[0].mxu0
        %v2139 = vpop.f32.mrb[0].mxu0
        %v2140 = vpop.f32.mrb[0].mxu0
        %2141 = vdwg.mxu0
        %v2142 = vadd.f32 %v2061, %v2137
        %v2143 = vpack.c.bf16 %v1887, %v1887
        %v2144 = vld [vmem:[%s9 + $0x60] sm:$0xf]
        %v2145 = vld [vmem:[%s9 + $0x64] sm:$0xf]
        %v2146 = vld [vmem:[%s9 + $0x68] sm:$0xf]
        %v2147 = vld [vmem:[%s9 + $0x6c] sm:$0xf]
        %v2148 = vld [vmem:[%s9 + $0x70] sm:$0xf]
        %v2149 = vld [vmem:[%s9 + $0x74] sm:$0xf]
        %v2150 = vld [vmem:[%s9 + $0x78] sm:$0xf]
        %v2151 = vld [vmem:[%s9 + $0x7c] sm:$0xf]
        %v2160 = vunpack.c.l.b16 %v2144
        %v2161 = vunpack.c.l.b16 %v2145
        %v2162 = vunpack.c.l.b16 %v2146
        %v2163 = vunpack.c.l.b16 %v2147
        %v2164 = vunpack.c.l.b16 %v2148
        %v2165 = vunpack.c.l.b16 %v2149
        %v2166 = vunpack.c.l.b16 %v2150
        %v2167 = vunpack.c.l.b16 %v2151
        %v2168 = vpack.c.b16 %v2161, %v2160
        %v2169 = vpack.c.b16 %v2163, %v2162
        %v2170 = vpack.c.b16 %v2165, %v2164
        %v2171 = vpack.c.b16 %v2167, %v2166
        %v2177 = vsel %vm1955, %v2143, 0
        %2179 = vmatprep.subr.bf16.mxu0 0
        %2180 = vmatpush1.bf16.msra.mxu0 %v2168
        %2181 = vmatprep.subr.bf16.mxu0 0
        %2182 = vmatpush1.bf16.msra.mxu0 %v2169
        %2183 = vmatprep.subr.bf16.mxu0 0
        %2184 = vmatpush1.bf16.msra.mxu0 %v2170
        %2185 = vmatprep.subr.bf16.mxu0 0
        %2186 = vmatpush1.bf16.msra.mxu0 %v2171
        %2187 = vmatprep.subr.bf16.mxu0 0
        %2188 = vmatpush1.bf16.msra.mxu0 0
        %2189 = vmatprep.subr.bf16.mxu0 0
        %2190 = vmatpush1.bf16.msra.mxu0 0
        %2191 = vmatprep.subr.bf16.mxu0 0
        %2192 = vmatpush1.bf16.msra.mxu0 0
        %2193 = vmatprep.subr.bf16.mxu0 0
        %2194 = vmatpush1.bf16.msra.mxu0 0
        %2195 = vmatprep.subr.bf16.mxu0 0
        %2196 = vmatpush1.bf16.msra.mxu0 0
        %2197 = vmatprep.subr.bf16.mxu0 0
        %2198 = vmatpush1.bf16.msra.mxu0 0
        %2199 = vmatprep.subr.bf16.mxu0 0
        %2200 = vmatpush1.bf16.msra.mxu0 0
        %2201 = vmatprep.subr.bf16.mxu0 0
        %2202 = vmatpush1.bf16.msra.mxu0 0
        %2203 = vmatprep.subr.bf16.mxu0 0
        %2204 = vmatpush1.bf16.msra.mxu0 0
        %2205 = vmatprep.subr.bf16.mxu0 0
        %2206 = vmatpush1.bf16.msra.mxu0 0
        %2207 = vmatprep.subr.bf16.mxu0 0
        %2208 = vmatpush1.bf16.msra.mxu0 0
        %2209 = vmatprep.subr.bf16.mxu0 0
        %2210 = vmatpush1.bf16.msra.mxu0 0
        %2211 = vmatprep.mubr.bf16.mxu0 0
        %2212 = vmatmul.mubr.bf16.gmra.mrb[0].mxu0 %v2177
        %v2213 = vpop.f32.mrb[0].mxu0
        %v2214 = vadd.f32 0.0, %v2213
        %v2215 = vpop.f32.mrb[0].mxu0
        %v2216 = vpop.f32.mrb[0].mxu0
        %v2217 = vpop.f32.mrb[0].mxu0
        %2218 = vdwg.mxu0
        %v2219 = vadd.f32 %v2142, %v2214
        %v2220 = vpack.c.bf16 %v1892, %v1892
        %v2221 = vld [vmem:[%s9 + $0x80] sm:$0xf]
        %v2222 = vld [vmem:[%s9 + $0x84] sm:$0xf]
        %v2223 = vld [vmem:[%s9 + $0x88] sm:$0xf]
        %v2224 = vld [vmem:[%s9 + $0x8c] sm:$0xf]
        %v2225 = vld [vmem:[%s9 + $0x90] sm:$0xf]
        %v2226 = vld [vmem:[%s9 + $0x94] sm:$0xf]
        %v2227 = vld [vmem:[%s9 + $0x98] sm:$0xf]
        %v2228 = vld [vmem:[%s9 + $0x9c] sm:$0xf]
        %v2237 = vunpack.c.l.b16 %v2221
        %v2238 = vunpack.c.l.b16 %v2222
        %v2239 = vunpack.c.l.b16 %v2223
        %v2240 = vunpack.c.l.b16 %v2224
        %v2241 = vunpack.c.l.b16 %v2225
        %v2242 = vunpack.c.l.b16 %v2226
        %v2243 = vunpack.c.l.b16 %v2227
        %v2244 = vunpack.c.l.b16 %v2228
        %v2245 = vpack.c.b16 %v2238, %v2237
        %v2246 = vpack.c.b16 %v2240, %v2239
        %v2247 = vpack.c.b16 %v2242, %v2241
        %v2248 = vpack.c.b16 %v2244, %v2243
        %v2254 = vsel %vm1955, %v2220, 0
        %2256 = vmatprep.subr.bf16.mxu0 0
        %2257 = vmatpush1.bf16.msra.mxu0 %v2245
        %2258 = vmatprep.subr.bf16.mxu0 0
        %2259 = vmatpush1.bf16.msra.mxu0 %v2246
        %2260 = vmatprep.subr.bf16.mxu0 0
        %2261 = vmatpush1.bf16.msra.mxu0 %v2247
        %2262 = vmatprep.subr.bf16.mxu0 0
        %2263 = vmatpush1.bf16.msra.mxu0 %v2248
        %2264 = vmatprep.subr.bf16.mxu0 0
        %2265 = vmatpush1.bf16.msra.mxu0 0
        %2266 = vmatprep.subr.bf16.mxu0 0
        %2267 = vmatpush1.bf16.msra.mxu0 0
        %2268 = vmatprep.subr.bf16.mxu0 0
        %2269 = vmatpush1.bf16.msra.mxu0 0
        %2270 = vmatprep.subr.bf16.mxu0 0
        %2271 = vmatpush1.bf16.msra.mxu0 0
        %2272 = vmatprep.subr.bf16.mxu0 0
        %2273 = vmatpush1.bf16.msra.mxu0 0
        %2274 = vmatprep.subr.bf16.mxu0 0
        %2275 = vmatpush1.bf16.msra.mxu0 0
        %2276 = vmatprep.subr.bf16.mxu0 0
        %2277 = vmatpush1.bf16.msra.mxu0 0
        %2278 = vmatprep.subr.bf16.mxu0 0
        %2279 = vmatpush1.bf16.msra.mxu0 0
        %2280 = vmatprep.subr.bf16.mxu0 0
        %2281 = vmatpush1.bf16.msra.mxu0 0
        %2282 = vmatprep.subr.bf16.mxu0 0
        %2283 = vmatpush1.bf16.msra.mxu0 0
        %2284 = vmatprep.subr.bf16.mxu0 0
        %2285 = vmatpush1.bf16.msra.mxu0 0
        %2286 = vmatprep.subr.bf16.mxu0 0
        %2287 = vmatpush1.bf16.msra.mxu0 0
        %2288 = vmatprep.mubr.bf16.mxu0 0
        %2289 = vmatmul.mubr.bf16.gmra.mrb[0].mxu0 %v2254
        %v2290 = vpop.f32.mrb[0].mxu0
        %v2291 = vadd.f32 0.0, %v2290
        %v2292 = vpop.f32.mrb[0].mxu0
        %v2293 = vpop.f32.mrb[0].mxu0
        %v2294 = vpop.f32.mrb[0].mxu0
        %2295 = vdwg.mxu0
        %v2296 = vadd.f32 %v2219, %v2291
        %v2297 = vpack.c.bf16 %v1895, %v1895
        %v2298 = vld [vmem:[%s9 + $0xa0] sm:$0xf]
        %v2299 = vld [vmem:[%s9 + $0xa4] sm:$0xf]
        %v2300 = vld [vmem:[%s9 + $0xa8] sm:$0xf]
        %v2301 = vld [vmem:[%s9 + $0xac] sm:$0xf]
        %v2302 = vld [vmem:[%s9 + $0xb0] sm:$0xf]
        %v2303 = vld [vmem:[%s9 + $0xb4] sm:$0xf]
        %v2304 = vld [vmem:[%s9 + $0xb8] sm:$0xf]
        %v2305 = vld [vmem:[%s9 + $0xbc] sm:$0xf]
        %v2314 = vunpack.c.l.b16 %v2298
        %v2315 = vunpack.c.l.b16 %v2299
        %v2316 = vunpack.c.l.b16 %v2300
        %v2317 = vunpack.c.l.b16 %v2301
        %v2318 = vunpack.c.l.b16 %v2302
        %v2319 = vunpack.c.l.b16 %v2303
        %v2320 = vunpack.c.l.b16 %v2304
        %v2321 = vunpack.c.l.b16 %v2305
        %v2322 = vpack.c.b16 %v2315, %v2314
        %v2323 = vpack.c.b16 %v2317, %v2316
        %v2324 = vpack.c.b16 %v2319, %v2318
        %v2325 = vpack.c.b16 %v2321, %v2320
        %v2331 = vsel %vm1955, %v2297, 0
        %2333 = vmatprep.subr.bf16.mxu0 0
        %2334 = vmatpush1.bf16.msra.mxu0 %v2322
        %2335 = vmatprep.subr.bf16.mxu0 0
        %2336 = vmatpush1.bf16.msra.mxu0 %v2323
        %2337 = vmatprep.subr.bf16.mxu0 0
        %2338 = vmatpush1.bf16.msra.mxu0 %v2324
        %2339 = vmatprep.subr.bf16.mxu0 0
        %2340 = vmatpush1.bf16.msra.mxu0 %v2325
        %2341 = vmatprep.subr.bf16.mxu0 0
        %2342 = vmatpush1.bf16.msra.mxu0 0
        %2343 = vmatprep.subr.bf16.mxu0 0
        %2344 = vmatpush1.bf16.msra.mxu0 0
        %2345 = vmatprep.subr.bf16.mxu0 0
        %2346 = vmatpush1.bf16.msra.mxu0 0
        %2347 = vmatprep.subr.bf16.mxu0 0
        %2348 = vmatpush1.bf16.msra.mxu0 0
        %2349 = vmatprep.subr.bf16.mxu0 0
        %2350 = vmatpush1.bf16.msra.mxu0 0
        %2351 = vmatprep.subr.bf16.mxu0 0
        %2352 = vmatpush1.bf16.msra.mxu0 0
        %2353 = vmatprep.subr.bf16.mxu0 0
        %2354 = vmatpush1.bf16.msra.mxu0 0
        %2355 = vmatprep.subr.bf16.mxu0 0
        %2356 = vmatpush1.bf16.msra.mxu0 0
        %2357 = vmatprep.subr.bf16.mxu0 0
        %2358 = vmatpush1.bf16.msra.mxu0 0
        %2359 = vmatprep.subr.bf16.mxu0 0
        %2360 = vmatpush1.bf16.msra.mxu0 0
        %2361 = vmatprep.subr.bf16.mxu0 0
        %2362 = vmatpush1.bf16.msra.mxu0 0
        %2363 = vmatprep.subr.bf16.mxu0 0
        %2364 = vmatpush1.bf16.msra.mxu0 0
        %2365 = vmatprep.mubr.bf16.mxu0 0
        %2366 = vmatmul.mubr.bf16.gmra.mrb[0].mxu0 %v2331
        %v2367 = vpop.f32.mrb[0].mxu0
        %v2368 = vadd.f32 0.0, %v2367
        %v2369 = vpop.f32.mrb[0].mxu0
        %v2370 = vpop.f32.mrb[0].mxu0
        %v2371 = vpop.f32.mrb[0].mxu0
        %2372 = vdwg.mxu0
        %v2373 = vadd.f32 %v2296, %v2368
        %v2374 = vpack.c.bf16 %v1900, %v1900
        %v2375 = vld [vmem:[%s9 + $0xc0] sm:$0xf]
        %v2376 = vld [vmem:[%s9 + $0xc4] sm:$0xf]
        %v2377 = vld [vmem:[%s9 + $0xc8] sm:$0xf]
        %v2378 = vld [vmem:[%s9 + $0xcc] sm:$0xf]
        %v2379 = vld [vmem:[%s9 + $0xd0] sm:$0xf]
        %v2380 = vld [vmem:[%s9 + $0xd4] sm:$0xf]
        %v2381 = vld [vmem:[%s9 + $0xd8] sm:$0xf]
        %v2382 = vld [vmem:[%s9 + $0xdc] sm:$0xf]
        %v2391 = vunpack.c.l.b16 %v2375
        %v2392 = vunpack.c.l.b16 %v2376
        %v2393 = vunpack.c.l.b16 %v2377
        %v2394 = vunpack.c.l.b16 %v2378
        %v2395 = vunpack.c.l.b16 %v2379
        %v2396 = vunpack.c.l.b16 %v2380
        %v2397 = vunpack.c.l.b16 %v2381
        %v2398 = vunpack.c.l.b16 %v2382
        %v2399 = vpack.c.b16 %v2392, %v2391
        %v2400 = vpack.c.b16 %v2394, %v2393
        %v2401 = vpack.c.b16 %v2396, %v2395
        %v2402 = vpack.c.b16 %v2398, %v2397
        %v2408 = vsel %vm1955, %v2374, 0
        %2410 = vmatprep.subr.bf16.mxu0 0
        %2411 = vmatpush1.bf16.msra.mxu0 %v2399
        %2412 = vmatprep.subr.bf16.mxu0 0
        %2413 = vmatpush1.bf16.msra.mxu0 %v2400
        %2414 = vmatprep.subr.bf16.mxu0 0
        %2415 = vmatpush1.bf16.msra.mxu0 %v2401
        %2416 = vmatprep.subr.bf16.mxu0 0
        %2417 = vmatpush1.bf16.msra.mxu0 %v2402
        %2418 = vmatprep.subr.bf16.mxu0 0
        %2419 = vmatpush1.bf16.msra.mxu0 0
        %2420 = vmatprep.subr.bf16.mxu0 0
        %2421 = vmatpush1.bf16.msra.mxu0 0
        %2422 = vmatprep.subr.bf16.mxu0 0
        %2423 = vmatpush1.bf16.msra.mxu0 0
        %2424 = vmatprep.subr.bf16.mxu0 0
        %2425 = vmatpush1.bf16.msra.mxu0 0
        %2426 = vmatprep.subr.bf16.mxu0 0
        %2427 = vmatpush1.bf16.msra.mxu0 0
        %2428 = vmatprep.subr.bf16.mxu0 0
        %2429 = vmatpush1.bf16.msra.mxu0 0
        %2430 = vmatprep.subr.bf16.mxu0 0
        %2431 = vmatpush1.bf16.msra.mxu0 0
        %2432 = vmatprep.subr.bf16.mxu0 0
        %2433 = vmatpush1.bf16.msra.mxu0 0
        %2434 = vmatprep.subr.bf16.mxu0 0
        %2435 = vmatpush1.bf16.msra.mxu0 0
        %2436 = vmatprep.subr.bf16.mxu0 0
        %2437 = vmatpush1.bf16.msra.mxu0 0
        %2438 = vmatprep.subr.bf16.mxu0 0
        %2439 = vmatpush1.bf16.msra.mxu0 0
        %2440 = vmatprep.subr.bf16.mxu0 0
        %2441 = vmatpush1.bf16.msra.mxu0 0
        %2442 = vmatprep.mubr.bf16.mxu0 0
        %2443 = vmatmul.mubr.bf16.gmra.mrb[0].mxu0 %v2408
        %v2444 = vpop.f32.mrb[0].mxu0
        %v2445 = vadd.f32 0.0, %v2444
        %v2446 = vpop.f32.mrb[0].mxu0
        %v2447 = vpop.f32.mrb[0].mxu0
        %v2448 = vpop.f32.mrb[0].mxu0
        %2449 = vdwg.mxu0
        %v2450 = vadd.f32 %v2373, %v2445
        %v2451 = vpack.c.bf16 %v1903, %v1903
        %v2452 = vld [vmem:[%s9 + $0xe0] sm:$0xf]
        %v2453 = vld [vmem:[%s9 + $0xe4] sm:$0xf]
        %v2454 = vld [vmem:[%s9 + $0xe8] sm:$0xf]
        %v2455 = vld [vmem:[%s9 + $0xec] sm:$0xf]
        %v2456 = vld [vmem:[%s9 + $0xf0] sm:$0xf]
        %v2457 = vld [vmem:[%s9 + $0xf4] sm:$0xf]
        %v2458 = vld [vmem:[%s9 + $0xf8] sm:$0xf]
        %v2459 = vld [vmem:[%s9 + $0xfc] sm:$0xf]
        %v2468 = vunpack.c.l.b16 %v2452
        %v2469 = vunpack.c.l.b16 %v2453
        %v2470 = vunpack.c.l.b16 %v2454
        %v2471 = vunpack.c.l.b16 %v2455
        %v2472 = vunpack.c.l.b16 %v2456
        %v2473 = vunpack.c.l.b16 %v2457
        %v2474 = vunpack.c.l.b16 %v2458
        %v2475 = vunpack.c.l.b16 %v2459
        %v2476 = vpack.c.b16 %v2469, %v2468
        %v2477 = vpack.c.b16 %v2471, %v2470
        %v2478 = vpack.c.b16 %v2473, %v2472
        %v2479 = vpack.c.b16 %v2475, %v2474
        %v2485 = vsel %vm1955, %v2451, 0
        %2487 = vmatprep.subr.bf16.mxu0 0
        %2488 = vmatpush1.bf16.msra.mxu0 %v2476
        %2489 = vmatprep.subr.bf16.mxu0 0
        %2490 = vmatpush1.bf16.msra.mxu0 %v2477
        %2491 = vmatprep.subr.bf16.mxu0 0
        %2492 = vmatpush1.bf16.msra.mxu0 %v2478
        %2493 = vmatprep.subr.bf16.mxu0 0
        %2494 = vmatpush1.bf16.msra.mxu0 %v2479
        %2495 = vmatprep.subr.bf16.mxu0 0
        %2496 = vmatpush1.bf16.msra.mxu0 0
        %2497 = vmatprep.subr.bf16.mxu0 0
        %2498 = vmatpush1.bf16.msra.mxu0 0
        %2499 = vmatprep.subr.bf16.mxu0 0
        %2500 = vmatpush1.bf16.msra.mxu0 0
        %2501 = vmatprep.subr.bf16.mxu0 0
        %2502 = vmatpush1.bf16.msra.mxu0 0
        %2503 = vmatprep.subr.bf16.mxu0 0
        %2504 = vmatpush1.bf16.msra.mxu0 0
        %2505 = vmatprep.subr.bf16.mxu0 0
        %2506 = vmatpush1.bf16.msra.mxu0 0
        %2507 = vmatprep.subr.bf16.mxu0 0
        %2508 = vmatpush1.bf16.msra.mxu0 0
        %2509 = vmatprep.subr.bf16.mxu0 0
        %2510 = vmatpush1.bf16.msra.mxu0 0
        %2511 = vmatprep.subr.bf16.mxu0 0
        %2512 = vmatpush1.bf16.msra.mxu0 0
        %2513 = vmatprep.subr.bf16.mxu0 0
        %2514 = vmatpush1.bf16.msra.mxu0 0
        %2515 = vmatprep.subr.bf16.mxu0 0
        %2516 = vmatpush1.bf16.msra.mxu0 0
        %2517 = vmatprep.subr.bf16.mxu0 0
        %2518 = vmatpush1.bf16.msra.mxu0 0
        %2519 = vmatprep.mubr.bf16.mxu0 0
        %2520 = vmatmul.mubr.bf16.gmra.mrb[0].mxu0 %v2485
        %v2521 = vpop.f32.mrb[0].mxu0
        %v2522 = vadd.f32 0.0, %v2521
        %v2523 = vpop.f32.mrb[0].mxu0
        %v2524 = vpop.f32.mrb[0].mxu0
        %v2525 = vpop.f32.mrb[0].mxu0
        %2526 = vdwg.mxu0
        %v2527 = vadd.f32 %v2450, %v2522
        %v2528 = vpack.c.bf16 %v1908, %v1908
        %v2529 = vld [vmem:[%s9 + $0x100] sm:$0xf]
        %v2530 = vld [vmem:[%s9 + $0x104] sm:$0xf]
        %v2531 = vld [vmem:[%s9 + $0x108] sm:$0xf]
        %v2532 = vld [vmem:[%s9 + $0x10c] sm:$0xf]
        %v2533 = vld [vmem:[%s9 + $0x110] sm:$0xf]
        %v2534 = vld [vmem:[%s9 + $0x114] sm:$0xf]
        %v2535 = vld [vmem:[%s9 + $0x118] sm:$0xf]
        %v2536 = vld [vmem:[%s9 + $0x11c] sm:$0xf]
        %v2545 = vunpack.c.l.b16 %v2529
        %v2546 = vunpack.c.l.b16 %v2530
        %v2547 = vunpack.c.l.b16 %v2531
        %v2548 = vunpack.c.l.b16 %v2532
        %v2549 = vunpack.c.l.b16 %v2533
        %v2550 = vunpack.c.l.b16 %v2534
        %v2551 = vunpack.c.l.b16 %v2535
        %v2552 = vunpack.c.l.b16 %v2536
        %v2553 = vpack.c.b16 %v2546, %v2545
        %v2554 = vpack.c.b16 %v2548, %v2547
        %v2555 = vpack.c.b16 %v2550, %v2549
        %v2556 = vpack.c.b16 %v2552, %v2551
        %v2562 = vsel %vm1955, %v2528, 0
        %2564 = vmatprep.subr.bf16.mxu0 0
        %2565 = vmatpush1.bf16.msra.mxu0 %v2553
        %2566 = vmatprep.subr.bf16.mxu0 0
        %2567 = vmatpush1.bf16.msra.mxu0 %v2554
        %2568 = vmatprep.subr.bf16.mxu0 0
        %2569 = vmatpush1.bf16.msra.mxu0 %v2555
        %2570 = vmatprep.subr.bf16.mxu0 0
        %2571 = vmatpush1.bf16.msra.mxu0 %v2556
        %2572 = vmatprep.subr.bf16.mxu0 0
        %2573 = vmatpush1.bf16.msra.mxu0 0
        %2574 = vmatprep.subr.bf16.mxu0 0
        %2575 = vmatpush1.bf16.msra.mxu0 0
        %2576 = vmatprep.subr.bf16.mxu0 0
        %2577 = vmatpush1.bf16.msra.mxu0 0
        %2578 = vmatprep.subr.bf16.mxu0 0
        %2579 = vmatpush1.bf16.msra.mxu0 0
        %2580 = vmatprep.subr.bf16.mxu0 0
        %2581 = vmatpush1.bf16.msra.mxu0 0
        %2582 = vmatprep.subr.bf16.mxu0 0
        %2583 = vmatpush1.bf16.msra.mxu0 0
        %2584 = vmatprep.subr.bf16.mxu0 0
        %2585 = vmatpush1.bf16.msra.mxu0 0
        %2586 = vmatprep.subr.bf16.mxu0 0
        %2587 = vmatpush1.bf16.msra.mxu0 0
        %2588 = vmatprep.subr.bf16.mxu0 0
        %2589 = vmatpush1.bf16.msra.mxu0 0
        %2590 = vmatprep.subr.bf16.mxu0 0
        %2591 = vmatpush1.bf16.msra.mxu0 0
        %2592 = vmatprep.subr.bf16.mxu0 0
        %2593 = vmatpush1.bf16.msra.mxu0 0
        %2594 = vmatprep.subr.bf16.mxu0 0
        %2595 = vmatpush1.bf16.msra.mxu0 0
        %2596 = vmatprep.mubr.bf16.mxu0 0
        %2597 = vmatmul.mubr.bf16.gmra.mrb[0].mxu0 %v2562
        %v2598 = vpop.f32.mrb[0].mxu0
        %v2599 = vadd.f32 0.0, %v2598
        %v2600 = vpop.f32.mrb[0].mxu0
        %v2601 = vpop.f32.mrb[0].mxu0
        %v2602 = vpop.f32.mrb[0].mxu0
        %2603 = vdwg.mxu0
        %v2604 = vadd.f32 %v2527, %v2599
        %2606 = vset.pattern.permute.xlu0 0
        %2607 = vperm.xlu0 %2606, %v1814
        %v2608 = vpop.permute.xlu0 %2607
        %v2610 = vadd.f32 %v2604, %v2608
        %v2611 = vmax.f32 %v2610, 0.0
        %v2612 = vpack.c.bf16 %v2611, %v2611
        %v2613 = vld [vmem:[%s13] sm:$0xff]
        %v2614 = vld [vmem:[%s13 + $0x8] sm:$0xff]
        %v2615 = vld [vmem:[%s13 + $0x10] sm:$0xff]
        %v2616 = vld [vmem:[%s13 + $0x18] sm:$0xff]
        %v2617 = vld [vmem:[%s13 + $0x20] sm:$0xff]
        %v2618 = vld [vmem:[%s13 + $0x28] sm:$0xff]
        %v2619 = vld [vmem:[%s13 + $0x30] sm:$0xff]
        %v2620 = vld [vmem:[%s13 + $0x38] sm:$0xff]
        %v2629 = vunpack.c.l.b16 %v2613
        %v2630 = vunpack.c.h.b16 %v2613
        %v2631 = vunpack.c.l.b16 %v2614
        %v2632 = vunpack.c.h.b16 %v2614
        %v2633 = vunpack.c.l.b16 %v2615
        %v2634 = vunpack.c.h.b16 %v2615
        %v2635 = vunpack.c.l.b16 %v2616
        %v2636 = vunpack.c.h.b16 %v2616
        %v2637 = vunpack.c.l.b16 %v2617
        %v2638 = vunpack.c.h.b16 %v2617
        %v2639 = vunpack.c.l.b16 %v2618
        %v2640 = vunpack.c.h.b16 %v2618
        %v2641 = vunpack.c.l.b16 %v2619
        %v2642 = vunpack.c.h.b16 %v2619
        %v2643 = vunpack.c.l.b16 %v2620
        %v2644 = vunpack.c.h.b16 %v2620
        %v2645 = vpack.c.b16 %v2631, %v2629
        %v2646 = vpack.c.b16 %v2632, %v2630
        %v2647 = vpack.c.b16 %v2635, %v2633
        %v2648 = vpack.c.b16 %v2636, %v2634
        %v2649 = vpack.c.b16 %v2639, %v2637
        %v2650 = vpack.c.b16 %v2640, %v2638
        %v2651 = vpack.c.b16 %v2643, %v2641
        %v2652 = vpack.c.b16 %v2644, %v2642
        %v2662 = vsel %vm1955, %v2612, 0
        %2664 = vmatprep.subr.bf16.mxu0 %v2646
        %2665 = vmatpush1.bf16.msra.mxu0 %v2645
        %2666 = vmatprep.subr.bf16.mxu0 %v2648
        %2667 = vmatpush1.bf16.msra.mxu0 %v2647
        %2668 = vmatprep.subr.bf16.mxu0 %v2650
        %2669 = vmatpush1.bf16.msra.mxu0 %v2649
        %2670 = vmatprep.subr.bf16.mxu0 %v2652
        %2671 = vmatpush1.bf16.msra.mxu0 %v2651
        %2672 = vmatprep.subr.bf16.mxu0 0
        %2673 = vmatpush1.bf16.msra.mxu0 0
        %2674 = vmatprep.subr.bf16.mxu0 0
        %2675 = vmatpush1.bf16.msra.mxu0 0
        %2676 = vmatprep.subr.bf16.mxu0 0
        %2677 = vmatpush1.bf16.msra.mxu0 0
        %2678 = vmatprep.subr.bf16.mxu0 0
        %2679 = vmatpush1.bf16.msra.mxu0 0
        %2680 = vmatprep.subr.bf16.mxu0 0
        %2681 = vmatpush1.bf16.msra.mxu0 0
        %2682 = vmatprep.subr.bf16.mxu0 0
        %2683 = vmatpush1.bf16.msra.mxu0 0
        %2684 = vmatprep.subr.bf16.mxu0 0
        %2685 = vmatpush1.bf16.msra.mxu0 0
        %2686 = vmatprep.subr.bf16.mxu0 0
        %2687 = vmatpush1.bf16.msra.mxu0 0
        %2688 = vmatprep.subr.bf16.mxu0 0
        %2689 = vmatpush1.bf16.msra.mxu0 0
        %2690 = vmatprep.subr.bf16.mxu0 0
        %2691 = vmatpush1.bf16.msra.mxu0 0
        %2692 = vmatprep.subr.bf16.mxu0 0
        %2693 = vmatpush1.bf16.msra.mxu0 0
        %2694 = vmatprep.subr.bf16.mxu0 0
        %2695 = vmatpush1.bf16.msra.mxu0 0
        %2696 = vmatprep.mubr.bf16.mxu0 0
        %2697 = vmatmul.mubr.bf16.gmra.mrb[0].mxu0 %v2662
        %v2698 = vpop.f32.mrb[0].mxu0
        %v2699 = vadd.f32 0.0, %v2698
        %v2700 = vpop.f32.mrb[0].mxu0
        %v2701 = vadd.f32 0.0, %v2700
        %v2702 = vpop.f32.mrb[0].mxu0
        %v2703 = vpop.f32.mrb[0].mxu0
        %2704 = vdwg.mxu0
        %v2705 = vld [vmem:[#allocation5] sm:$0xff]
        %2706 = vrot.lane.b32.xlu0 %v2699, 17
        %v2707 = vpop.permute.xlu0 %2706
        %2708 = vrot.lane.b32.xlu0 %v2701, 17
        %v2709 = vpop.permute.xlu0 %2708
        %vm2710 = vcmp.lt.s32.totalorder %v1145, 17
        %v2711 = vsel %vm2710, %v2707, %v2709
        %v2712 = vsel %vm2710, %v2709, %v2707
        %v2713 = vsel %vm1157, 1, 0
        %v2714 = vsel %vm1158, 1, 0
        %vm2715 = vcmp.eq.s32.totalorder %v2713, 1
        %vm2716 = vcmp.eq.s32.totalorder %v2714, 1
        %v2717 = vsel %vm2715, %v2712, 0.0
        %v2718 = vsel %vm2716, %v2711, 0.0
        %v2719 = vpack.c.bf16 %v2717, %v2717
        %v2720 = vpack.c.bf16 %v2718, %v2718
        %v2721 = vld [vmem:[#allocation3] sm:$0xff]
        %v2722 = vpack.c.bf16 %v2721, %v2721
        %2723 = vrot.lane.b32.xlu0 %v2699, 16
        %v2724 = vpop.permute.xlu0 %2723
        %2725 = vrot.lane.b32.xlu0 %v2701, 16
        %v2726 = vpop.permute.xlu0 %2725
        %vm2727 = vcmp.lt.s32.totalorder %v1145, 16
        %v2728 = vsel %vm2727, %v2724, %v2726
        %v2729 = vsel %vm2727, %v2726, %v2724
        %v2730 = vsel %vm1149, 1, 0
        %v2731 = vsel %vm1150, 1, 0
        %vm2732 = vcmp.eq.s32.totalorder %v2730, 1
        %vm2733 = vcmp.eq.s32.totalorder %v2731, 1
        %v2734 = vsel %vm2732, %v2729, 0.0
        %v2735 = vsel %vm2733, %v2728, 0.0
        %v2736 = vpack.c.bf16 %v2734, %v2734
        %v2737 = vpack.c.bf16 %v2735, %v2735
        %s2738 = scalar_lea.vmem [#allocation3], 8
        %v2739 = vld [vmem:[%s2738] sm:$0xff]
        %v2740 = vpack.c.bf16 %v2739, %v2739
        %v2742 = vsel %vm1821, %v2740, 0
        %v2745 = vsel %vm1837, %v2736, 0
        %v2748 = vsel %vm1837, %v2737, 0
        %2750 = vmatprep.subr.bf16.mxu0 %v2748
        %2751 = vmatpush1.bf16.msra.mxu0 %v2745
        %2752 = vmatprep.subr.bf16.mxu0 0
        %2753 = vmatpush1.bf16.msra.mxu0 0
        %2754 = vmatprep.subr.bf16.mxu0 0
        %2755 = vmatpush1.bf16.msra.mxu0 0
        %2756 = vmatprep.subr.bf16.mxu0 0
        %2757 = vmatpush1.bf16.msra.mxu0 0
        %2758 = vmatprep.subr.bf16.mxu0 0
        %2759 = vmatpush1.bf16.msra.mxu0 0
        %2760 = vmatprep.subr.bf16.mxu0 0
        %2761 = vmatpush1.bf16.msra.mxu0 0
        %2762 = vmatprep.subr.bf16.mxu0 0
        %2763 = vmatpush1.bf16.msra.mxu0 0
        %2764 = vmatprep.subr.bf16.mxu0 0
        %2765 = vmatpush1.bf16.msra.mxu0 0
        %2766 = vmatprep.subr.bf16.mxu0 0
        %2767 = vmatpush1.bf16.msra.mxu0 0
        %2768 = vmatprep.subr.bf16.mxu0 0
        %2769 = vmatpush1.bf16.msra.mxu0 0
        %2770 = vmatprep.subr.bf16.mxu0 0
        %2771 = vmatpush1.bf16.msra.mxu0 0
        %2772 = vmatprep.subr.bf16.mxu0 0
        %2773 = vmatpush1.bf16.msra.mxu0 0
        %2774 = vmatprep.subr.bf16.mxu0 0
        %2775 = vmatpush1.bf16.msra.mxu0 0
        %2776 = vmatprep.subr.bf16.mxu0 0
        %2777 = vmatpush1.bf16.msra.mxu0 0
        %2778 = vmatprep.subr.bf16.mxu0 0
        %2779 = vmatpush1.bf16.msra.mxu0 0
        %2780 = vmatprep.subr.bf16.mxu0 0
        %2781 = vmatpush1.bf16.msra.mxu0 0
        %2782 = vmatprep.mubr.bf16.mxu0 0
        %2783 = vmatmul.mubr.bf16.gmra.mrb[0].mxu0 %v2742
        %v2784 = vpop.f32.mrb[0].mxu0
        %v2785 = vadd.f32 0.0, %v2784
        %v2786 = vpop.f32.mrb[0].mxu0
        %v2787 = vadd.f32 0.0, %v2786
        %v2788 = vpop.f32.mrb[0].mxu0
        %v2789 = vpop.f32.mrb[0].mxu0
        %2790 = vdwg.mxu0
        %v2792 = vsel %vm1821, %v2722, 0
        %v2795 = vsel %vm1837, %v2719, 0
        %v2798 = vsel %vm1837, %v2720, 0
        %2800 = vmatprep.subr.bf16.mxu0 %v2798
        %2801 = vmatpush1.bf16.msra.mxu0 %v2795
        %2802 = vmatprep.subr.bf16.mxu0 0
        %2803 = vmatpush1.bf16.msra.mxu0 0
        %2804 = vmatprep.subr.bf16.mxu0 0
        %2805 = vmatpush1.bf16.msra.mxu0 0
        %2806 = vmatprep.subr.bf16.mxu0 0
        %2807 = vmatpush1.bf16.msra.mxu0 0
        %2808 = vmatprep.subr.bf16.mxu0 0
        %2809 = vmatpush1.bf16.msra.mxu0 0
        %2810 = vmatprep.subr.bf16.mxu0 0
        %2811 = vmatpush1.bf16.msra.mxu0 0
        %2812 = vmatprep.subr.bf16.mxu0 0
        %2813 = vmatpush1.bf16.msra.mxu0 0
        %2814 = vmatprep.subr.bf16.mxu0 0
        %2815 = vmatpush1.bf16.msra.mxu0 0
        %2816 = vmatprep.subr.bf16.mxu0 0
        %2817 = vmatpush1.bf16.msra.mxu0 0
        %2818 = vmatprep.subr.bf16.mxu0 0
        %2819 = vmatpush1.bf16.msra.mxu0 0
        %2820 = vmatprep.subr.bf16.mxu0 0
        %2821 = vmatpush1.bf16.msra.mxu0 0
        %2822 = vmatprep.subr.bf16.mxu0 0
        %2823 = vmatpush1.bf16.msra.mxu0 0
        %2824 = vmatprep.subr.bf16.mxu0 0
        %2825 = vmatpush1.bf16.msra.mxu0 0
        %2826 = vmatprep.subr.bf16.mxu0 0
        %2827 = vmatpush1.bf16.msra.mxu0 0
        %2828 = vmatprep.subr.bf16.mxu0 0
        %2829 = vmatpush1.bf16.msra.mxu0 0
        %2830 = vmatprep.subr.bf16.mxu0 0
        %2831 = vmatpush1.bf16.msra.mxu0 0
        %2832 = vmatprep.mubr.bf16.mxu0 0
        %2833 = vmatmul.mubr.bf16.gmra.mrb[0].mxu0 %v2792
        %v2834 = vpop.f32.mrb[0].mxu0
        %v2835 = vadd.f32 %v2785, %v2834
        %v2836 = vpop.f32.mrb[0].mxu0
        %v2837 = vadd.f32 %v2787, %v2836
        %v2838 = vpop.f32.mrb[0].mxu0
        %v2839 = vpop.f32.mrb[0].mxu0
        %2840 = vdwg.mxu0
        %2841 = vrot.lane.b32.xlu0 %v2699, 15
        %v2842 = vpop.permute.xlu0 %2841
        %2843 = vrot.lane.b32.xlu0 %v2701, 15
        %v2844 = vpop.permute.xlu0 %2843
        %vm2845 = vcmp.lt.s32.totalorder %v1145, 15
        %v2846 = vsel %vm2845, %v2842, %v2844
        %v2847 = vsel %vm2845, %v2844, %v2842
        %v2848 = vsel %vm1159, 1, 0
        %v2849 = vsel %vm1160, 1, 0
        %vm2850 = vcmp.eq.s32.totalorder %v2848, 1
        %vm2851 = vcmp.eq.s32.totalorder %v2849, 1
        %v2852 = vsel %vm2850, %v2847, 0.0
        %v2853 = vsel %vm2851, %v2846, 0.0
        %v2854 = vpack.c.bf16 %v2852, %v2852
        %v2855 = vpack.c.bf16 %v2853, %v2853
        %s2856 = scalar_lea.vmem [#allocation3], 16
        %v2857 = vld [vmem:[%s2856] sm:$0xff]
        %v2858 = vpack.c.bf16 %v2857, %v2857
        %v2860 = vsel %vm1821, %v2858, 0
        %v2863 = vsel %vm1837, %v2854, 0
        %v2866 = vsel %vm1837, %v2855, 0
        %2868 = vmatprep.subr.bf16.mxu0 %v2866
        %2869 = vmatpush1.bf16.msra.mxu0 %v2863
        %2870 = vmatprep.subr.bf16.mxu0 0
        %2871 = vmatpush1.bf16.msra.mxu0 0
        %2872 = vmatprep.subr.bf16.mxu0 0
        %2873 = vmatpush1.bf16.msra.mxu0 0
        %2874 = vmatprep.subr.bf16.mxu0 0
        %2875 = vmatpush1.bf16.msra.mxu0 0
        %2876 = vmatprep.subr.bf16.mxu0 0
        %2877 = vmatpush1.bf16.msra.mxu0 0
        %2878 = vmatprep.subr.bf16.mxu0 0
        %2879 = vmatpush1.bf16.msra.mxu0 0
        %2880 = vmatprep.subr.bf16.mxu0 0
        %2881 = vmatpush1.bf16.msra.mxu0 0
        %2882 = vmatprep.subr.bf16.mxu0 0
        %2883 = vmatpush1.bf16.msra.mxu0 0
        %2884 = vmatprep.subr.bf16.mxu0 0
        %2885 = vmatpush1.bf16.msra.mxu0 0
        %2886 = vmatprep.subr.bf16.mxu0 0
        %2887 = vmatpush1.bf16.msra.mxu0 0
        %2888 = vmatprep.subr.bf16.mxu0 0
        %2889 = vmatpush1.bf16.msra.mxu0 0
        %2890 = vmatprep.subr.bf16.mxu0 0
        %2891 = vmatpush1.bf16.msra.mxu0 0
        %2892 = vmatprep.subr.bf16.mxu0 0
        %2893 = vmatpush1.bf16.msra.mxu0 0
        %2894 = vmatprep.subr.bf16.mxu0 0
        %2895 = vmatpush1.bf16.msra.mxu0 0
        %2896 = vmatprep.subr.bf16.mxu0 0
        %2897 = vmatpush1.bf16.msra.mxu0 0
        %2898 = vmatprep.subr.bf16.mxu0 0
        %2899 = vmatpush1.bf16.msra.mxu0 0
        %2900 = vmatprep.mubr.bf16.mxu0 0
        %2901 = vmatmul.mubr.bf16.gmra.mrb[0].mxu0 %v2860
        %v2902 = vpop.f32.mrb[0].mxu0
        %v2903 = vadd.f32 0.0, %v2902
        %v2904 = vpop.f32.mrb[0].mxu0
        %v2905 = vadd.f32 0.0, %v2904
        %v2906 = vpop.f32.mrb[0].mxu0
        %v2907 = vpop.f32.mrb[0].mxu0
        %2908 = vdwg.mxu0
        %v2909 = vadd.f32 %v2835, %v2903
        %v2910 = vadd.f32 %v2837, %v2905
        %2911 = vrot.lane.b32.xlu0 %v2699, 1
        %v2912 = vpop.permute.xlu0 %2911
        %2913 = vrot.lane.b32.xlu0 %v2701, 1
        %v2914 = vpop.permute.xlu0 %2913
        %vm2915 = vcmp.lt.s32.totalorder %v1145, 1
        %v2916 = vsel %vm2915, %v2912, %v2914
        %v2917 = vsel %vm2915, %v2914, %v2912
        %v2918 = vsel %vm1153, 1, 0
        %v2919 = vsel %vm1154, 1, 0
        %vm2920 = vcmp.eq.s32.totalorder %v2918, 1
        %vm2921 = vcmp.eq.s32.totalorder %v2919, 1
        %v2922 = vsel %vm2920, %v2917, 0.0
        %v2923 = vsel %vm2921, %v2916, 0.0
        %v2924 = vpack.c.bf16 %v2922, %v2922
        %v2925 = vpack.c.bf16 %v2923, %v2923
        %s2926 = scalar_lea.vmem [#allocation3], 24
        %v2927 = vld [vmem:[%s2926] sm:$0xff]
        %v2928 = vpack.c.bf16 %v2927, %v2927
        %v2930 = vsel %vm1821, %v2928, 0
        %v2933 = vsel %vm1837, %v2924, 0
        %v2936 = vsel %vm1837, %v2925, 0
        %2938 = vmatprep.subr.bf16.mxu0 %v2936
        %2939 = vmatpush1.bf16.msra.mxu0 %v2933
        %2940 = vmatprep.subr.bf16.mxu0 0
        %2941 = vmatpush1.bf16.msra.mxu0 0
        %2942 = vmatprep.subr.bf16.mxu0 0
        %2943 = vmatpush1.bf16.msra.mxu0 0
        %2944 = vmatprep.subr.bf16.mxu0 0
        %2945 = vmatpush1.bf16.msra.mxu0 0
        %2946 = vmatprep.subr.bf16.mxu0 0
        %2947 = vmatpush1.bf16.msra.mxu0 0
        %2948 = vmatprep.subr.bf16.mxu0 0
        %2949 = vmatpush1.bf16.msra.mxu0 0
        %2950 = vmatprep.subr.bf16.mxu0 0
        %2951 = vmatpush1.bf16.msra.mxu0 0
        %2952 = vmatprep.subr.bf16.mxu0 0
        %2953 = vmatpush1.bf16.msra.mxu0 0
        %2954 = vmatprep.subr.bf16.mxu0 0
        %2955 = vmatpush1.bf16.msra.mxu0 0
        %2956 = vmatprep.subr.bf16.mxu0 0
        %2957 = vmatpush1.bf16.msra.mxu0 0
        %2958 = vmatprep.subr.bf16.mxu0 0
        %2959 = vmatpush1.bf16.msra.mxu0 0
        %2960 = vmatprep.subr.bf16.mxu0 0
        %2961 = vmatpush1.bf16.msra.mxu0 0
        %2962 = vmatprep.subr.bf16.mxu0 0
        %2963 = vmatpush1.bf16.msra.mxu0 0
        %2964 = vmatprep.subr.bf16.mxu0 0
        %2965 = vmatpush1.bf16.msra.mxu0 0
        %2966 = vmatprep.subr.bf16.mxu0 0
        %2967 = vmatpush1.bf16.msra.mxu0 0
        %2968 = vmatprep.subr.bf16.mxu0 0
        %2969 = vmatpush1.bf16.msra.mxu0 0
        %2970 = vmatprep.mubr.bf16.mxu0 0
        %2971 = vmatmul.mubr.bf16.gmra.mrb[0].mxu0 %v2930
        %v2972 = vpop.f32.mrb[0].mxu0
        %v2973 = vadd.f32 0.0, %v2972
        %v2974 = vpop.f32.mrb[0].mxu0
        %v2975 = vadd.f32 0.0, %v2974
        %v2976 = vpop.f32.mrb[0].mxu0
        %v2977 = vpop.f32.mrb[0].mxu0
        %2978 = vdwg.mxu0
        %v2979 = vadd.f32 %v2909, %v2973
        %v2980 = vadd.f32 %v2910, %v2975
        %v2981 = vpack.c.bf16 %v2699, %v2699
        %v2982 = vpack.c.bf16 %v2701, %v2701
        %s2983 = scalar_lea.vmem [#allocation3], 32
        %v2984 = vld [vmem:[%s2983] sm:$0xff]
        %v2985 = vpack.c.bf16 %v2984, %v2984
        %v2987 = vsel %vm1821, %v2985, 0
        %v2990 = vsel %vm1837, %v2981, 0
        %v2993 = vsel %vm1837, %v2982, 0
        %2995 = vmatprep.subr.bf16.mxu0 %v2993
        %2996 = vmatpush1.bf16.msra.mxu0 %v2990
        %2997 = vmatprep.subr.bf16.mxu0 0
        %2998 = vmatpush1.bf16.msra.mxu0 0
        %2999 = vmatprep.subr.bf16.mxu0 0
        %3000 = vmatpush1.bf16.msra.mxu0 0
        %3001 = vmatprep.subr.bf16.mxu0 0
        %3002 = vmatpush1.bf16.msra.mxu0 0
        %3003 = vmatprep.subr.bf16.mxu0 0
        %3004 = vmatpush1.bf16.msra.mxu0 0
        %3005 = vmatprep.subr.bf16.mxu0 0
        %3006 = vmatpush1.bf16.msra.mxu0 0
        %3007 = vmatprep.subr.bf16.mxu0 0
        %3008 = vmatpush1.bf16.msra.mxu0 0
        %3009 = vmatprep.subr.bf16.mxu0 0
        %3010 = vmatpush1.bf16.msra.mxu0 0
        %3011 = vmatprep.subr.bf16.mxu0 0
        %3012 = vmatpush1.bf16.msra.mxu0 0
        %3013 = vmatprep.subr.bf16.mxu0 0
        %3014 = vmatpush1.bf16.msra.mxu0 0
        %3015 = vmatprep.subr.bf16.mxu0 0
        %3016 = vmatpush1.bf16.msra.mxu0 0
        %3017 = vmatprep.subr.bf16.mxu0 0
        %3018 = vmatpush1.bf16.msra.mxu0 0
        %3019 = vmatprep.subr.bf16.mxu0 0
        %3020 = vmatpush1.bf16.msra.mxu0 0
        %3021 = vmatprep.subr.bf16.mxu0 0
        %3022 = vmatpush1.bf16.msra.mxu0 0
        %3023 = vmatprep.subr.bf16.mxu0 0
        %3024 = vmatpush1.bf16.msra.mxu0 0
        %3025 = vmatprep.subr.bf16.mxu0 0
        %3026 = vmatpush1.bf16.msra.mxu0 0
        %3027 = vmatprep.mubr.bf16.mxu0 0
        %3028 = vmatmul.mubr.bf16.gmra.mrb[0].mxu0 %v2987
        %v3029 = vpop.f32.mrb[0].mxu0
        %v3030 = vadd.f32 0.0, %v3029
        %v3031 = vpop.f32.mrb[0].mxu0
        %v3032 = vadd.f32 0.0, %v3031
        %v3033 = vpop.f32.mrb[0].mxu0
        %v3034 = vpop.f32.mrb[0].mxu0
        %3035 = vdwg.mxu0
        %v3036 = vadd.f32 %v2979, %v3030
        %v3037 = vadd.f32 %v2980, %v3032
        %3038 = vrot.lane.b32.xlu0 %v2699, 127
        %v3039 = vpop.permute.xlu0 %3038
        %3040 = vrot.lane.b32.xlu0 %v2701, 127
        %v3041 = vpop.permute.xlu0 %3040
        %vm3042 = vcmp.lt.s32.totalorder %v1145, 127
        %v3043 = vsel %vm3042, %v3039, %v3041
        %v3044 = vsel %vm3042, %v3041, %v3039
        %v3045 = vsel %vm1155, 1, 0
        %v3046 = vsel %vm1156, 1, 0
        %vm3047 = vcmp.eq.s32.totalorder %v3045, 1
        %vm3048 = vcmp.eq.s32.totalorder %v3046, 1
        %v3049 = vsel %vm3047, %v3043, 0.0
        %v3050 = vsel %vm3048, %v3044, 0.0
        %v3051 = vpack.c.bf16 %v3049, %v3049
        %v3052 = vpack.c.bf16 %v3050, %v3050
        %s3053 = scalar_lea.vmem [#allocation3], 40
        %v3054 = vld [vmem:[%s3053] sm:$0xff]
        %v3055 = vpack.c.bf16 %v3054, %v3054
        %v3057 = vsel %vm1821, %v3055, 0
        %v3060 = vsel %vm1837, %v3051, 0
        %v3063 = vsel %vm1837, %v3052, 0
        %3065 = vmatprep.subr.bf16.mxu0 %v3063
        %3066 = vmatpush1.bf16.msra.mxu0 %v3060
        %3067 = vmatprep.subr.bf16.mxu0 0
        %3068 = vmatpush1.bf16.msra.mxu0 0
        %3069 = vmatprep.subr.bf16.mxu0 0
        %3070 = vmatpush1.bf16.msra.mxu0 0
        %3071 = vmatprep.subr.bf16.mxu0 0
        %3072 = vmatpush1.bf16.msra.mxu0 0
        %3073 = vmatprep.subr.bf16.mxu0 0
        %3074 = vmatpush1.bf16.msra.mxu0 0
        %3075 = vmatprep.subr.bf16.mxu0 0
        %3076 = vmatpush1.bf16.msra.mxu0 0
        %3077 = vmatprep.subr.bf16.mxu0 0
        %3078 = vmatpush1.bf16.msra.mxu0 0
        %3079 = vmatprep.subr.bf16.mxu0 0
        %3080 = vmatpush1.bf16.msra.mxu0 0
        %3081 = vmatprep.subr.bf16.mxu0 0
        %3082 = vmatpush1.bf16.msra.mxu0 0
        %3083 = vmatprep.subr.bf16.mxu0 0
        %3084 = vmatpush1.bf16.msra.mxu0 0
        %3085 = vmatprep.subr.bf16.mxu0 0
        %3086 = vmatpush1.bf16.msra.mxu0 0
        %3087 = vmatprep.subr.bf16.mxu0 0
        %3088 = vmatpush1.bf16.msra.mxu0 0
        %3089 = vmatprep.subr.bf16.mxu0 0
        %3090 = vmatpush1.bf16.msra.mxu0 0
        %3091 = vmatprep.subr.bf16.mxu0 0
        %3092 = vmatpush1.bf16.msra.mxu0 0
        %3093 = vmatprep.subr.bf16.mxu0 0
        %3094 = vmatpush1.bf16.msra.mxu0 0
        %3095 = vmatprep.subr.bf16.mxu0 0
        %3096 = vmatpush1.bf16.msra.mxu0 0
        %3097 = vmatprep.mubr.bf16.mxu0 0
        %3098 = vmatmul.mubr.bf16.gmra.mrb[0].mxu0 %v3057
        %v3099 = vpop.f32.mrb[0].mxu0
        %v3100 = vadd.f32 0.0, %v3099
        %v3101 = vpop.f32.mrb[0].mxu0
        %v3102 = vadd.f32 0.0, %v3101
        %v3103 = vpop.f32.mrb[0].mxu0
        %v3104 = vpop.f32.mrb[0].mxu0
        %3105 = vdwg.mxu0
        %v3106 = vadd.f32 %v3036, %v3100
        %v3107 = vadd.f32 %v3037, %v3102
        %3108 = vrot.lane.b32.xlu0 %v2699, 113
        %v3109 = vpop.permute.xlu0 %3108
        %3110 = vrot.lane.b32.xlu0 %v2701, 113
        %v3111 = vpop.permute.xlu0 %3110
        %vm3112 = vcmp.lt.s32.totalorder %v1145, 113
        %v3113 = vsel %vm3112, %v3109, %v3111
        %v3114 = vsel %vm3112, %v3111, %v3109
        %v3115 = vsel %vm1161, 1, 0
        %v3116 = vsel %vm1162, 1, 0
        %vm3117 = vcmp.eq.s32.totalorder %v3115, 1
        %vm3118 = vcmp.eq.s32.totalorder %v3116, 1
        %v3119 = vsel %vm3117, %v3113, 0.0
        %v3120 = vsel %vm3118, %v3114, 0.0
        %v3121 = vpack.c.bf16 %v3119, %v3119
        %v3122 = vpack.c.bf16 %v3120, %v3120
        %s3123 = scalar_lea.vmem [#allocation3], 48
        %v3124 = vld [vmem:[%s3123] sm:$0xff]
        %v3125 = vpack.c.bf16 %v3124, %v3124
        %v3127 = vsel %vm1821, %v3125, 0
        %v3130 = vsel %vm1837, %v3121, 0
        %v3133 = vsel %vm1837, %v3122, 0
        %3135 = vmatprep.subr.bf16.mxu0 %v3133
        %3136 = vmatpush1.bf16.msra.mxu0 %v3130
        %3137 = vmatprep.subr.bf16.mxu0 0
        %3138 = vmatpush1.bf16.msra.mxu0 0
        %3139 = vmatprep.subr.bf16.mxu0 0
        %3140 = vmatpush1.bf16.msra.mxu0 0
        %3141 = vmatprep.subr.bf16.mxu0 0
        %3142 = vmatpush1.bf16.msra.mxu0 0
        %3143 = vmatprep.subr.bf16.mxu0 0
        %3144 = vmatpush1.bf16.msra.mxu0 0
        %3145 = vmatprep.subr.bf16.mxu0 0
        %3146 = vmatpush1.bf16.msra.mxu0 0
        %3147 = vmatprep.subr.bf16.mxu0 0
        %3148 = vmatpush1.bf16.msra.mxu0 0
        %3149 = vmatprep.subr.bf16.mxu0 0
        %3150 = vmatpush1.bf16.msra.mxu0 0
        %3151 = vmatprep.subr.bf16.mxu0 0
        %3152 = vmatpush1.bf16.msra.mxu0 0
        %3153 = vmatprep.subr.bf16.mxu0 0
        %3154 = vmatpush1.bf16.msra.mxu0 0
        %3155 = vmatprep.subr.bf16.mxu0 0
        %3156 = vmatpush1.bf16.msra.mxu0 0
        %3157 = vmatprep.subr.bf16.mxu0 0
        %3158 = vmatpush1.bf16.msra.mxu0 0
        %3159 = vmatprep.subr.bf16.mxu0 0
        %3160 = vmatpush1.bf16.msra.mxu0 0
        %3161 = vmatprep.subr.bf16.mxu0 0
        %3162 = vmatpush1.bf16.msra.mxu0 0
        %3163 = vmatprep.subr.bf16.mxu0 0
        %3164 = vmatpush1.bf16.msra.mxu0 0
        %3165 = vmatprep.subr.bf16.mxu0 0
        %3166 = vmatpush1.bf16.msra.mxu0 0
        %3167 = vmatprep.mubr.bf16.mxu0 0
        %3168 = vmatmul.mubr.bf16.gmra.mrb[0].mxu0 %v3127
        %v3169 = vpop.f32.mrb[0].mxu0
        %v3170 = vadd.f32 0.0, %v3169
        %v3171 = vpop.f32.mrb[0].mxu0
        %v3172 = vadd.f32 0.0, %v3171
        %v3173 = vpop.f32.mrb[0].mxu0
        %v3174 = vpop.f32.mrb[0].mxu0
        %3175 = vdwg.mxu0
        %v3176 = vadd.f32 %v3106, %v3170
        %v3177 = vadd.f32 %v3107, %v3172
        %3178 = vrot.lane.b32.xlu0 %v2699, 112
        %v3179 = vpop.permute.xlu0 %3178
        %3180 = vrot.lane.b32.xlu0 %v2701, 112
        %v3181 = vpop.permute.xlu0 %3180
        %vm3182 = vcmp.lt.s32.totalorder %v1145, 112
        %v3183 = vsel %vm3182, %v3179, %v3181
        %v3184 = vsel %vm3182, %v3181, %v3179
        %v3185 = vsel %vm1151, 1, 0
        %v3186 = vsel %vm1152, 1, 0
        %vm3187 = vcmp.eq.s32.totalorder %v3185, 1
        %vm3188 = vcmp.eq.s32.totalorder %v3186, 1
        %v3189 = vsel %vm3187, %v3183, 0.0
        %v3190 = vsel %vm3188, %v3184, 0.0
        %v3191 = vpack.c.bf16 %v3189, %v3189
        %v3192 = vpack.c.bf16 %v3190, %v3190
        %s3193 = scalar_lea.vmem [#allocation3], 56
        %v3194 = vld [vmem:[%s3193] sm:$0xff]
        %v3195 = vpack.c.bf16 %v3194, %v3194
        %v3197 = vsel %vm1821, %v3195, 0
        %v3200 = vsel %vm1837, %v3191, 0
        %v3203 = vsel %vm1837, %v3192, 0
        %3205 = vmatprep.subr.bf16.mxu0 %v3203
        %3206 = vmatpush1.bf16.msra.mxu0 %v3200
        %3207 = vmatprep.subr.bf16.mxu0 0
        %3208 = vmatpush1.bf16.msra.mxu0 0
        %3209 = vmatprep.subr.bf16.mxu0 0
        %3210 = vmatpush1.bf16.msra.mxu0 0
        %3211 = vmatprep.subr.bf16.mxu0 0
        %3212 = vmatpush1.bf16.msra.mxu0 0
        %3213 = vmatprep.subr.bf16.mxu0 0
        %3214 = vmatpush1.bf16.msra.mxu0 0
        %3215 = vmatprep.subr.bf16.mxu0 0
        %3216 = vmatpush1.bf16.msra.mxu0 0
        %3217 = vmatprep.subr.bf16.mxu0 0
        %3218 = vmatpush1.bf16.msra.mxu0 0
        %3219 = vmatprep.subr.bf16.mxu0 0
        %3220 = vmatpush1.bf16.msra.mxu0 0
        %3221 = vmatprep.subr.bf16.mxu0 0
        %3222 = vmatpush1.bf16.msra.mxu0 0
        %3223 = vmatprep.subr.bf16.mxu0 0
        %3224 = vmatpush1.bf16.msra.mxu0 0
        %3225 = vmatprep.subr.bf16.mxu0 0
        %3226 = vmatpush1.bf16.msra.mxu0 0
        %3227 = vmatprep.subr.bf16.mxu0 0
        %3228 = vmatpush1.bf16.msra.mxu0 0
        %3229 = vmatprep.subr.bf16.mxu0 0
        %3230 = vmatpush1.bf16.msra.mxu0 0
        %3231 = vmatprep.subr.bf16.mxu0 0
        %3232 = vmatpush1.bf16.msra.mxu0 0
        %3233 = vmatprep.subr.bf16.mxu0 0
        %3234 = vmatpush1.bf16.msra.mxu0 0
        %3235 = vmatprep.subr.bf16.mxu0 0
        %3236 = vmatpush1.bf16.msra.mxu0 0
        %3237 = vmatprep.mubr.bf16.mxu0 0
        %3238 = vmatmul.mubr.bf16.gmra.mrb[0].mxu0 %v3197
        %v3239 = vpop.f32.mrb[0].mxu0
        %v3240 = vadd.f32 0.0, %v3239
        %v3241 = vpop.f32.mrb[0].mxu0
        %v3242 = vadd.f32 0.0, %v3241
        %v3243 = vpop.f32.mrb[0].mxu0
        %v3244 = vpop.f32.mrb[0].mxu0
        %3245 = vdwg.mxu0
        %v3246 = vadd.f32 %v3176, %v3240
        %v3247 = vadd.f32 %v3177, %v3242
        %3248 = vrot.lane.b32.xlu0 %v2699, 111
        %v3249 = vpop.permute.xlu0 %3248
        %3250 = vrot.lane.b32.xlu0 %v2701, 111
        %v3251 = vpop.permute.xlu0 %3250
        %vm3252 = vcmp.lt.s32.totalorder %v1145, 111
        %v3253 = vsel %vm3252, %v3249, %v3251
        %v3254 = vsel %vm3252, %v3251, %v3249
        %v3255 = vsel %vm1163, 1, 0
        %v3256 = vsel %vm1164, 1, 0
        %vm3257 = vcmp.eq.s32.totalorder %v3255, 1
        %vm3258 = vcmp.eq.s32.totalorder %v3256, 1
        %v3259 = vsel %vm3257, %v3253, 0.0
        %v3260 = vsel %vm3258, %v3254, 0.0
        %v3261 = vpack.c.bf16 %v3259, %v3259
        %v3262 = vpack.c.bf16 %v3260, %v3260
        %s3263 = scalar_lea.vmem [#allocation3], 64
        %v3264 = vld [vmem:[%s3263] sm:$0xff]
        %v3265 = vpack.c.bf16 %v3264, %v3264
        %v3267 = vsel %vm1821, %v3265, 0
        %v3270 = vsel %vm1837, %v3261, 0
        %v3273 = vsel %vm1837, %v3262, 0
        %3275 = vmatprep.subr.bf16.mxu0 %v3273
        %3276 = vmatpush1.bf16.msra.mxu0 %v3270
        %3277 = vmatprep.subr.bf16.mxu0 0
        %3278 = vmatpush1.bf16.msra.mxu0 0
        %3279 = vmatprep.subr.bf16.mxu0 0
        %3280 = vmatpush1.bf16.msra.mxu0 0
        %3281 = vmatprep.subr.bf16.mxu0 0
        %3282 = vmatpush1.bf16.msra.mxu0 0
        %3283 = vmatprep.subr.bf16.mxu0 0
        %3284 = vmatpush1.bf16.msra.mxu0 0
        %3285 = vmatprep.subr.bf16.mxu0 0
        %3286 = vmatpush1.bf16.msra.mxu0 0
        %3287 = vmatprep.subr.bf16.mxu0 0
        %3288 = vmatpush1.bf16.msra.mxu0 0
        %3289 = vmatprep.subr.bf16.mxu0 0
        %3290 = vmatpush1.bf16.msra.mxu0 0
        %3291 = vmatprep.subr.bf16.mxu0 0
        %3292 = vmatpush1.bf16.msra.mxu0 0
        %3293 = vmatprep.subr.bf16.mxu0 0
        %3294 = vmatpush1.bf16.msra.mxu0 0
        %3295 = vmatprep.subr.bf16.mxu0 0
        %3296 = vmatpush1.bf16.msra.mxu0 0
        %3297 = vmatprep.subr.bf16.mxu0 0
        %3298 = vmatpush1.bf16.msra.mxu0 0
        %3299 = vmatprep.subr.bf16.mxu0 0
        %3300 = vmatpush1.bf16.msra.mxu0 0
        %3301 = vmatprep.subr.bf16.mxu0 0
        %3302 = vmatpush1.bf16.msra.mxu0 0
        %3303 = vmatprep.subr.bf16.mxu0 0
        %3304 = vmatpush1.bf16.msra.mxu0 0
        %3305 = vmatprep.subr.bf16.mxu0 0
        %3306 = vmatpush1.bf16.msra.mxu0 0
        %3307 = vmatprep.mubr.bf16.mxu0 0
        %3308 = vmatmul.mubr.bf16.gmra.mrb[0].mxu0 %v3267
        %v3309 = vpop.f32.mrb[0].mxu0
        %v3310 = vadd.f32 0.0, %v3309
        %v3311 = vpop.f32.mrb[0].mxu0
        %v3312 = vadd.f32 0.0, %v3311
        %v3313 = vpop.f32.mrb[0].mxu0
        %v3314 = vpop.f32.mrb[0].mxu0
        %3315 = vdwg.mxu0
        %v3316 = vadd.f32 %v3246, %v3310
        %v3317 = vadd.f32 %v3247, %v3312
        %3319 = vset.pattern.permute.xlu0 0
        %3320 = vperm.xlu0 %3319, %v2705
        %v3321 = vpop.permute.xlu0 %3320
        %v3323 = vadd.f32 %v3316, %v3321
        %v3324 = vadd.f32 %v3317, %v3321
        %v3325 = vmax.f32 %v3323, 0.0
        %v3326 = vmax.f32 %v3324, 0.0
        %v3327 = vld [vmem:[%s1130] sm:$0xff]
        %v3328 = vld [vmem:[%s1130 + $0x8] sm:$0xff]
        %v3329 = vld [vmem:[#allocation8] sm:$0xff]
        %3330 = vrot.lane.b32.xlu0 %v3327, 17
        %v3331 = vpop.permute.xlu0 %3330
        %3332 = vrot.lane.b32.xlu0 %v3328, 17
        %v3333 = vpop.permute.xlu0 %3332
        %v3334 = vsel %vm2710, %v3331, %v3333
        %v3335 = vsel %vm2710, %v3333, %v3331
        %v3336 = vsel %vm2715, %v3335, 0.0
        %v3337 = vsel %vm2716, %v3334, 0.0
        %v3338 = vpack.c.bf16 %v3336, %v3336
        %v3339 = vpack.c.bf16 %v3337, %v3337
        %v3340 = vld [vmem:[#allocation7] sm:$0xff]
        %v3341 = vpack.c.bf16 %v3340, %v3340
        %3342 = vrot.lane.b32.xlu0 %v3327, 16
        %v3343 = vpop.permute.xlu0 %3342
        %3344 = vrot.lane.b32.xlu0 %v3328, 16
        %v3345 = vpop.permute.xlu0 %3344
        %v3346 = vsel %vm2727, %v3343, %v3345
        %v3347 = vsel %vm2727, %v3345, %v3343
        %v3348 = vsel %vm2732, %v3347, 0.0
        %v3349 = vsel %vm2733, %v3346, 0.0
        %v3350 = vpack.c.bf16 %v3348, %v3348
        %v3351 = vpack.c.bf16 %v3349, %v3349
        %s3352 = scalar_lea.vmem [#allocation7], 8
        %v3353 = vld [vmem:[%s3352] sm:$0xff]
        %v3354 = vpack.c.bf16 %v3353, %v3353
        %v3356 = vsel %vm1821, %v3354, 0
        %v3359 = vsel %vm1837, %v3350, 0
        %v3362 = vsel %vm1837, %v3351, 0
        %3364 = vmatprep.subr.bf16.mxu0 %v3362
        %3365 = vmatpush1.bf16.msra.mxu0 %v3359
        %3366 = vmatprep.subr.bf16.mxu0 0
        %3367 = vmatpush1.bf16.msra.mxu0 0
        %3368 = vmatprep.subr.bf16.mxu0 0
        %3369 = vmatpush1.bf16.msra.mxu0 0
        %3370 = vmatprep.subr.bf16.mxu0 0
        %3371 = vmatpush1.bf16.msra.mxu0 0
        %3372 = vmatprep.subr.bf16.mxu0 0
        %3373 = vmatpush1.bf16.msra.mxu0 0
        %3374 = vmatprep.subr.bf16.mxu0 0
        %3375 = vmatpush1.bf16.msra.mxu0 0
        %3376 = vmatprep.subr.bf16.mxu0 0
        %3377 = vmatpush1.bf16.msra.mxu0 0
        %3378 = vmatprep.subr.bf16.mxu0 0
        %3379 = vmatpush1.bf16.msra.mxu0 0
        %3380 = vmatprep.subr.bf16.mxu0 0
        %3381 = vmatpush1.bf16.msra.mxu0 0
        %3382 = vmatprep.subr.bf16.mxu0 0
        %3383 = vmatpush1.bf16.msra.mxu0 0
        %3384 = vmatprep.subr.bf16.mxu0 0
        %3385 = vmatpush1.bf16.msra.mxu0 0
        %3386 = vmatprep.subr.bf16.mxu0 0
        %3387 = vmatpush1.bf16.msra.mxu0 0
        %3388 = vmatprep.subr.bf16.mxu0 0
        %3389 = vmatpush1.bf16.msra.mxu0 0
        %3390 = vmatprep.subr.bf16.mxu0 0
        %3391 = vmatpush1.bf16.msra.mxu0 0
        %3392 = vmatprep.subr.bf16.mxu0 0
        %3393 = vmatpush1.bf16.msra.mxu0 0
        %3394 = vmatprep.subr.bf16.mxu0 0
        %3395 = vmatpush1.bf16.msra.mxu0 0
        %3396 = vmatprep.mubr.bf16.mxu0 0
        %3397 = vmatmul.mubr.bf16.gmra.mrb[0].mxu0 %v3356
        %v3398 = vpop.f32.mrb[0].mxu0
        %v3399 = vadd.f32 0.0, %v3398
        %v3400 = vpop.f32.mrb[0].mxu0
        %v3401 = vadd.f32 0.0, %v3400
        %v3402 = vpop.f32.mrb[0].mxu0
        %v3403 = vpop.f32.mrb[0].mxu0
        %3404 = vdwg.mxu0
        %v3406 = vsel %vm1821, %v3341, 0
        %v3409 = vsel %vm1837, %v3338, 0
        %v3412 = vsel %vm1837, %v3339, 0
        %3414 = vmatprep.subr.bf16.mxu0 %v3412
        %3415 = vmatpush1.bf16.msra.mxu0 %v3409
        %3416 = vmatprep.subr.bf16.mxu0 0
        %3417 = vmatpush1.bf16.msra.mxu0 0
        %3418 = vmatprep.subr.bf16.mxu0 0
        %3419 = vmatpush1.bf16.msra.mxu0 0
        %3420 = vmatprep.subr.bf16.mxu0 0
        %3421 = vmatpush1.bf16.msra.mxu0 0
        %3422 = vmatprep.subr.bf16.mxu0 0
        %3423 = vmatpush1.bf16.msra.mxu0 0
        %3424 = vmatprep.subr.bf16.mxu0 0
        %3425 = vmatpush1.bf16.msra.mxu0 0
        %3426 = vmatprep.subr.bf16.mxu0 0
        %3427 = vmatpush1.bf16.msra.mxu0 0
        %3428 = vmatprep.subr.bf16.mxu0 0
        %3429 = vmatpush1.bf16.msra.mxu0 0
        %3430 = vmatprep.subr.bf16.mxu0 0
        %3431 = vmatpush1.bf16.msra.mxu0 0
        %3432 = vmatprep.subr.bf16.mxu0 0
        %3433 = vmatpush1.bf16.msra.mxu0 0
        %3434 = vmatprep.subr.bf16.mxu0 0
        %3435 = vmatpush1.bf16.msra.mxu0 0
        %3436 = vmatprep.subr.bf16.mxu0 0
        %3437 = vmatpush1.bf16.msra.mxu0 0
        %3438 = vmatprep.subr.bf16.mxu0 0
        %3439 = vmatpush1.bf16.msra.mxu0 0
        %3440 = vmatprep.subr.bf16.mxu0 0
        %3441 = vmatpush1.bf16.msra.mxu0 0
        %3442 = vmatprep.subr.bf16.mxu0 0
        %3443 = vmatpush1.bf16.msra.mxu0 0
        %3444 = vmatprep.subr.bf16.mxu0 0
        %3445 = vmatpush1.bf16.msra.mxu0 0
        %3446 = vmatprep.mubr.bf16.mxu0 0
        %3447 = vmatmul.mubr.bf16.gmra.mrb[0].mxu0 %v3406
        %v3448 = vpop.f32.mrb[0].mxu0
        %v3449 = vadd.f32 %v3399, %v3448
        %v3450 = vpop.f32.mrb[0].mxu0
        %v3451 = vadd.f32 %v3401, %v3450
        %v3452 = vpop.f32.mrb[0].mxu0
        %v3453 = vpop.f32.mrb[0].mxu0
        %3454 = vdwg.mxu0
        %3455 = vrot.lane.b32.xlu0 %v3327, 15
        %v3456 = vpop.permute.xlu0 %3455
        %3457 = vrot.lane.b32.xlu0 %v3328, 15
        %v3458 = vpop.permute.xlu0 %3457
        %v3459 = vsel %vm2845, %v3456, %v3458
        %v3460 = vsel %vm2845, %v3458, %v3456
        %v3461 = vsel %vm2850, %v3460, 0.0
        %v3462 = vsel %vm2851, %v3459, 0.0
        %v3463 = vpack.c.bf16 %v3461, %v3461
        %v3464 = vpack.c.bf16 %v3462, %v3462
        %s3465 = scalar_lea.vmem [#allocation7], 16
        %v3466 = vld [vmem:[%s3465] sm:$0xff]
        %v3467 = vpack.c.bf16 %v3466, %v3466
        %v3469 = vsel %vm1821, %v3467, 0
        %v3472 = vsel %vm1837, %v3463, 0
        %v3475 = vsel %vm1837, %v3464, 0
        %3477 = vmatprep.subr.bf16.mxu0 %v3475
        %3478 = vmatpush1.bf16.msra.mxu0 %v3472
        %3479 = vmatprep.subr.bf16.mxu0 0
        %3480 = vmatpush1.bf16.msra.mxu0 0
        %3481 = vmatprep.subr.bf16.mxu0 0
        %3482 = vmatpush1.bf16.msra.mxu0 0
        %3483 = vmatprep.subr.bf16.mxu0 0
        %3484 = vmatpush1.bf16.msra.mxu0 0
        %3485 = vmatprep.subr.bf16.mxu0 0
        %3486 = vmatpush1.bf16.msra.mxu0 0
        %3487 = vmatprep.subr.bf16.mxu0 0
        %3488 = vmatpush1.bf16.msra.mxu0 0
        %3489 = vmatprep.subr.bf16.mxu0 0
        %3490 = vmatpush1.bf16.msra.mxu0 0
        %3491 = vmatprep.subr.bf16.mxu0 0
        %3492 = vmatpush1.bf16.msra.mxu0 0
        %3493 = vmatprep.subr.bf16.mxu0 0
        %3494 = vmatpush1.bf16.msra.mxu0 0
        %3495 = vmatprep.subr.bf16.mxu0 0
        %3496 = vmatpush1.bf16.msra.mxu0 0
        %3497 = vmatprep.subr.bf16.mxu0 0
        %3498 = vmatpush1.bf16.msra.mxu0 0
        %3499 = vmatprep.subr.bf16.mxu0 0
        %3500 = vmatpush1.bf16.msra.mxu0 0
        %3501 = vmatprep.subr.bf16.mxu0 0
        %3502 = vmatpush1.bf16.msra.mxu0 0
        %3503 = vmatprep.subr.bf16.mxu0 0
        %3504 = vmatpush1.bf16.msra.mxu0 0
        %3505 = vmatprep.subr.bf16.mxu0 0
        %3506 = vmatpush1.bf16.msra.mxu0 0
        %3507 = vmatprep.subr.bf16.mxu0 0
        %3508 = vmatpush1.bf16.msra.mxu0 0
        %3509 = vmatprep.mubr.bf16.mxu0 0
        %3510 = vmatmul.mubr.bf16.gmra.mrb[0].mxu0 %v3469
        %v3511 = vpop.f32.mrb[0].mxu0
        %v3512 = vadd.f32 0.0, %v3511
        %v3513 = vpop.f32.mrb[0].mxu0
        %v3514 = vadd.f32 0.0, %v3513
        %v3515 = vpop.f32.mrb[0].mxu0
        %v3516 = vpop.f32.mrb[0].mxu0
        %3517 = vdwg.mxu0
        %v3518 = vadd.f32 %v3449, %v3512
        %v3519 = vadd.f32 %v3451, %v3514
        %3520 = vrot.lane.b32.xlu0 %v3327, 1
        %v3521 = vpop.permute.xlu0 %3520
        %3522 = vrot.lane.b32.xlu0 %v3328, 1
        %v3523 = vpop.permute.xlu0 %3522
        %v3524 = vsel %vm2915, %v3521, %v3523
        %v3525 = vsel %vm2915, %v3523, %v3521
        %v3526 = vsel %vm2920, %v3525, 0.0
        %v3527 = vsel %vm2921, %v3524, 0.0
        %v3528 = vpack.c.bf16 %v3526, %v3526
        %v3529 = vpack.c.bf16 %v3527, %v3527
        %s3530 = scalar_lea.vmem [#allocation7], 24
        %v3531 = vld [vmem:[%s3530] sm:$0xff]
        %v3532 = vpack.c.bf16 %v3531, %v3531
        %v3534 = vsel %vm1821, %v3532, 0
        %v3537 = vsel %vm1837, %v3528, 0
        %v3540 = vsel %vm1837, %v3529, 0
        %3542 = vmatprep.subr.bf16.mxu0 %v3540
        %3543 = vmatpush1.bf16.msra.mxu0 %v3537
        %3544 = vmatprep.subr.bf16.mxu0 0
        %3545 = vmatpush1.bf16.msra.mxu0 0
        %3546 = vmatprep.subr.bf16.mxu0 0
        %3547 = vmatpush1.bf16.msra.mxu0 0
        %3548 = vmatprep.subr.bf16.mxu0 0
        %3549 = vmatpush1.bf16.msra.mxu0 0
        %3550 = vmatprep.subr.bf16.mxu0 0
        %3551 = vmatpush1.bf16.msra.mxu0 0
        %3552 = vmatprep.subr.bf16.mxu0 0
        %3553 = vmatpush1.bf16.msra.mxu0 0
        %3554 = vmatprep.subr.bf16.mxu0 0
        %3555 = vmatpush1.bf16.msra.mxu0 0
        %3556 = vmatprep.subr.bf16.mxu0 0
        %3557 = vmatpush1.bf16.msra.mxu0 0
        %3558 = vmatprep.subr.bf16.mxu0 0
        %3559 = vmatpush1.bf16.msra.mxu0 0
        %3560 = vmatprep.subr.bf16.mxu0 0
        %3561 = vmatpush1.bf16.msra.mxu0 0
        %3562 = vmatprep.subr.bf16.mxu0 0
        %3563 = vmatpush1.bf16.msra.mxu0 0
        %3564 = vmatprep.subr.bf16.mxu0 0
        %3565 = vmatpush1.bf16.msra.mxu0 0
        %3566 = vmatprep.subr.bf16.mxu0 0
        %3567 = vmatpush1.bf16.msra.mxu0 0
        %3568 = vmatprep.subr.bf16.mxu0 0
        %3569 = vmatpush1.bf16.msra.mxu0 0
        %3570 = vmatprep.subr.bf16.mxu0 0
        %3571 = vmatpush1.bf16.msra.mxu0 0
        %3572 = vmatprep.subr.bf16.mxu0 0
        %3573 = vmatpush1.bf16.msra.mxu0 0
        %3574 = vmatprep.mubr.bf16.mxu0 0
        %3575 = vmatmul.mubr.bf16.gmra.mrb[0].mxu0 %v3534
        %v3576 = vpop.f32.mrb[0].mxu0
        %v3577 = vadd.f32 0.0, %v3576
        %v3578 = vpop.f32.mrb[0].mxu0
        %v3579 = vadd.f32 0.0, %v3578
        %v3580 = vpop.f32.mrb[0].mxu0
        %v3581 = vpop.f32.mrb[0].mxu0
        %3582 = vdwg.mxu0
        %v3583 = vadd.f32 %v3518, %v3577
        %v3584 = vadd.f32 %v3519, %v3579
        %v3585 = vpack.c.bf16 %v3327, %v3327
        %v3586 = vpack.c.bf16 %v3328, %v3328
        %s3587 = scalar_lea.vmem [#allocation7], 32
        %v3588 = vld [vmem:[%s3587] sm:$0xff]
        %v3589 = vpack.c.bf16 %v3588, %v3588
        %v3591 = vsel %vm1821, %v3589, 0
        %v3594 = vsel %vm1837, %v3585, 0
        %v3597 = vsel %vm1837, %v3586, 0
        %3599 = vmatprep.subr.bf16.mxu0 %v3597
        %3600 = vmatpush1.bf16.msra.mxu0 %v3594
        %3601 = vmatprep.subr.bf16.mxu0 0
        %3602 = vmatpush1.bf16.msra.mxu0 0
        %3603 = vmatprep.subr.bf16.mxu0 0
        %3604 = vmatpush1.bf16.msra.mxu0 0
        %3605 = vmatprep.subr.bf16.mxu0 0
        %3606 = vmatpush1.bf16.msra.mxu0 0
        %3607 = vmatprep.subr.bf16.mxu0 0
        %3608 = vmatpush1.bf16.msra.mxu0 0
        %3609 = vmatprep.subr.bf16.mxu0 0
        %3610 = vmatpush1.bf16.msra.mxu0 0
        %3611 = vmatprep.subr.bf16.mxu0 0
        %3612 = vmatpush1.bf16.msra.mxu0 0
        %3613 = vmatprep.subr.bf16.mxu0 0
        %3614 = vmatpush1.bf16.msra.mxu0 0
        %3615 = vmatprep.subr.bf16.mxu0 0
        %3616 = vmatpush1.bf16.msra.mxu0 0
        %3617 = vmatprep.subr.bf16.mxu0 0
        %3618 = vmatpush1.bf16.msra.mxu0 0
        %3619 = vmatprep.subr.bf16.mxu0 0
        %3620 = vmatpush1.bf16.msra.mxu0 0
        %3621 = vmatprep.subr.bf16.mxu0 0
        %3622 = vmatpush1.bf16.msra.mxu0 0
        %3623 = vmatprep.subr.bf16.mxu0 0
        %3624 = vmatpush1.bf16.msra.mxu0 0
        %3625 = vmatprep.subr.bf16.mxu0 0
        %3626 = vmatpush1.bf16.msra.mxu0 0
        %3627 = vmatprep.subr.bf16.mxu0 0
        %3628 = vmatpush1.bf16.msra.mxu0 0
        %3629 = vmatprep.subr.bf16.mxu0 0
        %3630 = vmatpush1.bf16.msra.mxu0 0
        %3631 = vmatprep.mubr.bf16.mxu0 0
        %3632 = vmatmul.mubr.bf16.gmra.mrb[0].mxu0 %v3591
        %v3633 = vpop.f32.mrb[0].mxu0
        %v3634 = vadd.f32 0.0, %v3633
        %v3635 = vpop.f32.mrb[0].mxu0
        %v3636 = vadd.f32 0.0, %v3635
        %v3637 = vpop.f32.mrb[0].mxu0
        %v3638 = vpop.f32.mrb[0].mxu0
        %3639 = vdwg.mxu0
        %v3640 = vadd.f32 %v3583, %v3634
        %v3641 = vadd.f32 %v3584, %v3636
        %3642 = vrot.lane.b32.xlu0 %v3327, 127
        %v3643 = vpop.permute.xlu0 %3642
        %3644 = vrot.lane.b32.xlu0 %v3328, 127
        %v3645 = vpop.permute.xlu0 %3644
        %v3646 = vsel %vm3042, %v3643, %v3645
        %v3647 = vsel %vm3042, %v3645, %v3643
        %v3648 = vsel %vm3047, %v3646, 0.0
        %v3649 = vsel %vm3048, %v3647, 0.0
        %v3650 = vpack.c.bf16 %v3648, %v3648
        %v3651 = vpack.c.bf16 %v3649, %v3649
        %s3652 = scalar_lea.vmem [#allocation7], 40
        %v3653 = vld [vmem:[%s3652] sm:$0xff]
        %v3654 = vpack.c.bf16 %v3653, %v3653
        %v3656 = vsel %vm1821, %v3654, 0
        %v3659 = vsel %vm1837, %v3650, 0
        %v3662 = vsel %vm1837, %v3651, 0
        %3664 = vmatprep.subr.bf16.mxu0 %v3662
        %3665 = vmatpush1.bf16.msra.mxu0 %v3659
        %3666 = vmatprep.subr.bf16.mxu0 0
        %3667 = vmatpush1.bf16.msra.mxu0 0
        %3668 = vmatprep.subr.bf16.mxu0 0
        %3669 = vmatpush1.bf16.msra.mxu0 0
        %3670 = vmatprep.subr.bf16.mxu0 0
        %3671 = vmatpush1.bf16.msra.mxu0 0
        %3672 = vmatprep.subr.bf16.mxu0 0
        %3673 = vmatpush1.bf16.msra.mxu0 0
        %3674 = vmatprep.subr.bf16.mxu0 0
        %3675 = vmatpush1.bf16.msra.mxu0 0
        %3676 = vmatprep.subr.bf16.mxu0 0
        %3677 = vmatpush1.bf16.msra.mxu0 0
        %3678 = vmatprep.subr.bf16.mxu0 0
        %3679 = vmatpush1.bf16.msra.mxu0 0
        %3680 = vmatprep.subr.bf16.mxu0 0
        %3681 = vmatpush1.bf16.msra.mxu0 0
        %3682 = vmatprep.subr.bf16.mxu0 0
        %3683 = vmatpush1.bf16.msra.mxu0 0
        %3684 = vmatprep.subr.bf16.mxu0 0
        %3685 = vmatpush1.bf16.msra.mxu0 0
        %3686 = vmatprep.subr.bf16.mxu0 0
        %3687 = vmatpush1.bf16.msra.mxu0 0
        %3688 = vmatprep.subr.bf16.mxu0 0
        %3689 = vmatpush1.bf16.msra.mxu0 0
        %3690 = vmatprep.subr.bf16.mxu0 0
        %3691 = vmatpush1.bf16.msra.mxu0 0
        %3692 = vmatprep.subr.bf16.mxu0 0
        %3693 = vmatpush1.bf16.msra.mxu0 0
        %3694 = vmatprep.subr.bf16.mxu0 0
        %3695 = vmatpush1.bf16.msra.mxu0 0
        %3696 = vmatprep.mubr.bf16.mxu0 0
        %3697 = vmatmul.mubr.bf16.gmra.mrb[0].mxu0 %v3656
        %v3698 = vpop.f32.mrb[0].mxu0
        %v3699 = vadd.f32 0.0, %v3698
        %v3700 = vpop.f32.mrb[0].mxu0
        %v3701 = vadd.f32 0.0, %v3700
        %v3702 = vpop.f32.mrb[0].mxu0
        %v3703 = vpop.f32.mrb[0].mxu0
        %3704 = vdwg.mxu0
        %v3705 = vadd.f32 %v3640, %v3699
        %v3706 = vadd.f32 %v3641, %v3701
        %3707 = vrot.lane.b32.xlu0 %v3327, 113
        %v3708 = vpop.permute.xlu0 %3707
        %3709 = vrot.lane.b32.xlu0 %v3328, 113
        %v3710 = vpop.permute.xlu0 %3709
        %v3711 = vsel %vm3112, %v3708, %v3710
        %v3712 = vsel %vm3112, %v3710, %v3708
        %v3713 = vsel %vm3117, %v3711, 0.0
        %v3714 = vsel %vm3118, %v3712, 0.0
        %v3715 = vpack.c.bf16 %v3713, %v3713
        %v3716 = vpack.c.bf16 %v3714, %v3714
        %s3717 = scalar_lea.vmem [#allocation7], 48
        %v3718 = vld [vmem:[%s3717] sm:$0xff]
        %v3719 = vpack.c.bf16 %v3718, %v3718
        %v3721 = vsel %vm1821, %v3719, 0
        %v3724 = vsel %vm1837, %v3715, 0
        %v3727 = vsel %vm1837, %v3716, 0
        %3729 = vmatprep.subr.bf16.mxu0 %v3727
        %3730 = vmatpush1.bf16.msra.mxu0 %v3724
        %3731 = vmatprep.subr.bf16.mxu0 0
        %3732 = vmatpush1.bf16.msra.mxu0 0
        %3733 = vmatprep.subr.bf16.mxu0 0
        %3734 = vmatpush1.bf16.msra.mxu0 0
        %3735 = vmatprep.subr.bf16.mxu0 0
        %3736 = vmatpush1.bf16.msra.mxu0 0
        %3737 = vmatprep.subr.bf16.mxu0 0
        %3738 = vmatpush1.bf16.msra.mxu0 0
        %3739 = vmatprep.subr.bf16.mxu0 0
        %3740 = vmatpush1.bf16.msra.mxu0 0
        %3741 = vmatprep.subr.bf16.mxu0 0
        %3742 = vmatpush1.bf16.msra.mxu0 0
        %3743 = vmatprep.subr.bf16.mxu0 0
        %3744 = vmatpush1.bf16.msra.mxu0 0
        %3745 = vmatprep.subr.bf16.mxu0 0
        %3746 = vmatpush1.bf16.msra.mxu0 0
        %3747 = vmatprep.subr.bf16.mxu0 0
        %3748 = vmatpush1.bf16.msra.mxu0 0
        %3749 = vmatprep.subr.bf16.mxu0 0
        %3750 = vmatpush1.bf16.msra.mxu0 0
        %3751 = vmatprep.subr.bf16.mxu0 0
        %3752 = vmatpush1.bf16.msra.mxu0 0
        %3753 = vmatprep.subr.bf16.mxu0 0
        %3754 = vmatpush1.bf16.msra.mxu0 0
        %3755 = vmatprep.subr.bf16.mxu0 0
        %3756 = vmatpush1.bf16.msra.mxu0 0
        %3757 = vmatprep.subr.bf16.mxu0 0
        %3758 = vmatpush1.bf16.msra.mxu0 0
        %3759 = vmatprep.subr.bf16.mxu0 0
        %3760 = vmatpush1.bf16.msra.mxu0 0
        %3761 = vmatprep.mubr.bf16.mxu0 0
        %3762 = vmatmul.mubr.bf16.gmra.mrb[0].mxu0 %v3721
        %v3763 = vpop.f32.mrb[0].mxu0
        %v3764 = vadd.f32 0.0, %v3763
        %v3765 = vpop.f32.mrb[0].mxu0
        %v3766 = vadd.f32 0.0, %v3765
        %v3767 = vpop.f32.mrb[0].mxu0
        %v3768 = vpop.f32.mrb[0].mxu0
        %3769 = vdwg.mxu0
        %v3770 = vadd.f32 %v3705, %v3764
        %v3771 = vadd.f32 %v3706, %v3766
        %3772 = vrot.lane.b32.xlu0 %v3327, 112
        %v3773 = vpop.permute.xlu0 %3772
        %3774 = vrot.lane.b32.xlu0 %v3328, 112
        %v3775 = vpop.permute.xlu0 %3774
        %v3776 = vsel %vm3182, %v3773, %v3775
        %v3777 = vsel %vm3182, %v3775, %v3773
        %v3778 = vsel %vm3187, %v3776, 0.0
        %v3779 = vsel %vm3188, %v3777, 0.0
        %v3780 = vpack.c.bf16 %v3778, %v3778
        %v3781 = vpack.c.bf16 %v3779, %v3779
        %s3782 = scalar_lea.vmem [#allocation7], 56
        %v3783 = vld [vmem:[%s3782] sm:$0xff]
        %v3784 = vpack.c.bf16 %v3783, %v3783
        %v3786 = vsel %vm1821, %v3784, 0
        %v3789 = vsel %vm1837, %v3780, 0
        %v3792 = vsel %vm1837, %v3781, 0
        %3794 = vmatprep.subr.bf16.mxu0 %v3792
        %3795 = vmatpush1.bf16.msra.mxu0 %v3789
        %3796 = vmatprep.subr.bf16.mxu0 0
        %3797 = vmatpush1.bf16.msra.mxu0 0
        %3798 = vmatprep.subr.bf16.mxu0 0
        %3799 = vmatpush1.bf16.msra.mxu0 0
        %3800 = vmatprep.subr.bf16.mxu0 0
        %3801 = vmatpush1.bf16.msra.mxu0 0
        %3802 = vmatprep.subr.bf16.mxu0 0
        %3803 = vmatpush1.bf16.msra.mxu0 0
        %3804 = vmatprep.subr.bf16.mxu0 0
        %3805 = vmatpush1.bf16.msra.mxu0 0
        %3806 = vmatprep.subr.bf16.mxu0 0
        %3807 = vmatpush1.bf16.msra.mxu0 0
        %3808 = vmatprep.subr.bf16.mxu0 0
        %3809 = vmatpush1.bf16.msra.mxu0 0
        %3810 = vmatprep.subr.bf16.mxu0 0
        %3811 = vmatpush1.bf16.msra.mxu0 0
        %3812 = vmatprep.subr.bf16.mxu0 0
        %3813 = vmatpush1.bf16.msra.mxu0 0
        %3814 = vmatprep.subr.bf16.mxu0 0
        %3815 = vmatpush1.bf16.msra.mxu0 0
        %3816 = vmatprep.subr.bf16.mxu0 0
        %3817 = vmatpush1.bf16.msra.mxu0 0
        %3818 = vmatprep.subr.bf16.mxu0 0
        %3819 = vmatpush1.bf16.msra.mxu0 0
        %3820 = vmatprep.subr.bf16.mxu0 0
        %3821 = vmatpush1.bf16.msra.mxu0 0
        %3822 = vmatprep.subr.bf16.mxu0 0
        %3823 = vmatpush1.bf16.msra.mxu0 0
        %3824 = vmatprep.subr.bf16.mxu0 0
        %3825 = vmatpush1.bf16.msra.mxu0 0
        %3826 = vmatprep.mubr.bf16.mxu0 0
        %3827 = vmatmul.mubr.bf16.gmra.mrb[0].mxu0 %v3786
        %v3828 = vpop.f32.mrb[0].mxu0
        %v3829 = vadd.f32 0.0, %v3828
        %v3830 = vpop.f32.mrb[0].mxu0
        %v3831 = vadd.f32 0.0, %v3830
        %v3832 = vpop.f32.mrb[0].mxu0
        %v3833 = vpop.f32.mrb[0].mxu0
        %3834 = vdwg.mxu0
        %v3835 = vadd.f32 %v3770, %v3829
        %v3836 = vadd.f32 %v3771, %v3831
        %3837 = vrot.lane.b32.xlu0 %v3327, 111
        %v3838 = vpop.permute.xlu0 %3837
        %3839 = vrot.lane.b32.xlu0 %v3328, 111
        %v3840 = vpop.permute.xlu0 %3839
        %v3841 = vsel %vm3252, %v3838, %v3840
        %v3842 = vsel %vm3252, %v3840, %v3838
        %v3843 = vsel %vm3257, %v3841, 0.0
        %v3844 = vsel %vm3258, %v3842, 0.0
        %v3845 = vpack.c.bf16 %v3843, %v3843
        %v3846 = vpack.c.bf16 %v3844, %v3844
        %s3847 = scalar_lea.vmem [#allocation7], 64
        %v3848 = vld [vmem:[%s3847] sm:$0xff]
        %v3849 = vpack.c.bf16 %v3848, %v3848
        %v3851 = vsel %vm1821, %v3849, 0
        %v3854 = vsel %vm1837, %v3845, 0
        %v3857 = vsel %vm1837, %v3846, 0
        %3859 = vmatprep.subr.bf16.mxu0 %v3857
        %3860 = vmatpush1.bf16.msra.mxu0 %v3854
        %3861 = vmatprep.subr.bf16.mxu0 0
        %3862 = vmatpush1.bf16.msra.mxu0 0
        %3863 = vmatprep.subr.bf16.mxu0 0
        %3864 = vmatpush1.bf16.msra.mxu0 0
        %3865 = vmatprep.subr.bf16.mxu0 0
        %3866 = vmatpush1.bf16.msra.mxu0 0
        %3867 = vmatprep.subr.bf16.mxu0 0
        %3868 = vmatpush1.bf16.msra.mxu0 0
        %3869 = vmatprep.subr.bf16.mxu0 0
        %3870 = vmatpush1.bf16.msra.mxu0 0
        %3871 = vmatprep.subr.bf16.mxu0 0
        %3872 = vmatpush1.bf16.msra.mxu0 0
        %3873 = vmatprep.subr.bf16.mxu0 0
        %3874 = vmatpush1.bf16.msra.mxu0 0
        %3875 = vmatprep.subr.bf16.mxu0 0
        %3876 = vmatpush1.bf16.msra.mxu0 0
        %3877 = vmatprep.subr.bf16.mxu0 0
        %3878 = vmatpush1.bf16.msra.mxu0 0
        %3879 = vmatprep.subr.bf16.mxu0 0
        %3880 = vmatpush1.bf16.msra.mxu0 0
        %3881 = vmatprep.subr.bf16.mxu0 0
        %3882 = vmatpush1.bf16.msra.mxu0 0
        %3883 = vmatprep.subr.bf16.mxu0 0
        %3884 = vmatpush1.bf16.msra.mxu0 0
        %3885 = vmatprep.subr.bf16.mxu0 0
        %3886 = vmatpush1.bf16.msra.mxu0 0
        %3887 = vmatprep.subr.bf16.mxu0 0
        %3888 = vmatpush1.bf16.msra.mxu0 0
        %3889 = vmatprep.subr.bf16.mxu0 0
        %3890 = vmatpush1.bf16.msra.mxu0 0
        %3891 = vmatprep.mubr.bf16.mxu0 0
        %3892 = vmatmul.mubr.bf16.gmra.mrb[0].mxu0 %v3851
        %v3893 = vpop.f32.mrb[0].mxu0
        %v3894 = vadd.f32 0.0, %v3893
        %v3895 = vpop.f32.mrb[0].mxu0
        %v3896 = vadd.f32 0.0, %v3895
        %v3897 = vpop.f32.mrb[0].mxu0
        %v3898 = vpop.f32.mrb[0].mxu0
        %3899 = vdwg.mxu0
        %v3900 = vadd.f32 %v3835, %v3894
        %v3901 = vadd.f32 %v3836, %v3896
        %3903 = vset.pattern.permute.xlu0 0
        %3904 = vperm.xlu0 %3903, %v3329
        %v3905 = vpop.permute.xlu0 %3904
        %v3907 = vadd.f32 %v3900, %v3905
        %v3908 = vadd.f32 %v3901, %v3905
        %v3909 = vmax.f32 %v3907, 0.0
        %v3910 = vmax.f32 %v3908, 0.0
        %v3911 = vld [vmem:[#allocation10] sm:$0xf]
        %v3912 = vld [vmem:[#allocation11] sm:$0xf]
        %3914 = vset.pattern.permute.xlu0 0
        %3915 = vperm.xlu0 %3914, %v3911
        %v3916 = vpop.permute.xlu0 %3915
        %v3918 = vlaneseq
        %v3919 = vshrl.u32 %v3918, 7
        %v3920 = vsub.s32 0, %v3919
        %v3921 = vrot.slane %v3909, %v3920
        %v3922 = vlaneseq
        %v3923 = vshrl.u32 %v3922, 7
        %v3924 = vsub.s32 0, %v3923
        %v3925 = vrot.slane %v3910, %v3924
        %v3926 = vmul.f32 %v3916, %v3921
        %v3927 = vmul.f32 %v3916, %v3925
        %3928 = vset.pattern.permute.xlu0 1
        %3929 = vperm.xlu0 %3928, %v3911
        %v3930 = vpop.permute.xlu0 %3929
        %v3932 = vlaneseq
        %v3933 = vshrl.u32 %v3932, 7
        %v3934 = vsub.s32 1, %v3933
        %v3935 = vrot.slane %v3909, %v3934
        %v3936 = vlaneseq
        %v3937 = vshrl.u32 %v3936, 7
        %v3938 = vsub.s32 1, %v3937
        %v3939 = vrot.slane %v3910, %v3938
        %v3940 = vmul.f32 %v3930, %v3935
        %v3941 = vmul.f32 %v3930, %v3939
        %v3942 = vadd.f32 %v3926, %v3940
        %v3943 = vadd.f32 %v3927, %v3941
        %3944 = vset.pattern.permute.xlu0 2
        %3945 = vperm.xlu0 %3944, %v3911
        %v3946 = vpop.permute.xlu0 %3945
        %v3948 = vlaneseq
        %v3949 = vshrl.u32 %v3948, 7
        %v3950 = vsub.s32 2, %v3949
        %v3951 = vrot.slane %v3909, %v3950
        %v3952 = vlaneseq
        %v3953 = vshrl.u32 %v3952, 7
        %v3954 = vsub.s32 2, %v3953
        %v3955 = vrot.slane %v3910, %v3954
        %v3956 = vmul.f32 %v3946, %v3951
        %v3957 = vmul.f32 %v3946, %v3955
        %v3958 = vadd.f32 %v3942, %v3956
        %v3959 = vadd.f32 %v3943, %v3957
        %3960 = vset.pattern.permute.xlu0 3
        %3961 = vperm.xlu0 %3960, %v3911
        %v3962 = vpop.permute.xlu0 %3961
        %v3964 = vlaneseq
        %v3965 = vshrl.u32 %v3964, 7
        %v3966 = vsub.s32 3, %v3965
        %v3967 = vrot.slane %v3909, %v3966
        %v3968 = vlaneseq
        %v3969 = vshrl.u32 %v3968, 7
        %v3970 = vsub.s32 3, %v3969
        %v3971 = vrot.slane %v3910, %v3970
        %v3972 = vmul.f32 %v3962, %v3967
        %v3973 = vmul.f32 %v3962, %v3971
        %v3974 = vadd.f32 %v3958, %v3972
        %v3975 = vadd.f32 %v3959, %v3973
        %3976 = vset.pattern.permute.xlu0 4
        %3977 = vperm.xlu0 %3976, %v3911
        %v3978 = vpop.permute.xlu0 %3977
        %v3980 = vlaneseq
        %v3981 = vshrl.u32 %v3980, 7
        %v3982 = vsub.s32 4, %v3981
        %v3983 = vrot.slane %v3909, %v3982
        %v3984 = vlaneseq
        %v3985 = vshrl.u32 %v3984, 7
        %v3986 = vsub.s32 4, %v3985
        %v3987 = vrot.slane %v3910, %v3986
        %v3988 = vmul.f32 %v3978, %v3983
        %v3989 = vmul.f32 %v3978, %v3987
        %v3990 = vadd.f32 %v3974, %v3988
        %v3991 = vadd.f32 %v3975, %v3989
        %3992 = vset.pattern.permute.xlu0 5
        %3993 = vperm.xlu0 %3992, %v3911
        %v3994 = vpop.permute.xlu0 %3993
        %v3996 = vlaneseq
        %v3997 = vshrl.u32 %v3996, 7
        %v3998 = vsub.s32 5, %v3997
        %v3999 = vrot.slane %v3909, %v3998
        %v4000 = vlaneseq
        %v4001 = vshrl.u32 %v4000, 7
        %v4002 = vsub.s32 5, %v4001
        %v4003 = vrot.slane %v3910, %v4002
        %v4004 = vmul.f32 %v3994, %v3999
        %v4005 = vmul.f32 %v3994, %v4003
        %v4006 = vadd.f32 %v3990, %v4004
        %v4007 = vadd.f32 %v3991, %v4005
        %4008 = vset.pattern.permute.xlu0 6
        %4009 = vperm.xlu0 %4008, %v3911
        %v4010 = vpop.permute.xlu0 %4009
        %v4012 = vlaneseq
        %v4013 = vshrl.u32 %v4012, 7
        %v4014 = vsub.s32 6, %v4013
        %v4015 = vrot.slane %v3909, %v4014
        %v4016 = vlaneseq
        %v4017 = vshrl.u32 %v4016, 7
        %v4018 = vsub.s32 6, %v4017
        %v4019 = vrot.slane %v3910, %v4018
        %v4020 = vmul.f32 %v4010, %v4015
        %v4021 = vmul.f32 %v4010, %v4019
        %v4022 = vadd.f32 %v4006, %v4020
        %v4023 = vadd.f32 %v4007, %v4021
        %4024 = vset.pattern.permute.xlu0 7
        %4025 = vperm.xlu0 %4024, %v3911
        %v4026 = vpop.permute.xlu0 %4025
        %v4028 = vlaneseq
        %v4029 = vshrl.u32 %v4028, 7
        %v4030 = vsub.s32 7, %v4029
        %v4031 = vrot.slane %v3909, %v4030
        %v4032 = vlaneseq
        %v4033 = vshrl.u32 %v4032, 7
        %v4034 = vsub.s32 7, %v4033
        %v4035 = vrot.slane %v3910, %v4034
        %v4036 = vmul.f32 %v4026, %v4031
        %v4037 = vmul.f32 %v4026, %v4035
        %v4038 = vadd.f32 %v4022, %v4036
        %v4039 = vadd.f32 %v4023, %v4037
        %4041 = vset.pattern.permute.xlu0 0
        %4042 = vperm.xlu0 %4041, %v3912
        %v4043 = vpop.permute.xlu0 %4042
        %v4045 = vadd.f32 %v4038, %v4043
        %v4046 = vadd.f32 %v4039, %v4043
        %v4047 = vxor.u32 %v4045, 2147483648
        %v4048 = vxor.u32 %v4046, 2147483648
        %v4049 = vmul.f32 %v4047, 1.442695
        %v4050 = vpow.pop %v4049
        %v4051 = vmul.f32 %v4048, 1.442695
        %v4052 = vpow.pop %v4051
        %v4053 = vadd.f32 %v4050, 1.0
        %v4054 = vadd.f32 %v4052, 1.0
        %v4055 = vrcp.pop %v4053
        %v4056 = vmul.f32 1.0, %v4055
        %v4057 = vrcp.pop %v4054
        %v4058 = vmul.f32 1.0, %v4057
        %4059 = vrot.lane.b32.xlu0 %v4056, 1
        %v4060 = vpop.permute.xlu0 %4059
        %4061 = vrot.lane.b32.xlu0 %v4058, 1
        %v4062 = vpop.permute.xlu0 %4061
        %v4063 = vsel %vm2915, %v4060, %v4062
        %v4064 = vsel %vm2915, %v4062, %v4060
        %v4065 = vsel %vm2920, %v4064, 0.0
        %v4066 = vsel %vm2921, %v4063, 0.0
        %v4067 = vadd.f32 %v4056, %v4065
        %v4068 = vadd.f32 %v4058, %v4066
        %4069 = vrot.lane.b32.xlu0 %v4056, 127
        %v4070 = vpop.permute.xlu0 %4069
        %4071 = vrot.lane.b32.xlu0 %v4058, 127
        %v4072 = vpop.permute.xlu0 %4071
        %v4073 = vsel %vm3042, %v4070, %v4072
        %v4074 = vsel %vm3042, %v4072, %v4070
        %v4075 = vsel %vm3047, %v4073, 0.0
        %v4076 = vsel %vm3048, %v4074, 0.0
        %v4077 = vadd.f32 %v4067, %v4075
        %v4078 = vadd.f32 %v4068, %v4076
        %4079 = vrot.lane.b32.xlu0 %v4077, 16
        %v4080 = vpop.permute.xlu0 %4079
        %4081 = vrot.lane.b32.xlu0 %v4078, 16
        %v4082 = vpop.permute.xlu0 %4081
        %v4083 = vsel %vm2727, %v4080, %v4082
        %v4084 = vsel %vm2727, %v4082, %v4080
        %v4085 = vsel %vm2732, %v4084, 0.0
        %v4086 = vsel %vm2733, %v4083, 0.0
        %v4087 = vadd.f32 %v4077, %v4085
        %v4088 = vadd.f32 %v4078, %v4086
        %4089 = vrot.lane.b32.xlu0 %v4077, 112
        %v4090 = vpop.permute.xlu0 %4089
        %4091 = vrot.lane.b32.xlu0 %v4078, 112
        %v4092 = vpop.permute.xlu0 %4091
        %v4093 = vsel %vm3182, %v4090, %v4092
        %v4094 = vsel %vm3182, %v4092, %v4090
        %v4095 = vsel %vm3187, %v4093, 0.0
        %v4096 = vsel %vm3188, %v4094, 0.0
        %v4097 = vadd.f32 %v4087, %v4095
        %v4098 = vadd.f32 %v4088, %v4096
        %v4099 = vmul.f32 %v4097, 0.11111111
        %v4100 = vmul.f32 %v4098, 0.11111111
        %v4101 = vld [vmem:[#allocation13] sm:$0xf]
        %v4102 = vld [vmem:[#allocation14] sm:$0xf]
        %4104 = vset.pattern.permute.xlu0 0
        %4105 = vperm.xlu0 %4104, %v4101
        %v4106 = vpop.permute.xlu0 %4105
        %v4108 = vlaneseq
        %v4109 = vshrl.u32 %v4108, 7
        %v4110 = vsub.s32 0, %v4109
        %v4111 = vrot.slane %v4099, %v4110
        %v4112 = vlaneseq
        %v4113 = vshrl.u32 %v4112, 7
        %v4114 = vsub.s32 0, %v4113
        %v4115 = vrot.slane %v4100, %v4114
        %v4116 = vmul.f32 %v4106, %v4111
        %v4117 = vmul.f32 %v4106, %v4115
        %4118 = vset.pattern.permute.xlu0 1
        %4119 = vperm.xlu0 %4118, %v4101
        %v4120 = vpop.permute.xlu0 %4119
        %v4122 = vlaneseq
        %v4123 = vshrl.u32 %v4122, 7
        %v4124 = vsub.s32 1, %v4123
        %v4125 = vrot.slane %v4099, %v4124
        %v4126 = vlaneseq
        %v4127 = vshrl.u32 %v4126, 7
        %v4128 = vsub.s32 1, %v4127
        %v4129 = vrot.slane %v4100, %v4128
        %v4130 = vmul.f32 %v4120, %v4125
        %v4131 = vmul.f32 %v4120, %v4129
        %v4132 = vadd.f32 %v4116, %v4130
        %v4133 = vadd.f32 %v4117, %v4131
        %4134 = vset.pattern.permute.xlu0 2
        %4135 = vperm.xlu0 %4134, %v4101
        %v4136 = vpop.permute.xlu0 %4135
        %v4138 = vlaneseq
        %v4139 = vshrl.u32 %v4138, 7
        %v4140 = vsub.s32 2, %v4139
        %v4141 = vrot.slane %v4099, %v4140
        %v4142 = vlaneseq
        %v4143 = vshrl.u32 %v4142, 7
        %v4144 = vsub.s32 2, %v4143
        %v4145 = vrot.slane %v4100, %v4144
        %v4146 = vmul.f32 %v4136, %v4141
        %v4147 = vmul.f32 %v4136, %v4145
        %v4148 = vadd.f32 %v4132, %v4146
        %v4149 = vadd.f32 %v4133, %v4147
        %4150 = vset.pattern.permute.xlu0 3
        %4151 = vperm.xlu0 %4150, %v4101
        %v4152 = vpop.permute.xlu0 %4151
        %v4154 = vlaneseq
        %v4155 = vshrl.u32 %v4154, 7
        %v4156 = vsub.s32 3, %v4155
        %v4157 = vrot.slane %v4099, %v4156
        %v4158 = vlaneseq
        %v4159 = vshrl.u32 %v4158, 7
        %v4160 = vsub.s32 3, %v4159
        %v4161 = vrot.slane %v4100, %v4160
        %v4162 = vmul.f32 %v4152, %v4157
        %v4163 = vmul.f32 %v4152, %v4161
        %v4164 = vadd.f32 %v4148, %v4162
        %v4165 = vadd.f32 %v4149, %v4163
        %4167 = vset.pattern.permute.xlu0 0
        %4168 = vperm.xlu0 %4167, %v4102
        %v4169 = vpop.permute.xlu0 %4168
        %v4171 = vadd.f32 %v4164, %v4169
        %v4172 = vadd.f32 %v4165, %v4169
        %v4173 = vxor.u32 %v4171, 2147483648
        %v4174 = vxor.u32 %v4172, 2147483648
        %v4175 = vmul.f32 %v4173, 1.442695
        %v4176 = vpow.pop %v4175
        %v4177 = vmul.f32 %v4174, 1.442695
        %v4178 = vpow.pop %v4177
        %v4179 = vadd.f32 %v4176, 1.0
        %v4180 = vadd.f32 %v4178, 1.0
        %v4181 = vrcp.pop %v4179
        %v4182 = vmul.f32 1.0, %v4181
        %v4183 = vrcp.pop %v4180
        %v4184 = vmul.f32 1.0, %v4183
        %4185 = vrot.lane.b32.xlu0 %v4182, 1
        %v4186 = vpop.permute.xlu0 %4185
        %4187 = vrot.lane.b32.xlu0 %v4184, 1
        %v4188 = vpop.permute.xlu0 %4187
        %v4189 = vsel %vm2915, %v4186, %v4188
        %v4190 = vsel %vm2915, %v4188, %v4186
        %v4191 = vsel %vm2920, %v4190, 0.0
        %v4192 = vsel %vm2921, %v4189, 0.0
        %v4193 = vadd.f32 %v4182, %v4191
        %v4194 = vadd.f32 %v4184, %v4192
        %4195 = vrot.lane.b32.xlu0 %v4182, 127
        %v4196 = vpop.permute.xlu0 %4195
        %4197 = vrot.lane.b32.xlu0 %v4184, 127
        %v4198 = vpop.permute.xlu0 %4197
        %v4199 = vsel %vm3042, %v4196, %v4198
        %v4200 = vsel %vm3042, %v4198, %v4196
        %v4201 = vsel %vm3047, %v4199, 0.0
        %v4202 = vsel %vm3048, %v4200, 0.0
        %v4203 = vadd.f32 %v4193, %v4201
        %v4204 = vadd.f32 %v4194, %v4202
        %4205 = vrot.lane.b32.xlu0 %v4203, 16
        %v4206 = vpop.permute.xlu0 %4205
        %4207 = vrot.lane.b32.xlu0 %v4204, 16
        %v4208 = vpop.permute.xlu0 %4207
        %v4209 = vsel %vm2727, %v4206, %v4208
        %v4210 = vsel %vm2727, %v4208, %v4206
        %v4211 = vsel %vm2732, %v4210, 0.0
        %v4212 = vsel %vm2733, %v4209, 0.0
        %v4213 = vadd.f32 %v4203, %v4211
        %v4214 = vadd.f32 %v4204, %v4212
        %4215 = vrot.lane.b32.xlu0 %v4203, 112
        %v4216 = vpop.permute.xlu0 %4215
        %4217 = vrot.lane.b32.xlu0 %v4204, 112
        %v4218 = vpop.permute.xlu0 %4217
        %v4219 = vsel %vm3182, %v4216, %v4218
        %v4220 = vsel %vm3182, %v4218, %v4216
        %v4221 = vsel %vm3187, %v4219, 0.0
        %v4222 = vsel %vm3188, %v4220, 0.0
        %v4223 = vadd.f32 %v4213, %v4221
        %v4224 = vadd.f32 %v4214, %v4222
        %v4225 = vmul.f32 %v4223, 0.11111111
        %v4226 = vmul.f32 %v4224, 0.11111111
        %v4227 = vsub.f32 %v4182, %v4225
        %v4228 = vsub.f32 %v4184, %v4226
        %v4229 = vld [vmem:[#allocation16] sm:$0xf]
        %v4230 = vld [vmem:[#allocation17] sm:$0xf]
        %4232 = vset.pattern.permute.xlu0 0
        %4233 = vperm.xlu0 %4232, %v4229
        %v4234 = vpop.permute.xlu0 %4233
        %v4236 = vlaneseq
        %v4237 = vshrl.u32 %v4236, 7
        %v4238 = vsub.s32 0, %v4237
        %v4239 = vrot.slane %v4227, %v4238
        %v4240 = vlaneseq
        %v4241 = vshrl.u32 %v4240, 7
        %v4242 = vsub.s32 0, %v4241
        %v4243 = vrot.slane %v4228, %v4242
        %v4244 = vmul.f32 %v4234, %v4239
        %v4245 = vmul.f32 %v4234, %v4243
        %4246 = vset.pattern.permute.xlu0 1
        %4247 = vperm.xlu0 %4246, %v4229
        %v4248 = vpop.permute.xlu0 %4247
        %v4250 = vlaneseq
        %v4251 = vshrl.u32 %v4250, 7
        %v4252 = vsub.s32 1, %v4251
        %v4253 = vrot.slane %v4227, %v4252
        %v4254 = vlaneseq
        %v4255 = vshrl.u32 %v4254, 7
        %v4256 = vsub.s32 1, %v4255
        %v4257 = vrot.slane %v4228, %v4256
        %v4258 = vmul.f32 %v4248, %v4253
        %v4259 = vmul.f32 %v4248, %v4257
        %v4260 = vadd.f32 %v4244, %v4258
        %v4261 = vadd.f32 %v4245, %v4259
        %4262 = vset.pattern.permute.xlu0 2
        %4263 = vperm.xlu0 %4262, %v4229
        %v4264 = vpop.permute.xlu0 %4263
        %v4266 = vlaneseq
        %v4267 = vshrl.u32 %v4266, 7
        %v4268 = vsub.s32 2, %v4267
        %v4269 = vrot.slane %v4227, %v4268
        %v4270 = vlaneseq
        %v4271 = vshrl.u32 %v4270, 7
        %v4272 = vsub.s32 2, %v4271
        %v4273 = vrot.slane %v4228, %v4272
        %v4274 = vmul.f32 %v4264, %v4269
        %v4275 = vmul.f32 %v4264, %v4273
        %v4276 = vadd.f32 %v4260, %v4274
        %v4277 = vadd.f32 %v4261, %v4275
        %4278 = vset.pattern.permute.xlu0 3
        %4279 = vperm.xlu0 %4278, %v4229
        %v4280 = vpop.permute.xlu0 %4279
        %v4282 = vlaneseq
        %v4283 = vshrl.u32 %v4282, 7
        %v4284 = vsub.s32 3, %v4283
        %v4285 = vrot.slane %v4227, %v4284
        %v4286 = vlaneseq
        %v4287 = vshrl.u32 %v4286, 7
        %v4288 = vsub.s32 3, %v4287
        %v4289 = vrot.slane %v4228, %v4288
        %v4290 = vmul.f32 %v4280, %v4285
        %v4291 = vmul.f32 %v4280, %v4289
        %v4292 = vadd.f32 %v4276, %v4290
        %v4293 = vadd.f32 %v4277, %v4291
        %4295 = vset.pattern.permute.xlu0 0
        %4296 = vperm.xlu0 %4295, %v4230
        %v4297 = vpop.permute.xlu0 %4296
        %v4299 = vadd.f32 %v4292, %v4297
        %v4300 = vadd.f32 %v4293, %v4297
        %v4301 = vxor.u32 %v4299, 2147483648
        %v4302 = vxor.u32 %v4300, 2147483648
        %v4303 = vmul.f32 %v4301, 1.442695
        %v4304 = vpow.pop %v4303
        %v4305 = vmul.f32 %v4302, 1.442695
        %v4306 = vpow.pop %v4305
        %v4307 = vadd.f32 %v4304, 1.0
        %v4308 = vadd.f32 %v4306, 1.0
        %v4309 = vrcp.pop %v4307
        %v4310 = vmul.f32 1.0, %v4309
        %v4311 = vrcp.pop %v4308
        %v4312 = vmul.f32 1.0, %v4311
        %v4313 = vadd.f32 %v4182, %v4310
        %v4314 = vadd.f32 %v4184, %v4312
        %s4315 = scalar_lea.vmem [#allocation13], 4
        %v4316 = vld [vmem:[%s4315] sm:$0xf]
        %s4317 = scalar_lea.vmem [#allocation14], 4
        %v4318 = vld [vmem:[%s4317] sm:$0xf]
        %4320 = vset.pattern.permute.xlu0 0
        %4321 = vperm.xlu0 %4320, %v4316
        %v4322 = vpop.permute.xlu0 %4321
        %v4324 = vlaneseq
        %v4325 = vshrl.u32 %v4324, 7
        %v4326 = vsub.s32 0, %v4325
        %v4327 = vrot.slane %v4225, %v4326
        %v4328 = vlaneseq
        %v4329 = vshrl.u32 %v4328, 7
        %v4330 = vsub.s32 0, %v4329
        %v4331 = vrot.slane %v4226, %v4330
        %v4332 = vmul.f32 %v4322, %v4327
        %v4333 = vmul.f32 %v4322, %v4331
        %4334 = vset.pattern.permute.xlu0 1
        %4335 = vperm.xlu0 %4334, %v4316
        %v4336 = vpop.permute.xlu0 %4335
        %v4338 = vlaneseq
        %v4339 = vshrl.u32 %v4338, 7
        %v4340 = vsub.s32 1, %v4339
        %v4341 = vrot.slane %v4225, %v4340
        %v4342 = vlaneseq
        %v4343 = vshrl.u32 %v4342, 7
        %v4344 = vsub.s32 1, %v4343
        %v4345 = vrot.slane %v4226, %v4344
        %v4346 = vmul.f32 %v4336, %v4341
        %v4347 = vmul.f32 %v4336, %v4345
        %v4348 = vadd.f32 %v4332, %v4346
        %v4349 = vadd.f32 %v4333, %v4347
        %4350 = vset.pattern.permute.xlu0 2
        %4351 = vperm.xlu0 %4350, %v4316
        %v4352 = vpop.permute.xlu0 %4351
        %v4354 = vlaneseq
        %v4355 = vshrl.u32 %v4354, 7
        %v4356 = vsub.s32 2, %v4355
        %v4357 = vrot.slane %v4225, %v4356
        %v4358 = vlaneseq
        %v4359 = vshrl.u32 %v4358, 7
        %v4360 = vsub.s32 2, %v4359
        %v4361 = vrot.slane %v4226, %v4360
        %v4362 = vmul.f32 %v4352, %v4357
        %v4363 = vmul.f32 %v4352, %v4361
        %v4364 = vadd.f32 %v4348, %v4362
        %v4365 = vadd.f32 %v4349, %v4363
        %4366 = vset.pattern.permute.xlu0 3
        %4367 = vperm.xlu0 %4366, %v4316
        %v4368 = vpop.permute.xlu0 %4367
        %v4370 = vlaneseq
        %v4371 = vshrl.u32 %v4370, 7
        %v4372 = vsub.s32 3, %v4371
        %v4373 = vrot.slane %v4225, %v4372
        %v4374 = vlaneseq
        %v4375 = vshrl.u32 %v4374, 7
        %v4376 = vsub.s32 3, %v4375
        %v4377 = vrot.slane %v4226, %v4376
        %v4378 = vmul.f32 %v4368, %v4373
        %v4379 = vmul.f32 %v4368, %v4377
        %v4380 = vadd.f32 %v4364, %v4378
        %v4381 = vadd.f32 %v4365, %v4379
        %4383 = vset.pattern.permute.xlu0 0
        %4384 = vperm.xlu0 %4383, %v4318
        %v4385 = vpop.permute.xlu0 %4384
        %v4387 = vadd.f32 %v4380, %v4385
        %v4388 = vadd.f32 %v4381, %v4385
        %v4389 = vxor.u32 %v4387, 2147483648
        %v4390 = vxor.u32 %v4388, 2147483648
        %v4391 = vmul.f32 %v4389, 1.442695
        %v4392 = vpow.pop %v4391
        %v4393 = vmul.f32 %v4390, 1.442695
        %v4394 = vpow.pop %v4393
        %v4395 = vadd.f32 %v4392, 1.0
        %v4396 = vadd.f32 %v4394, 1.0
        %v4397 = vrcp.pop %v4395
        %v4398 = vmul.f32 1.0, %v4397
        %v4399 = vrcp.pop %v4396
        %v4400 = vmul.f32 1.0, %v4399
        %4401 = vrot.lane.b32.xlu0 %v4398, 1
        %v4402 = vpop.permute.xlu0 %4401
        %4403 = vrot.lane.b32.xlu0 %v4400, 1
        %v4404 = vpop.permute.xlu0 %4403
        %v4405 = vsel %vm2915, %v4402, %v4404
        %v4406 = vsel %vm2915, %v4404, %v4402
        %v4407 = vsel %vm2920, %v4406, 0.0
        %v4408 = vsel %vm2921, %v4405, 0.0
        %v4409 = vadd.f32 %v4398, %v4407
        %v4410 = vadd.f32 %v4400, %v4408
        %4411 = vrot.lane.b32.xlu0 %v4398, 127
        %v4412 = vpop.permute.xlu0 %4411
        %4413 = vrot.lane.b32.xlu0 %v4400, 127
        %v4414 = vpop.permute.xlu0 %4413
        %v4415 = vsel %vm3042, %v4412, %v4414
        %v4416 = vsel %vm3042, %v4414, %v4412
        %v4417 = vsel %vm3047, %v4415, 0.0
        %v4418 = vsel %vm3048, %v4416, 0.0
        %v4419 = vadd.f32 %v4409, %v4417
        %v4420 = vadd.f32 %v4410, %v4418
        %4421 = vrot.lane.b32.xlu0 %v4419, 16
        %v4422 = vpop.permute.xlu0 %4421
        %4423 = vrot.lane.b32.xlu0 %v4420, 16
        %v4424 = vpop.permute.xlu0 %4423
        %v4425 = vsel %vm2727, %v4422, %v4424
        %v4426 = vsel %vm2727, %v4424, %v4422
        %v4427 = vsel %vm2732, %v4426, 0.0
        %v4428 = vsel %vm2733, %v4425, 0.0
        %v4429 = vadd.f32 %v4419, %v4427
        %v4430 = vadd.f32 %v4420, %v4428
        %4431 = vrot.lane.b32.xlu0 %v4419, 112
        %v4432 = vpop.permute.xlu0 %4431
        %4433 = vrot.lane.b32.xlu0 %v4420, 112
        %v4434 = vpop.permute.xlu0 %4433
        %v4435 = vsel %vm3182, %v4432, %v4434
        %v4436 = vsel %vm3182, %v4434, %v4432
        %v4437 = vsel %vm3187, %v4435, 0.0
        %v4438 = vsel %vm3188, %v4436, 0.0
        %v4439 = vadd.f32 %v4429, %v4437
        %v4440 = vadd.f32 %v4430, %v4438
        %v4441 = vmul.f32 %v4439, 0.11111111
        %v4442 = vmul.f32 %v4440, 0.11111111
        %v4443 = vsub.f32 %v4398, %v4441
        %v4444 = vsub.f32 %v4400, %v4442
        %s4445 = scalar_lea.vmem [#allocation16], 4
        %v4446 = vld [vmem:[%s4445] sm:$0xf]
        %s4447 = scalar_lea.vmem [#allocation17], 4
        %v4448 = vld [vmem:[%s4447] sm:$0xf]
        %4450 = vset.pattern.permute.xlu0 0
        %4451 = vperm.xlu0 %4450, %v4446
        %v4452 = vpop.permute.xlu0 %4451
        %v4454 = vlaneseq
        %v4455 = vshrl.u32 %v4454, 7
        %v4456 = vsub.s32 0, %v4455
        %v4457 = vrot.slane %v4443, %v4456
        %v4458 = vlaneseq
        %v4459 = vshrl.u32 %v4458, 7
        %v4460 = vsub.s32 0, %v4459
        %v4461 = vrot.slane %v4444, %v4460
        %v4462 = vmul.f32 %v4452, %v4457
        %v4463 = vmul.f32 %v4452, %v4461
        %4464 = vset.pattern.permute.xlu0 1
        %4465 = vperm.xlu0 %4464, %v4446
        %v4466 = vpop.permute.xlu0 %4465
        %v4468 = vlaneseq
        %v4469 = vshrl.u32 %v4468, 7
        %v4470 = vsub.s32 1, %v4469
        %v4471 = vrot.slane %v4443, %v4470
        %v4472 = vlaneseq
        %v4473 = vshrl.u32 %v4472, 7
        %v4474 = vsub.s32 1, %v4473
        %v4475 = vrot.slane %v4444, %v4474
        %v4476 = vmul.f32 %v4466, %v4471
        %v4477 = vmul.f32 %v4466, %v4475
        %v4478 = vadd.f32 %v4462, %v4476
        %v4479 = vadd.f32 %v4463, %v4477
        %4480 = vset.pattern.permute.xlu0 2
        %4481 = vperm.xlu0 %4480, %v4446
        %v4482 = vpop.permute.xlu0 %4481
        %v4484 = vlaneseq
        %v4485 = vshrl.u32 %v4484, 7
        %v4486 = vsub.s32 2, %v4485
        %v4487 = vrot.slane %v4443, %v4486
        %v4488 = vlaneseq
        %v4489 = vshrl.u32 %v4488, 7
        %v4490 = vsub.s32 2, %v4489
        %v4491 = vrot.slane %v4444, %v4490
        %v4492 = vmul.f32 %v4482, %v4487
        %v4493 = vmul.f32 %v4482, %v4491
        %v4494 = vadd.f32 %v4478, %v4492
        %v4495 = vadd.f32 %v4479, %v4493
        %4496 = vset.pattern.permute.xlu0 3
        %4497 = vperm.xlu0 %4496, %v4446
        %v4498 = vpop.permute.xlu0 %4497
        %v4500 = vlaneseq
        %v4501 = vshrl.u32 %v4500, 7
        %v4502 = vsub.s32 3, %v4501
        %v4503 = vrot.slane %v4443, %v4502
        %v4504 = vlaneseq
        %v4505 = vshrl.u32 %v4504, 7
        %v4506 = vsub.s32 3, %v4505
        %v4507 = vrot.slane %v4444, %v4506
        %v4508 = vmul.f32 %v4498, %v4503
        %v4509 = vmul.f32 %v4498, %v4507
        %v4510 = vadd.f32 %v4494, %v4508
        %v4511 = vadd.f32 %v4495, %v4509
        %4513 = vset.pattern.permute.xlu0 0
        %4514 = vperm.xlu0 %4513, %v4448
        %v4515 = vpop.permute.xlu0 %4514
        %v4517 = vadd.f32 %v4510, %v4515
        %v4518 = vadd.f32 %v4511, %v4515
        %v4519 = vxor.u32 %v4517, 2147483648
        %v4520 = vxor.u32 %v4518, 2147483648
        %v4521 = vmul.f32 %v4519, 1.442695
        %v4522 = vpow.pop %v4521
        %v4523 = vmul.f32 %v4520, 1.442695
        %v4524 = vpow.pop %v4523
        %v4525 = vadd.f32 %v4522, 1.0
        %v4526 = vadd.f32 %v4524, 1.0
        %v4527 = vrcp.pop %v4525
        %v4528 = vmul.f32 1.0, %v4527
        %v4529 = vrcp.pop %v4526
        %v4530 = vmul.f32 1.0, %v4529
        %v4531 = vadd.f32 %v4398, %v4528
        %v4532 = vadd.f32 %v4400, %v4530
        %s4533 = scalar_lea.vmem [#allocation13], 8
        %v4534 = vld [vmem:[%s4533] sm:$0xf]
        %s4535 = scalar_lea.vmem [#allocation14], 8
        %v4536 = vld [vmem:[%s4535] sm:$0xf]
        %4538 = vset.pattern.permute.xlu0 0
        %4539 = vperm.xlu0 %4538, %v4534
        %v4540 = vpop.permute.xlu0 %4539
        %v4542 = vlaneseq
        %v4543 = vshrl.u32 %v4542, 7
        %v4544 = vsub.s32 0, %v4543
        %v4545 = vrot.slane %v4441, %v4544
        %v4546 = vlaneseq
        %v4547 = vshrl.u32 %v4546, 7
        %v4548 = vsub.s32 0, %v4547
        %v4549 = vrot.slane %v4442, %v4548
        %v4550 = vmul.f32 %v4540, %v4545
        %v4551 = vmul.f32 %v4540, %v4549
        %4552 = vset.pattern.permute.xlu0 1
        %4553 = vperm.xlu0 %4552, %v4534
        %v4554 = vpop.permute.xlu0 %4553
        %v4556 = vlaneseq
        %v4557 = vshrl.u32 %v4556, 7
        %v4558 = vsub.s32 1, %v4557
        %v4559 = vrot.slane %v4441, %v4558
        %v4560 = vlaneseq
        %v4561 = vshrl.u32 %v4560, 7
        %v4562 = vsub.s32 1, %v4561
        %v4563 = vrot.slane %v4442, %v4562
        %v4564 = vmul.f32 %v4554, %v4559
        %v4565 = vmul.f32 %v4554, %v4563
        %v4566 = vadd.f32 %v4550, %v4564
        %v4567 = vadd.f32 %v4551, %v4565
        %4568 = vset.pattern.permute.xlu0 2
        %4569 = vperm.xlu0 %4568, %v4534
        %v4570 = vpop.permute.xlu0 %4569
        %v4572 = vlaneseq
        %v4573 = vshrl.u32 %v4572, 7
        %v4574 = vsub.s32 2, %v4573
        %v4575 = vrot.slane %v4441, %v4574
        %v4576 = vlaneseq
        %v4577 = vshrl.u32 %v4576, 7
        %v4578 = vsub.s32 2, %v4577
        %v4579 = vrot.slane %v4442, %v4578
        %v4580 = vmul.f32 %v4570, %v4575
        %v4581 = vmul.f32 %v4570, %v4579
        %v4582 = vadd.f32 %v4566, %v4580
        %v4583 = vadd.f32 %v4567, %v4581
        %4584 = vset.pattern.permute.xlu0 3
        %4585 = vperm.xlu0 %4584, %v4534
        %v4586 = vpop.permute.xlu0 %4585
        %v4588 = vlaneseq
        %v4589 = vshrl.u32 %v4588, 7
        %v4590 = vsub.s32 3, %v4589
        %v4591 = vrot.slane %v4441, %v4590
        %v4592 = vlaneseq
        %v4593 = vshrl.u32 %v4592, 7
        %v4594 = vsub.s32 3, %v4593
        %v4595 = vrot.slane %v4442, %v4594
        %v4596 = vmul.f32 %v4586, %v4591
        %v4597 = vmul.f32 %v4586, %v4595
        %v4598 = vadd.f32 %v4582, %v4596
        %v4599 = vadd.f32 %v4583, %v4597
        %4601 = vset.pattern.permute.xlu0 0
        %4602 = vperm.xlu0 %4601, %v4536
        %v4603 = vpop.permute.xlu0 %4602
        %v4605 = vadd.f32 %v4598, %v4603
        %v4606 = vadd.f32 %v4599, %v4603
        %v4607 = vxor.u32 %v4605, 2147483648
        %v4608 = vxor.u32 %v4606, 2147483648
        %v4609 = vmul.f32 %v4607, 1.442695
        %v4610 = vpow.pop %v4609
        %v4611 = vmul.f32 %v4608, 1.442695
        %v4612 = vpow.pop %v4611
        %v4613 = vadd.f32 %v4610, 1.0
        %v4614 = vadd.f32 %v4612, 1.0
        %v4615 = vrcp.pop %v4613
        %v4616 = vmul.f32 1.0, %v4615
        %v4617 = vrcp.pop %v4614
        %v4618 = vmul.f32 1.0, %v4617
        %4619 = vrot.lane.b32.xlu0 %v4616, 1
        %v4620 = vpop.permute.xlu0 %4619
        %4621 = vrot.lane.b32.xlu0 %v4618, 1
        %v4622 = vpop.permute.xlu0 %4621
        %v4623 = vsel %vm2915, %v4620, %v4622
        %v4624 = vsel %vm2915, %v4622, %v4620
        %v4625 = vsel %vm2920, %v4624, 0.0
        %v4626 = vsel %vm2921, %v4623, 0.0
        %v4627 = vadd.f32 %v4616, %v4625
        %v4628 = vadd.f32 %v4618, %v4626
        %4629 = vrot.lane.b32.xlu0 %v4616, 127
        %v4630 = vpop.permute.xlu0 %4629
        %4631 = vrot.lane.b32.xlu0 %v4618, 127
        %v4632 = vpop.permute.xlu0 %4631
        %v4633 = vsel %vm3042, %v4630, %v4632
        %v4634 = vsel %vm3042, %v4632, %v4630
        %v4635 = vsel %vm3047, %v4633, 0.0
        %v4636 = vsel %vm3048, %v4634, 0.0
        %v4637 = vadd.f32 %v4627, %v4635
        %v4638 = vadd.f32 %v4628, %v4636
        %4639 = vrot.lane.b32.xlu0 %v4637, 16
        %v4640 = vpop.permute.xlu0 %4639
        %4641 = vrot.lane.b32.xlu0 %v4638, 16
        %v4642 = vpop.permute.xlu0 %4641
        %v4643 = vsel %vm2727, %v4640, %v4642
        %v4644 = vsel %vm2727, %v4642, %v4640
        %v4645 = vsel %vm2732, %v4644, 0.0
        %v4646 = vsel %vm2733, %v4643, 0.0
        %v4647 = vadd.f32 %v4637, %v4645
        %v4648 = vadd.f32 %v4638, %v4646
        %4649 = vrot.lane.b32.xlu0 %v4637, 112
        %v4650 = vpop.permute.xlu0 %4649
        %4651 = vrot.lane.b32.xlu0 %v4638, 112
        %v4652 = vpop.permute.xlu0 %4651
        %v4653 = vsel %vm3182, %v4650, %v4652
        %v4654 = vsel %vm3182, %v4652, %v4650
        %v4655 = vsel %vm3187, %v4653, 0.0
        %v4656 = vsel %vm3188, %v4654, 0.0
        %v4657 = vadd.f32 %v4647, %v4655
        %v4658 = vadd.f32 %v4648, %v4656
        %v4659 = vmul.f32 %v4657, 0.11111111
        %v4660 = vmul.f32 %v4658, 0.11111111
        %v4661 = vsub.f32 %v4616, %v4659
        %v4662 = vsub.f32 %v4618, %v4660
        %s4663 = scalar_lea.vmem [#allocation16], 8
        %v4664 = vld [vmem:[%s4663] sm:$0xf]
        %s4665 = scalar_lea.vmem [#allocation17], 8
        %v4666 = vld [vmem:[%s4665] sm:$0xf]
        %4668 = vset.pattern.permute.xlu0 0
        %4669 = vperm.xlu0 %4668, %v4664
        %v4670 = vpop.permute.xlu0 %4669
        %v4672 = vlaneseq
        %v4673 = vshrl.u32 %v4672, 7
        %v4674 = vsub.s32 0, %v4673
        %v4675 = vrot.slane %v4661, %v4674
        %v4676 = vlaneseq
        %v4677 = vshrl.u32 %v4676, 7
        %v4678 = vsub.s32 0, %v4677
        %v4679 = vrot.slane %v4662, %v4678
        %v4680 = vmul.f32 %v4670, %v4675
        %v4681 = vmul.f32 %v4670, %v4679
        %4682 = vset.pattern.permute.xlu0 1
        %4683 = vperm.xlu0 %4682, %v4664
        %v4684 = vpop.permute.xlu0 %4683
        %v4686 = vlaneseq
        %v4687 = vshrl.u32 %v4686, 7
        %v4688 = vsub.s32 1, %v4687
        %v4689 = vrot.slane %v4661, %v4688
        %v4690 = vlaneseq
        %v4691 = vshrl.u32 %v4690, 7
        %v4692 = vsub.s32 1, %v4691
        %v4693 = vrot.slane %v4662, %v4692
        %v4694 = vmul.f32 %v4684, %v4689
        %v4695 = vmul.f32 %v4684, %v4693
        %v4696 = vadd.f32 %v4680, %v4694
        %v4697 = vadd.f32 %v4681, %v4695
        %4698 = vset.pattern.permute.xlu0 2
        %4699 = vperm.xlu0 %4698, %v4664
        %v4700 = vpop.permute.xlu0 %4699
        %v4702 = vlaneseq
        %v4703 = vshrl.u32 %v4702, 7
        %v4704 = vsub.s32 2, %v4703
        %v4705 = vrot.slane %v4661, %v4704
        %v4706 = vlaneseq
        %v4707 = vshrl.u32 %v4706, 7
        %v4708 = vsub.s32 2, %v4707
        %v4709 = vrot.slane %v4662, %v4708
        %v4710 = vmul.f32 %v4700, %v4705
        %v4711 = vmul.f32 %v4700, %v4709
        %v4712 = vadd.f32 %v4696, %v4710
        %v4713 = vadd.f32 %v4697, %v4711
        %4714 = vset.pattern.permute.xlu0 3
        %4715 = vperm.xlu0 %4714, %v4664
        %v4716 = vpop.permute.xlu0 %4715
        %v4718 = vlaneseq
        %v4719 = vshrl.u32 %v4718, 7
        %v4720 = vsub.s32 3, %v4719
        %v4721 = vrot.slane %v4661, %v4720
        %v4722 = vlaneseq
        %v4723 = vshrl.u32 %v4722, 7
        %v4724 = vsub.s32 3, %v4723
        %v4725 = vrot.slane %v4662, %v4724
        %v4726 = vmul.f32 %v4716, %v4721
        %v4727 = vmul.f32 %v4716, %v4725
        %v4728 = vadd.f32 %v4712, %v4726
        %v4729 = vadd.f32 %v4713, %v4727
        %4731 = vset.pattern.permute.xlu0 0
        %4732 = vperm.xlu0 %4731, %v4666
        %v4733 = vpop.permute.xlu0 %4732
        %v4735 = vadd.f32 %v4728, %v4733
        %v4736 = vadd.f32 %v4729, %v4733
        %v4737 = vxor.u32 %v4735, 2147483648
        %v4738 = vxor.u32 %v4736, 2147483648
        %v4739 = vmul.f32 %v4737, 1.442695
        %v4740 = vpow.pop %v4739
        %v4741 = vmul.f32 %v4738, 1.442695
        %v4742 = vpow.pop %v4741
        %v4743 = vadd.f32 %v4740, 1.0
        %v4744 = vadd.f32 %v4742, 1.0
        %v4745 = vrcp.pop %v4743
        %v4746 = vmul.f32 1.0, %v4745
        %v4747 = vrcp.pop %v4744
        %v4748 = vmul.f32 1.0, %v4747
        %v4749 = vadd.f32 %v4616, %v4746
        %v4750 = vadd.f32 %v4618, %v4748
        %v4751 = vld [vmem:[#allocation19] sm:$0xff]
        %4753 = vset.pattern.permute.xlu0 0
        %4754 = vperm.xlu0 %4753, %v4751
        %v4755 = vpop.permute.xlu0 %4754
        %v4757 = vlaneseq
        %v4758 = vshrl.u32 %v4757, 7
        %v4759 = vsub.s32 0, %v4758
        %v4760 = vrot.slane %v4056, %v4759
        %v4761 = vlaneseq
        %v4762 = vshrl.u32 %v4761, 7
        %v4763 = vsub.s32 0, %v4762
        %v4764 = vrot.slane %v4058, %v4763
        %v4765 = vmul.f32 %v4755, %v4760
        %v4766 = vmul.f32 %v4755, %v4764
        %4767 = vset.pattern.permute.xlu0 1
        %4768 = vperm.xlu0 %4767, %v4751
        %v4769 = vpop.permute.xlu0 %4768
        %v4771 = vlaneseq
        %v4772 = vshrl.u32 %v4771, 7
        %v4773 = vsub.s32 1, %v4772
        %v4774 = vrot.slane %v4056, %v4773
        %v4775 = vlaneseq
        %v4776 = vshrl.u32 %v4775, 7
        %v4777 = vsub.s32 1, %v4776
        %v4778 = vrot.slane %v4058, %v4777
        %v4779 = vmul.f32 %v4769, %v4774
        %v4780 = vmul.f32 %v4769, %v4778
        %v4781 = vadd.f32 %v4765, %v4779
        %v4782 = vadd.f32 %v4766, %v4780
        %4783 = vset.pattern.permute.xlu0 2
        %4784 = vperm.xlu0 %4783, %v4751
        %v4785 = vpop.permute.xlu0 %4784
        %v4787 = vlaneseq
        %v4788 = vshrl.u32 %v4787, 7
        %v4789 = vsub.s32 2, %v4788
        %v4790 = vrot.slane %v4056, %v4789
        %v4791 = vlaneseq
        %v4792 = vshrl.u32 %v4791, 7
        %v4793 = vsub.s32 2, %v4792
        %v4794 = vrot.slane %v4058, %v4793
        %v4795 = vmul.f32 %v4785, %v4790
        %v4796 = vmul.f32 %v4785, %v4794
        %v4797 = vadd.f32 %v4781, %v4795
        %v4798 = vadd.f32 %v4782, %v4796
        %4799 = vset.pattern.permute.xlu0 3
        %4800 = vperm.xlu0 %4799, %v4751
        %v4801 = vpop.permute.xlu0 %4800
        %v4803 = vlaneseq
        %v4804 = vshrl.u32 %v4803, 7
        %v4805 = vsub.s32 3, %v4804
        %v4806 = vrot.slane %v4056, %v4805
        %v4807 = vlaneseq
        %v4808 = vshrl.u32 %v4807, 7
        %v4809 = vsub.s32 3, %v4808
        %v4810 = vrot.slane %v4058, %v4809
        %v4811 = vmul.f32 %v4801, %v4806
        %v4812 = vmul.f32 %v4801, %v4810
        %v4813 = vadd.f32 %v4797, %v4811
        %v4814 = vadd.f32 %v4798, %v4812
        %s4815 = scalar_lea.vmem [#allocation19], 8
        %v4816 = vld [vmem:[%s4815] sm:$0xff]
        %4818 = vset.pattern.permute.xlu0 0
        %4819 = vperm.xlu0 %4818, %v4816
        %v4820 = vpop.permute.xlu0 %4819
        %v4822 = vlaneseq
        %v4823 = vshrl.u32 %v4822, 7
        %v4824 = vsub.s32 0, %v4823
        %v4825 = vrot.slane %v4313, %v4824
        %v4826 = vlaneseq
        %v4827 = vshrl.u32 %v4826, 7
        %v4828 = vsub.s32 0, %v4827
        %v4829 = vrot.slane %v4314, %v4828
        %v4830 = vmul.f32 %v4820, %v4825
        %v4831 = vmul.f32 %v4820, %v4829
        %v4832 = vadd.f32 %v4813, %v4830
        %v4833 = vadd.f32 %v4814, %v4831
        %4834 = vset.pattern.permute.xlu0 1
        %4835 = vperm.xlu0 %4834, %v4816
        %v4836 = vpop.permute.xlu0 %4835
        %v4838 = vlaneseq
        %v4839 = vshrl.u32 %v4838, 7
        %v4840 = vsub.s32 1, %v4839
        %v4841 = vrot.slane %v4313, %v4840
        %v4842 = vlaneseq
        %v4843 = vshrl.u32 %v4842, 7
        %v4844 = vsub.s32 1, %v4843
        %v4845 = vrot.slane %v4314, %v4844
        %v4846 = vmul.f32 %v4836, %v4841
        %v4847 = vmul.f32 %v4836, %v4845
        %v4848 = vadd.f32 %v4832, %v4846
        %v4849 = vadd.f32 %v4833, %v4847
        %4850 = vset.pattern.permute.xlu0 2
        %4851 = vperm.xlu0 %4850, %v4816
        %v4852 = vpop.permute.xlu0 %4851
        %v4854 = vlaneseq
        %v4855 = vshrl.u32 %v4854, 7
        %v4856 = vsub.s32 2, %v4855
        %v4857 = vrot.slane %v4313, %v4856
        %v4858 = vlaneseq
        %v4859 = vshrl.u32 %v4858, 7
        %v4860 = vsub.s32 2, %v4859
        %v4861 = vrot.slane %v4314, %v4860
        %v4862 = vmul.f32 %v4852, %v4857
        %v4863 = vmul.f32 %v4852, %v4861
        %v4864 = vadd.f32 %v4848, %v4862
        %v4865 = vadd.f32 %v4849, %v4863
        %4866 = vset.pattern.permute.xlu0 3
        %4867 = vperm.xlu0 %4866, %v4816
        %v4868 = vpop.permute.xlu0 %4867
        %v4870 = vlaneseq
        %v4871 = vshrl.u32 %v4870, 7
        %v4872 = vsub.s32 3, %v4871
        %v4873 = vrot.slane %v4313, %v4872
        %v4874 = vlaneseq
        %v4875 = vshrl.u32 %v4874, 7
        %v4876 = vsub.s32 3, %v4875
        %v4877 = vrot.slane %v4314, %v4876
        %v4878 = vmul.f32 %v4868, %v4873
        %v4879 = vmul.f32 %v4868, %v4877
        %v4880 = vadd.f32 %v4864, %v4878
        %v4881 = vadd.f32 %v4865, %v4879
        %s4882 = scalar_lea.vmem [#allocation19], 16
        %v4883 = vld [vmem:[%s4882] sm:$0xff]
        %4885 = vset.pattern.permute.xlu0 0
        %4886 = vperm.xlu0 %4885, %v4883
        %v4887 = vpop.permute.xlu0 %4886
        %v4889 = vlaneseq
        %v4890 = vshrl.u32 %v4889, 7
        %v4891 = vsub.s32 0, %v4890
        %v4892 = vrot.slane %v4531, %v4891
        %v4893 = vlaneseq
        %v4894 = vshrl.u32 %v4893, 7
        %v4895 = vsub.s32 0, %v4894
        %v4896 = vrot.slane %v4532, %v4895
        %v4897 = vmul.f32 %v4887, %v4892
        %v4898 = vmul.f32 %v4887, %v4896
        %v4899 = vadd.f32 %v4880, %v4897
        %v4900 = vadd.f32 %v4881, %v4898
        %4901 = vset.pattern.permute.xlu0 1
        %4902 = vperm.xlu0 %4901, %v4883
        %v4903 = vpop.permute.xlu0 %4902
        %v4905 = vlaneseq
        %v4906 = vshrl.u32 %v4905, 7
        %v4907 = vsub.s32 1, %v4906
        %v4908 = vrot.slane %v4531, %v4907
        %v4909 = vlaneseq
        %v4910 = vshrl.u32 %v4909, 7
        %v4911 = vsub.s32 1, %v4910
        %v4912 = vrot.slane %v4532, %v4911
        %v4913 = vmul.f32 %v4903, %v4908
        %v4914 = vmul.f32 %v4903, %v4912
        %v4915 = vadd.f32 %v4899, %v4913
        %v4916 = vadd.f32 %v4900, %v4914
        %4917 = vset.pattern.permute.xlu0 2
        %4918 = vperm.xlu0 %4917, %v4883
        %v4919 = vpop.permute.xlu0 %4918
        %v4921 = vlaneseq
        %v4922 = vshrl.u32 %v4921, 7
        %v4923 = vsub.s32 2, %v4922
        %v4924 = vrot.slane %v4531, %v4923
        %v4925 = vlaneseq
        %v4926 = vshrl.u32 %v4925, 7
        %v4927 = vsub.s32 2, %v4926
        %v4928 = vrot.slane %v4532, %v4927
        %v4929 = vmul.f32 %v4919, %v4924
        %v4930 = vmul.f32 %v4919, %v4928
        %v4931 = vadd.f32 %v4915, %v4929
        %v4932 = vadd.f32 %v4916, %v4930
        %4933 = vset.pattern.permute.xlu0 3
        %4934 = vperm.xlu0 %4933, %v4883
        %v4935 = vpop.permute.xlu0 %4934
        %v4937 = vlaneseq
        %v4938 = vshrl.u32 %v4937, 7
        %v4939 = vsub.s32 3, %v4938
        %v4940 = vrot.slane %v4531, %v4939
        %v4941 = vlaneseq
        %v4942 = vshrl.u32 %v4941, 7
        %v4943 = vsub.s32 3, %v4942
        %v4944 = vrot.slane %v4532, %v4943
        %v4945 = vmul.f32 %v4935, %v4940
        %v4946 = vmul.f32 %v4935, %v4944
        %v4947 = vadd.f32 %v4931, %v4945
        %v4948 = vadd.f32 %v4932, %v4946
        %s4949 = scalar_lea.vmem [#allocation19], 24
        %v4950 = vld [vmem:[%s4949] sm:$0xff]
        %4952 = vset.pattern.permute.xlu0 0
        %4953 = vperm.xlu0 %4952, %v4950
        %v4954 = vpop.permute.xlu0 %4953
        %v4956 = vlaneseq
        %v4957 = vshrl.u32 %v4956, 7
        %v4958 = vsub.s32 0, %v4957
        %v4959 = vrot.slane %v4749, %v4958
        %v4960 = vlaneseq
        %v4961 = vshrl.u32 %v4960, 7
        %v4962 = vsub.s32 0, %v4961
        %v4963 = vrot.slane %v4750, %v4962
        %v4964 = vmul.f32 %v4954, %v4959
        %v4965 = vmul.f32 %v4954, %v4963
        %v4966 = vadd.f32 %v4947, %v4964
        %v4967 = vadd.f32 %v4948, %v4965
        %4968 = vset.pattern.permute.xlu0 1
        %4969 = vperm.xlu0 %4968, %v4950
        %v4970 = vpop.permute.xlu0 %4969
        %v4972 = vlaneseq
        %v4973 = vshrl.u32 %v4972, 7
        %v4974 = vsub.s32 1, %v4973
        %v4975 = vrot.slane %v4749, %v4974
        %v4976 = vlaneseq
        %v4977 = vshrl.u32 %v4976, 7
        %v4978 = vsub.s32 1, %v4977
        %v4979 = vrot.slane %v4750, %v4978
        %v4980 = vmul.f32 %v4970, %v4975
        %v4981 = vmul.f32 %v4970, %v4979
        %v4982 = vadd.f32 %v4966, %v4980
        %v4983 = vadd.f32 %v4967, %v4981
        %4984 = vset.pattern.permute.xlu0 2
        %4985 = vperm.xlu0 %4984, %v4950
        %v4986 = vpop.permute.xlu0 %4985
        %v4988 = vlaneseq
        %v4989 = vshrl.u32 %v4988, 7
        %v4990 = vsub.s32 2, %v4989
        %v4991 = vrot.slane %v4749, %v4990
        %v4992 = vlaneseq
        %v4993 = vshrl.u32 %v4992, 7
        %v4994 = vsub.s32 2, %v4993
        %v4995 = vrot.slane %v4750, %v4994
        %v4996 = vmul.f32 %v4986, %v4991
        %v4997 = vmul.f32 %v4986, %v4995
        %v4998 = vadd.f32 %v4982, %v4996
        %v4999 = vadd.f32 %v4983, %v4997
        %5000 = vset.pattern.permute.xlu0 3
        %5001 = vperm.xlu0 %5000, %v4950
        %v5002 = vpop.permute.xlu0 %5001
        %v5004 = vlaneseq
        %v5005 = vshrl.u32 %v5004, 7
        %v5006 = vsub.s32 3, %v5005
        %v5007 = vrot.slane %v4749, %v5006
        %v5008 = vlaneseq
        %v5009 = vshrl.u32 %v5008, 7
        %v5010 = vsub.s32 3, %v5009
        %v5011 = vrot.slane %v4750, %v5010
        %v5012 = vmul.f32 %v5002, %v5007
        %v5013 = vmul.f32 %v5002, %v5011
        %v5014 = vadd.f32 %v4998, %v5012
        %v5015 = vadd.f32 %v4999, %v5013
        %v5016 = vld [vmem:[#allocation20] sm:$0xff]
        %5018 = vset.pattern.permute.xlu0 0
        %5019 = vperm.xlu0 %5018, %v5016
        %v5020 = vpop.permute.xlu0 %5019
        %v5022 = vadd.f32 %v5014, %v5020
        %v5023 = vadd.f32 %v5015, %v5020
        %v5024 = vmax.f32 %v5022, 0.0
        %v5025 = vmax.f32 %v5023, 0.0
        %v5026 = vadd.f32 %v5024, %v3909
        %v5027 = vadd.f32 %v5025, %v3910
        %v5028 = vld [vmem:[#allocation22] sm:$0xff]
        %v5029 = vld [vmem:[#allocation22 + $0x8] sm:$0xff]
        %v5030 = vld [vmem:[#allocation22 + $0x10] sm:$0xff]
        %v5031 = vld [vmem:[#allocation22 + $0x18] sm:$0xff]
        %5032 = vrot.lane.b32.xlu0 %v3325, 17
        %v5033 = vpop.permute.xlu0 %5032
        %5034 = vrot.lane.b32.xlu0 %v5026, 17
        %v5035 = vpop.permute.xlu0 %5034
        %5036 = vrot.lane.b32.xlu0 %v3326, 17
        %v5037 = vpop.permute.xlu0 %5036
        %5038 = vrot.lane.b32.xlu0 %v5027, 17
        %v5039 = vpop.permute.xlu0 %5038
        %v5040 = vsel %vm2710, %v5033, %v5037
        %v5041 = vsel %vm2710, %v5035, %v5039
        %v5042 = vsel %vm2710, %v5037, %v5033
        %v5043 = vsel %vm2710, %v5039, %v5035
        %v5044 = vsel %vm2715, %v5042, 0.0
        %v5045 = vsel %vm2716, %v5040, 0.0
        %v5046 = vsel %vm2715, %v5043, 0.0
        %v5047 = vsel %vm2716, %v5041, 0.0
        %v5048 = vpack.c.bf16 %v5046, %v5044
        %v5049 = vpack.c.bf16 %v5047, %v5045
        %v5050 = vld [vmem:[%s47] sm:$0xff]
        %v5051 = vld [vmem:[%s47 + $0x8] sm:$0xff]
        %v5052 = vld [vmem:[%s47 + $0x10] sm:$0xff]
        %v5053 = vld [vmem:[%s47 + $0x18] sm:$0xff]
        %v5054 = vpack.c.bf16 %v5051, %v5050
        %v5055 = vpack.c.bf16 %v5053, %v5052
        %5056 = vrot.lane.b32.xlu0 %v3325, 16
        %v5057 = vpop.permute.xlu0 %5056
        %5058 = vrot.lane.b32.xlu0 %v5026, 16
        %v5059 = vpop.permute.xlu0 %5058
        %5060 = vrot.lane.b32.xlu0 %v3326, 16
        %v5061 = vpop.permute.xlu0 %5060
        %5062 = vrot.lane.b32.xlu0 %v5027, 16
        %v5063 = vpop.permute.xlu0 %5062
        %v5064 = vsel %vm2727, %v5057, %v5061
        %v5065 = vsel %vm2727, %v5059, %v5063
        %v5066 = vsel %vm2727, %v5061, %v5057
        %v5067 = vsel %vm2727, %v5063, %v5059
        %v5068 = vsel %vm2732, %v5066, 0.0
        %v5069 = vsel %vm2733, %v5064, 0.0
        %v5070 = vsel %vm2732, %v5067, 0.0
        %v5071 = vsel %vm2733, %v5065, 0.0
        %v5072 = vpack.c.bf16 %v5070, %v5068
        %v5073 = vpack.c.bf16 %v5071, %v5069
        %s5074 = scalar_lea.vmem %s47, 32
        %v5075 = vld [vmem:[%s5074] sm:$0xff]
        %v5076 = vld [vmem:[%s5074 + $0x8] sm:$0xff]
        %v5077 = vld [vmem:[%s5074 + $0x10] sm:$0xff]
        %v5078 = vld [vmem:[%s5074 + $0x18] sm:$0xff]
        %v5079 = vpack.c.bf16 %v5076, %v5075
        %v5080 = vpack.c.bf16 %v5078, %v5077
        %v5082 = vsel %vm1183, %v5079, 0
        %v5085 = vsel %vm1183, %v5080, 0
        %5087 = vmatprep.subr.bf16.mxu0 %v5073
        %5088 = vmatpush1.bf16.msra.mxu0 %v5072
        %5089 = vmatprep.subr.bf16.mxu0 0
        %5090 = vmatpush1.bf16.msra.mxu0 0
        %5091 = vmatprep.subr.bf16.mxu0 0
        %5092 = vmatpush1.bf16.msra.mxu0 0
        %5093 = vmatprep.subr.bf16.mxu0 0
        %5094 = vmatpush1.bf16.msra.mxu0 0
        %5095 = vmatprep.subr.bf16.mxu0 0
        %5096 = vmatpush1.bf16.msra.mxu0 0
        %5097 = vmatprep.subr.bf16.mxu0 0
        %5098 = vmatpush1.bf16.msra.mxu0 0
        %5099 = vmatprep.subr.bf16.mxu0 0
        %5100 = vmatpush1.bf16.msra.mxu0 0
        %5101 = vmatprep.subr.bf16.mxu0 0
        %5102 = vmatpush1.bf16.msra.mxu0 0
        %5103 = vmatprep.subr.bf16.mxu0 0
        %5104 = vmatpush1.bf16.msra.mxu0 0
        %5105 = vmatprep.subr.bf16.mxu0 0
        %5106 = vmatpush1.bf16.msra.mxu0 0
        %5107 = vmatprep.subr.bf16.mxu0 0
        %5108 = vmatpush1.bf16.msra.mxu0 0
        %5109 = vmatprep.subr.bf16.mxu0 0
        %5110 = vmatpush1.bf16.msra.mxu0 0
        %5111 = vmatprep.subr.bf16.mxu0 0
        %5112 = vmatpush1.bf16.msra.mxu0 0
        %5113 = vmatprep.subr.bf16.mxu0 0
        %5114 = vmatpush1.bf16.msra.mxu0 0
        %5115 = vmatprep.subr.bf16.mxu0 0
        %5116 = vmatpush1.bf16.msra.mxu0 0
        %5117 = vmatprep.subr.bf16.mxu0 0
        %5118 = vmatpush1.bf16.msra.mxu0 0
        %5119 = vmatprep.mubr.bf16.mxu0 0
        %5120 = vmatmul.mubr.bf16.gmra.mrb[0].mxu0 %v5082
        %v5121 = vpop.f32.mrb[0].mxu0
        %v5122 = vadd.f32 0.0, %v5121
        %v5123 = vpop.f32.mrb[0].mxu0
        %v5124 = vadd.f32 0.0, %v5123
        %v5125 = vpop.f32.mrb[0].mxu0
        %v5126 = vadd.f32 0.0, %v5125
        %v5127 = vpop.f32.mrb[0].mxu0
        %v5128 = vadd.f32 0.0, %v5127
        %5129 = vmatprep.mubr.bf16.mxu0 0
        %5130 = vmatmul.mubr.bf16.gmra.mrb[0].mxu0 %v5085
        %v5131 = vpop.f32.mrb[0].mxu0
        %v5132 = vadd.f32 0.0, %v5131
        %v5133 = vpop.f32.mrb[0].mxu0
        %v5134 = vadd.f32 0.0, %v5133
        %v5135 = vpop.f32.mrb[0].mxu0
        %v5136 = vadd.f32 0.0, %v5135
        %v5137 = vpop.f32.mrb[0].mxu0
        %v5138 = vadd.f32 0.0, %v5137
        %5139 = vdwg.mxu0
        %v5141 = vsel %vm1183, %v5054, 0
        %v5144 = vsel %vm1183, %v5055, 0
        %5146 = vmatprep.subr.bf16.mxu0 %v5049
        %5147 = vmatpush1.bf16.msra.mxu0 %v5048
        %5148 = vmatprep.subr.bf16.mxu0 0
        %5149 = vmatpush1.bf16.msra.mxu0 0
        %5150 = vmatprep.subr.bf16.mxu0 0
        %5151 = vmatpush1.bf16.msra.mxu0 0
        %5152 = vmatprep.subr.bf16.mxu0 0
        %5153 = vmatpush1.bf16.msra.mxu0 0
        %5154 = vmatprep.subr.bf16.mxu0 0
        %5155 = vmatpush1.bf16.msra.mxu0 0
        %5156 = vmatprep.subr.bf16.mxu0 0
        %5157 = vmatpush1.bf16.msra.mxu0 0
        %5158 = vmatprep.subr.bf16.mxu0 0
        %5159 = vmatpush1.bf16.msra.mxu0 0
        %5160 = vmatprep.subr.bf16.mxu0 0
        %5161 = vmatpush1.bf16.msra.mxu0 0
        %5162 = vmatprep.subr.bf16.mxu0 0
        %5163 = vmatpush1.bf16.msra.mxu0 0
        %5164 = vmatprep.subr.bf16.mxu0 0
        %5165 = vmatpush1.bf16.msra.mxu0 0
        %5166 = vmatprep.subr.bf16.mxu0 0
        %5167 = vmatpush1.bf16.msra.mxu0 0
        %5168 = vmatprep.subr.bf16.mxu0 0
        %5169 = vmatpush1.bf16.msra.mxu0 0
        %5170 = vmatprep.subr.bf16.mxu0 0
        %5171 = vmatpush1.bf16.msra.mxu0 0
        %5172 = vmatprep.subr.bf16.mxu0 0
        %5173 = vmatpush1.bf16.msra.mxu0 0
        %5174 = vmatprep.subr.bf16.mxu0 0
        %5175 = vmatpush1.bf16.msra.mxu0 0
        %5176 = vmatprep.subr.bf16.mxu0 0
        %5177 = vmatpush1.bf16.msra.mxu0 0
        %5178 = vmatprep.mubr.bf16.mxu0 0
        %5179 = vmatmul.mubr.bf16.gmra.mrb[0].mxu0 %v5141
        %v5180 = vpop.f32.mrb[0].mxu0
        %v5181 = vadd.f32 %v5122, %v5180
        %v5182 = vpop.f32.mrb[0].mxu0
        %v5183 = vadd.f32 %v5124, %v5182
        %v5184 = vpop.f32.mrb[0].mxu0
        %v5185 = vadd.f32 %v5126, %v5184
        %v5186 = vpop.f32.mrb[0].mxu0
        %v5187 = vadd.f32 %v5128, %v5186
        %5188 = vmatprep.mubr.bf16.mxu0 0
        %5189 = vmatmul.mubr.bf16.gmra.mrb[0].mxu0 %v5144
        %v5190 = vpop.f32.mrb[0].mxu0
        %v5191 = vadd.f32 %v5132, %v5190
        %v5192 = vpop.f32.mrb[0].mxu0
        %v5193 = vadd.f32 %v5134, %v5192
        %v5194 = vpop.f32.mrb[0].mxu0
        %v5195 = vadd.f32 %v5136, %v5194
        %v5196 = vpop.f32.mrb[0].mxu0
        %v5197 = vadd.f32 %v5138, %v5196
        %5198 = vdwg.mxu0
        %5199 = vrot.lane.b32.xlu0 %v3325, 15
        %v5200 = vpop.permute.xlu0 %5199
        %5201 = vrot.lane.b32.xlu0 %v5026, 15
        %v5202 = vpop.permute.xlu0 %5201
        %5203 = vrot.lane.b32.xlu0 %v3326, 15
        %v5204 = vpop.permute.xlu0 %5203
        %5205 = vrot.lane.b32.xlu0 %v5027, 15
        %v5206 = vpop.permute.xlu0 %5205
        %v5207 = vsel %vm2845, %v5200, %v5204
        %v5208 = vsel %vm2845, %v5202, %v5206
        %v5209 = vsel %vm2845, %v5204, %v5200
        %v5210 = vsel %vm2845, %v5206, %v5202
        %v5211 = vsel %vm2850, %v5209, 0.0
        %v5212 = vsel %vm2851, %v5207, 0.0
        %v5213 = vsel %vm2850, %v5210, 0.0
        %v5214 = vsel %vm2851, %v5208, 0.0
        %v5215 = vpack.c.bf16 %v5213, %v5211
        %v5216 = vpack.c.bf16 %v5214, %v5212
        %s5217 = scalar_lea.vmem %s47, 64
        %v5218 = vld [vmem:[%s5217] sm:$0xff]
        %v5219 = vld [vmem:[%s5217 + $0x8] sm:$0xff]
        %v5220 = vld [vmem:[%s5217 + $0x10] sm:$0xff]
        %v5221 = vld [vmem:[%s5217 + $0x18] sm:$0xff]
        %v5222 = vpack.c.bf16 %v5219, %v5218
        %v5223 = vpack.c.bf16 %v5221, %v5220
        %v5225 = vsel %vm1183, %v5222, 0
        %v5228 = vsel %vm1183, %v5223, 0
        %5230 = vmatprep.subr.bf16.mxu0 %v5216
        %5231 = vmatpush1.bf16.msra.mxu0 %v5215
        %5232 = vmatprep.subr.bf16.mxu0 0
        %5233 = vmatpush1.bf16.msra.mxu0 0
        %5234 = vmatprep.subr.bf16.mxu0 0
        %5235 = vmatpush1.bf16.msra.mxu0 0
        %5236 = vmatprep.subr.bf16.mxu0 0
        %5237 = vmatpush1.bf16.msra.mxu0 0
        %5238 = vmatprep.subr.bf16.mxu0 0
        %5239 = vmatpush1.bf16.msra.mxu0 0
        %5240 = vmatprep.subr.bf16.mxu0 0
        %5241 = vmatpush1.bf16.msra.mxu0 0
        %5242 = vmatprep.subr.bf16.mxu0 0
        %5243 = vmatpush1.bf16.msra.mxu0 0
        %5244 = vmatprep.subr.bf16.mxu0 0
        %5245 = vmatpush1.bf16.msra.mxu0 0
        %5246 = vmatprep.subr.bf16.mxu0 0
        %5247 = vmatpush1.bf16.msra.mxu0 0
        %5248 = vmatprep.subr.bf16.mxu0 0
        %5249 = vmatpush1.bf16.msra.mxu0 0
        %5250 = vmatprep.subr.bf16.mxu0 0
        %5251 = vmatpush1.bf16.msra.mxu0 0
        %5252 = vmatprep.subr.bf16.mxu0 0
        %5253 = vmatpush1.bf16.msra.mxu0 0
        %5254 = vmatprep.subr.bf16.mxu0 0
        %5255 = vmatpush1.bf16.msra.mxu0 0
        %5256 = vmatprep.subr.bf16.mxu0 0
        %5257 = vmatpush1.bf16.msra.mxu0 0
        %5258 = vmatprep.subr.bf16.mxu0 0
        %5259 = vmatpush1.bf16.msra.mxu0 0
        %5260 = vmatprep.subr.bf16.mxu0 0
        %5261 = vmatpush1.bf16.msra.mxu0 0
        %5262 = vmatprep.mubr.bf16.mxu0 0
        %5263 = vmatmul.mubr.bf16.gmra.mrb[0].mxu0 %v5225
        %v5264 = vpop.f32.mrb[0].mxu0
        %v5265 = vadd.f32 0.0, %v5264
        %v5266 = vpop.f32.mrb[0].mxu0
        %v5267 = vadd.f32 0.0, %v5266
        %v5268 = vpop.f32.mrb[0].mxu0
        %v5269 = vadd.f32 0.0, %v5268
        %v5270 = vpop.f32.mrb[0].mxu0
        %v5271 = vadd.f32 0.0, %v5270
        %5272 = vmatprep.mubr.bf16.mxu0 0
        %5273 = vmatmul.mubr.bf16.gmra.mrb[0].mxu0 %v5228
        %v5274 = vpop.f32.mrb[0].mxu0
        %v5275 = vadd.f32 0.0, %v5274
        %v5276 = vpop.f32.mrb[0].mxu0
        %v5277 = vadd.f32 0.0, %v5276
        %v5278 = vpop.f32.mrb[0].mxu0
        %v5279 = vadd.f32 0.0, %v5278
        %v5280 = vpop.f32.mrb[0].mxu0
        %v5281 = vadd.f32 0.0, %v5280
        %5282 = vdwg.mxu0
        %v5283 = vadd.f32 %v5181, %v5265
        %v5284 = vadd.f32 %v5183, %v5267
        %v5285 = vadd.f32 %v5185, %v5269
        %v5286 = vadd.f32 %v5187, %v5271
        %v5287 = vadd.f32 %v5191, %v5275
        %v5288 = vadd.f32 %v5193, %v5277
        %v5289 = vadd.f32 %v5195, %v5279
        %v5290 = vadd.f32 %v5197, %v5281
        %5291 = vrot.lane.b32.xlu0 %v3325, 1
        %v5292 = vpop.permute.xlu0 %5291
        %5293 = vrot.lane.b32.xlu0 %v5026, 1
        %v5294 = vpop.permute.xlu0 %5293
        %5295 = vrot.lane.b32.xlu0 %v3326, 1
        %v5296 = vpop.permute.xlu0 %5295
        %5297 = vrot.lane.b32.xlu0 %v5027, 1
        %v5298 = vpop.permute.xlu0 %5297
        %v5299 = vsel %vm2915, %v5292, %v5296
        %v5300 = vsel %vm2915, %v5294, %v5298
        %v5301 = vsel %vm2915, %v5296, %v5292
        %v5302 = vsel %vm2915, %v5298, %v5294
        %v5303 = vsel %vm2920, %v5301, 0.0
        %v5304 = vsel %vm2921, %v5299, 0.0
        %v5305 = vsel %vm2920, %v5302, 0.0
        %v5306 = vsel %vm2921, %v5300, 0.0
        %v5307 = vpack.c.bf16 %v5305, %v5303
        %v5308 = vpack.c.bf16 %v5306, %v5304
        %s5309 = scalar_lea.vmem %s47, 96
        %v5310 = vld [vmem:[%s5309] sm:$0xff]
        %v5311 = vld [vmem:[%s5309 + $0x8] sm:$0xff]
        %v5312 = vld [vmem:[%s5309 + $0x10] sm:$0xff]
        %v5313 = vld [vmem:[%s5309 + $0x18] sm:$0xff]
        %v5314 = vpack.c.bf16 %v5311, %v5310
        %v5315 = vpack.c.bf16 %v5313, %v5312
        %v5317 = vsel %vm1183, %v5314, 0
        %v5320 = vsel %vm1183, %v5315, 0
        %5322 = vmatprep.subr.bf16.mxu0 %v5308
        %5323 = vmatpush1.bf16.msra.mxu0 %v5307
        %5324 = vmatprep.subr.bf16.mxu0 0
        %5325 = vmatpush1.bf16.msra.mxu0 0
        %5326 = vmatprep.subr.bf16.mxu0 0
        %5327 = vmatpush1.bf16.msra.mxu0 0
        %5328 = vmatprep.subr.bf16.mxu0 0
        %5329 = vmatpush1.bf16.msra.mxu0 0
        %5330 = vmatprep.subr.bf16.mxu0 0
        %5331 = vmatpush1.bf16.msra.mxu0 0
        %5332 = vmatprep.subr.bf16.mxu0 0
        %5333 = vmatpush1.bf16.msra.mxu0 0
        %5334 = vmatprep.subr.bf16.mxu0 0
        %5335 = vmatpush1.bf16.msra.mxu0 0
        %5336 = vmatprep.subr.bf16.mxu0 0
        %5337 = vmatpush1.bf16.msra.mxu0 0
        %5338 = vmatprep.subr.bf16.mxu0 0
        %5339 = vmatpush1.bf16.msra.mxu0 0
        %5340 = vmatprep.subr.bf16.mxu0 0
        %5341 = vmatpush1.bf16.msra.mxu0 0
        %5342 = vmatprep.subr.bf16.mxu0 0
        %5343 = vmatpush1.bf16.msra.mxu0 0
        %5344 = vmatprep.subr.bf16.mxu0 0
        %5345 = vmatpush1.bf16.msra.mxu0 0
        %5346 = vmatprep.subr.bf16.mxu0 0
        %5347 = vmatpush1.bf16.msra.mxu0 0
        %5348 = vmatprep.subr.bf16.mxu0 0
        %5349 = vmatpush1.bf16.msra.mxu0 0
        %5350 = vmatprep.subr.bf16.mxu0 0
        %5351 = vmatpush1.bf16.msra.mxu0 0
        %5352 = vmatprep.subr.bf16.mxu0 0
        %5353 = vmatpush1.bf16.msra.mxu0 0
        %5354 = vmatprep.mubr.bf16.mxu0 0
        %5355 = vmatmul.mubr.bf16.gmra.mrb[0].mxu0 %v5317
        %v5356 = vpop.f32.mrb[0].mxu0
        %v5357 = vadd.f32 0.0, %v5356
        %v5358 = vpop.f32.mrb[0].mxu0
        %v5359 = vadd.f32 0.0, %v5358
        %v5360 = vpop.f32.mrb[0].mxu0
        %v5361 = vadd.f32 0.0, %v5360
        %v5362 = vpop.f32.mrb[0].mxu0
        %v5363 = vadd.f32 0.0, %v5362
        %5364 = vmatprep.mubr.bf16.mxu0 0
        %5365 = vmatmul.mubr.bf16.gmra.mrb[0].mxu0 %v5320
        %v5366 = vpop.f32.mrb[0].mxu0
        %v5367 = vadd.f32 0.0, %v5366
        %v5368 = vpop.f32.mrb[0].mxu0
        %v5369 = vadd.f32 0.0, %v5368
        %v5370 = vpop.f32.mrb[0].mxu0
        %v5371 = vadd.f32 0.0, %v5370
        %v5372 = vpop.f32.mrb[0].mxu0
        %v5373 = vadd.f32 0.0, %v5372
        %5374 = vdwg.mxu0
        %v5375 = vadd.f32 %v5283, %v5357
        %v5376 = vadd.f32 %v5284, %v5359
        %v5377 = vadd.f32 %v5285, %v5361
        %v5378 = vadd.f32 %v5286, %v5363
        %v5379 = vadd.f32 %v5287, %v5367
        %v5380 = vadd.f32 %v5288, %v5369
        %v5381 = vadd.f32 %v5289, %v5371
        %v5382 = vadd.f32 %v5290, %v5373
        %v5383 = vpack.c.bf16 %v5026, %v3325
        %v5384 = vpack.c.bf16 %v5027, %v3326
        %s5385 = scalar_lea.vmem %s47, 128
        %v5386 = vld [vmem:[%s5385] sm:$0xff]
        %v5387 = vld [vmem:[%s5385 + $0x8] sm:$0xff]
        %v5388 = vld [vmem:[%s5385 + $0x10] sm:$0xff]
        %v5389 = vld [vmem:[%s5385 + $0x18] sm:$0xff]
        %v5390 = vpack.c.bf16 %v5387, %v5386
        %v5391 = vpack.c.bf16 %v5389, %v5388
        %v5393 = vsel %vm1183, %v5390, 0
        %v5396 = vsel %vm1183, %v5391, 0
        %5398 = vmatprep.subr.bf16.mxu0 %v5384
        %5399 = vmatpush1.bf16.msra.mxu0 %v5383
        %5400 = vmatprep.subr.bf16.mxu0 0
        %5401 = vmatpush1.bf16.msra.mxu0 0
        %5402 = vmatprep.subr.bf16.mxu0 0
        %5403 = vmatpush1.bf16.msra.mxu0 0
        %5404 = vmatprep.subr.bf16.mxu0 0
        %5405 = vmatpush1.bf16.msra.mxu0 0
        %5406 = vmatprep.subr.bf16.mxu0 0
        %5407 = vmatpush1.bf16.msra.mxu0 0
        %5408 = vmatprep.subr.bf16.mxu0 0
        %5409 = vmatpush1.bf16.msra.mxu0 0
        %5410 = vmatprep.subr.bf16.mxu0 0
        %5411 = vmatpush1.bf16.msra.mxu0 0
        %5412 = vmatprep.subr.bf16.mxu0 0
        %5413 = vmatpush1.bf16.msra.mxu0 0
        %5414 = vmatprep.subr.bf16.mxu0 0
        %5415 = vmatpush1.bf16.msra.mxu0 0
        %5416 = vmatprep.subr.bf16.mxu0 0
        %5417 = vmatpush1.bf16.msra.mxu0 0
        %5418 = vmatprep.subr.bf16.mxu0 0
        %5419 = vmatpush1.bf16.msra.mxu0 0
        %5420 = vmatprep.subr.bf16.mxu0 0
        %5421 = vmatpush1.bf16.msra.mxu0 0
        %5422 = vmatprep.subr.bf16.mxu0 0
        %5423 = vmatpush1.bf16.msra.mxu0 0
        %5424 = vmatprep.subr.bf16.mxu0 0
        %5425 = vmatpush1.bf16.msra.mxu0 0
        %5426 = vmatprep.subr.bf16.mxu0 0
        %5427 = vmatpush1.bf16.msra.mxu0 0
        %5428 = vmatprep.subr.bf16.mxu0 0
        %5429 = vmatpush1.bf16.msra.mxu0 0
        %5430 = vmatprep.mubr.bf16.mxu0 0
        %5431 = vmatmul.mubr.bf16.gmra.mrb[0].mxu0 %v5393
        %v5432 = vpop.f32.mrb[0].mxu0
        %v5433 = vadd.f32 0.0, %v5432
        %v5434 = vpop.f32.mrb[0].mxu0
        %v5435 = vadd.f32 0.0, %v5434
        %v5436 = vpop.f32.mrb[0].mxu0
        %v5437 = vadd.f32 0.0, %v5436
        %v5438 = vpop.f32.mrb[0].mxu0
        %v5439 = vadd.f32 0.0, %v5438
        %5440 = vmatprep.mubr.bf16.mxu0 0
        %5441 = vmatmul.mubr.bf16.gmra.mrb[0].mxu0 %v5396
        %v5442 = vpop.f32.mrb[0].mxu0
        %v5443 = vadd.f32 0.0, %v5442
        %v5444 = vpop.f32.mrb[0].mxu0
        %v5445 = vadd.f32 0.0, %v5444
        %v5446 = vpop.f32.mrb[0].mxu0
        %v5447 = vadd.f32 0.0, %v5446
        %v5448 = vpop.f32.mrb[0].mxu0
        %v5449 = vadd.f32 0.0, %v5448
        %5450 = vdwg.mxu0
        %v5451 = vadd.f32 %v5375, %v5433
        %v5452 = vadd.f32 %v5376, %v5435
        %v5453 = vadd.f32 %v5377, %v5437
        %v5454 = vadd.f32 %v5378, %v5439
        %v5455 = vadd.f32 %v5379, %v5443
        %v5456 = vadd.f32 %v5380, %v5445
        %v5457 = vadd.f32 %v5381, %v5447
        %v5458 = vadd.f32 %v5382, %v5449
        %5459 = vrot.lane.b32.xlu0 %v3325, 127
        %v5460 = vpop.permute.xlu0 %5459
        %5461 = vrot.lane.b32.xlu0 %v5026, 127
        %v5462 = vpop.permute.xlu0 %5461
        %5463 = vrot.lane.b32.xlu0 %v3326, 127
        %v5464 = vpop.permute.xlu0 %5463
        %5465 = vrot.lane.b32.xlu0 %v5027, 127
        %v5466 = vpop.permute.xlu0 %5465
        %v5467 = vsel %vm3042, %v5460, %v5464
        %v5468 = vsel %vm3042, %v5462, %v5466
        %v5469 = vsel %vm3042, %v5464, %v5460
        %v5470 = vsel %vm3042, %v5466, %v5462
        %v5471 = vsel %vm3047, %v5467, 0.0
        %v5472 = vsel %vm3048, %v5469, 0.0
        %v5473 = vsel %vm3047, %v5468, 0.0
        %v5474 = vsel %vm3048, %v5470, 0.0
        %v5475 = vpack.c.bf16 %v5473, %v5471
        %v5476 = vpack.c.bf16 %v5474, %v5472
        %s5477 = scalar_lea.vmem %s47, 160
        %v5478 = vld [vmem:[%s5477] sm:$0xff]
        %v5479 = vld [vmem:[%s5477 + $0x8] sm:$0xff]
        %v5480 = vld [vmem:[%s5477 + $0x10] sm:$0xff]
        %v5481 = vld [vmem:[%s5477 + $0x18] sm:$0xff]
        %v5482 = vpack.c.bf16 %v5479, %v5478
        %v5483 = vpack.c.bf16 %v5481, %v5480
        %v5485 = vsel %vm1183, %v5482, 0
        %v5488 = vsel %vm1183, %v5483, 0
        %5490 = vmatprep.subr.bf16.mxu0 %v5476
        %5491 = vmatpush1.bf16.msra.mxu0 %v5475
        %5492 = vmatprep.subr.bf16.mxu0 0
        %5493 = vmatpush1.bf16.msra.mxu0 0
        %5494 = vmatprep.subr.bf16.mxu0 0
        %5495 = vmatpush1.bf16.msra.mxu0 0
        %5496 = vmatprep.subr.bf16.mxu0 0
        %5497 = vmatpush1.bf16.msra.mxu0 0
        %5498 = vmatprep.subr.bf16.mxu0 0
        %5499 = vmatpush1.bf16.msra.mxu0 0
        %5500 = vmatprep.subr.bf16.mxu0 0
        %5501 = vmatpush1.bf16.msra.mxu0 0
        %5502 = vmatprep.subr.bf16.mxu0 0
        %5503 = vmatpush1.bf16.msra.mxu0 0
        %5504 = vmatprep.subr.bf16.mxu0 0
        %5505 = vmatpush1.bf16.msra.mxu0 0
        %5506 = vmatprep.subr.bf16.mxu0 0
        %5507 = vmatpush1.bf16.msra.mxu0 0
        %5508 = vmatprep.subr.bf16.mxu0 0
        %5509 = vmatpush1.bf16.msra.mxu0 0
        %5510 = vmatprep.subr.bf16.mxu0 0
        %5511 = vmatpush1.bf16.msra.mxu0 0
        %5512 = vmatprep.subr.bf16.mxu0 0
        %5513 = vmatpush1.bf16.msra.mxu0 0
        %5514 = vmatprep.subr.bf16.mxu0 0
        %5515 = vmatpush1.bf16.msra.mxu0 0
        %5516 = vmatprep.subr.bf16.mxu0 0
        %5517 = vmatpush1.bf16.msra.mxu0 0
        %5518 = vmatprep.subr.bf16.mxu0 0
        %5519 = vmatpush1.bf16.msra.mxu0 0
        %5520 = vmatprep.subr.bf16.mxu0 0
        %5521 = vmatpush1.bf16.msra.mxu0 0
        %5522 = vmatprep.mubr.bf16.mxu0 0
        %5523 = vmatmul.mubr.bf16.gmra.mrb[0].mxu0 %v5485
        %v5524 = vpop.f32.mrb[0].mxu0
        %v5525 = vadd.f32 0.0, %v5524
        %v5526 = vpop.f32.mrb[0].mxu0
        %v5527 = vadd.f32 0.0, %v5526
        %v5528 = vpop.f32.mrb[0].mxu0
        %v5529 = vadd.f32 0.0, %v5528
        %v5530 = vpop.f32.mrb[0].mxu0
        %v5531 = vadd.f32 0.0, %v5530
        %5532 = vmatprep.mubr.bf16.mxu0 0
        %5533 = vmatmul.mubr.bf16.gmra.mrb[0].mxu0 %v5488
        %v5534 = vpop.f32.mrb[0].mxu0
        %v5535 = vadd.f32 0.0, %v5534
        %v5536 = vpop.f32.mrb[0].mxu0
        %v5537 = vadd.f32 0.0, %v5536
        %v5538 = vpop.f32.mrb[0].mxu0
        %v5539 = vadd.f32 0.0, %v5538
        %v5540 = vpop.f32.mrb[0].mxu0
        %v5541 = vadd.f32 0.0, %v5540
        %5542 = vdwg.mxu0
        %v5543 = vadd.f32 %v5451, %v5525
        %v5544 = vadd.f32 %v5452, %v5527
        %v5545 = vadd.f32 %v5453, %v5529
        %v5546 = vadd.f32 %v5454, %v5531
        %v5547 = vadd.f32 %v5455, %v5535
        %v5548 = vadd.f32 %v5456, %v5537
        %v5549 = vadd.f32 %v5457, %v5539
        %v5550 = vadd.f32 %v5458, %v5541
        %5551 = vrot.lane.b32.xlu0 %v3325, 113
        %v5552 = vpop.permute.xlu0 %5551
        %5553 = vrot.lane.b32.xlu0 %v5026, 113
        %v5554 = vpop.permute.xlu0 %5553
        %5555 = vrot.lane.b32.xlu0 %v3326, 113
        %v5556 = vpop.permute.xlu0 %5555
        %5557 = vrot.lane.b32.xlu0 %v5027, 113
        %v5558 = vpop.permute.xlu0 %5557
        %v5559 = vsel %vm3112, %v5552, %v5556
        %v5560 = vsel %vm3112, %v5554, %v5558
        %v5561 = vsel %vm3112, %v5556, %v5552
        %v5562 = vsel %vm3112, %v5558, %v5554
        %v5563 = vsel %vm3117, %v5559, 0.0
        %v5564 = vsel %vm3118, %v5561, 0.0
        %v5565 = vsel %vm3117, %v5560, 0.0
        %v5566 = vsel %vm3118, %v5562, 0.0
        %v5567 = vpack.c.bf16 %v5565, %v5563
        %v5568 = vpack.c.bf16 %v5566, %v5564
        %s5569 = scalar_lea.vmem %s47, 192
        %v5570 = vld [vmem:[%s5569] sm:$0xff]
        %v5571 = vld [vmem:[%s5569 + $0x8] sm:$0xff]
        %v5572 = vld [vmem:[%s5569 + $0x10] sm:$0xff]
        %v5573 = vld [vmem:[%s5569 + $0x18] sm:$0xff]
        %v5574 = vpack.c.bf16 %v5571, %v5570
        %v5575 = vpack.c.bf16 %v5573, %v5572
        %v5577 = vsel %vm1183, %v5574, 0
        %v5580 = vsel %vm1183, %v5575, 0
        %5582 = vmatprep.subr.bf16.mxu0 %v5568
        %5583 = vmatpush1.bf16.msra.mxu0 %v5567
        %5584 = vmatprep.subr.bf16.mxu0 0
        %5585 = vmatpush1.bf16.msra.mxu0 0
        %5586 = vmatprep.subr.bf16.mxu0 0
        %5587 = vmatpush1.bf16.msra.mxu0 0
        %5588 = vmatprep.subr.bf16.mxu0 0
        %5589 = vmatpush1.bf16.msra.mxu0 0
        %5590 = vmatprep.subr.bf16.mxu0 0
        %5591 = vmatpush1.bf16.msra.mxu0 0
        %5592 = vmatprep.subr.bf16.mxu0 0
        %5593 = vmatpush1.bf16.msra.mxu0 0
        %5594 = vmatprep.subr.bf16.mxu0 0
        %5595 = vmatpush1.bf16.msra.mxu0 0
        %5596 = vmatprep.subr.bf16.mxu0 0
        %5597 = vmatpush1.bf16.msra.mxu0 0
        %5598 = vmatprep.subr.bf16.mxu0 0
        %5599 = vmatpush1.bf16.msra.mxu0 0
        %5600 = vmatprep.subr.bf16.mxu0 0
        %5601 = vmatpush1.bf16.msra.mxu0 0
        %5602 = vmatprep.subr.bf16.mxu0 0
        %5603 = vmatpush1.bf16.msra.mxu0 0
        %5604 = vmatprep.subr.bf16.mxu0 0
        %5605 = vmatpush1.bf16.msra.mxu0 0
        %5606 = vmatprep.subr.bf16.mxu0 0
        %5607 = vmatpush1.bf16.msra.mxu0 0
        %5608 = vmatprep.subr.bf16.mxu0 0
        %5609 = vmatpush1.bf16.msra.mxu0 0
        %5610 = vmatprep.subr.bf16.mxu0 0
        %5611 = vmatpush1.bf16.msra.mxu0 0
        %5612 = vmatprep.subr.bf16.mxu0 0
        %5613 = vmatpush1.bf16.msra.mxu0 0
        %5614 = vmatprep.mubr.bf16.mxu0 0
        %5615 = vmatmul.mubr.bf16.gmra.mrb[0].mxu0 %v5577
        %v5616 = vpop.f32.mrb[0].mxu0
        %v5617 = vadd.f32 0.0, %v5616
        %v5618 = vpop.f32.mrb[0].mxu0
        %v5619 = vadd.f32 0.0, %v5618
        %v5620 = vpop.f32.mrb[0].mxu0
        %v5621 = vadd.f32 0.0, %v5620
        %v5622 = vpop.f32.mrb[0].mxu0
        %v5623 = vadd.f32 0.0, %v5622
        %5624 = vmatprep.mubr.bf16.mxu0 0
        %5625 = vmatmul.mubr.bf16.gmra.mrb[0].mxu0 %v5580
        %v5626 = vpop.f32.mrb[0].mxu0
        %v5627 = vadd.f32 0.0, %v5626
        %v5628 = vpop.f32.mrb[0].mxu0
        %v5629 = vadd.f32 0.0, %v5628
        %v5630 = vpop.f32.mrb[0].mxu0
        %v5631 = vadd.f32 0.0, %v5630
        %v5632 = vpop.f32.mrb[0].mxu0
        %v5633 = vadd.f32 0.0, %v5632
        %5634 = vdwg.mxu0
        %v5635 = vadd.f32 %v5543, %v5617
        %v5636 = vadd.f32 %v5544, %v5619
        %v5637 = vadd.f32 %v5545, %v5621
        %v5638 = vadd.f32 %v5546, %v5623
        %v5639 = vadd.f32 %v5547, %v5627
        %v5640 = vadd.f32 %v5548, %v5629
        %v5641 = vadd.f32 %v5549, %v5631
        %v5642 = vadd.f32 %v5550, %v5633
        %5643 = vrot.lane.b32.xlu0 %v3325, 112
        %v5644 = vpop.permute.xlu0 %5643
        %5645 = vrot.lane.b32.xlu0 %v5026, 112
        %v5646 = vpop.permute.xlu0 %5645
        %5647 = vrot.lane.b32.xlu0 %v3326, 112
        %v5648 = vpop.permute.xlu0 %5647
        %5649 = vrot.lane.b32.xlu0 %v5027, 112
        %v5650 = vpop.permute.xlu0 %5649
        %v5651 = vsel %vm3182, %v5644, %v5648
        %v5652 = vsel %vm3182, %v5646, %v5650
        %v5653 = vsel %vm3182, %v5648, %v5644
        %v5654 = vsel %vm3182, %v5650, %v5646
        %v5655 = vsel %vm3187, %v5651, 0.0
        %v5656 = vsel %vm3188, %v5653, 0.0
        %v5657 = vsel %vm3187, %v5652, 0.0
        %v5658 = vsel %vm3188, %v5654, 0.0
        %v5659 = vpack.c.bf16 %v5657, %v5655
        %v5660 = vpack.c.bf16 %v5658, %v5656
        %s5661 = scalar_lea.vmem %s47, 224
        %v5662 = vld [vmem:[%s5661] sm:$0xff]
        %v5663 = vld [vmem:[%s5661 + $0x8] sm:$0xff]
        %v5664 = vld [vmem:[%s5661 + $0x10] sm:$0xff]
        %v5665 = vld [vmem:[%s5661 + $0x18] sm:$0xff]
        %v5666 = vpack.c.bf16 %v5663, %v5662
        %v5667 = vpack.c.bf16 %v5665, %v5664
        %v5669 = vsel %vm1183, %v5666, 0
        %v5672 = vsel %vm1183, %v5667, 0
        %5674 = vmatprep.subr.bf16.mxu0 %v5660
        %5675 = vmatpush1.bf16.msra.mxu0 %v5659
        %5676 = vmatprep.subr.bf16.mxu0 0
        %5677 = vmatpush1.bf16.msra.mxu0 0
        %5678 = vmatprep.subr.bf16.mxu0 0
        %5679 = vmatpush1.bf16.msra.mxu0 0
        %5680 = vmatprep.subr.bf16.mxu0 0
        %5681 = vmatpush1.bf16.msra.mxu0 0
        %5682 = vmatprep.subr.bf16.mxu0 0
        %5683 = vmatpush1.bf16.msra.mxu0 0
        %5684 = vmatprep.subr.bf16.mxu0 0
        %5685 = vmatpush1.bf16.msra.mxu0 0
        %5686 = vmatprep.subr.bf16.mxu0 0
        %5687 = vmatpush1.bf16.msra.mxu0 0
        %5688 = vmatprep.subr.bf16.mxu0 0
        %5689 = vmatpush1.bf16.msra.mxu0 0
        %5690 = vmatprep.subr.bf16.mxu0 0
        %5691 = vmatpush1.bf16.msra.mxu0 0
        %5692 = vmatprep.subr.bf16.mxu0 0
        %5693 = vmatpush1.bf16.msra.mxu0 0
        %5694 = vmatprep.subr.bf16.mxu0 0
        %5695 = vmatpush1.bf16.msra.mxu0 0
        %5696 = vmatprep.subr.bf16.mxu0 0
        %5697 = vmatpush1.bf16.msra.mxu0 0
        %5698 = vmatprep.subr.bf16.mxu0 0
        %5699 = vmatpush1.bf16.msra.mxu0 0
        %5700 = vmatprep.subr.bf16.mxu0 0
        %5701 = vmatpush1.bf16.msra.mxu0 0
        %5702 = vmatprep.subr.bf16.mxu0 0
        %5703 = vmatpush1.bf16.msra.mxu0 0
        %5704 = vmatprep.subr.bf16.mxu0 0
        %5705 = vmatpush1.bf16.msra.mxu0 0
        %5706 = vmatprep.mubr.bf16.mxu0 0
        %5707 = vmatmul.mubr.bf16.gmra.mrb[0].mxu0 %v5669
        %v5708 = vpop.f32.mrb[0].mxu0
        %v5709 = vadd.f32 0.0, %v5708
        %v5710 = vpop.f32.mrb[0].mxu0
        %v5711 = vadd.f32 0.0, %v5710
        %v5712 = vpop.f32.mrb[0].mxu0
        %v5713 = vadd.f32 0.0, %v5712
        %v5714 = vpop.f32.mrb[0].mxu0
        %v5715 = vadd.f32 0.0, %v5714
        %5716 = vmatprep.mubr.bf16.mxu0 0
        %5717 = vmatmul.mubr.bf16.gmra.mrb[0].mxu0 %v5672
        %v5718 = vpop.f32.mrb[0].mxu0
        %v5719 = vadd.f32 0.0, %v5718
        %v5720 = vpop.f32.mrb[0].mxu0
        %v5721 = vadd.f32 0.0, %v5720
        %v5722 = vpop.f32.mrb[0].mxu0
        %v5723 = vadd.f32 0.0, %v5722
        %v5724 = vpop.f32.mrb[0].mxu0
        %v5725 = vadd.f32 0.0, %v5724
        %5726 = vdwg.mxu0
        %v5727 = vadd.f32 %v5635, %v5709
        %v5728 = vadd.f32 %v5636, %v5711
        %v5729 = vadd.f32 %v5637, %v5713
        %v5730 = vadd.f32 %v5638, %v5715
        %v5731 = vadd.f32 %v5639, %v5719
        %v5732 = vadd.f32 %v5640, %v5721
        %v5733 = vadd.f32 %v5641, %v5723
        %v5734 = vadd.f32 %v5642, %v5725
        %5735 = vrot.lane.b32.xlu0 %v3325, 111
        %v5736 = vpop.permute.xlu0 %5735
        %5737 = vrot.lane.b32.xlu0 %v5026, 111
        %v5738 = vpop.permute.xlu0 %5737
        %5739 = vrot.lane.b32.xlu0 %v3326, 111
        %v5740 = vpop.permute.xlu0 %5739
        %5741 = vrot.lane.b32.xlu0 %v5027, 111
        %v5742 = vpop.permute.xlu0 %5741
        %v5743 = vsel %vm3252, %v5736, %v5740
        %v5744 = vsel %vm3252, %v5738, %v5742
        %v5745 = vsel %vm3252, %v5740, %v5736
        %v5746 = vsel %vm3252, %v5742, %v5738
        %v5747 = vsel %vm3257, %v5743, 0.0
        %v5748 = vsel %vm3258, %v5745, 0.0
        %v5749 = vsel %vm3257, %v5744, 0.0
        %v5750 = vsel %vm3258, %v5746, 0.0
        %v5751 = vpack.c.bf16 %v5749, %v5747
        %v5752 = vpack.c.bf16 %v5750, %v5748
        %s5753 = scalar_lea.vmem %s47, 256
        %v5754 = vld [vmem:[%s5753] sm:$0xff]
        %v5755 = vld [vmem:[%s5753 + $0x8] sm:$0xff]
        %v5756 = vld [vmem:[%s5753 + $0x10] sm:$0xff]
        %v5757 = vld [vmem:[%s5753 + $0x18] sm:$0xff]
        %v5758 = vpack.c.bf16 %v5755, %v5754
        %v5759 = vpack.c.bf16 %v5757, %v5756
        %v5761 = vsel %vm1183, %v5758, 0
        %v5764 = vsel %vm1183, %v5759, 0
        %5766 = vmatprep.subr.bf16.mxu0 %v5752
        %5767 = vmatpush1.bf16.msra.mxu0 %v5751
        %5768 = vmatprep.subr.bf16.mxu0 0
        %5769 = vmatpush1.bf16.msra.mxu0 0
        %5770 = vmatprep.subr.bf16.mxu0 0
        %5771 = vmatpush1.bf16.msra.mxu0 0
        %5772 = vmatprep.subr.bf16.mxu0 0
        %5773 = vmatpush1.bf16.msra.mxu0 0
        %5774 = vmatprep.subr.bf16.mxu0 0
        %5775 = vmatpush1.bf16.msra.mxu0 0
        %5776 = vmatprep.subr.bf16.mxu0 0
        %5777 = vmatpush1.bf16.msra.mxu0 0
        %5778 = vmatprep.subr.bf16.mxu0 0
        %5779 = vmatpush1.bf16.msra.mxu0 0
        %5780 = vmatprep.subr.bf16.mxu0 0
        %5781 = vmatpush1.bf16.msra.mxu0 0
        %5782 = vmatprep.subr.bf16.mxu0 0
        %5783 = vmatpush1.bf16.msra.mxu0 0
        %5784 = vmatprep.subr.bf16.mxu0 0
        %5785 = vmatpush1.bf16.msra.mxu0 0
        %5786 = vmatprep.subr.bf16.mxu0 0
        %5787 = vmatpush1.bf16.msra.mxu0 0
        %5788 = vmatprep.subr.bf16.mxu0 0
        %5789 = vmatpush1.bf16.msra.mxu0 0
        %5790 = vmatprep.subr.bf16.mxu0 0
        %5791 = vmatpush1.bf16.msra.mxu0 0
        %5792 = vmatprep.subr.bf16.mxu0 0
        %5793 = vmatpush1.bf16.msra.mxu0 0
        %5794 = vmatprep.subr.bf16.mxu0 0
        %5795 = vmatpush1.bf16.msra.mxu0 0
        %5796 = vmatprep.subr.bf16.mxu0 0
        %5797 = vmatpush1.bf16.msra.mxu0 0
        %5798 = vmatprep.mubr.bf16.mxu0 0
        %5799 = vmatmul.mubr.bf16.gmra.mrb[0].mxu0 %v5761
        %v5800 = vpop.f32.mrb[0].mxu0
        %v5801 = vadd.f32 0.0, %v5800
        %v5802 = vpop.f32.mrb[0].mxu0
        %v5803 = vadd.f32 0.0, %v5802
        %v5804 = vpop.f32.mrb[0].mxu0
        %v5805 = vadd.f32 0.0, %v5804
        %v5806 = vpop.f32.mrb[0].mxu0
        %v5807 = vadd.f32 0.0, %v5806
        %5808 = vmatprep.mubr.bf16.mxu0 0
        %5809 = vmatmul.mubr.bf16.gmra.mrb[0].mxu0 %v5764
        %v5810 = vpop.f32.mrb[0].mxu0
        %v5811 = vadd.f32 0.0, %v5810
        %v5812 = vpop.f32.mrb[0].mxu0
        %v5813 = vadd.f32 0.0, %v5812
        %v5814 = vpop.f32.mrb[0].mxu0
        %v5815 = vadd.f32 0.0, %v5814
        %v5816 = vpop.f32.mrb[0].mxu0
        %v5817 = vadd.f32 0.0, %v5816
        %5818 = vdwg.mxu0
        %v5819 = vadd.f32 %v5727, %v5801
        %v5820 = vadd.f32 %v5728, %v5803
        %v5821 = vadd.f32 %v5729, %v5805
        %v5822 = vadd.f32 %v5730, %v5807
        %v5823 = vadd.f32 %v5731, %v5811
        %v5824 = vadd.f32 %v5732, %v5813
        %v5825 = vadd.f32 %v5733, %v5815
        %v5826 = vadd.f32 %v5734, %v5817
        %5828 = vset.pattern.permute.xlu0 0
        %5829 = vperm.xlu0 %5828, %v5028
        %v5830 = vpop.permute.xlu0 %5829
        %5833 = vset.pattern.permute.xlu0 0
        %5834 = vperm.xlu0 %5833, %v5029
        %v5835 = vpop.permute.xlu0 %5834
        %5838 = vset.pattern.permute.xlu0 0
        %5839 = vperm.xlu0 %5838, %v5030
        %v5840 = vpop.permute.xlu0 %5839
        %5843 = vset.pattern.permute.xlu0 0
        %5844 = vperm.xlu0 %5843, %v5031
        %v5845 = vpop.permute.xlu0 %5844
        %v5847 = vadd.f32 %v5819, %v5830
        %v5848 = vadd.f32 %v5820, %v5830
        %v5849 = vadd.f32 %v5821, %v5835
        %v5850 = vadd.f32 %v5822, %v5835
        %v5851 = vadd.f32 %v5823, %v5840
        %v5852 = vadd.f32 %v5824, %v5840
        %v5853 = vadd.f32 %v5825, %v5845
        %v5854 = vadd.f32 %v5826, %v5845
        %v5855 = vmax.f32 %v5847, 0.0
        %v5856 = vmax.f32 %v5848, 0.0
        %v5857 = vmax.f32 %v5849, 0.0
        %v5858 = vmax.f32 %v5850, 0.0
        %v5859 = vmax.f32 %v5851, 0.0
        %v5860 = vmax.f32 %v5852, 0.0
        %v5861 = vmax.f32 %v5853, 0.0
        %v5862 = vmax.f32 %v5854, 0.0
        %v5863 = vld [vmem:[#allocation23] sm:$0xff]
        %v5864 = vld [vmem:[#allocation23 + $0x8] sm:$0xff]
        %5865 = vrot.lane.b32.xlu0 %v5855, 17
        %v5866 = vpop.permute.xlu0 %5865
        %5867 = vrot.lane.b32.xlu0 %v5857, 17
        %v5868 = vpop.permute.xlu0 %5867
        %5869 = vrot.lane.b32.xlu0 %v5859, 17
        %v5870 = vpop.permute.xlu0 %5869
        %5871 = vrot.lane.b32.xlu0 %v5861, 17
        %v5872 = vpop.permute.xlu0 %5871
        %5873 = vrot.lane.b32.xlu0 %v5856, 17
        %v5874 = vpop.permute.xlu0 %5873
        %5875 = vrot.lane.b32.xlu0 %v5858, 17
        %v5876 = vpop.permute.xlu0 %5875
        %5877 = vrot.lane.b32.xlu0 %v5860, 17
        %v5878 = vpop.permute.xlu0 %5877
        %5879 = vrot.lane.b32.xlu0 %v5862, 17
        %v5880 = vpop.permute.xlu0 %5879
        %v5881 = vsel %vm2710, %v5866, %v5874
        %v5882 = vsel %vm2710, %v5868, %v5876
        %v5883 = vsel %vm2710, %v5870, %v5878
        %v5884 = vsel %vm2710, %v5872, %v5880
        %v5885 = vsel %vm2710, %v5874, %v5866
        %v5886 = vsel %vm2710, %v5876, %v5868
        %v5887 = vsel %vm2710, %v5878, %v5870
        %v5888 = vsel %vm2710, %v5880, %v5872
        %v5889 = vsel %vm2715, %v5885, 0.0
        %v5890 = vsel %vm2716, %v5881, 0.0
        %v5891 = vsel %vm2715, %v5886, 0.0
        %v5892 = vsel %vm2716, %v5882, 0.0
        %v5893 = vsel %vm2715, %v5887, 0.0
        %v5894 = vsel %vm2716, %v5883, 0.0
        %v5895 = vsel %vm2715, %v5888, 0.0
        %v5896 = vsel %vm2716, %v5884, 0.0
        %v5897 = vpack.c.bf16 %v5891, %v5889
        %v5898 = vpack.c.bf16 %v5892, %v5890
        %v5899 = vpack.c.bf16 %v5895, %v5893
        %v5900 = vpack.c.bf16 %v5896, %v5894
        %v5901 = vld [vmem:[%s51] sm:$0xff]
        %v5902 = vld [vmem:[%s51 + $0x8] sm:$0xff]
        %v5903 = vpack.c.bf16 %v5902, %v5901
        %5904 = vrot.lane.b32.xlu0 %v5855, 16
        %v5905 = vpop.permute.xlu0 %5904
        %5906 = vrot.lane.b32.xlu0 %v5857, 16
        %v5907 = vpop.permute.xlu0 %5906
        %5908 = vrot.lane.b32.xlu0 %v5859, 16
        %v5909 = vpop.permute.xlu0 %5908
        %5910 = vrot.lane.b32.xlu0 %v5861, 16
        %v5911 = vpop.permute.xlu0 %5910
        %5912 = vrot.lane.b32.xlu0 %v5856, 16
        %v5913 = vpop.permute.xlu0 %5912
        %5914 = vrot.lane.b32.xlu0 %v5858, 16
        %v5915 = vpop.permute.xlu0 %5914
        %5916 = vrot.lane.b32.xlu0 %v5860, 16
        %v5917 = vpop.permute.xlu0 %5916
        %5918 = vrot.lane.b32.xlu0 %v5862, 16
        %v5919 = vpop.permute.xlu0 %5918
        %v5920 = vsel %vm2727, %v5905, %v5913
        %v5921 = vsel %vm2727, %v5907, %v5915
        %v5922 = vsel %vm2727, %v5909, %v5917
        %v5923 = vsel %vm2727, %v5911, %v5919
        %v5924 = vsel %vm2727, %v5913, %v5905
        %v5925 = vsel %vm2727, %v5915, %v5907
        %v5926 = vsel %vm2727, %v5917, %v5909
        %v5927 = vsel %vm2727, %v5919, %v5911
        %v5928 = vsel %vm2732, %v5924, 0.0
        %v5929 = vsel %vm2733, %v5920, 0.0
        %v5930 = vsel %vm2732, %v5925, 0.0
        %v5931 = vsel %vm2733, %v5921, 0.0
        %v5932 = vsel %vm2732, %v5926, 0.0
        %v5933 = vsel %vm2733, %v5922, 0.0
        %v5934 = vsel %vm2732, %v5927, 0.0
        %v5935 = vsel %vm2733, %v5923, 0.0
        %v5936 = vpack.c.bf16 %v5930, %v5928
        %v5937 = vpack.c.bf16 %v5931, %v5929
        %v5938 = vpack.c.bf16 %v5934, %v5932
        %v5939 = vpack.c.bf16 %v5935, %v5933
        %s5940 = scalar_lea.vmem %s51, 16
        %v5941 = vld [vmem:[%s5940] sm:$0xff]
        %v5942 = vld [vmem:[%s5940 + $0x8] sm:$0xff]
        %v5943 = vpack.c.bf16 %v5942, %v5941
        %vm5944 = vcmask 261120
        %v5946 = vsel %vm5944, %v5943, 0
        %5948 = vmatprep.subr.bf16.mxu0 %v5937
        %5949 = vmatpush1.bf16.msra.mxu0 %v5936
        %5950 = vmatprep.subr.bf16.mxu0 %v5939
        %5951 = vmatpush1.bf16.msra.mxu0 %v5938
        %5952 = vmatprep.subr.bf16.mxu0 0
        %5953 = vmatpush1.bf16.msra.mxu0 0
        %5954 = vmatprep.subr.bf16.mxu0 0
        %5955 = vmatpush1.bf16.msra.mxu0 0
        %5956 = vmatprep.subr.bf16.mxu0 0
        %5957 = vmatpush1.bf16.msra.mxu0 0
        %5958 = vmatprep.subr.bf16.mxu0 0
        %5959 = vmatpush1.bf16.msra.mxu0 0
        %5960 = vmatprep.subr.bf16.mxu0 0
        %5961 = vmatpush1.bf16.msra.mxu0 0
        %5962 = vmatprep.subr.bf16.mxu0 0
        %5963 = vmatpush1.bf16.msra.mxu0 0
        %5964 = vmatprep.subr.bf16.mxu0 0
        %5965 = vmatpush1.bf16.msra.mxu0 0
        %5966 = vmatprep.subr.bf16.mxu0 0
        %5967 = vmatpush1.bf16.msra.mxu0 0
        %5968 = vmatprep.subr.bf16.mxu0 0
        %5969 = vmatpush1.bf16.msra.mxu0 0
        %5970 = vmatprep.subr.bf16.mxu0 0
        %5971 = vmatpush1.bf16.msra.mxu0 0
        %5972 = vmatprep.subr.bf16.mxu0 0
        %5973 = vmatpush1.bf16.msra.mxu0 0
        %5974 = vmatprep.subr.bf16.mxu0 0
        %5975 = vmatpush1.bf16.msra.mxu0 0
        %5976 = vmatprep.subr.bf16.mxu0 0
        %5977 = vmatpush1.bf16.msra.mxu0 0
        %5978 = vmatprep.subr.bf16.mxu0 0
        %5979 = vmatpush1.bf16.msra.mxu0 0
        %5980 = vmatprep.mubr.bf16.mxu0 0
        %5981 = vmatmul.mubr.bf16.gmra.mrb[0].mxu0 %v5946
        %v5982 = vpop.f32.mrb[0].mxu0
        %v5983 = vadd.f32 0.0, %v5982
        %v5984 = vpop.f32.mrb[0].mxu0
        %v5985 = vadd.f32 0.0, %v5984
        %v5986 = vpop.f32.mrb[0].mxu0
        %v5987 = vadd.f32 0.0, %v5986
        %v5988 = vpop.f32.mrb[0].mxu0
        %v5989 = vadd.f32 0.0, %v5988
        %5990 = vdwg.mxu0
        %v5992 = vsel %vm5944, %v5903, 0
        %5994 = vmatprep.subr.bf16.mxu0 %v5898
        %5995 = vmatpush1.bf16.msra.mxu0 %v5897
        %5996 = vmatprep.subr.bf16.mxu0 %v5900
        %5997 = vmatpush1.bf16.msra.mxu0 %v5899
        %5998 = vmatprep.subr.bf16.mxu0 0
        %5999 = vmatpush1.bf16.msra.mxu0 0
        %6000 = vmatprep.subr.bf16.mxu0 0
        %6001 = vmatpush1.bf16.msra.mxu0 0
        %6002 = vmatprep.subr.bf16.mxu0 0
        %6003 = vmatpush1.bf16.msra.mxu0 0
        %6004 = vmatprep.subr.bf16.mxu0 0
        %6005 = vmatpush1.bf16.msra.mxu0 0
        %6006 = vmatprep.subr.bf16.mxu0 0
        %6007 = vmatpush1.bf16.msra.mxu0 0
        %6008 = vmatprep.subr.bf16.mxu0 0
        %6009 = vmatpush1.bf16.msra.mxu0 0
        %6010 = vmatprep.subr.bf16.mxu0 0
        %6011 = vmatpush1.bf16.msra.mxu0 0
        %6012 = vmatprep.subr.bf16.mxu0 0
        %6013 = vmatpush1.bf16.msra.mxu0 0
        %6014 = vmatprep.subr.bf16.mxu0 0
        %6015 = vmatpush1.bf16.msra.mxu0 0
        %6016 = vmatprep.subr.bf16.mxu0 0
        %6017 = vmatpush1.bf16.msra.mxu0 0
        %6018 = vmatprep.subr.bf16.mxu0 0
        %6019 = vmatpush1.bf16.msra.mxu0 0
        %6020 = vmatprep.subr.bf16.mxu0 0
        %6021 = vmatpush1.bf16.msra.mxu0 0
        %6022 = vmatprep.subr.bf16.mxu0 0
        %6023 = vmatpush1.bf16.msra.mxu0 0
        %6024 = vmatprep.subr.bf16.mxu0 0
        %6025 = vmatpush1.bf16.msra.mxu0 0
        %6026 = vmatprep.mubr.bf16.mxu0 0
        %6027 = vmatmul.mubr.bf16.gmra.mrb[0].mxu0 %v5992
        %v6028 = vpop.f32.mrb[0].mxu0
        %v6029 = vadd.f32 %v5983, %v6028
        %v6030 = vpop.f32.mrb[0].mxu0
        %v6031 = vadd.f32 %v5985, %v6030
        %v6032 = vpop.f32.mrb[0].mxu0
        %v6033 = vadd.f32 %v5987, %v6032
        %v6034 = vpop.f32.mrb[0].mxu0
        %v6035 = vadd.f32 %v5989, %v6034
        %6036 = vdwg.mxu0
        %6037 = vrot.lane.b32.xlu0 %v5855, 15
        %v6038 = vpop.permute.xlu0 %6037
        %6039 = vrot.lane.b32.xlu0 %v5857, 15
        %v6040 = vpop.permute.xlu0 %6039
        %6041 = vrot.lane.b32.xlu0 %v5859, 15
        %v6042 = vpop.permute.xlu0 %6041
        %6043 = vrot.lane.b32.xlu0 %v5861, 15
        %v6044 = vpop.permute.xlu0 %6043
        %6045 = vrot.lane.b32.xlu0 %v5856, 15
        %v6046 = vpop.permute.xlu0 %6045
        %6047 = vrot.lane.b32.xlu0 %v5858, 15
        %v6048 = vpop.permute.xlu0 %6047
        %6049 = vrot.lane.b32.xlu0 %v5860, 15
        %v6050 = vpop.permute.xlu0 %6049
        %6051 = vrot.lane.b32.xlu0 %v5862, 15
        %v6052 = vpop.permute.xlu0 %6051
        %v6053 = vsel %vm2845, %v6038, %v6046
        %v6054 = vsel %vm2845, %v6040, %v6048
        %v6055 = vsel %vm2845, %v6042, %v6050
        %v6056 = vsel %vm2845, %v6044, %v6052
        %v6057 = vsel %vm2845, %v6046, %v6038
        %v6058 = vsel %vm2845, %v6048, %v6040
        %v6059 = vsel %vm2845, %v6050, %v6042
        %v6060 = vsel %vm2845, %v6052, %v6044
        %v6061 = vsel %vm2850, %v6057, 0.0
        %v6062 = vsel %vm2851, %v6053, 0.0
        %v6063 = vsel %vm2850, %v6058, 0.0
        %v6064 = vsel %vm2851, %v6054, 0.0
        %v6065 = vsel %vm2850, %v6059, 0.0
        %v6066 = vsel %vm2851, %v6055, 0.0
        %v6067 = vsel %vm2850, %v6060, 0.0
        %v6068 = vsel %vm2851, %v6056, 0.0
        %v6069 = vpack.c.bf16 %v6063, %v6061
        %v6070 = vpack.c.bf16 %v6064, %v6062
        %v6071 = vpack.c.bf16 %v6067, %v6065
        %v6072 = vpack.c.bf16 %v6068, %v6066
        %s6073 = scalar_lea.vmem %s51, 32
        %v6074 = vld [vmem:[%s6073] sm:$0xff]
        %v6075 = vld [vmem:[%s6073 + $0x8] sm:$0xff]
        %v6076 = vpack.c.bf16 %v6075, %v6074
        %v6078 = vsel %vm5944, %v6076, 0
        %6080 = vmatprep.subr.bf16.mxu0 %v6070
        %6081 = vmatpush1.bf16.msra.mxu0 %v6069
        %6082 = vmatprep.subr.bf16.mxu0 %v6072
        %6083 = vmatpush1.bf16.msra.mxu0 %v6071
        %6084 = vmatprep.subr.bf16.mxu0 0
        %6085 = vmatpush1.bf16.msra.mxu0 0
        %6086 = vmatprep.subr.bf16.mxu0 0
        %6087 = vmatpush1.bf16.msra.mxu0 0
        %6088 = vmatprep.subr.bf16.mxu0 0
        %6089 = vmatpush1.bf16.msra.mxu0 0
        %6090 = vmatprep.subr.bf16.mxu0 0
        %6091 = vmatpush1.bf16.msra.mxu0 0
        %6092 = vmatprep.subr.bf16.mxu0 0
        %6093 = vmatpush1.bf16.msra.mxu0 0
        %6094 = vmatprep.subr.bf16.mxu0 0
        %6095 = vmatpush1.bf16.msra.mxu0 0
        %6096 = vmatprep.subr.bf16.mxu0 0
        %6097 = vmatpush1.bf16.msra.mxu0 0
        %6098 = vmatprep.subr.bf16.mxu0 0
        %6099 = vmatpush1.bf16.msra.mxu0 0
        %6100 = vmatprep.subr.bf16.mxu0 0
        %6101 = vmatpush1.bf16.msra.mxu0 0
        %6102 = vmatprep.subr.bf16.mxu0 0
        %6103 = vmatpush1.bf16.msra.mxu0 0
        %6104 = vmatprep.subr.bf16.mxu0 0
        %6105 = vmatpush1.bf16.msra.mxu0 0
        %6106 = vmatprep.subr.bf16.mxu0 0
        %6107 = vmatpush1.bf16.msra.mxu0 0
        %6108 = vmatprep.subr.bf16.mxu0 0
        %6109 = vmatpush1.bf16.msra.mxu0 0
        %6110 = vmatprep.subr.bf16.mxu0 0
        %6111 = vmatpush1.bf16.msra.mxu0 0
        %6112 = vmatprep.mubr.bf16.mxu0 0
        %6113 = vmatmul.mubr.bf16.gmra.mrb[0].mxu0 %v6078
        %v6114 = vpop.f32.mrb[0].mxu0
        %v6115 = vadd.f32 0.0, %v6114
        %v6116 = vpop.f32.mrb[0].mxu0
        %v6117 = vadd.f32 0.0, %v6116
        %v6118 = vpop.f32.mrb[0].mxu0
        %v6119 = vadd.f32 0.0, %v6118
        %v6120 = vpop.f32.mrb[0].mxu0
        %v6121 = vadd.f32 0.0, %v6120
        %6122 = vdwg.mxu0
        %v6123 = vadd.f32 %v6029, %v6115
        %v6124 = vadd.f32 %v6031, %v6117
        %v6125 = vadd.f32 %v6033, %v6119
        %v6126 = vadd.f32 %v6035, %v6121
        %6127 = vrot.lane.b32.xlu0 %v5855, 1
        %v6128 = vpop.permute.xlu0 %6127
        %6129 = vrot.lane.b32.xlu0 %v5857, 1
        %v6130 = vpop.permute.xlu0 %6129
        %6131 = vrot.lane.b32.xlu0 %v5859, 1
        %v6132 = vpop.permute.xlu0 %6131
        %6133 = vrot.lane.b32.xlu0 %v5861, 1
        %v6134 = vpop.permute.xlu0 %6133
        %6135 = vrot.lane.b32.xlu0 %v5856, 1
        %v6136 = vpop.permute.xlu0 %6135
        %6137 = vrot.lane.b32.xlu0 %v5858, 1
        %v6138 = vpop.permute.xlu0 %6137
        %6139 = vrot.lane.b32.xlu0 %v5860, 1
        %v6140 = vpop.permute.xlu0 %6139
        %6141 = vrot.lane.b32.xlu0 %v5862, 1
        %v6142 = vpop.permute.xlu0 %6141
        %v6143 = vsel %vm2915, %v6128, %v6136
        %v6144 = vsel %vm2915, %v6130, %v6138
        %v6145 = vsel %vm2915, %v6132, %v6140
        %v6146 = vsel %vm2915, %v6134, %v6142
        %v6147 = vsel %vm2915, %v6136, %v6128
        %v6148 = vsel %vm2915, %v6138, %v6130
        %v6149 = vsel %vm2915, %v6140, %v6132
        %v6150 = vsel %vm2915, %v6142, %v6134
        %v6151 = vsel %vm2920, %v6147, 0.0
        %v6152 = vsel %vm2921, %v6143, 0.0
        %v6153 = vsel %vm2920, %v6148, 0.0
        %v6154 = vsel %vm2921, %v6144, 0.0
        %v6155 = vsel %vm2920, %v6149, 0.0
        %v6156 = vsel %vm2921, %v6145, 0.0
        %v6157 = vsel %vm2920, %v6150, 0.0
        %v6158 = vsel %vm2921, %v6146, 0.0
        %v6159 = vpack.c.bf16 %v6153, %v6151
        %v6160 = vpack.c.bf16 %v6154, %v6152
        %v6161 = vpack.c.bf16 %v6157, %v6155
        %v6162 = vpack.c.bf16 %v6158, %v6156
        %s6163 = scalar_lea.vmem %s51, 48
        %v6164 = vld [vmem:[%s6163] sm:$0xff]
        %v6165 = vld [vmem:[%s6163 + $0x8] sm:$0xff]
        %v6166 = vpack.c.bf16 %v6165, %v6164
        %v6168 = vsel %vm5944, %v6166, 0
        %6170 = vmatprep.subr.bf16.mxu0 %v6160
        %6171 = vmatpush1.bf16.msra.mxu0 %v6159
        %6172 = vmatprep.subr.bf16.mxu0 %v6162
        %6173 = vmatpush1.bf16.msra.mxu0 %v6161
        %6174 = vmatprep.subr.bf16.mxu0 0
        %6175 = vmatpush1.bf16.msra.mxu0 0
        %6176 = vmatprep.subr.bf16.mxu0 0
        %6177 = vmatpush1.bf16.msra.mxu0 0
        %6178 = vmatprep.subr.bf16.mxu0 0
        %6179 = vmatpush1.bf16.msra.mxu0 0
        %6180 = vmatprep.subr.bf16.mxu0 0
        %6181 = vmatpush1.bf16.msra.mxu0 0
        %6182 = vmatprep.subr.bf16.mxu0 0
        %6183 = vmatpush1.bf16.msra.mxu0 0
        %6184 = vmatprep.subr.bf16.mxu0 0
        %6185 = vmatpush1.bf16.msra.mxu0 0
        %6186 = vmatprep.subr.bf16.mxu0 0
        %6187 = vmatpush1.bf16.msra.mxu0 0
        %6188 = vmatprep.subr.bf16.mxu0 0
        %6189 = vmatpush1.bf16.msra.mxu0 0
        %6190 = vmatprep.subr.bf16.mxu0 0
        %6191 = vmatpush1.bf16.msra.mxu0 0
        %6192 = vmatprep.subr.bf16.mxu0 0
        %6193 = vmatpush1.bf16.msra.mxu0 0
        %6194 = vmatprep.subr.bf16.mxu0 0
        %6195 = vmatpush1.bf16.msra.mxu0 0
        %6196 = vmatprep.subr.bf16.mxu0 0
        %6197 = vmatpush1.bf16.msra.mxu0 0
        %6198 = vmatprep.subr.bf16.mxu0 0
        %6199 = vmatpush1.bf16.msra.mxu0 0
        %6200 = vmatprep.subr.bf16.mxu0 0
        %6201 = vmatpush1.bf16.msra.mxu0 0
        %6202 = vmatprep.mubr.bf16.mxu0 0
        %6203 = vmatmul.mubr.bf16.gmra.mrb[0].mxu0 %v6168
        %v6204 = vpop.f32.mrb[0].mxu0
        %v6205 = vadd.f32 0.0, %v6204
        %v6206 = vpop.f32.mrb[0].mxu0
        %v6207 = vadd.f32 0.0, %v6206
        %v6208 = vpop.f32.mrb[0].mxu0
        %v6209 = vadd.f32 0.0, %v6208
        %v6210 = vpop.f32.mrb[0].mxu0
        %v6211 = vadd.f32 0.0, %v6210
        %6212 = vdwg.mxu0
        %v6213 = vadd.f32 %v6123, %v6205
        %v6214 = vadd.f32 %v6124, %v6207
        %v6215 = vadd.f32 %v6125, %v6209
        %v6216 = vadd.f32 %v6126, %v6211
        %v6217 = vpack.c.bf16 %v5857, %v5855
        %v6218 = vpack.c.bf16 %v5858, %v5856
        %v6219 = vpack.c.bf16 %v5861, %v5859
        %v6220 = vpack.c.bf16 %v5862, %v5860
        %s6221 = scalar_lea.vmem %s51, 64
        %v6222 = vld [vmem:[%s6221] sm:$0xff]
        %v6223 = vld [vmem:[%s6221 + $0x8] sm:$0xff]
        %v6224 = vpack.c.bf16 %v6223, %v6222
        %v6226 = vsel %vm5944, %v6224, 0
        %6228 = vmatprep.subr.bf16.mxu0 %v6218
        %6229 = vmatpush1.bf16.msra.mxu0 %v6217
        %6230 = vmatprep.subr.bf16.mxu0 %v6220
        %6231 = vmatpush1.bf16.msra.mxu0 %v6219
        %6232 = vmatprep.subr.bf16.mxu0 0
        %6233 = vmatpush1.bf16.msra.mxu0 0
        %6234 = vmatprep.subr.bf16.mxu0 0
        %6235 = vmatpush1.bf16.msra.mxu0 0
        %6236 = vmatprep.subr.bf16.mxu0 0
        %6237 = vmatpush1.bf16.msra.mxu0 0
        %6238 = vmatprep.subr.bf16.mxu0 0
        %6239 = vmatpush1.bf16.msra.mxu0 0
        %6240 = vmatprep.subr.bf16.mxu0 0
        %6241 = vmatpush1.bf16.msra.mxu0 0
        %6242 = vmatprep.subr.bf16.mxu0 0
        %6243 = vmatpush1.bf16.msra.mxu0 0
        %6244 = vmatprep.subr.bf16.mxu0 0
        %6245 = vmatpush1.bf16.msra.mxu0 0
        %6246 = vmatprep.subr.bf16.mxu0 0
        %6247 = vmatpush1.bf16.msra.mxu0 0
        %6248 = vmatprep.subr.bf16.mxu0 0
        %6249 = vmatpush1.bf16.msra.mxu0 0
        %6250 = vmatprep.subr.bf16.mxu0 0
        %6251 = vmatpush1.bf16.msra.mxu0 0
        %6252 = vmatprep.subr.bf16.mxu0 0
        %6253 = vmatpush1.bf16.msra.mxu0 0
        %6254 = vmatprep.subr.bf16.mxu0 0
        %6255 = vmatpush1.bf16.msra.mxu0 0
        %6256 = vmatprep.subr.bf16.mxu0 0
        %6257 = vmatpush1.bf16.msra.mxu0 0
        %6258 = vmatprep.subr.bf16.mxu0 0
        %6259 = vmatpush1.bf16.msra.mxu0 0
        %6260 = vmatprep.mubr.bf16.mxu0 0
        %6261 = vmatmul.mubr.bf16.gmra.mrb[0].mxu0 %v6226
        %v6262 = vpop.f32.mrb[0].mxu0
        %v6263 = vadd.f32 0.0, %v6262
        %v6264 = vpop.f32.mrb[0].mxu0
        %v6265 = vadd.f32 0.0, %v6264
        %v6266 = vpop.f32.mrb[0].mxu0
        %v6267 = vadd.f32 0.0, %v6266
        %v6268 = vpop.f32.mrb[0].mxu0
        %v6269 = vadd.f32 0.0, %v6268
        %6270 = vdwg.mxu0
        %v6271 = vadd.f32 %v6213, %v6263
        %v6272 = vadd.f32 %v6214, %v6265
        %v6273 = vadd.f32 %v6215, %v6267
        %v6274 = vadd.f32 %v6216, %v6269
        %6275 = vrot.lane.b32.xlu0 %v5855, 127
        %v6276 = vpop.permute.xlu0 %6275
        %6277 = vrot.lane.b32.xlu0 %v5857, 127
        %v6278 = vpop.permute.xlu0 %6277
        %6279 = vrot.lane.b32.xlu0 %v5859, 127
        %v6280 = vpop.permute.xlu0 %6279
        %6281 = vrot.lane.b32.xlu0 %v5861, 127
        %v6282 = vpop.permute.xlu0 %6281
        %6283 = vrot.lane.b32.xlu0 %v5856, 127
        %v6284 = vpop.permute.xlu0 %6283
        %6285 = vrot.lane.b32.xlu0 %v5858, 127
        %v6286 = vpop.permute.xlu0 %6285
        %6287 = vrot.lane.b32.xlu0 %v5860, 127
        %v6288 = vpop.permute.xlu0 %6287
        %6289 = vrot.lane.b32.xlu0 %v5862, 127
        %v6290 = vpop.permute.xlu0 %6289
        %v6291 = vsel %vm3042, %v6276, %v6284
        %v6292 = vsel %vm3042, %v6278, %v6286
        %v6293 = vsel %vm3042, %v6280, %v6288
        %v6294 = vsel %vm3042, %v6282, %v6290
        %v6295 = vsel %vm3042, %v6284, %v6276
        %v6296 = vsel %vm3042, %v6286, %v6278
        %v6297 = vsel %vm3042, %v6288, %v6280
        %v6298 = vsel %vm3042, %v6290, %v6282
        %v6299 = vsel %vm3047, %v6291, 0.0
        %v6300 = vsel %vm3048, %v6295, 0.0
        %v6301 = vsel %vm3047, %v6292, 0.0
        %v6302 = vsel %vm3048, %v6296, 0.0
        %v6303 = vsel %vm3047, %v6293, 0.0
        %v6304 = vsel %vm3048, %v6297, 0.0
        %v6305 = vsel %vm3047, %v6294, 0.0
        %v6306 = vsel %vm3048, %v6298, 0.0
        %v6307 = vpack.c.bf16 %v6301, %v6299
        %v6308 = vpack.c.bf16 %v6302, %v6300
        %v6309 = vpack.c.bf16 %v6305, %v6303
        %v6310 = vpack.c.bf16 %v6306, %v6304
        %s6311 = scalar_lea.vmem %s51, 80
        %v6312 = vld [vmem:[%s6311] sm:$0xff]
        %v6313 = vld [vmem:[%s6311 + $0x8] sm:$0xff]
        %v6314 = vpack.c.bf16 %v6313, %v6312
        %v6316 = vsel %vm5944, %v6314, 0
        %6318 = vmatprep.subr.bf16.mxu0 %v6308
        %6319 = vmatpush1.bf16.msra.mxu0 %v6307
        %6320 = vmatprep.subr.bf16.mxu0 %v6310
        %6321 = vmatpush1.bf16.msra.mxu0 %v6309
        %6322 = vmatprep.subr.bf16.mxu0 0
        %6323 = vmatpush1.bf16.msra.mxu0 0
        %6324 = vmatprep.subr.bf16.mxu0 0
        %6325 = vmatpush1.bf16.msra.mxu0 0
        %6326 = vmatprep.subr.bf16.mxu0 0
        %6327 = vmatpush1.bf16.msra.mxu0 0
        %6328 = vmatprep.subr.bf16.mxu0 0
        %6329 = vmatpush1.bf16.msra.mxu0 0
        %6330 = vmatprep.subr.bf16.mxu0 0
        %6331 = vmatpush1.bf16.msra.mxu0 0
        %6332 = vmatprep.subr.bf16.mxu0 0
        %6333 = vmatpush1.bf16.msra.mxu0 0
        %6334 = vmatprep.subr.bf16.mxu0 0
        %6335 = vmatpush1.bf16.msra.mxu0 0
        %6336 = vmatprep.subr.bf16.mxu0 0
        %6337 = vmatpush1.bf16.msra.mxu0 0
        %6338 = vmatprep.subr.bf16.mxu0 0
        %6339 = vmatpush1.bf16.msra.mxu0 0
        %6340 = vmatprep.subr.bf16.mxu0 0
        %6341 = vmatpush1.bf16.msra.mxu0 0
        %6342 = vmatprep.subr.bf16.mxu0 0
        %6343 = vmatpush1.bf16.msra.mxu0 0
        %6344 = vmatprep.subr.bf16.mxu0 0
        %6345 = vmatpush1.bf16.msra.mxu0 0
        %6346 = vmatprep.subr.bf16.mxu0 0
        %6347 = vmatpush1.bf16.msra.mxu0 0
        %6348 = vmatprep.subr.bf16.mxu0 0
        %6349 = vmatpush1.bf16.msra.mxu0 0
        %6350 = vmatprep.mubr.bf16.mxu0 0
        %6351 = vmatmul.mubr.bf16.gmra.mrb[0].mxu0 %v6316
        %v6352 = vpop.f32.mrb[0].mxu0
        %v6353 = vadd.f32 0.0, %v6352
        %v6354 = vpop.f32.mrb[0].mxu0
        %v6355 = vadd.f32 0.0, %v6354
        %v6356 = vpop.f32.mrb[0].mxu0
        %v6357 = vadd.f32 0.0, %v6356
        %v6358 = vpop.f32.mrb[0].mxu0
        %v6359 = vadd.f32 0.0, %v6358
        %6360 = vdwg.mxu0
        %v6361 = vadd.f32 %v6271, %v6353
        %v6362 = vadd.f32 %v6272, %v6355
        %v6363 = vadd.f32 %v6273, %v6357
        %v6364 = vadd.f32 %v6274, %v6359
        %6365 = vrot.lane.b32.xlu0 %v5855, 113
        %v6366 = vpop.permute.xlu0 %6365
        %6367 = vrot.lane.b32.xlu0 %v5857, 113
        %v6368 = vpop.permute.xlu0 %6367
        %6369 = vrot.lane.b32.xlu0 %v5859, 113
        %v6370 = vpop.permute.xlu0 %6369
        %6371 = vrot.lane.b32.xlu0 %v5861, 113
        %v6372 = vpop.permute.xlu0 %6371
        %6373 = vrot.lane.b32.xlu0 %v5856, 113
        %v6374 = vpop.permute.xlu0 %6373
        %6375 = vrot.lane.b32.xlu0 %v5858, 113
        %v6376 = vpop.permute.xlu0 %6375
        %6377 = vrot.lane.b32.xlu0 %v5860, 113
        %v6378 = vpop.permute.xlu0 %6377
        %6379 = vrot.lane.b32.xlu0 %v5862, 113
        %v6380 = vpop.permute.xlu0 %6379
        %v6381 = vsel %vm3112, %v6366, %v6374
        %v6382 = vsel %vm3112, %v6368, %v6376
        %v6383 = vsel %vm3112, %v6370, %v6378
        %v6384 = vsel %vm3112, %v6372, %v6380
        %v6385 = vsel %vm3112, %v6374, %v6366
        %v6386 = vsel %vm3112, %v6376, %v6368
        %v6387 = vsel %vm3112, %v6378, %v6370
        %v6388 = vsel %vm3112, %v6380, %v6372
        %v6389 = vsel %vm3117, %v6381, 0.0
        %v6390 = vsel %vm3118, %v6385, 0.0
        %v6391 = vsel %vm3117, %v6382, 0.0
        %v6392 = vsel %vm3118, %v6386, 0.0
        %v6393 = vsel %vm3117, %v6383, 0.0
        %v6394 = vsel %vm3118, %v6387, 0.0
        %v6395 = vsel %vm3117, %v6384, 0.0
        %v6396 = vsel %vm3118, %v6388, 0.0
        %v6397 = vpack.c.bf16 %v6391, %v6389
        %v6398 = vpack.c.bf16 %v6392, %v6390
        %v6399 = vpack.c.bf16 %v6395, %v6393
        %v6400 = vpack.c.bf16 %v6396, %v6394
        %s6401 = scalar_lea.vmem %s51, 96
        %v6402 = vld [vmem:[%s6401] sm:$0xff]
        %v6403 = vld [vmem:[%s6401 + $0x8] sm:$0xff]
        %v6404 = vpack.c.bf16 %v6403, %v6402
        %v6406 = vsel %vm5944, %v6404, 0
        %6408 = vmatprep.subr.bf16.mxu0 %v6398
        %6409 = vmatpush1.bf16.msra.mxu0 %v6397
        %6410 = vmatprep.subr.bf16.mxu0 %v6400
        %6411 = vmatpush1.bf16.msra.mxu0 %v6399
        %6412 = vmatprep.subr.bf16.mxu0 0
        %6413 = vmatpush1.bf16.msra.mxu0 0
        %6414 = vmatprep.subr.bf16.mxu0 0
        %6415 = vmatpush1.bf16.msra.mxu0 0
        %6416 = vmatprep.subr.bf16.mxu0 0
        %6417 = vmatpush1.bf16.msra.mxu0 0
        %6418 = vmatprep.subr.bf16.mxu0 0
        %6419 = vmatpush1.bf16.msra.mxu0 0
        %6420 = vmatprep.subr.bf16.mxu0 0
        %6421 = vmatpush1.bf16.msra.mxu0 0
        %6422 = vmatprep.subr.bf16.mxu0 0
        %6423 = vmatpush1.bf16.msra.mxu0 0
        %6424 = vmatprep.subr.bf16.mxu0 0
        %6425 = vmatpush1.bf16.msra.mxu0 0
        %6426 = vmatprep.subr.bf16.mxu0 0
        %6427 = vmatpush1.bf16.msra.mxu0 0
        %6428 = vmatprep.subr.bf16.mxu0 0
        %6429 = vmatpush1.bf16.msra.mxu0 0
        %6430 = vmatprep.subr.bf16.mxu0 0
        %6431 = vmatpush1.bf16.msra.mxu0 0
        %6432 = vmatprep.subr.bf16.mxu0 0
        %6433 = vmatpush1.bf16.msra.mxu0 0
        %6434 = vmatprep.subr.bf16.mxu0 0
        %6435 = vmatpush1.bf16.msra.mxu0 0
        %6436 = vmatprep.subr.bf16.mxu0 0
        %6437 = vmatpush1.bf16.msra.mxu0 0
        %6438 = vmatprep.subr.bf16.mxu0 0
        %6439 = vmatpush1.bf16.msra.mxu0 0
        %6440 = vmatprep.mubr.bf16.mxu0 0
        %6441 = vmatmul.mubr.bf16.gmra.mrb[0].mxu0 %v6406
        %v6442 = vpop.f32.mrb[0].mxu0
        %v6443 = vadd.f32 0.0, %v6442
        %v6444 = vpop.f32.mrb[0].mxu0
        %v6445 = vadd.f32 0.0, %v6444
        %v6446 = vpop.f32.mrb[0].mxu0
        %v6447 = vadd.f32 0.0, %v6446
        %v6448 = vpop.f32.mrb[0].mxu0
        %v6449 = vadd.f32 0.0, %v6448
        %6450 = vdwg.mxu0
        %v6451 = vadd.f32 %v6361, %v6443
        %v6452 = vadd.f32 %v6362, %v6445
        %v6453 = vadd.f32 %v6363, %v6447
        %v6454 = vadd.f32 %v6364, %v6449
        %6455 = vrot.lane.b32.xlu0 %v5855, 112
        %v6456 = vpop.permute.xlu0 %6455
        %6457 = vrot.lane.b32.xlu0 %v5857, 112
        %v6458 = vpop.permute.xlu0 %6457
        %6459 = vrot.lane.b32.xlu0 %v5859, 112
        %v6460 = vpop.permute.xlu0 %6459
        %6461 = vrot.lane.b32.xlu0 %v5861, 112
        %v6462 = vpop.permute.xlu0 %6461
        %6463 = vrot.lane.b32.xlu0 %v5856, 112
        %v6464 = vpop.permute.xlu0 %6463
        %6465 = vrot.lane.b32.xlu0 %v5858, 112
        %v6466 = vpop.permute.xlu0 %6465
        %6467 = vrot.lane.b32.xlu0 %v5860, 112
        %v6468 = vpop.permute.xlu0 %6467
        %6469 = vrot.lane.b32.xlu0 %v5862, 112
        %v6470 = vpop.permute.xlu0 %6469
        %v6471 = vsel %vm3182, %v6456, %v6464
        %v6472 = vsel %vm3182, %v6458, %v6466
        %v6473 = vsel %vm3182, %v6460, %v6468
        %v6474 = vsel %vm3182, %v6462, %v6470
        %v6475 = vsel %vm3182, %v6464, %v6456
        %v6476 = vsel %vm3182, %v6466, %v6458
        %v6477 = vsel %vm3182, %v6468, %v6460
        %v6478 = vsel %vm3182, %v6470, %v6462
        %v6479 = vsel %vm3187, %v6471, 0.0
        %v6480 = vsel %vm3188, %v6475, 0.0
        %v6481 = vsel %vm3187, %v6472, 0.0
        %v6482 = vsel %vm3188, %v6476, 0.0
        %v6483 = vsel %vm3187, %v6473, 0.0
        %v6484 = vsel %vm3188, %v6477, 0.0
        %v6485 = vsel %vm3187, %v6474, 0.0
        %v6486 = vsel %vm3188, %v6478, 0.0
        %v6487 = vpack.c.bf16 %v6481, %v6479
        %v6488 = vpack.c.bf16 %v6482, %v6480
        %v6489 = vpack.c.bf16 %v6485, %v6483
        %v6490 = vpack.c.bf16 %v6486, %v6484
        %s6491 = scalar_lea.vmem %s51, 112
        %v6492 = vld [vmem:[%s6491] sm:$0xff]
        %v6493 = vld [vmem:[%s6491 + $0x8] sm:$0xff]
        %v6494 = vpack.c.bf16 %v6493, %v6492
        %v6496 = vsel %vm5944, %v6494, 0
        %6498 = vmatprep.subr.bf16.mxu0 %v6488
        %6499 = vmatpush1.bf16.msra.mxu0 %v6487
        %6500 = vmatprep.subr.bf16.mxu0 %v6490
        %6501 = vmatpush1.bf16.msra.mxu0 %v6489
        %6502 = vmatprep.subr.bf16.mxu0 0
        %6503 = vmatpush1.bf16.msra.mxu0 0
        %6504 = vmatprep.subr.bf16.mxu0 0
        %6505 = vmatpush1.bf16.msra.mxu0 0
        %6506 = vmatprep.subr.bf16.mxu0 0
        %6507 = vmatpush1.bf16.msra.mxu0 0
        %6508 = vmatprep.subr.bf16.mxu0 0
        %6509 = vmatpush1.bf16.msra.mxu0 0
        %6510 = vmatprep.subr.bf16.mxu0 0
        %6511 = vmatpush1.bf16.msra.mxu0 0
        %6512 = vmatprep.subr.bf16.mxu0 0
        %6513 = vmatpush1.bf16.msra.mxu0 0
        %6514 = vmatprep.subr.bf16.mxu0 0
        %6515 = vmatpush1.bf16.msra.mxu0 0
        %6516 = vmatprep.subr.bf16.mxu0 0
        %6517 = vmatpush1.bf16.msra.mxu0 0
        %6518 = vmatprep.subr.bf16.mxu0 0
        %6519 = vmatpush1.bf16.msra.mxu0 0
        %6520 = vmatprep.subr.bf16.mxu0 0
        %6521 = vmatpush1.bf16.msra.mxu0 0
        %6522 = vmatprep.subr.bf16.mxu0 0
        %6523 = vmatpush1.bf16.msra.mxu0 0
        %6524 = vmatprep.subr.bf16.mxu0 0
        %6525 = vmatpush1.bf16.msra.mxu0 0
        %6526 = vmatprep.subr.bf16.mxu0 0
        %6527 = vmatpush1.bf16.msra.mxu0 0
        %6528 = vmatprep.subr.bf16.mxu0 0
        %6529 = vmatpush1.bf16.msra.mxu0 0
        %6530 = vmatprep.mubr.bf16.mxu0 0
        %6531 = vmatmul.mubr.bf16.gmra.mrb[0].mxu0 %v6496
        %v6532 = vpop.f32.mrb[0].mxu0
        %v6533 = vadd.f32 0.0, %v6532
        %v6534 = vpop.f32.mrb[0].mxu0
        %v6535 = vadd.f32 0.0, %v6534
        %v6536 = vpop.f32.mrb[0].mxu0
        %v6537 = vadd.f32 0.0, %v6536
        %v6538 = vpop.f32.mrb[0].mxu0
        %v6539 = vadd.f32 0.0, %v6538
        %6540 = vdwg.mxu0
        %v6541 = vadd.f32 %v6451, %v6533
        %v6542 = vadd.f32 %v6452, %v6535
        %v6543 = vadd.f32 %v6453, %v6537
        %v6544 = vadd.f32 %v6454, %v6539
        %6545 = vrot.lane.b32.xlu0 %v5855, 111
        %v6546 = vpop.permute.xlu0 %6545
        %6547 = vrot.lane.b32.xlu0 %v5857, 111
        %v6548 = vpop.permute.xlu0 %6547
        %6549 = vrot.lane.b32.xlu0 %v5859, 111
        %v6550 = vpop.permute.xlu0 %6549
        %6551 = vrot.lane.b32.xlu0 %v5861, 111
        %v6552 = vpop.permute.xlu0 %6551
        %6553 = vrot.lane.b32.xlu0 %v5856, 111
        %v6554 = vpop.permute.xlu0 %6553
        %6555 = vrot.lane.b32.xlu0 %v5858, 111
        %v6556 = vpop.permute.xlu0 %6555
        %6557 = vrot.lane.b32.xlu0 %v5860, 111
        %v6558 = vpop.permute.xlu0 %6557
        %6559 = vrot.lane.b32.xlu0 %v5862, 111
        %v6560 = vpop.permute.xlu0 %6559
        %v6561 = vsel %vm3252, %v6546, %v6554
        %v6562 = vsel %vm3252, %v6548, %v6556
        %v6563 = vsel %vm3252, %v6550, %v6558
        %v6564 = vsel %vm3252, %v6552, %v6560
        %v6565 = vsel %vm3252, %v6554, %v6546
        %v6566 = vsel %vm3252, %v6556, %v6548
        %v6567 = vsel %vm3252, %v6558, %v6550
        %v6568 = vsel %vm3252, %v6560, %v6552
        %v6569 = vsel %vm3257, %v6561, 0.0
        %v6570 = vsel %vm3258, %v6565, 0.0
        %v6571 = vsel %vm3257, %v6562, 0.0
        %v6572 = vsel %vm3258, %v6566, 0.0
        %v6573 = vsel %vm3257, %v6563, 0.0
        %v6574 = vsel %vm3258, %v6567, 0.0
        %v6575 = vsel %vm3257, %v6564, 0.0
        %v6576 = vsel %vm3258, %v6568, 0.0
        %v6577 = vpack.c.bf16 %v6571, %v6569
        %v6578 = vpack.c.bf16 %v6572, %v6570
        %v6579 = vpack.c.bf16 %v6575, %v6573
        %v6580 = vpack.c.bf16 %v6576, %v6574
        %s6581 = scalar_lea.vmem %s51, 128
        %v6582 = vld [vmem:[%s6581] sm:$0xff]
        %v6583 = vld [vmem:[%s6581 + $0x8] sm:$0xff]
        %v6584 = vpack.c.bf16 %v6583, %v6582
        %v6586 = vsel %vm5944, %v6584, 0
        %6588 = vmatprep.subr.bf16.mxu0 %v6578
        %6589 = vmatpush1.bf16.msra.mxu0 %v6577
        %6590 = vmatprep.subr.bf16.mxu0 %v6580
        %6591 = vmatpush1.bf16.msra.mxu0 %v6579
        %6592 = vmatprep.subr.bf16.mxu0 0
        %6593 = vmatpush1.bf16.msra.mxu0 0
        %6594 = vmatprep.subr.bf16.mxu0 0
        %6595 = vmatpush1.bf16.msra.mxu0 0
        %6596 = vmatprep.subr.bf16.mxu0 0
        %6597 = vmatpush1.bf16.msra.mxu0 0
        %6598 = vmatprep.subr.bf16.mxu0 0
        %6599 = vmatpush1.bf16.msra.mxu0 0
        %6600 = vmatprep.subr.bf16.mxu0 0
        %6601 = vmatpush1.bf16.msra.mxu0 0
        %6602 = vmatprep.subr.bf16.mxu0 0
        %6603 = vmatpush1.bf16.msra.mxu0 0
        %6604 = vmatprep.subr.bf16.mxu0 0
        %6605 = vmatpush1.bf16.msra.mxu0 0
        %6606 = vmatprep.subr.bf16.mxu0 0
        %6607 = vmatpush1.bf16.msra.mxu0 0
        %6608 = vmatprep.subr.bf16.mxu0 0
        %6609 = vmatpush1.bf16.msra.mxu0 0
        %6610 = vmatprep.subr.bf16.mxu0 0
        %6611 = vmatpush1.bf16.msra.mxu0 0
        %6612 = vmatprep.subr.bf16.mxu0 0
        %6613 = vmatpush1.bf16.msra.mxu0 0
        %6614 = vmatprep.subr.bf16.mxu0 0
        %6615 = vmatpush1.bf16.msra.mxu0 0
        %6616 = vmatprep.subr.bf16.mxu0 0
        %6617 = vmatpush1.bf16.msra.mxu0 0
        %6618 = vmatprep.subr.bf16.mxu0 0
        %6619 = vmatpush1.bf16.msra.mxu0 0
        %6620 = vmatprep.mubr.bf16.mxu0 0
        %6621 = vmatmul.mubr.bf16.gmra.mrb[0].mxu0 %v6586
        %v6622 = vpop.f32.mrb[0].mxu0
        %v6623 = vadd.f32 0.0, %v6622
        %v6624 = vpop.f32.mrb[0].mxu0
        %v6625 = vadd.f32 0.0, %v6624
        %v6626 = vpop.f32.mrb[0].mxu0
        %v6627 = vadd.f32 0.0, %v6626
        %v6628 = vpop.f32.mrb[0].mxu0
        %v6629 = vadd.f32 0.0, %v6628
        %6630 = vdwg.mxu0
        %v6631 = vadd.f32 %v6541, %v6623
        %v6632 = vadd.f32 %v6542, %v6625
        %v6633 = vadd.f32 %v6543, %v6627
        %v6634 = vadd.f32 %v6544, %v6629
        %6636 = vset.pattern.permute.xlu0 0
        %6637 = vperm.xlu0 %6636, %v5863
        %v6638 = vpop.permute.xlu0 %6637
        %6641 = vset.pattern.permute.xlu0 0
        %6642 = vperm.xlu0 %6641, %v5864
        %v6643 = vpop.permute.xlu0 %6642
        %v6645 = vadd.f32 %v6631, %v6638
        %v6646 = vadd.f32 %v6632, %v6638
        %v6647 = vadd.f32 %v6633, %v6643
        %v6648 = vadd.f32 %v6634, %v6643
        %v6649 = vmax.f32 %v6645, 0.0
        %v6650 = vmax.f32 %v6646, 0.0
        %v6651 = vmax.f32 %v6647, 0.0
        %v6652 = vmax.f32 %v6648, 0.0
        %v6653 = vld [vmem:[#allocation25] sm:$0x1]
        %v6654 = vld [vmem:[#allocation2] sm:$0x1]
        %6656 = vset.pattern.permute.xlu0 0
        %6657 = vperm.xlu0 %6656, %v6653
        %v6658 = vpop.permute.xlu0 %6657
        %v6660 = vlaneseq
        %v6661 = vshrl.u32 %v6660, 7
        %v6662 = vsub.s32 0, %v6661
        %v6663 = vrot.slane %v6658, %v6662
        %v6664 = vmul.f32 %v6663, %v6649
        %v6665 = vmul.f32 %v6663, %v6650
        %6666 = vset.pattern.permute.xlu0 1
        %6667 = vperm.xlu0 %6666, %v6653
        %v6668 = vpop.permute.xlu0 %6667
        %v6670 = vlaneseq
        %v6671 = vshrl.u32 %v6670, 7
        %v6672 = vsub.s32 0, %v6671
        %v6673 = vrot.slane %v6668, %v6672
        %v6674 = vmul.f32 %v6673, %v6649
        %v6675 = vmul.f32 %v6673, %v6650
        %v6678 = vrot.slane %v6674, 1
        %v6679 = vrot.slane %v6675, 1
        %v6682 = vadd.f32 %v6664, %v6678
        %v6683 = vadd.f32 %v6665, %v6679
        %6684 = vset.pattern.permute.xlu0 2
        %6685 = vperm.xlu0 %6684, %v6653
        %v6686 = vpop.permute.xlu0 %6685
        %v6688 = vlaneseq
        %v6689 = vshrl.u32 %v6688, 7
        %v6690 = vsub.s32 0, %v6689
        %v6691 = vrot.slane %v6686, %v6690
        %v6692 = vmul.f32 %v6691, %v6649
        %v6693 = vmul.f32 %v6691, %v6650
        %v6696 = vrot.slane %v6692, 2
        %v6697 = vrot.slane %v6693, 2
        %v6700 = vadd.f32 %v6682, %v6696
        %v6701 = vadd.f32 %v6683, %v6697
        %6702 = vset.pattern.permute.xlu0 3
        %6703 = vperm.xlu0 %6702, %v6653
        %v6704 = vpop.permute.xlu0 %6703
        %v6706 = vlaneseq
        %v6707 = vshrl.u32 %v6706, 7
        %v6708 = vsub.s32 0, %v6707
        %v6709 = vrot.slane %v6704, %v6708
        %v6710 = vmul.f32 %v6709, %v6649
        %v6711 = vmul.f32 %v6709, %v6650
        %v6714 = vrot.slane %v6710, 3
        %v6715 = vrot.slane %v6711, 3
        %v6718 = vadd.f32 %v6700, %v6714
        %v6719 = vadd.f32 %v6701, %v6715
        %6720 = vset.pattern.permute.xlu0 4
        %6721 = vperm.xlu0 %6720, %v6653
        %v6722 = vpop.permute.xlu0 %6721
        %v6724 = vlaneseq
        %v6725 = vshrl.u32 %v6724, 7
        %v6726 = vsub.s32 0, %v6725
        %v6727 = vrot.slane %v6722, %v6726
        %v6728 = vmul.f32 %v6727, %v6649
        %v6729 = vmul.f32 %v6727, %v6650
        %v6732 = vrot.slane %v6728, 4
        %v6733 = vrot.slane %v6729, 4
        %v6736 = vadd.f32 %v6718, %v6732
        %v6737 = vadd.f32 %v6719, %v6733
        %6738 = vset.pattern.permute.xlu0 5
        %6739 = vperm.xlu0 %6738, %v6653
        %v6740 = vpop.permute.xlu0 %6739
        %v6742 = vlaneseq
        %v6743 = vshrl.u32 %v6742, 7
        %v6744 = vsub.s32 0, %v6743
        %v6745 = vrot.slane %v6740, %v6744
        %v6746 = vmul.f32 %v6745, %v6649
        %v6747 = vmul.f32 %v6745, %v6650
        %v6750 = vrot.slane %v6746, 5
        %v6751 = vrot.slane %v6747, 5
        %v6754 = vadd.f32 %v6736, %v6750
        %v6755 = vadd.f32 %v6737, %v6751
        %6756 = vset.pattern.permute.xlu0 6
        %6757 = vperm.xlu0 %6756, %v6653
        %v6758 = vpop.permute.xlu0 %6757
        %v6760 = vlaneseq
        %v6761 = vshrl.u32 %v6760, 7
        %v6762 = vsub.s32 0, %v6761
        %v6763 = vrot.slane %v6758, %v6762
        %v6764 = vmul.f32 %v6763, %v6649
        %v6765 = vmul.f32 %v6763, %v6650
        %v6768 = vrot.slane %v6764, 6
        %v6769 = vrot.slane %v6765, 6
        %v6772 = vadd.f32 %v6754, %v6768
        %v6773 = vadd.f32 %v6755, %v6769
        %6774 = vset.pattern.permute.xlu0 7
        %6775 = vperm.xlu0 %6774, %v6653
        %v6776 = vpop.permute.xlu0 %6775
        %v6778 = vlaneseq
        %v6779 = vshrl.u32 %v6778, 7
        %v6780 = vsub.s32 0, %v6779
        %v6781 = vrot.slane %v6776, %v6780
        %v6782 = vmul.f32 %v6781, %v6649
        %v6783 = vmul.f32 %v6781, %v6650
        %v6786 = vrot.slane %v6782, 7
        %v6787 = vrot.slane %v6783, 7
        %v6790 = vadd.f32 %v6772, %v6786
        %v6791 = vadd.f32 %v6773, %v6787
        %6792 = vset.pattern.permute.xlu0 8
        %6793 = vperm.xlu0 %6792, %v6653
        %v6794 = vpop.permute.xlu0 %6793
        %v6796 = vlaneseq
        %v6797 = vshrl.u32 %v6796, 7
        %v6798 = vsub.s32 0, %v6797
        %v6799 = vrot.slane %v6794, %v6798
        %v6800 = vmul.f32 %v6799, %v6651
        %v6801 = vmul.f32 %v6799, %v6652
        %v6802 = vadd.f32 %v6790, %v6800
        %v6803 = vadd.f32 %v6791, %v6801
        %6804 = vset.pattern.permute.xlu0 9
        %6805 = vperm.xlu0 %6804, %v6653
        %v6806 = vpop.permute.xlu0 %6805
        %v6808 = vlaneseq
        %v6809 = vshrl.u32 %v6808, 7
        %v6810 = vsub.s32 0, %v6809
        %v6811 = vrot.slane %v6806, %v6810
        %v6812 = vmul.f32 %v6811, %v6651
        %v6813 = vmul.f32 %v6811, %v6652
        %v6816 = vrot.slane %v6812, 1
        %v6817 = vrot.slane %v6813, 1
        %v6820 = vadd.f32 %v6802, %v6816
        %v6821 = vadd.f32 %v6803, %v6817
        %6822 = vset.pattern.permute.xlu0 10
        %6823 = vperm.xlu0 %6822, %v6653
        %v6824 = vpop.permute.xlu0 %6823
        %v6826 = vlaneseq
        %v6827 = vshrl.u32 %v6826, 7
        %v6828 = vsub.s32 0, %v6827
        %v6829 = vrot.slane %v6824, %v6828
        %v6830 = vmul.f32 %v6829, %v6651
        %v6831 = vmul.f32 %v6829, %v6652
        %v6834 = vrot.slane %v6830, 2
        %v6835 = vrot.slane %v6831, 2
        %v6838 = vadd.f32 %v6820, %v6834
        %v6839 = vadd.f32 %v6821, %v6835
        %6840 = vset.pattern.permute.xlu0 11
        %6841 = vperm.xlu0 %6840, %v6653
        %v6842 = vpop.permute.xlu0 %6841
        %v6844 = vlaneseq
        %v6845 = vshrl.u32 %v6844, 7
        %v6846 = vsub.s32 0, %v6845
        %v6847 = vrot.slane %v6842, %v6846
        %v6848 = vmul.f32 %v6847, %v6651
        %v6849 = vmul.f32 %v6847, %v6652
        %v6852 = vrot.slane %v6848, 3
        %v6853 = vrot.slane %v6849, 3
        %v6856 = vadd.f32 %v6838, %v6852
        %v6857 = vadd.f32 %v6839, %v6853
        %6858 = vset.pattern.permute.xlu0 12
        %6859 = vperm.xlu0 %6858, %v6653
        %v6860 = vpop.permute.xlu0 %6859
        %v6862 = vlaneseq
        %v6863 = vshrl.u32 %v6862, 7
        %v6864 = vsub.s32 0, %v6863
        %v6865 = vrot.slane %v6860, %v6864
        %v6866 = vmul.f32 %v6865, %v6651
        %v6867 = vmul.f32 %v6865, %v6652
        %v6870 = vrot.slane %v6866, 4
        %v6871 = vrot.slane %v6867, 4
        %v6874 = vadd.f32 %v6856, %v6870
        %v6875 = vadd.f32 %v6857, %v6871
        %6876 = vset.pattern.permute.xlu0 13
        %6877 = vperm.xlu0 %6876, %v6653
        %v6878 = vpop.permute.xlu0 %6877
        %v6880 = vlaneseq
        %v6881 = vshrl.u32 %v6880, 7
        %v6882 = vsub.s32 0, %v6881
        %v6883 = vrot.slane %v6878, %v6882
        %v6884 = vmul.f32 %v6883, %v6651
        %v6885 = vmul.f32 %v6883, %v6652
        %v6888 = vrot.slane %v6884, 5
        %v6889 = vrot.slane %v6885, 5
        %v6892 = vadd.f32 %v6874, %v6888
        %v6893 = vadd.f32 %v6875, %v6889
        %6894 = vset.pattern.permute.xlu0 14
        %6895 = vperm.xlu0 %6894, %v6653
        %v6896 = vpop.permute.xlu0 %6895
        %v6898 = vlaneseq
        %v6899 = vshrl.u32 %v6898, 7
        %v6900 = vsub.s32 0, %v6899
        %v6901 = vrot.slane %v6896, %v6900
        %v6902 = vmul.f32 %v6901, %v6651
        %v6903 = vmul.f32 %v6901, %v6652
        %v6906 = vrot.slane %v6902, 6
        %v6907 = vrot.slane %v6903, 6
        %v6910 = vadd.f32 %v6892, %v6906
        %v6911 = vadd.f32 %v6893, %v6907
        %6912 = vset.pattern.permute.xlu0 15
        %6913 = vperm.xlu0 %6912, %v6653
        %v6914 = vpop.permute.xlu0 %6913
        %v6916 = vlaneseq
        %v6917 = vshrl.u32 %v6916, 7
        %v6918 = vsub.s32 0, %v6917
        %v6919 = vrot.slane %v6914, %v6918
        %v6920 = vmul.f32 %v6919, %v6651
        %v6921 = vmul.f32 %v6919, %v6652
        %v6924 = vrot.slane %v6920, 7
        %v6925 = vrot.slane %v6921, 7
        %v6928 = vadd.f32 %v6910, %v6924
        %v6929 = vadd.f32 %v6911, %v6925
        %6931 = vset.pattern.permute.xlu0 0
        %6932 = vperm.xlu0 %6931, %v6654
        %v6933 = vpop.permute.xlu0 %6932
        %v6935 = vlaneseq
        %v6936 = vshrl.u32 %v6935, 7
        %v6937 = vsub.s32 0, %v6936
        %v6938 = vrot.slane %v6933, %v6937
        %v6939 = vadd.f32 %v6928, %v6938
        %v6940 = vadd.f32 %v6929, %v6938
        %v6943 = vcombine.low %v6939, %v6940
        %v6945 = vunpack.c.l.s4 1966171168
        %v6946 = vunpack.c.0.s8 %v6945
        %v6947 = vlaneseq
        %v6948 = vshrl.u32 %v6947, 7
        %v6949 = vsub.s32 %v6946, %v6948
        %v6950 = vrot.slane %v6943, %v6949
        %v6952 = vunpack.c.l.s4 1966171168
        %v6953 = vunpack.c.0.s8 %v6952
        %v6954 = vlaneseq
        %v6955 = vshrl.u32 %v6954, 7
        %v6956 = vsub.s32 %v6953, %v6955
        %v6957 = vrot.slane %v6950, %v6956
        %v6959 = vlaneseq
        %vm6960 = vcmp.ge.s32.totalorder %v6959, 0
        %vm6961 = vcmp.lt.s32.totalorder %v6959, 256
        %vm6962 = vmand %vm6960, %vm6961
        %6963 = vst.msk [vmem:[%s1142] sm:$0x3] %vm6962, %v6957
        %p6964 = scmp.lt.s32.totalorder %s80, 1
        %s6965 = scalar_select %p6964, %s80, 1
        %s6966 = smul.addr %s6965, 2
        %s6967 = scalar_lea.vmem %s59, %s6966
        // Predicated region
        $region197: #{detail_enhancement_forward.1} parent=135 // pred_check
          %p6968 = pneg %p722
        $region198: #{detail_enhancement_forward.1} parent=135 // pred_check_branch
          %6970 = sbr.rel (%p6968) target = $region200
        $region199: #{detail_enhancement_forward.1} parent=135 // pred_region
          _
        $region200: #{detail_enhancement_forward.1} parent=135 // pred_fallthru
          _
      $region136: #{detail_enhancement_forward.1} parent=5 // pred_fallthru
        _
      %p6971 = scmp.le.s32.totalorder 2, %s75
      // Predicated region
      $region201: #{detail_enhancement_forward.1} parent=5 // pred_check
        %p6972 = pneg %p6971
      $region202: #{detail_enhancement_forward.1} parent=5 // pred_check_branch
        %6974 = sbr.rel (%p6972) target = $region204
      $region203: #{detail_enhancement_forward.1} parent=5 // pred_region
        %s6975 = ssub.s32 %s75, 2
        // Predicated region
        $region205: #{detail_enhancement_forward.1} parent=203 // pred_check
          %p6976 = pneg %p728
        $region206: #{detail_enhancement_forward.1} parent=203 // pred_check_branch
          %6978 = sbr.rel (%p6976) target = $region208
        $region207: #{detail_enhancement_forward.1} parent=203 // pred_region
          %p6979 = scmp.lt.s32.totalorder %s81, 1
          %s6980 = scalar_select %p6979, %s81, 1
          %s6981 = smul.addr %s6980, 2
          %s6982 = scalar_lea.vmem %s59, %s6981
        $region208: #{detail_enhancement_forward.1} parent=203 // pred_fallthru
          _
      $region204: #{detail_enhancement_forward.1} parent=5 // pred_fallthru
        _
    $region6: #{detail_enhancement_forward.1} parent=1 // loop_footer
      %s79 = sadd.s32 1, %s75
    $region7: #{detail_enhancement_forward.1} parent=1 // loop_footer_branch
      %74 = sbr.rel target = $region3
    $region8: #{detail_enhancement_forward.1} parent=1 // loop_exit
      _
    %6983 = vsyncpa [#allocation4], 1
    %s6984 = scalar_lea.sflag [#allocation4], 1
    %6985 = vsyncpa %s6984, 1
    %6986 = vsyncpa [#allocation6], 1
    %6987 = vsyncpa [#allocation9], 1
    %6988 = vsyncpa [#allocation12], 1
    %6989 = vsyncpa [#allocation15], 1
    %6990 = vsyncpa [#allocation18], 1
    %6991 = vsyncpa [#allocation21], 1
    %6992 = vsyncpa [#allocation24], 1

</llo_original>
